<compile_context>
chip_gen: v6e
topology: v6e:2x2x1
jax: 0.10.0
libtpu: 0.0.40
codegen_flags: <defaults>
</compile_context>

<pallas_src>
import jax
import jax.numpy as jnp
from jax.experimental import pallas as pl
from jax.experimental.pallas import tpu as pltpu

_BN_EPS = 1e-5
_VMEM_LIMIT = 32 * 1024 * 1024   # explicit scoped-VMEM limit (v5e default = 16 MiB)


def _pair(v):
    return tuple(v) if isinstance(v, (tuple, list)) else (v, v)


# ----------------------------------------------------------------------------
# Pallas kernels (bf16 in, f32 accumulate + epilogue, bf16/f32 out)
# ----------------------------------------------------------------------------
def _conv_bn_prelu_kernel(p_ref, w_ref, shift_ref, alpha_ref, o_ref):
    acc = jnp.dot(p_ref[...], w_ref[...], preferred_element_type=jnp.float32)
    y = acc + shift_ref[...]                       # broadcast (1, N) BN shift
    y = jnp.where(y >= 0.0, y, alpha_ref[...] * y)
    o_ref[...] = y.astype(o_ref.dtype)


def _conv_bn_prelu_res_kernel(p_ref, w_ref, shift_ref, alpha_ref,
                              falpha_ref, res_ref, o_ref):
    acc = jnp.dot(p_ref[...], w_ref[...], preferred_element_type=jnp.float32)
    y = acc + shift_ref[...]
    y = jnp.where(y >= 0.0, y, alpha_ref[...] * y)          # conv's own PReLU
    z = y + res_ref[...].astype(jnp.float32)                # bf16 residual, VPU upcast
    z = jnp.where(z >= 0.0, z, falpha_ref[...] * z)         # final PReLU
    o_ref[...] = z.astype(o_ref.dtype)


def _choose_tm(M):
    # Small layers: single whole block.  Large layers: >=4 blocks (feeds both
    # v7x TensorCores), tile up to 1024 rows, multiple of 8 (sublane).
    if M <= 512:
        return M
    tm = max(256, min(1024, pl.cdiv(M, 4)))
    return ((tm + 7) // 8) * 8


def _fused_matmul(patches, w_mat, shift, alpha, final_alpha=None,
                  residual=None, out_dtype=jnp.bfloat16):
    """Tiled (M,K)@(K,N) + BN-shift + PReLU (+ optional residual + PReLU)."""
    M, K = patches.shape
    N = w_mat.shape[1]
    TM = _choose_tm(M)
    grid = (pl.cdiv(M, TM),)

    row_spec = pl.BlockSpec((TM, K), lambda i: (i, 0))
    w_spec = pl.BlockSpec((K, N), lambda i: (0, 0))      # resident across grid
    vec_spec = pl.BlockSpec((1, N), lambda i: (0, 0))
    out_spec = pl.BlockSpec((TM, N), lambda i: (i, 0))
    cp = pltpu.CompilerParams(dimension_semantics=("parallel",),
                              vmem_limit_bytes=_VMEM_LIMIT)

    if residual is None:
        return pl.pallas_call(
            _conv_bn_prelu_kernel,
            out_shape=jax.ShapeDtypeStruct((M, N), out_dtype),
            grid=grid,
            in_specs=[row_spec, w_spec, vec_spec, vec_spec],
            out_specs=out_spec,
            compiler_params=cp,
        )(patches, w_mat, shift, alpha)

    res_spec = pl.BlockSpec((TM, N), lambda i: (i, 0))
    return pl.pallas_call(
        _conv_bn_prelu_res_kernel,
        out_shape=jax.ShapeDtypeStruct((M, N), out_dtype),
        grid=grid,
        in_specs=[row_spec, w_spec, vec_spec, vec_spec, vec_spec, res_spec],
        out_specs=out_spec,
        compiler_params=cp,
    )(patches, w_mat, shift, alpha, final_alpha, residual)


# ----------------------------------------------------------------------------
# Convolution glue (NHWC im2col; all compute stays inside the Pallas kernel)
# ----------------------------------------------------------------------------
def _im2col(x_nhwc, kh, kw, sh, sw, ph, pw, dh, dw):
    N, H, W, C = x_nhwc.shape
    xp = x_nhwc
    if ph or pw:
        xp = jnp.pad(xp, ((0, 0), (ph, ph), (pw, pw), (0, 0)))
    Hp, Wp = H + 2 * ph, W + 2 * pw
    OH = (Hp - dh * (kh - 1) - 1) // sh + 1
    OW = (Wp - dw * (kw - 1) - 1) // sw + 1
    if kh == 1 and kw == 1 and sh == 1 and sw == 1:
        # 1x1 stride-1 conv: pure reshape, no patch materialization.
        return xp.reshape(N * OH * OW, C), OH, OW
    cols = []
    for i in range(kh):
        r0 = i * dh
        for j in range(kw):
            c0 = j * dw
            cols.append(xp[:, r0:r0 + (OH - 1) * sh + 1:sh,
                           c0:c0 + (OW - 1) * sw + 1:sw, :])
    patches = jnp.stack(cols, axis=3)            # (N, OH, OW, kh*kw, C)
    return patches.reshape(N * OH * OW, kh * kw * C), OH, OW


def _conv_core(x_nhwc, p, kh, kw, stride, padding, dilation=1,
               residual_nhwc=None, final_alpha=None, out_dtype=jnp.bfloat16):
    sh, sw = _pair(stride)
    ph, pw = _pair(padding)
    dh, dw = _pair(dilation)
    N = x_nhwc.shape[0]
    x_bf = x_nhwc.astype(jnp.bfloat16)           # no-op when already bf16
    patches, OH, OW = _im2col(x_bf, kh, kw, sh, sw, ph, pw, dh, dw)
    Cout = p["w_mat"].shape[1]
    if residual_nhwc is None:
        out = _fused_matmul(patches, p["w_mat"], p["shift"], p["alpha"],
                            out_dtype=out_dtype)
    else:
        res2d = residual_nhwc.reshape(N * OH * OW, Cout)     # native bf16
        out = _fused_matmul(patches, p["w_mat"], p["shift"], p["alpha"],
                            final_alpha, res2d, out_dtype=out_dtype)
    return out.reshape(N, OH, OW, Cout)


def conv_bn_prelu(x, p, kh, kw, stride, padding, dilation=1):
    return _conv_core(x, p, kh, kw, stride, padding, dilation)


def convtransposed2d_3x3_s2(x, p, out_dtype=jnp.bfloat16):
    """ConvTranspose2d(k=3, s=2, p=1, output_padding=1) as 4 sub-pixel phases.

    out[2i+a, 2j+b] is a tiny stride-1 conv (1x1 / 1x2 / 2x1 / 2x2) of the
    un-dilated input -- no zero-stuffing, ~4x less patch traffic and flops.
    """
    N, H, W, C = x.shape
    xr = jnp.pad(x, ((0, 0), (0, 0), (0, 1), (0, 0)))
    xb = jnp.pad(x, ((0, 0), (0, 1), (0, 0), (0, 0)))
    xbr = jnp.pad(x, ((0, 0), (0, 1), (0, 1), (0, 0)))
    y00 = _conv_core(x, p["p00"], 1, 1, 1, 0, out_dtype=out_dtype)
    y01 = _conv_core(xr, p["p01"], 1, 2, 1, 0, out_dtype=out_dtype)
    y10 = _conv_core(xb, p["p10"], 2, 1, 1, 0, out_dtype=out_dtype)
    y11 = _conv_core(xbr, p["p11"], 2, 2, 1, 0, out_dtype=out_dtype)
    Cout = y00.shape[-1]
    y = jnp.stack([y00, y01, y10, y11], axis=3)          # (N,H,W,4,Cout)
    y = y.reshape(N, H, W, 2, 2, Cout)
    y = jnp.transpose(y, (0, 1, 3, 2, 4, 5)).reshape(N, 2 * H, 2 * W, Cout)
    return y


# ----------------------------------------------------------------------------
# Pooling glue (NHWC; matches the PyTorch flat H*W index convention)
# ----------------------------------------------------------------------------
def maxpool2x2_with_indices(x):
    N, H, W, C = x.shape
    xr = x.reshape(N, H // 2, 2, W // 2, 2, C)
    xr = jnp.transpose(xr, (0, 1, 3, 2, 4, 5)).reshape(N, H // 2, W // 2, 4, C)
    vals = jnp.max(xr, axis=3)
    arg = jnp.argmax(xr, axis=3)                 # 0..3, row-major in window
    di = arg // 2
    dj = arg % 2
    oh = jnp.arange(H // 2)[None, :, None, None]
    ow = jnp.arange(W // 2)[None, None, :, None]
    idx = (2 * oh + di) * W + (2 * ow + dj)
    return vals, idx.astype(jnp.int32)


def max_unpool2x2(x, indices, out_hw):
    """Scatter-free MaxUnpool2d: decode window parity, one-hot expand."""
    N, H, W, C = x.shape
    OH, OW = out_hw
    h = jnp.arange(H).reshape(1, H, 1, 1)
    w = jnp.arange(W).reshape(1, 1, W, 1)
    di = indices // OW - 2 * h                   # in {0,1}
    dj = indices % OW - 2 * w                    # in {0,1}
    a = jnp.arange(2).reshape(1, 1, 2, 1, 1, 1)
    b = jnp.arange(2).reshape(1, 1, 1, 1, 2, 1)
    mask = (di[:, :, None, :, None, :] == a) & (dj[:, :, None, :, None, :] == b)
    xe = x[:, :, None, :, None, :]
    out = jnp.where(mask, xe, jnp.zeros((), x.dtype))
    return out.reshape(N, OH, OW, C)


# ----------------------------------------------------------------------------
# Parameter initialization (deterministic, synthetic; BN scale folded once)
# ----------------------------------------------------------------------------
class ParamGen:
    def __init__(self, key):
        self.key = key

    def normal(self, shape, scale=0.1):
        self.key, sub = jax.random.split(self.key)
        return scale * jax.random.normal(sub, shape, jnp.float32)


def _fold_conv(w_oihw, scale, shift, alpha_val):
    cout, cin, kh, kw = w_oihw.shape
    w_mat = jnp.transpose(w_oihw, (2, 3, 1, 0)).reshape(kh * kw * cin, cout)
    w_mat = (w_mat * scale[None, :]).astype(jnp.bfloat16)   # fold BN scale
    return dict(w_mat=w_mat,
                shift=shift.reshape(1, cout).astype(jnp.float32),
                alpha=jnp.full((1, cout), alpha_val, jnp.float32))


def conv_bn_prelu_params(pg, cin, cout, kh, kw):
    w = pg.normal((cout, cin, kh, kw))
    gamma = 1.0 + pg.normal((cout,), 0.05)
    beta = pg.normal((cout,), 0.05)
    scale = gamma / jnp.sqrt(1.0 + _BN_EPS)      # eval BN: mean=0, var=1
    return _fold_conv(w, scale, beta, 0.25)


def _convT_phase_params(w_ciokk, scale, shift, alpha_val):
    """Build the four sub-pixel phase weights for ConvT(k=3,s=2,p=1,op=1)."""
    wf = jnp.transpose(w_ciokk, (1, 0, 2, 3))    # (Cout, Cin, kh, kw)

    def tap(kh_, kw_):
        return wf[:, :, kh_:kh_ + 1, kw_:kw_ + 1]

    p00 = tap(1, 1)                                                   # 1x1
    p01 = jnp.concatenate([tap(1, 2), tap(1, 0)], axis=3)             # 1x2
    p10 = jnp.concatenate([tap(2, 1), tap(0, 1)], axis=2)             # 2x1
    p11 = jnp.concatenate([jnp.concatenate([tap(2, 2), tap(2, 0)], axis=3),
                           jnp.concatenate([tap(0, 2), tap(0, 0)], axis=3)],
                          axis=2)                                      # 2x2
    return dict(p00=_fold_conv(p00, scale, shift, alpha_val),
                p01=_fold_conv(p01, scale, shift, alpha_val),
                p10=_fold_conv(p10, scale, shift, alpha_val),
                p11=_fold_conv(p11, scale, shift, alpha_val))


def convT_bn_prelu_params(pg, cin, cout):
    w = pg.normal((cin, cout, 3, 3))             # PyTorch ConvTranspose layout
    gamma = 1.0 + pg.normal((cout,), 0.05)
    beta = pg.normal((cout,), 0.05)
    scale = gamma / jnp.sqrt(1.0 + _BN_EPS)
    return _convT_phase_params(w, scale, beta, 0.25)


def final_convT_params(pg, cin, cout):
    # ConvTranspose2d with bias, no BN / PReLU (alpha=1 -> identity PReLU).
    w = pg.normal((cin, cout, 3, 3))
    bias = pg.normal((cout,), 0.05)
    return _convT_phase_params(w, jnp.ones((cout,), jnp.float32), bias, 1.0)


def bottleneck_params(pg, in_ch, kernel_size, asymmetric):
    mid = in_ch // 4
    p = dict(reduce=conv_bn_prelu_params(pg, in_ch, mid, 1, 1),
             increase=conv_bn_prelu_params(pg, mid, in_ch, 1, 1),
             final_alpha=jnp.full((1, in_ch), 0.25, jnp.float32))
    if asymmetric:
        p["main1"] = conv_bn_prelu_params(pg, mid, mid, kernel_size, 1)
        p["main2"] = conv_bn_prelu_params(pg, mid, mid, 1, kernel_size)
    else:
        p["main"] = conv_bn_prelu_params(pg, mid, mid, kernel_size, kernel_size)
    return p


def downsampling_params(pg, in_ch, out_ch):
    mid = in_ch // 4
    return dict(reduce=conv_bn_prelu_params(pg, in_ch, mid, 2, 2),
                main=conv_bn_prelu_params(pg, mid, mid, 3, 3),
                increase=conv_bn_prelu_params(pg, mid, out_ch, 1, 1),
                final_alpha=jnp.full((1, out_ch), 0.25, jnp.float32))


def upsampling_params(pg, in_ch, out_ch):
    mid = out_ch // 4
    return dict(reduce=conv_bn_prelu_params(pg, in_ch, mid, 1, 1),
                main=convT_bn_prelu_params(pg, mid, mid),
                increase=conv_bn_prelu_params(pg, mid, out_ch, 1, 1),
                shortcut=conv_bn_prelu_params(pg, in_ch, out_ch, 1, 1),
                final_alpha=jnp.full((1, out_ch), 0.25, jnp.float32))


STAGE23_CFG = [
    # (kernel_size, stride, padding, dilation, asymmetric)
    (3, 1, 1, 1, False),
    (3, 1, 2, 2, False),
    (5, 1, 2, 1, True),
    (3, 1, 4, 4, False),
    (3, 1, 1, 1, False),
    (3, 1, 8, 8, False),
    (5, 1, 2, 1, True),
    (3, 1, 16, 16, False),
] * 2


def init_enet_params(key, num_classes, in_channels=3):
    pg = ParamGen(key)
    params = {}
    params["initial"] = conv_bn_prelu_params(pg, in_channels, 13, 3, 3)
    params["stage1_down"] = downsampling_params(pg, 16, 64)
    params["stage1_bottlenecks"] = [bottleneck_params(pg, 64, 3, False)
                                    for _ in range(4)]
    params["stage2_down"] = downsampling_params(pg, 64, 128)
    params["stages2and3"] = [bottleneck_params(pg, 128, k, asym)
                             for (k, _, _, _, asym) in STAGE23_CFG]
    params["stage4_up"] = upsampling_params(pg, 128, 64)
    params["stage4_bottlenecks"] = [bottleneck_params(pg, 64, 3, False)
                                    for _ in range(2)]
    params["stage5_up"] = upsampling_params(pg, 64, 16)
    params["stage5_bottleneck"] = bottleneck_params(pg, 16, 3, False)
    params["final"] = final_convT_params(pg, 16, num_classes)
    return params


# ----------------------------------------------------------------------------
# Forward passes (all NHWC, all activations bf16)
# ----------------------------------------------------------------------------
def initial_block_forward(p, x):
    conv = conv_bn_prelu(x, p, 3, 3, stride=2, padding=1)
    pool, _ = maxpool2x2_with_indices(x)
    return jnp.concatenate([conv, pool], axis=-1)


def bottleneck_forward(p, x, kernel_size, padding, dilation, asymmetric):
    cb = conv_bn_prelu(x, p["reduce"], 1, 1, stride=1, padding=0)
    if asymmetric:
        cb = conv_bn_prelu(cb, p["main1"], kernel_size, 1, stride=1,
                           padding=(padding, 0), dilation=dilation)
        cb = conv_bn_prelu(cb, p["main2"], 1, kernel_size, stride=1,
                           padding=(0, padding), dilation=dilation)
    else:
        cb = conv_bn_prelu(cb, p["main"], kernel_size, kernel_size, stride=1,
                           padding=padding, dilation=dilation)
    # Dropout2d is identity in eval mode. The increase 1x1 conv fuses its
    # BN + PReLU, the residual add and the final PReLU in one Pallas kernel.
    return _conv_core(cb, p["increase"], 1, 1, 1, 0, 1,
                      residual_nhwc=x, final_alpha=p["final_alpha"])


def downsampling_forward(p, x):
    cb = conv_bn_prelu(x, p["reduce"], 2, 2, stride=2, padding=0)
    cb = conv_bn_prelu(cb, p["main"], 3, 3, stride=1, padding=1)
    shortcut, pool_idx = maxpool2x2_with_indices(x)
    c_in = x.shape[-1]
    c_out = p["increase"]["w_mat"].shape[1]
    shortcut = jnp.pad(shortcut, ((0, 0), (0, 0), (0, 0), (0, c_out - c_in)))
    out = _conv_core(cb, p["increase"], 1, 1, 1, 0, 1,
                     residual_nhwc=shortcut, final_alpha=p["final_alpha"])
    return out, pool_idx


def upsampling_forward(p, x, pool_indices):
    cb = conv_bn_prelu(x, p["reduce"], 1, 1, stride=1, padding=0)
    cb = convtransposed2d_3x3_s2(cb, p["main"])
    shortcut = conv_bn_prelu(x, p["shortcut"], 1, 1, stride=1, padding=0)
    OH, OW = x.shape[1] * 2, x.shape[2] * 2
    shortcut = max_unpool2x2(shortcut, pool_indices, (OH, OW))
    return _conv_core(cb, p["increase"], 1, 1, 1, 0, 1,
                      residual_nhwc=shortcut, final_alpha=p["final_alpha"])


def enet_forward(params, x_nchw):
    x = jnp.transpose(x_nchw, (0, 2, 3, 1))          # NCHW -> NHWC (once)
    x = x.astype(jnp.bfloat16)                        # bf16 activations (once)
    x = initial_block_forward(params["initial"], x)
    x, idx1 = downsampling_forward(params["stage1_down"], x)
    for p in params["stage1_bottlenecks"]:
        x = bottleneck_forward(p, x, 3, 1, 1, False)
    x, idx2 = downsampling_forward(params["stage2_down"], x)
    for p, (k, _, pad, dil, asym) in zip(params["stages2and3"], STAGE23_CFG):
        x = bottleneck_forward(p, x, k, pad, dil, asym)
    x = upsampling_forward(params["stage4_up"], x, idx2)
    for p in params["stage4_bottlenecks"]:
        x = bottleneck_forward(p, x, 3, 1, 1, False)
    x = upsampling_forward(params["stage5_up"], x, idx1)
    x = bottleneck_forward(params["stage5_bottleneck"], x, 3, 1, 1, False)
    x = convtransposed2d_3x3_s2(x, params["final"], out_dtype=jnp.float32)
    return jnp.transpose(x, (0, 3, 1, 2))            # NHWC -> NCHW (once)


# ----------------------------------------------------------------------------
if __name__ == "__main__":
    num_classes = 4
    key = jax.random.PRNGKey(0)
    pkey, xkey = jax.random.split(key)
    params = init_enet_params(pkey, num_classes, in_channels=3)
    x = jax.random.normal(xkey, (2, 3, 16, 16), jnp.float32)  # NCHW input

    fwd = jax.jit(enet_forward)
    out = jax.block_until_ready(fwd(params, x))
    assert out.shape == (2, num_classes, 16, 16), out.shape
    assert out.dtype == jnp.float32, out.dtype
    assert bool(jnp.all(jnp.isfinite(out)))
    print("KERNEL_OK")
</pallas_src>

<mosaic_0001>
module attributes {stable_mosaic.version = 11 : i64} {
  func.func @_conv_bn_prelu_kernel(%arg0: i32, %arg1: memref<128x27xbf16, #tpu.memory_space<vmem>>, %arg2: memref<27x13xbf16, #tpu.memory_space<vmem>>, %arg3: memref<1x13xf32, #tpu.memory_space<vmem>>, %arg4: memref<1x13xf32, #tpu.memory_space<vmem>>, %arg5: memref<128x13xbf16, #tpu.memory_space<vmem>>) attributes {dimension_semantics = [#tpu.dimension_semantics<parallel>], iteration_bounds = array<i64: 1>, scalar_prefetch = 0 : i64, scratch_operands = 0 : i64, tpu.core_type = #tpu.core_type<tc>, window_params = [{transform_indices = @transform_0, window_bounds = array<i64: 128, 27>}, {pipeline_mode = #tpu.pipeline_mode<synchronous>, transform_indices = @transform_1, window_bounds = array<i64: 27, 13>}, {pipeline_mode = #tpu.pipeline_mode<synchronous>, transform_indices = @transform_2, window_bounds = array<i64: 1, 13>}, {pipeline_mode = #tpu.pipeline_mode<synchronous>, transform_indices = @transform_3, window_bounds = array<i64: 1, 13>}, {transform_indices = @transform_4, window_bounds = array<i64: 128, 13>}]} {
    %c0 = arith.constant 0 : index
    %c0_0 = arith.constant 0 : index
    %0 = vector.load %arg1[%c0, %c0_0] : memref<128x27xbf16, #tpu.memory_space<vmem>>, vector<128x27xbf16>
    %c0_1 = arith.constant 0 : index
    %c0_2 = arith.constant 0 : index
    %1 = vector.load %arg2[%c0_1, %c0_2] : memref<27x13xbf16, #tpu.memory_space<vmem>>, vector<27x13xbf16>
    %cst = arith.constant dense<0.000000e+00> : vector<128x13xf32>
    %2 = tpu.matmul %0, %1, %cst {dimension_numbers = #tpu.dot_dimension_numbers<[1], [0], [0], [1], [0, 0, 1, 1], [], []>} : vector<128x27xbf16>, vector<27x13xbf16>, vector<128x13xf32> -> vector<128x13xf32>
    %c0_3 = arith.constant 0 : index
    %c0_4 = arith.constant 0 : index
    %3 = vector.load %arg3[%c0_3, %c0_4] : memref<1x13xf32, #tpu.memory_space<vmem>>, vector<1x13xf32>
    %4 = vector.broadcast %3 : vector<1x13xf32> to vector<128x13xf32>
    %5 = arith.addf %2, %4 : vector<128x13xf32>
    %cst_5 = arith.constant 0.000000e+00 : f32
    %6 = vector.broadcast %cst_5 : f32 to vector<128x13xf32>
    %7 = arith.cmpf oge, %5, %6 : vector<128x13xf32>
    %c0_6 = arith.constant 0 : index
    %c0_7 = arith.constant 0 : index
    %8 = vector.load %arg4[%c0_6, %c0_7] : memref<1x13xf32, #tpu.memory_space<vmem>>, vector<1x13xf32>
    %9 = vector.broadcast %8 : vector<1x13xf32> to vector<128x13xf32>
    %10 = arith.mulf %9, %5 : vector<128x13xf32>
    %11 = arith.select %7, %5, %10 : vector<128x13xi1>, vector<128x13xf32>
    %12 = arith.truncf %11 : vector<128x13xf32> to vector<128x13xbf16>
    %c0_8 = arith.constant 0 : index
    %c0_9 = arith.constant 0 : index
    %13 = vector.load %arg5[%c0_8, %c0_9] : memref<128x13xbf16, #tpu.memory_space<vmem>>, vector<128x13xbf16>
    tpu.vector_store %arg5[%c0_8, %c0_9], %12 {strides = array<i32>} : memref<128x13xbf16, #tpu.memory_space<vmem>>, vector<128x13xbf16>,
    return
  }
  func.func @transform_0(%arg0: i32) -> (i32, i32) {
    %c0_i32 = arith.constant 0 : i32
    %c0_i32_0 = arith.constant 0 : i32
    return %arg0, %c0_i32 : i32, i32
  }
  func.func @transform_1(%arg0: i32) -> (i32, i32) {
    %c0_i32 = arith.constant 0 : i32
    %c0_i32_0 = arith.constant 0 : i32
    %c0_i32_1 = arith.constant 0 : i32
    return %c0_i32, %c0_i32_0 : i32, i32
  }
  func.func @transform_2(%arg0: i32) -> (i32, i32) {
    %c0_i32 = arith.constant 0 : i32
    %c0_i32_0 = arith.constant 0 : i32
    %c0_i32_1 = arith.constant 0 : i32
    return %c0_i32, %c0_i32_0 : i32, i32
  }
  func.func @transform_3(%arg0: i32) -> (i32, i32) {
    %c0_i32 = arith.constant 0 : i32
    %c0_i32_0 = arith.constant 0 : i32
    %c0_i32_1 = arith.constant 0 : i32
    return %c0_i32, %c0_i32_0 : i32, i32
  }
  func.func @transform_4(%arg0: i32) -> (i32, i32) {
    %c0_i32 = arith.constant 0 : i32
    %c0_i32_0 = arith.constant 0 : i32
    return %arg0, %c0_i32 : i32, i32
  }
}

module attributes {stable_mosaic.version = 11 : i64} {
  func.func @_conv_bn_prelu_kernel(%arg0: i32, %arg1: memref<32x64xbf16, #tpu.memory_space<vmem>>, %arg2: memref<64x4xbf16, #tpu.memory_space<vmem>>, %arg3: memref<1x4xf32, #tpu.memory_space<vmem>>, %arg4: memref<1x4xf32, #tpu.memory_space<vmem>>, %arg5: memref<32x4xbf16, #tpu.memory_space<vmem>>) attributes {dimension_semantics = [#tpu.dimension_semantics<parallel>], iteration_bounds = array<i64: 1>, scalar_prefetch = 0 : i64, scratch_operands = 0 : i64, tpu.core_type = #tpu.core_type<tc>, window_params = [{transform_indices = @transform_0, window_bounds = array<i64: 32, 64>}, {pipeline_mode = #tpu.pipeline_mode<synchronous>, transform_indices = @transform_1, window_bounds = array<i64: 64, 4>}, {pipeline_mode = #tpu.pipeline_mode<synchronous>, transform_indices = @transform_2, window_bounds = array<i64: 1, 4>}, {pipeline_mode = #tpu.pipeline_mode<synchronous>, transform_indices = @transform_3, window_bounds = array<i64: 1, 4>}, {transform_indices = @transform_4, window_bounds = array<i64: 32, 4>}]} {
    %c0 = arith.constant 0 : index
    %c0_0 = arith.constant 0 : index
    %0 = vector.load %arg1[%c0, %c0_0] : memref<32x64xbf16, #tpu.memory_space<vmem>>, vector<32x64xbf16>
    %c0_1 = arith.constant 0 : index
    %c0_2 = arith.constant 0 : index
    %1 = vector.load %arg2[%c0_1, %c0_2] : memref<64x4xbf16, #tpu.memory_space<vmem>>, vector<64x4xbf16>
    %cst = arith.constant dense<0.000000e+00> : vector<32x4xf32>
    %2 = tpu.matmul %0, %1, %cst {dimension_numbers = #tpu.dot_dimension_numbers<[1], [0], [0], [1], [0, 0, 1, 1], [], []>} : vector<32x64xbf16>, vector<64x4xbf16>, vector<32x4xf32> -> vector<32x4xf32>
    %c0_3 = arith.constant 0 : index
    %c0_4 = arith.constant 0 : index
    %3 = vector.load %arg3[%c0_3, %c0_4] : memref<1x4xf32, #tpu.memory_space<vmem>>, vector<1x4xf32>
    %4 = vector.broadcast %3 : vector<1x4xf32> to vector<32x4xf32>
    %5 = arith.addf %2, %4 : vector<32x4xf32>
    %cst_5 = arith.constant 0.000000e+00 : f32
    %6 = vector.broadcast %cst_5 : f32 to vector<32x4xf32>
    %7 = arith.cmpf oge, %5, %6 : vector<32x4xf32>
    %c0_6 = arith.constant 0 : index
    %c0_7 = arith.constant 0 : index
    %8 = vector.load %arg4[%c0_6, %c0_7] : memref<1x4xf32, #tpu.memory_space<vmem>>, vector<1x4xf32>
    %9 = vector.broadcast %8 : vector<1x4xf32> to vector<32x4xf32>
    %10 = arith.mulf %9, %5 : vector<32x4xf32>
    %11 = arith.select %7, %5, %10 : vector<32x4xi1>, vector<32x4xf32>
    %12 = arith.truncf %11 : vector<32x4xf32> to vector<32x4xbf16>
    %c0_8 = arith.constant 0 : index
    %c0_9 = arith.constant 0 : index
    %13 = vector.load %arg5[%c0_8, %c0_9] : memref<32x4xbf16, #tpu.memory_space<vmem>>, vector<32x4xbf16>
    tpu.vector_store %arg5[%c0_8, %c0_9], %12 {strides = array<i32>} : memref<32x4xbf16, #tpu.memory_space<vmem>>, vector<32x4xbf16>,
    return
  }
  func.func @transform_0(%arg0: i32) -> (i32, i32) {
    %c0_i32 = arith.constant 0 : i32
    %c0_i32_0 = arith.constant 0 : i32
    return %arg0, %c0_i32 : i32, i32
  }
  func.func @transform_1(%arg0: i32) -> (i32, i32) {
    %c0_i32 = arith.constant 0 : i32
    %c0_i32_0 = arith.constant 0 : i32
    %c0_i32_1 = arith.constant 0 : i32
    return %c0_i32, %c0_i32_0 : i32, i32
  }
  func.func @transform_2(%arg0: i32) -> (i32, i32) {
    %c0_i32 = arith.constant 0 : i32
    %c0_i32_0 = arith.constant 0 : i32
    %c0_i32_1 = arith.constant 0 : i32
    return %c0_i32, %c0_i32_0 : i32, i32
  }
  func.func @transform_3(%arg0: i32) -> (i32, i32) {
    %c0_i32 = arith.constant 0 : i32
    %c0_i32_0 = arith.constant 0 : i32
    %c0_i32_1 = arith.constant 0 : i32
    return %c0_i32, %c0_i32_0 : i32, i32
  }
  func.func @transform_4(%arg0: i32) -> (i32, i32) {
    %c0_i32 = arith.constant 0 : i32
    %c0_i32_0 = arith.constant 0 : i32
    return %arg0, %c0_i32 : i32, i32
  }
}

module attributes {stable_mosaic.version = 11 : i64} {
  func.func @_conv_bn_prelu_kernel(%arg0: i32, %arg1: memref<32x36xbf16, #tpu.memory_space<vmem>>, %arg2: memref<36x4xbf16, #tpu.memory_space<vmem>>, %arg3: memref<1x4xf32, #tpu.memory_space<vmem>>, %arg4: memref<1x4xf32, #tpu.memory_space<vmem>>, %arg5: memref<32x4xbf16, #tpu.memory_space<vmem>>) attributes {dimension_semantics = [#tpu.dimension_semantics<parallel>], iteration_bounds = array<i64: 1>, scalar_prefetch = 0 : i64, scratch_operands = 0 : i64, tpu.core_type = #tpu.core_type<tc>, window_params = [{transform_indices = @transform_0, window_bounds = array<i64: 32, 36>}, {pipeline_mode = #tpu.pipeline_mode<synchronous>, transform_indices = @transform_1, window_bounds = array<i64: 36, 4>}, {pipeline_mode = #tpu.pipeline_mode<synchronous>, transform_indices = @transform_2, window_bounds = array<i64: 1, 4>}, {pipeline_mode = #tpu.pipeline_mode<synchronous>, transform_indices = @transform_3, window_bounds = array<i64: 1, 4>}, {transform_indices = @transform_4, window_bounds = array<i64: 32, 4>}]} {
    %c0 = arith.constant 0 : index
    %c0_0 = arith.constant 0 : index
    %0 = vector.load %arg1[%c0, %c0_0] : memref<32x36xbf16, #tpu.memory_space<vmem>>, vector<32x36xbf16>
    %c0_1 = arith.constant 0 : index
    %c0_2 = arith.constant 0 : index
    %1 = vector.load %arg2[%c0_1, %c0_2] : memref<36x4xbf16, #tpu.memory_space<vmem>>, vector<36x4xbf16>
    %cst = arith.constant dense<0.000000e+00> : vector<32x4xf32>
    %2 = tpu.matmul %0, %1, %cst {dimension_numbers = #tpu.dot_dimension_numbers<[1], [0], [0], [1], [0, 0, 1, 1], [], []>} : vector<32x36xbf16>, vector<36x4xbf16>, vector<32x4xf32> -> vector<32x4xf32>
    %c0_3 = arith.constant 0 : index
    %c0_4 = arith.constant 0 : index
    %3 = vector.load %arg3[%c0_3, %c0_4] : memref<1x4xf32, #tpu.memory_space<vmem>>, vector<1x4xf32>
    %4 = vector.broadcast %3 : vector<1x4xf32> to vector<32x4xf32>
    %5 = arith.addf %2, %4 : vector<32x4xf32>
    %cst_5 = arith.constant 0.000000e+00 : f32
    %6 = vector.broadcast %cst_5 : f32 to vector<32x4xf32>
    %7 = arith.cmpf oge, %5, %6 : vector<32x4xf32>
    %c0_6 = arith.constant 0 : index
    %c0_7 = arith.constant 0 : index
    %8 = vector.load %arg4[%c0_6, %c0_7] : memref<1x4xf32, #tpu.memory_space<vmem>>, vector<1x4xf32>
    %9 = vector.broadcast %8 : vector<1x4xf32> to vector<32x4xf32>
    %10 = arith.mulf %9, %5 : vector<32x4xf32>
    %11 = arith.select %7, %5, %10 : vector<32x4xi1>, vector<32x4xf32>
    %12 = arith.truncf %11 : vector<32x4xf32> to vector<32x4xbf16>
    %c0_8 = arith.constant 0 : index
    %c0_9 = arith.constant 0 : index
    %13 = vector.load %arg5[%c0_8, %c0_9] : memref<32x4xbf16, #tpu.memory_space<vmem>>, vector<32x4xbf16>
    tpu.vector_store %arg5[%c0_8, %c0_9], %12 {strides = array<i32>} : memref<32x4xbf16, #tpu.memory_space<vmem>>, vector<32x4xbf16>,
    return
  }
  func.func @transform_0(%arg0: i32) -> (i32, i32) {
    %c0_i32 = arith.constant 0 : i32
    %c0_i32_0 = arith.constant 0 : i32
    return %arg0, %c0_i32 : i32, i32
  }
  func.func @transform_1(%arg0: i32) -> (i32, i32) {
    %c0_i32 = arith.constant 0 : i32
    %c0_i32_0 = arith.constant 0 : i32
    %c0_i32_1 = arith.constant 0 : i32
    return %c0_i32, %c0_i32_0 : i32, i32
  }
  func.func @transform_2(%arg0: i32) -> (i32, i32) {
    %c0_i32 = arith.constant 0 : i32
    %c0_i32_0 = arith.constant 0 : i32
    %c0_i32_1 = arith.constant 0 : i32
    return %c0_i32, %c0_i32_0 : i32, i32
  }
  func.func @transform_3(%arg0: i32) -> (i32, i32) {
    %c0_i32 = arith.constant 0 : i32
    %c0_i32_0 = arith.constant 0 : i32
    %c0_i32_1 = arith.constant 0 : i32
    return %c0_i32, %c0_i32_0 : i32, i32
  }
  func.func @transform_4(%arg0: i32) -> (i32, i32) {
    %c0_i32 = arith.constant 0 : i32
    %c0_i32_0 = arith.constant 0 : i32
    return %arg0, %c0_i32 : i32, i32
  }
}

module attributes {stable_mosaic.version = 11 : i64} {
  func.func @_conv_bn_prelu_res_kernel(%arg0: i32, %arg1: memref<32x4xbf16, #tpu.memory_space<vmem>>, %arg2: memref<4x64xbf16, #tpu.memory_space<vmem>>, %arg3: memref<1x64xf32, #tpu.memory_space<vmem>>, %arg4: memref<1x64xf32, #tpu.memory_space<vmem>>, %arg5: memref<1x64xf32, #tpu.memory_space<vmem>>, %arg6: memref<32x64xbf16, #tpu.memory_space<vmem>>, %arg7: memref<32x64xbf16, #tpu.memory_space<vmem>>) attributes {dimension_semantics = [#tpu.dimension_semantics<parallel>], iteration_bounds = array<i64: 1>, scalar_prefetch = 0 : i64, scratch_operands = 0 : i64, tpu.core_type = #tpu.core_type<tc>, window_params = [{transform_indices = @transform_0, window_bounds = array<i64: 32, 4>}, {pipeline_mode = #tpu.pipeline_mode<synchronous>, transform_indices = @transform_1, window_bounds = array<i64: 4, 64>}, {pipeline_mode = #tpu.pipeline_mode<synchronous>, transform_indices = @transform_2, window_bounds = array<i64: 1, 64>}, {pipeline_mode = #tpu.pipeline_mode<synchronous>, transform_indices = @transform_3, window_bounds = array<i64: 1, 64>}, {pipeline_mode = #tpu.pipeline_mode<synchronous>, transform_indices = @transform_4, window_bounds = array<i64: 1, 64>}, {transform_indices = @transform_5, window_bounds = array<i64: 32, 64>}, {transform_indices = @transform_6, window_bounds = array<i64: 32, 64>}]} {
    %c0 = arith.constant 0 : index
    %c0_0 = arith.constant 0 : index
    %0 = vector.load %arg1[%c0, %c0_0] : memref<32x4xbf16, #tpu.memory_space<vmem>>, vector<32x4xbf16>
    %c0_1 = arith.constant 0 : index
    %c0_2 = arith.constant 0 : index
    %1 = vector.load %arg2[%c0_1, %c0_2] : memref<4x64xbf16, #tpu.memory_space<vmem>>, vector<4x64xbf16>
    %cst = arith.constant dense<0.000000e+00> : vector<32x64xf32>
    %2 = tpu.matmul %0, %1, %cst {dimension_numbers = #tpu.dot_dimension_numbers<[1], [0], [0], [1], [0, 0, 1, 1], [], []>} : vector<32x4xbf16>, vector<4x64xbf16>, vector<32x64xf32> -> vector<32x64xf32>
    %c0_3 = arith.constant 0 : index
    %c0_4 = arith.constant 0 : index
    %3 = vector.load %arg3[%c0_3, %c0_4] : memref<1x64xf32, #tpu.memory_space<vmem>>, vector<1x64xf32>
    %4 = vector.broadcast %3 : vector<1x64xf32> to vector<32x64xf32>
    %5 = arith.addf %2, %4 : vector<32x64xf32>
    %cst_5 = arith.constant 0.000000e+00 : f32
    %6 = vector.broadcast %cst_5 : f32 to vector<32x64xf32>
    %7 = arith.cmpf oge, %5, %6 : vector<32x64xf32>
    %c0_6 = arith.constant 0 : index
    %c0_7 = arith.constant 0 : index
    %8 = vector.load %arg4[%c0_6, %c0_7] : memref<1x64xf32, #tpu.memory_space<vmem>>, vector<1x64xf32>
    %9 = vector.broadcast %8 : vector<1x64xf32> to vector<32x64xf32>
    %10 = arith.mulf %9, %5 : vector<32x64xf32>
    %11 = arith.select %7, %5, %10 : vector<32x64xi1>, vector<32x64xf32>
    %c0_8 = arith.constant 0 : index
    %c0_9 = arith.constant 0 : index
    %12 = vector.load %arg6[%c0_8, %c0_9] : memref<32x64xbf16, #tpu.memory_space<vmem>>, vector<32x64xbf16>
    %13 = arith.extf %12 : vector<32x64xbf16> to vector<32x64xf32>
    %14 = arith.addf %11, %13 : vector<32x64xf32>
    %cst_10 = arith.constant 0.000000e+00 : f32
    %15 = vector.broadcast %cst_10 : f32 to vector<32x64xf32>
    %16 = arith.cmpf oge, %14, %15 : vector<32x64xf32>
    %c0_11 = arith.constant 0 : index
    %c0_12 = arith.constant 0 : index
    %17 = vector.load %arg5[%c0_11, %c0_12] : memref<1x64xf32, #tpu.memory_space<vmem>>, vector<1x64xf32>
    %18 = vector.broadcast %17 : vector<1x64xf32> to vector<32x64xf32>
    %19 = arith.mulf %18, %14 : vector<32x64xf32>
    %20 = arith.select %16, %14, %19 : vector<32x64xi1>, vector<32x64xf32>
    %21 = arith.truncf %20 : vector<32x64xf32> to vector<32x64xbf16>
    %c0_13 = arith.constant 0 : index
    %c0_14 = arith.constant 0 : index
    %22 = vector.load %arg7[%c0_13, %c0_14] : memref<32x64xbf16, #tpu.memory_space<vmem>>, vector<32x64xbf16>
    tpu.vector_store %arg7[%c0_13, %c0_14], %21 {strides = array<i32>} : memref<32x64xbf16, #tpu.memory_space<vmem>>, vector<32x64xbf16>,
    return
  }
  func.func @transform_0(%arg0: i32) -> (i32, i32) {
    %c0_i32 = arith.constant 0 : i32
    %c0_i32_0 = arith.constant 0 : i32
    return %arg0, %c0_i32 : i32, i32
  }
  func.func @transform_1(%arg0: i32) -> (i32, i32) {
    %c0_i32 = arith.constant 0 : i32
    %c0_i32_0 = arith.constant 0 : i32
    %c0_i32_1 = arith.constant 0 : i32
    return %c0_i32, %c0_i32_0 : i32, i32
  }
  func.func @transform_2(%arg0: i32) -> (i32, i32) {
    %c0_i32 = arith.constant 0 : i32
    %c0_i32_0 = arith.constant 0 : i32
    %c0_i32_1 = arith.constant 0 : i32
    return %c0_i32, %c0_i32_0 : i32, i32
  }
  func.func @transform_3(%arg0: i32) -> (i32, i32) {
    %c0_i32 = arith.constant 0 : i32
    %c0_i32_0 = arith.constant 0 : i32
    %c0_i32_1 = arith.constant 0 : i32
    return %c0_i32, %c0_i32_0 : i32, i32
  }
  func.func @transform_4(%arg0: i32) -> (i32, i32) {
    %c0_i32 = arith.constant 0 : i32
    %c0_i32_0 = arith.constant 0 : i32
    %c0_i32_1 = arith.constant 0 : i32
    return %c0_i32, %c0_i32_0 : i32, i32
  }
  func.func @transform_5(%arg0: i32) -> (i32, i32) {
    %c0_i32 = arith.constant 0 : i32
    %c0_i32_0 = arith.constant 0 : i32
    return %arg0, %c0_i32 : i32, i32
  }
  func.func @transform_6(%arg0: i32) -> (i32, i32) {
    %c0_i32 = arith.constant 0 : i32
    %c0_i32_0 = arith.constant 0 : i32
    return %arg0, %c0_i32 : i32, i32
  }
}

module attributes {stable_mosaic.version = 11 : i64} {
  func.func @_conv_bn_prelu_kernel(%arg0: i32, %arg1: memref<32x64xbf16, #tpu.memory_space<vmem>>, %arg2: memref<64x16xbf16, #tpu.memory_space<vmem>>, %arg3: memref<1x16xf32, #tpu.memory_space<vmem>>, %arg4: memref<1x16xf32, #tpu.memory_space<vmem>>, %arg5: memref<32x16xbf16, #tpu.memory_space<vmem>>) attributes {dimension_semantics = [#tpu.dimension_semantics<parallel>], iteration_bounds = array<i64: 1>, scalar_prefetch = 0 : i64, scratch_operands = 0 : i64, tpu.core_type = #tpu.core_type<tc>, window_params = [{transform_indices = @transform_0, window_bounds = array<i64: 32, 64>}, {pipeline_mode = #tpu.pipeline_mode<synchronous>, transform_indices = @transform_1, window_bounds = array<i64: 64, 16>}, {pipeline_mode = #tpu.pipeline_mode<synchronous>, transform_indices = @transform_2, window_bounds = array<i64: 1, 16>}, {pipeline_mode = #tpu.pipeline_mode<synchronous>, transform_indices = @transform_3, window_bounds = array<i64: 1, 16>}, {transform_indices = @transform_4, window_bounds = array<i64: 32, 16>}]} {
    %c0 = arith.constant 0 : index
    %c0_0 = arith.constant 0 : index
    %0 = vector.load %arg1[%c0, %c0_0] : memref<32x64xbf16, #tpu.memory_space<vmem>>, vector<32x64xbf16>
    %c0_1 = arith.constant 0 : index
    %c0_2 = arith.constant 0 : index
    %1 = vector.load %arg2[%c0_1, %c0_2] : memref<64x16xbf16, #tpu.memory_space<vmem>>, vector<64x16xbf16>
    %cst = arith.constant dense<0.000000e+00> : vector<32x16xf32>
    %2 = tpu.matmul %0, %1, %cst {dimension_numbers = #tpu.dot_dimension_numbers<[1], [0], [0], [1], [0, 0, 1, 1], [], []>} : vector<32x64xbf16>, vector<64x16xbf16>, vector<32x16xf32> -> vector<32x16xf32>
    %c0_3 = arith.constant 0 : index
    %c0_4 = arith.constant 0 : index
    %3 = vector.load %arg3[%c0_3, %c0_4] : memref<1x16xf32, #tpu.memory_space<vmem>>, vector<1x16xf32>
    %4 = vector.broadcast %3 : vector<1x16xf32> to vector<32x16xf32>
    %5 = arith.addf %2, %4 : vector<32x16xf32>
    %cst_5 = arith.constant 0.000000e+00 : f32
    %6 = vector.broadcast %cst_5 : f32 to vector<32x16xf32>
    %7 = arith.cmpf oge, %5, %6 : vector<32x16xf32>
    %c0_6 = arith.constant 0 : index
    %c0_7 = arith.constant 0 : index
    %8 = vector.load %arg4[%c0_6, %c0_7] : memref<1x16xf32, #tpu.memory_space<vmem>>, vector<1x16xf32>
    %9 = vector.broadcast %8 : vector<1x16xf32> to vector<32x16xf32>
    %10 = arith.mulf %9, %5 : vector<32x16xf32>
    %11 = arith.select %7, %5, %10 : vector<32x16xi1>, vector<32x16xf32>
    %12 = arith.truncf %11 : vector<32x16xf32> to vector<32x16xbf16>
    %c0_8 = arith.constant 0 : index
    %c0_9 = arith.constant 0 : index
    %13 = vector.load %arg5[%c0_8, %c0_9] : memref<32x16xbf16, #tpu.memory_space<vmem>>, vector<32x16xbf16>
    tpu.vector_store %arg5[%c0_8, %c0_9], %12 {strides = array<i32>} : memref<32x16xbf16, #tpu.memory_space<vmem>>, vector<32x16xbf16>,
    return
  }
  func.func @transform_0(%arg0: i32) -> (i32, i32) {
    %c0_i32 = arith.constant 0 : i32
    %c0_i32_0 = arith.constant 0 : i32
    return %arg0, %c0_i32 : i32, i32
  }
  func.func @transform_1(%arg0: i32) -> (i32, i32) {
    %c0_i32 = arith.constant 0 : i32
    %c0_i32_0 = arith.constant 0 : i32
    %c0_i32_1 = arith.constant 0 : i32
    return %c0_i32, %c0_i32_0 : i32, i32
  }
  func.func @transform_2(%arg0: i32) -> (i32, i32) {
    %c0_i32 = arith.constant 0 : i32
    %c0_i32_0 = arith.constant 0 : i32
    %c0_i32_1 = arith.constant 0 : i32
    return %c0_i32, %c0_i32_0 : i32, i32
  }
  func.func @transform_3(%arg0: i32) -> (i32, i32) {
    %c0_i32 = arith.constant 0 : i32
    %c0_i32_0 = arith.constant 0 : i32
    %c0_i32_1 = arith.constant 0 : i32
    return %c0_i32, %c0_i32_0 : i32, i32
  }
  func.func @transform_4(%arg0: i32) -> (i32, i32) {
    %c0_i32 = arith.constant 0 : i32
    %c0_i32_0 = arith.constant 0 : i32
    return %arg0, %c0_i32 : i32, i32
  }
}

module attributes {stable_mosaic.version = 11 : i64} {
  func.func @_conv_bn_prelu_kernel(%arg0: i32, %arg1: memref<32x144xbf16, #tpu.memory_space<vmem>>, %arg2: memref<144x16xbf16, #tpu.memory_space<vmem>>, %arg3: memref<1x16xf32, #tpu.memory_space<vmem>>, %arg4: memref<1x16xf32, #tpu.memory_space<vmem>>, %arg5: memref<32x16xbf16, #tpu.memory_space<vmem>>) attributes {dimension_semantics = [#tpu.dimension_semantics<parallel>], iteration_bounds = array<i64: 1>, scalar_prefetch = 0 : i64, scratch_operands = 0 : i64, tpu.core_type = #tpu.core_type<tc>, window_params = [{transform_indices = @transform_0, window_bounds = array<i64: 32, 144>}, {pipeline_mode = #tpu.pipeline_mode<synchronous>, transform_indices = @transform_1, window_bounds = array<i64: 144, 16>}, {pipeline_mode = #tpu.pipeline_mode<synchronous>, transform_indices = @transform_2, window_bounds = array<i64: 1, 16>}, {pipeline_mode = #tpu.pipeline_mode<synchronous>, transform_indices = @transform_3, window_bounds = array<i64: 1, 16>}, {transform_indices = @transform_4, window_bounds = array<i64: 32, 16>}]} {
    %c0 = arith.constant 0 : index
    %c0_0 = arith.constant 0 : index
    %0 = vector.load %arg1[%c0, %c0_0] : memref<32x144xbf16, #tpu.memory_space<vmem>>, vector<32x144xbf16>
    %c0_1 = arith.constant 0 : index
    %c0_2 = arith.constant 0 : index
    %1 = vector.load %arg2[%c0_1, %c0_2] : memref<144x16xbf16, #tpu.memory_space<vmem>>, vector<144x16xbf16>
    %cst = arith.constant dense<0.000000e+00> : vector<32x16xf32>
    %2 = tpu.matmul %0, %1, %cst {dimension_numbers = #tpu.dot_dimension_numbers<[1], [0], [0], [1], [0, 0, 1, 1], [], []>} : vector<32x144xbf16>, vector<144x16xbf16>, vector<32x16xf32> -> vector<32x16xf32>
    %c0_3 = arith.constant 0 : index
    %c0_4 = arith.constant 0 : index
    %3 = vector.load %arg3[%c0_3, %c0_4] : memref<1x16xf32, #tpu.memory_space<vmem>>, vector<1x16xf32>
    %4 = vector.broadcast %3 : vector<1x16xf32> to vector<32x16xf32>
    %5 = arith.addf %2, %4 : vector<32x16xf32>
    %cst_5 = arith.constant 0.000000e+00 : f32
    %6 = vector.broadcast %cst_5 : f32 to vector<32x16xf32>
    %7 = arith.cmpf oge, %5, %6 : vector<32x16xf32>
    %c0_6 = arith.constant 0 : index
    %c0_7 = arith.constant 0 : index
    %8 = vector.load %arg4[%c0_6, %c0_7] : memref<1x16xf32, #tpu.memory_space<vmem>>, vector<1x16xf32>
    %9 = vector.broadcast %8 : vector<1x16xf32> to vector<32x16xf32>
    %10 = arith.mulf %9, %5 : vector<32x16xf32>
    %11 = arith.select %7, %5, %10 : vector<32x16xi1>, vector<32x16xf32>
    %12 = arith.truncf %11 : vector<32x16xf32> to vector<32x16xbf16>
    %c0_8 = arith.constant 0 : index
    %c0_9 = arith.constant 0 : index
    %13 = vector.load %arg5[%c0_8, %c0_9] : memref<32x16xbf16, #tpu.memory_space<vmem>>, vector<32x16xbf16>
    tpu.vector_store %arg5[%c0_8, %c0_9], %12 {strides = array<i32>} : memref<32x16xbf16, #tpu.memory_space<vmem>>, vector<32x16xbf16>,
    return
  }
  func.func @transform_0(%arg0: i32) -> (i32, i32) {
    %c0_i32 = arith.constant 0 : i32
    %c0_i32_0 = arith.constant 0 : i32
    return %arg0, %c0_i32 : i32, i32
  }
  func.func @transform_1(%arg0: i32) -> (i32, i32) {
    %c0_i32 = arith.constant 0 : i32
    %c0_i32_0 = arith.constant 0 : i32
    %c0_i32_1 = arith.constant 0 : i32
    return %c0_i32, %c0_i32_0 : i32, i32
  }
  func.func @transform_2(%arg0: i32) -> (i32, i32) {
    %c0_i32 = arith.constant 0 : i32
    %c0_i32_0 = arith.constant 0 : i32
    %c0_i32_1 = arith.constant 0 : i32
    return %c0_i32, %c0_i32_0 : i32, i32
  }
  func.func @transform_3(%arg0: i32) -> (i32, i32) {
    %c0_i32 = arith.constant 0 : i32
    %c0_i32_0 = arith.constant 0 : i32
    %c0_i32_1 = arith.constant 0 : i32
    return %c0_i32, %c0_i32_0 : i32, i32
  }
  func.func @transform_4(%arg0: i32) -> (i32, i32) {
    %c0_i32 = arith.constant 0 : i32
    %c0_i32_0 = arith.constant 0 : i32
    return %arg0, %c0_i32 : i32, i32
  }
}

module attributes {stable_mosaic.version = 11 : i64} {
  func.func @_conv_bn_prelu_res_kernel(%arg0: i32, %arg1: memref<32x16xbf16, #tpu.memory_space<vmem>>, %arg2: memref<16x64xbf16, #tpu.memory_space<vmem>>, %arg3: memref<1x64xf32, #tpu.memory_space<vmem>>, %arg4: memref<1x64xf32, #tpu.memory_space<vmem>>, %arg5: memref<1x64xf32, #tpu.memory_space<vmem>>, %arg6: memref<32x64xbf16, #tpu.memory_space<vmem>>, %arg7: memref<32x64xbf16, #tpu.memory_space<vmem>>) attributes {dimension_semantics = [#tpu.dimension_semantics<parallel>], iteration_bounds = array<i64: 1>, scalar_prefetch = 0 : i64, scratch_operands = 0 : i64, tpu.core_type = #tpu.core_type<tc>, window_params = [{transform_indices = @transform_0, window_bounds = array<i64: 32, 16>}, {pipeline_mode = #tpu.pipeline_mode<synchronous>, transform_indices = @transform_1, window_bounds = array<i64: 16, 64>}, {pipeline_mode = #tpu.pipeline_mode<synchronous>, transform_indices = @transform_2, window_bounds = array<i64: 1, 64>}, {pipeline_mode = #tpu.pipeline_mode<synchronous>, transform_indices = @transform_3, window_bounds = array<i64: 1, 64>}, {pipeline_mode = #tpu.pipeline_mode<synchronous>, transform_indices = @transform_4, window_bounds = array<i64: 1, 64>}, {transform_indices = @transform_5, window_bounds = array<i64: 32, 64>}, {transform_indices = @transform_6, window_bounds = array<i64: 32, 64>}]} {
    %c0 = arith.constant 0 : index
    %c0_0 = arith.constant 0 : index
    %0 = vector.load %arg1[%c0, %c0_0] : memref<32x16xbf16, #tpu.memory_space<vmem>>, vector<32x16xbf16>
    %c0_1 = arith.constant 0 : index
    %c0_2 = arith.constant 0 : index
    %1 = vector.load %arg2[%c0_1, %c0_2] : memref<16x64xbf16, #tpu.memory_space<vmem>>, vector<16x64xbf16>
    %cst = arith.constant dense<0.000000e+00> : vector<32x64xf32>
    %2 = tpu.matmul %0, %1, %cst {dimension_numbers = #tpu.dot_dimension_numbers<[1], [0], [0], [1], [0, 0, 1, 1], [], []>} : vector<32x16xbf16>, vector<16x64xbf16>, vector<32x64xf32> -> vector<32x64xf32>
    %c0_3 = arith.constant 0 : index
    %c0_4 = arith.constant 0 : index
    %3 = vector.load %arg3[%c0_3, %c0_4] : memref<1x64xf32, #tpu.memory_space<vmem>>, vector<1x64xf32>
    %4 = vector.broadcast %3 : vector<1x64xf32> to vector<32x64xf32>
    %5 = arith.addf %2, %4 : vector<32x64xf32>
    %cst_5 = arith.constant 0.000000e+00 : f32
    %6 = vector.broadcast %cst_5 : f32 to vector<32x64xf32>
    %7 = arith.cmpf oge, %5, %6 : vector<32x64xf32>
    %c0_6 = arith.constant 0 : index
    %c0_7 = arith.constant 0 : index
    %8 = vector.load %arg4[%c0_6, %c0_7] : memref<1x64xf32, #tpu.memory_space<vmem>>, vector<1x64xf32>
    %9 = vector.broadcast %8 : vector<1x64xf32> to vector<32x64xf32>
    %10 = arith.mulf %9, %5 : vector<32x64xf32>
    %11 = arith.select %7, %5, %10 : vector<32x64xi1>, vector<32x64xf32>
    %c0_8 = arith.constant 0 : index
    %c0_9 = arith.constant 0 : index
    %12 = vector.load %arg6[%c0_8, %c0_9] : memref<32x64xbf16, #tpu.memory_space<vmem>>, vector<32x64xbf16>
    %13 = arith.extf %12 : vector<32x64xbf16> to vector<32x64xf32>
    %14 = arith.addf %11, %13 : vector<32x64xf32>
    %cst_10 = arith.constant 0.000000e+00 : f32
    %15 = vector.broadcast %cst_10 : f32 to vector<32x64xf32>
    %16 = arith.cmpf oge, %14, %15 : vector<32x64xf32>
    %c0_11 = arith.constant 0 : index
    %c0_12 = arith.constant 0 : index
    %17 = vector.load %arg5[%c0_11, %c0_12] : memref<1x64xf32, #tpu.memory_space<vmem>>, vector<1x64xf32>
    %18 = vector.broadcast %17 : vector<1x64xf32> to vector<32x64xf32>
    %19 = arith.mulf %18, %14 : vector<32x64xf32>
    %20 = arith.select %16, %14, %19 : vector<32x64xi1>, vector<32x64xf32>
    %21 = arith.truncf %20 : vector<32x64xf32> to vector<32x64xbf16>
    %c0_13 = arith.constant 0 : index
    %c0_14 = arith.constant 0 : index
    %22 = vector.load %arg7[%c0_13, %c0_14] : memref<32x64xbf16, #tpu.memory_space<vmem>>, vector<32x64xbf16>
    tpu.vector_store %arg7[%c0_13, %c0_14], %21 {strides = array<i32>} : memref<32x64xbf16, #tpu.memory_space<vmem>>, vector<32x64xbf16>,
    return
  }
  func.func @transform_0(%arg0: i32) -> (i32, i32) {
    %c0_i32 = arith.constant 0 : i32
    %c0_i32_0 = arith.constant 0 : i32
    return %arg0, %c0_i32 : i32, i32
  }
  func.func @transform_1(%arg0: i32) -> (i32, i32) {
    %c0_i32 = arith.constant 0 : i32
    %c0_i32_0 = arith.constant 0 : i32
    %c0_i32_1 = arith.constant 0 : i32
    return %c0_i32, %c0_i32_0 : i32, i32
  }
  func.func @transform_2(%arg0: i32) -> (i32, i32) {
    %c0_i32 = arith.constant 0 : i32
    %c0_i32_0 = arith.constant 0 : i32
    %c0_i32_1 = arith.constant 0 : i32
    return %c0_i32, %c0_i32_0 : i32, i32
  }
  func.func @transform_3(%arg0: i32) -> (i32, i32) {
    %c0_i32 = arith.constant 0 : i32
    %c0_i32_0 = arith.constant 0 : i32
    %c0_i32_1 = arith.constant 0 : i32
    return %c0_i32, %c0_i32_0 : i32, i32
  }
  func.func @transform_4(%arg0: i32) -> (i32, i32) {
    %c0_i32 = arith.constant 0 : i32
    %c0_i32_0 = arith.constant 0 : i32
    %c0_i32_1 = arith.constant 0 : i32
    return %c0_i32, %c0_i32_0 : i32, i32
  }
  func.func @transform_5(%arg0: i32) -> (i32, i32) {
    %c0_i32 = arith.constant 0 : i32
    %c0_i32_0 = arith.constant 0 : i32
    return %arg0, %c0_i32 : i32, i32
  }
  func.func @transform_6(%arg0: i32) -> (i32, i32) {
    %c0_i32 = arith.constant 0 : i32
    %c0_i32_0 = arith.constant 0 : i32
    return %arg0, %c0_i32 : i32, i32
  }
}

module attributes {stable_mosaic.version = 11 : i64} {
  func.func @_conv_bn_prelu_kernel(%arg0: i32, %arg1: memref<8x256xbf16, #tpu.memory_space<vmem>>, %arg2: memref<256x16xbf16, #tpu.memory_space<vmem>>, %arg3: memref<1x16xf32, #tpu.memory_space<vmem>>, %arg4: memref<1x16xf32, #tpu.memory_space<vmem>>, %arg5: memref<8x16xbf16, #tpu.memory_space<vmem>>) attributes {dimension_semantics = [#tpu.dimension_semantics<parallel>], iteration_bounds = array<i64: 1>, scalar_prefetch = 0 : i64, scratch_operands = 0 : i64, tpu.core_type = #tpu.core_type<tc>, window_params = [{transform_indices = @transform_0, window_bounds = array<i64: 8, 256>}, {pipeline_mode = #tpu.pipeline_mode<synchronous>, transform_indices = @transform_1, window_bounds = array<i64: 256, 16>}, {pipeline_mode = #tpu.pipeline_mode<synchronous>, transform_indices = @transform_2, window_bounds = array<i64: 1, 16>}, {pipeline_mode = #tpu.pipeline_mode<synchronous>, transform_indices = @transform_3, window_bounds = array<i64: 1, 16>}, {transform_indices = @transform_4, window_bounds = array<i64: 8, 16>}]} {
    %c0 = arith.constant 0 : index
    %c0_0 = arith.constant 0 : index
    %0 = vector.load %arg1[%c0, %c0_0] : memref<8x256xbf16, #tpu.memory_space<vmem>>, vector<8x256xbf16>
    %c0_1 = arith.constant 0 : index
    %c0_2 = arith.constant 0 : index
    %1 = vector.load %arg2[%c0_1, %c0_2] : memref<256x16xbf16, #tpu.memory_space<vmem>>, vector<256x16xbf16>
    %cst = arith.constant dense<0.000000e+00> : vector<8x16xf32>
    %2 = tpu.matmul %0, %1, %cst {dimension_numbers = #tpu.dot_dimension_numbers<[1], [0], [0], [1], [0, 0, 1, 1], [], []>} : vector<8x256xbf16>, vector<256x16xbf16>, vector<8x16xf32> -> vector<8x16xf32>
    %c0_3 = arith.constant 0 : index
    %c0_4 = arith.constant 0 : index
    %3 = vector.load %arg3[%c0_3, %c0_4] : memref<1x16xf32, #tpu.memory_space<vmem>>, vector<1x16xf32>
    %4 = vector.broadcast %3 : vector<1x16xf32> to vector<8x16xf32>
    %5 = arith.addf %2, %4 : vector<8x16xf32>
    %cst_5 = arith.constant 0.000000e+00 : f32
    %6 = vector.broadcast %cst_5 : f32 to vector<8x16xf32>
    %7 = arith.cmpf oge, %5, %6 : vector<8x16xf32>
    %c0_6 = arith.constant 0 : index
    %c0_7 = arith.constant 0 : index
    %8 = vector.load %arg4[%c0_6, %c0_7] : memref<1x16xf32, #tpu.memory_space<vmem>>, vector<1x16xf32>
    %9 = vector.broadcast %8 : vector<1x16xf32> to vector<8x16xf32>
    %10 = arith.mulf %9, %5 : vector<8x16xf32>
    %11 = arith.select %7, %5, %10 : vector<8x16xi1>, vector<8x16xf32>
    %12 = arith.truncf %11 : vector<8x16xf32> to vector<8x16xbf16>
    %c0_8 = arith.constant 0 : index
    %c0_9 = arith.constant 0 : index
    %13 = vector.load %arg5[%c0_8, %c0_9] : memref<8x16xbf16, #tpu.memory_space<vmem>>, vector<8x16xbf16>
    tpu.vector_store %arg5[%c0_8, %c0_9], %12 {strides = array<i32>} : memref<8x16xbf16, #tpu.memory_space<vmem>>, vector<8x16xbf16>,
    return
  }
  func.func @transform_0(%arg0: i32) -> (i32, i32) {
    %c0_i32 = arith.constant 0 : i32
    %c0_i32_0 = arith.constant 0 : i32
    return %arg0, %c0_i32 : i32, i32
  }
  func.func @transform_1(%arg0: i32) -> (i32, i32) {
    %c0_i32 = arith.constant 0 : i32
    %c0_i32_0 = arith.constant 0 : i32
    %c0_i32_1 = arith.constant 0 : i32
    return %c0_i32, %c0_i32_0 : i32, i32
  }
  func.func @transform_2(%arg0: i32) -> (i32, i32) {
    %c0_i32 = arith.constant 0 : i32
    %c0_i32_0 = arith.constant 0 : i32
    %c0_i32_1 = arith.constant 0 : i32
    return %c0_i32, %c0_i32_0 : i32, i32
  }
  func.func @transform_3(%arg0: i32) -> (i32, i32) {
    %c0_i32 = arith.constant 0 : i32
    %c0_i32_0 = arith.constant 0 : i32
    %c0_i32_1 = arith.constant 0 : i32
    return %c0_i32, %c0_i32_0 : i32, i32
  }
  func.func @transform_4(%arg0: i32) -> (i32, i32) {
    %c0_i32 = arith.constant 0 : i32
    %c0_i32_0 = arith.constant 0 : i32
    return %arg0, %c0_i32 : i32, i32
  }
}

module attributes {stable_mosaic.version = 11 : i64} {
  func.func @_conv_bn_prelu_kernel(%arg0: i32, %arg1: memref<8x144xbf16, #tpu.memory_space<vmem>>, %arg2: memref<144x16xbf16, #tpu.memory_space<vmem>>, %arg3: memref<1x16xf32, #tpu.memory_space<vmem>>, %arg4: memref<1x16xf32, #tpu.memory_space<vmem>>, %arg5: memref<8x16xbf16, #tpu.memory_space<vmem>>) attributes {dimension_semantics = [#tpu.dimension_semantics<parallel>], iteration_bounds = array<i64: 1>, scalar_prefetch = 0 : i64, scratch_operands = 0 : i64, tpu.core_type = #tpu.core_type<tc>, window_params = [{transform_indices = @transform_0, window_bounds = array<i64: 8, 144>}, {pipeline_mode = #tpu.pipeline_mode<synchronous>, transform_indices = @transform_1, window_bounds = array<i64: 144, 16>}, {pipeline_mode = #tpu.pipeline_mode<synchronous>, transform_indices = @transform_2, window_bounds = array<i64: 1, 16>}, {pipeline_mode = #tpu.pipeline_mode<synchronous>, transform_indices = @transform_3, window_bounds = array<i64: 1, 16>}, {transform_indices = @transform_4, window_bounds = array<i64: 8, 16>}]} {
    %c0 = arith.constant 0 : index
    %c0_0 = arith.constant 0 : index
    %0 = vector.load %arg1[%c0, %c0_0] : memref<8x144xbf16, #tpu.memory_space<vmem>>, vector<8x144xbf16>
    %c0_1 = arith.constant 0 : index
    %c0_2 = arith.constant 0 : index
    %1 = vector.load %arg2[%c0_1, %c0_2] : memref<144x16xbf16, #tpu.memory_space<vmem>>, vector<144x16xbf16>
    %cst = arith.constant dense<0.000000e+00> : vector<8x16xf32>
    %2 = tpu.matmul %0, %1, %cst {dimension_numbers = #tpu.dot_dimension_numbers<[1], [0], [0], [1], [0, 0, 1, 1], [], []>} : vector<8x144xbf16>, vector<144x16xbf16>, vector<8x16xf32> -> vector<8x16xf32>
    %c0_3 = arith.constant 0 : index
    %c0_4 = arith.constant 0 : index
    %3 = vector.load %arg3[%c0_3, %c0_4] : memref<1x16xf32, #tpu.memory_space<vmem>>, vector<1x16xf32>
    %4 = vector.broadcast %3 : vector<1x16xf32> to vector<8x16xf32>
    %5 = arith.addf %2, %4 : vector<8x16xf32>
    %cst_5 = arith.constant 0.000000e+00 : f32
    %6 = vector.broadcast %cst_5 : f32 to vector<8x16xf32>
    %7 = arith.cmpf oge, %5, %6 : vector<8x16xf32>
    %c0_6 = arith.constant 0 : index
    %c0_7 = arith.constant 0 : index
    %8 = vector.load %arg4[%c0_6, %c0_7] : memref<1x16xf32, #tpu.memory_space<vmem>>, vector<1x16xf32>
    %9 = vector.broadcast %8 : vector<1x16xf32> to vector<8x16xf32>
    %10 = arith.mulf %9, %5 : vector<8x16xf32>
    %11 = arith.select %7, %5, %10 : vector<8x16xi1>, vector<8x16xf32>
    %12 = arith.truncf %11 : vector<8x16xf32> to vector<8x16xbf16>
    %c0_8 = arith.constant 0 : index
    %c0_9 = arith.constant 0 : index
    %13 = vector.load %arg5[%c0_8, %c0_9] : memref<8x16xbf16, #tpu.memory_space<vmem>>, vector<8x16xbf16>
    tpu.vector_store %arg5[%c0_8, %c0_9], %12 {strides = array<i32>} : memref<8x16xbf16, #tpu.memory_space<vmem>>, vector<8x16xbf16>,
    return
  }
  func.func @transform_0(%arg0: i32) -> (i32, i32) {
    %c0_i32 = arith.constant 0 : i32
    %c0_i32_0 = arith.constant 0 : i32
    return %arg0, %c0_i32 : i32, i32
  }
  func.func @transform_1(%arg0: i32) -> (i32, i32) {
    %c0_i32 = arith.constant 0 : i32
    %c0_i32_0 = arith.constant 0 : i32
    %c0_i32_1 = arith.constant 0 : i32
    return %c0_i32, %c0_i32_0 : i32, i32
  }
  func.func @transform_2(%arg0: i32) -> (i32, i32) {
    %c0_i32 = arith.constant 0 : i32
    %c0_i32_0 = arith.constant 0 : i32
    %c0_i32_1 = arith.constant 0 : i32
    return %c0_i32, %c0_i32_0 : i32, i32
  }
  func.func @transform_3(%arg0: i32) -> (i32, i32) {
    %c0_i32 = arith.constant 0 : i32
    %c0_i32_0 = arith.constant 0 : i32
    %c0_i32_1 = arith.constant 0 : i32
    return %c0_i32, %c0_i32_0 : i32, i32
  }
  func.func @transform_4(%arg0: i32) -> (i32, i32) {
    %c0_i32 = arith.constant 0 : i32
    %c0_i32_0 = arith.constant 0 : i32
    return %arg0, %c0_i32 : i32, i32
  }
}

module attributes {stable_mosaic.version = 11 : i64} {
  func.func @_conv_bn_prelu_res_kernel(%arg0: i32, %arg1: memref<8x16xbf16, #tpu.memory_space<vmem>>, %arg2: memref<16x128xbf16, #tpu.memory_space<vmem>>, %arg3: memref<1x128xf32, #tpu.memory_space<vmem>>, %arg4: memref<1x128xf32, #tpu.memory_space<vmem>>, %arg5: memref<1x128xf32, #tpu.memory_space<vmem>>, %arg6: memref<8x128xbf16, #tpu.memory_space<vmem>>, %arg7: memref<8x128xbf16, #tpu.memory_space<vmem>>) attributes {dimension_semantics = [#tpu.dimension_semantics<parallel>], iteration_bounds = array<i64: 1>, scalar_prefetch = 0 : i64, scratch_operands = 0 : i64, tpu.core_type = #tpu.core_type<tc>, window_params = [{transform_indices = @transform_0, window_bounds = array<i64: 8, 16>}, {pipeline_mode = #tpu.pipeline_mode<synchronous>, transform_indices = @transform_1, window_bounds = array<i64: 16, 128>}, {pipeline_mode = #tpu.pipeline_mode<synchronous>, transform_indices = @transform_2, window_bounds = array<i64: 1, 128>}, {pipeline_mode = #tpu.pipeline_mode<synchronous>, transform_indices = @transform_3, window_bounds = array<i64: 1, 128>}, {pipeline_mode = #tpu.pipeline_mode<synchronous>, transform_indices = @transform_4, window_bounds = array<i64: 1, 128>}, {transform_indices = @transform_5, window_bounds = array<i64: 8, 128>}, {transform_indices = @transform_6, window_bounds = array<i64: 8, 128>}]} {
    %c0 = arith.constant 0 : index
    %c0_0 = arith.constant 0 : index
    %0 = vector.load %arg1[%c0, %c0_0] : memref<8x16xbf16, #tpu.memory_space<vmem>>, vector<8x16xbf16>
    %c0_1 = arith.constant 0 : index
    %c0_2 = arith.constant 0 : index
    %1 = vector.load %arg2[%c0_1, %c0_2] : memref<16x128xbf16, #tpu.memory_space<vmem>>, vector<16x128xbf16>
    %cst = arith.constant dense<0.000000e+00> : vector<8x128xf32>
    %2 = tpu.matmul %0, %1, %cst {dimension_numbers = #tpu.dot_dimension_numbers<[1], [0], [0], [1], [0, 0, 1, 1], [], []>} : vector<8x16xbf16>, vector<16x128xbf16>, vector<8x128xf32> -> vector<8x128xf32>
    %c0_3 = arith.constant 0 : index
    %c0_4 = arith.constant 0 : index
    %3 = vector.load %arg3[%c0_3, %c0_4] : memref<1x128xf32, #tpu.memory_space<vmem>>, vector<1x128xf32>
    %4 = vector.broadcast %3 : vector<1x128xf32> to vector<8x128xf32>
    %5 = arith.addf %2, %4 : vector<8x128xf32>
    %cst_5 = arith.constant 0.000000e+00 : f32
    %6 = vector.broadcast %cst_5 : f32 to vector<8x128xf32>
    %7 = arith.cmpf oge, %5, %6 : vector<8x128xf32>
    %c0_6 = arith.constant 0 : index
    %c0_7 = arith.constant 0 : index
    %8 = vector.load %arg4[%c0_6, %c0_7] : memref<1x128xf32, #tpu.memory_space<vmem>>, vector<1x128xf32>
    %9 = vector.broadcast %8 : vector<1x128xf32> to vector<8x128xf32>
    %10 = arith.mulf %9, %5 : vector<8x128xf32>
    %11 = arith.select %7, %5, %10 : vector<8x128xi1>, vector<8x128xf32>
    %c0_8 = arith.constant 0 : index
    %c0_9 = arith.constant 0 : index
    %12 = vector.load %arg6[%c0_8, %c0_9] : memref<8x128xbf16, #tpu.memory_space<vmem>>, vector<8x128xbf16>
    %13 = arith.extf %12 : vector<8x128xbf16> to vector<8x128xf32>
    %14 = arith.addf %11, %13 : vector<8x128xf32>
    %cst_10 = arith.constant 0.000000e+00 : f32
    %15 = vector.broadcast %cst_10 : f32 to vector<8x128xf32>
    %16 = arith.cmpf oge, %14, %15 : vector<8x128xf32>
    %c0_11 = arith.constant 0 : index
    %c0_12 = arith.constant 0 : index
    %17 = vector.load %arg5[%c0_11, %c0_12] : memref<1x128xf32, #tpu.memory_space<vmem>>, vector<1x128xf32>
    %18 = vector.broadcast %17 : vector<1x128xf32> to vector<8x128xf32>
    %19 = arith.mulf %18, %14 : vector<8x128xf32>
    %20 = arith.select %16, %14, %19 : vector<8x128xi1>, vector<8x128xf32>
    %21 = arith.truncf %20 : vector<8x128xf32> to vector<8x128xbf16>
    %c0_13 = arith.constant 0 : index
    %c0_14 = arith.constant 0 : index
    %22 = vector.load %arg7[%c0_13, %c0_14] : memref<8x128xbf16, #tpu.memory_space<vmem>>, vector<8x128xbf16>
    tpu.vector_store %arg7[%c0_13, %c0_14], %21 {strides = array<i32>} : memref<8x128xbf16, #tpu.memory_space<vmem>>, vector<8x128xbf16>,
    return
  }
  func.func @transform_0(%arg0: i32) -> (i32, i32) {
    %c0_i32 = arith.constant 0 : i32
    %c0_i32_0 = arith.constant 0 : i32
    return %arg0, %c0_i32 : i32, i32
  }
  func.func @transform_1(%arg0: i32) -> (i32, i32) {
    %c0_i32 = arith.constant 0 : i32
    %c0_i32_0 = arith.constant 0 : i32
    %c0_i32_1 = arith.constant 0 : i32
    return %c0_i32, %c0_i32_0 : i32, i32
  }
  func.func @transform_2(%arg0: i32) -> (i32, i32) {
    %c0_i32 = arith.constant 0 : i32
    %c0_i32_0 = arith.constant 0 : i32
    %c0_i32_1 = arith.constant 0 : i32
    return %c0_i32, %c0_i32_0 : i32, i32
  }
  func.func @transform_3(%arg0: i32) -> (i32, i32) {
    %c0_i32 = arith.constant 0 : i32
    %c0_i32_0 = arith.constant 0 : i32
    %c0_i32_1 = arith.constant 0 : i32
    return %c0_i32, %c0_i32_0 : i32, i32
  }
  func.func @transform_4(%arg0: i32) -> (i32, i32) {
    %c0_i32 = arith.constant 0 : i32
    %c0_i32_0 = arith.constant 0 : i32
    %c0_i32_1 = arith.constant 0 : i32
    return %c0_i32, %c0_i32_0 : i32, i32
  }
  func.func @transform_5(%arg0: i32) -> (i32, i32) {
    %c0_i32 = arith.constant 0 : i32
    %c0_i32_0 = arith.constant 0 : i32
    return %arg0, %c0_i32 : i32, i32
  }
  func.func @transform_6(%arg0: i32) -> (i32, i32) {
    %c0_i32 = arith.constant 0 : i32
    %c0_i32_0 = arith.constant 0 : i32
    return %arg0, %c0_i32 : i32, i32
  }
}

module attributes {stable_mosaic.version = 11 : i64} {
  func.func @_conv_bn_prelu_kernel(%arg0: i32, %arg1: memref<8x128xbf16, #tpu.memory_space<vmem>>, %arg2: memref<128x32xbf16, #tpu.memory_space<vmem>>, %arg3: memref<1x32xf32, #tpu.memory_space<vmem>>, %arg4: memref<1x32xf32, #tpu.memory_space<vmem>>, %arg5: memref<8x32xbf16, #tpu.memory_space<vmem>>) attributes {dimension_semantics = [#tpu.dimension_semantics<parallel>], iteration_bounds = array<i64: 1>, scalar_prefetch = 0 : i64, scratch_operands = 0 : i64, tpu.core_type = #tpu.core_type<tc>, window_params = [{transform_indices = @transform_0, window_bounds = array<i64: 8, 128>}, {pipeline_mode = #tpu.pipeline_mode<synchronous>, transform_indices = @transform_1, window_bounds = array<i64: 128, 32>}, {pipeline_mode = #tpu.pipeline_mode<synchronous>, transform_indices = @transform_2, window_bounds = array<i64: 1, 32>}, {pipeline_mode = #tpu.pipeline_mode<synchronous>, transform_indices = @transform_3, window_bounds = array<i64: 1, 32>}, {transform_indices = @transform_4, window_bounds = array<i64: 8, 32>}]} {
    %c0 = arith.constant 0 : index
    %c0_0 = arith.constant 0 : index
    %0 = vector.load %arg1[%c0, %c0_0] : memref<8x128xbf16, #tpu.memory_space<vmem>>, vector<8x128xbf16>
    %c0_1 = arith.constant 0 : index
    %c0_2 = arith.constant 0 : index
    %1 = vector.load %arg2[%c0_1, %c0_2] : memref<128x32xbf16, #tpu.memory_space<vmem>>, vector<128x32xbf16>
    %cst = arith.constant dense<0.000000e+00> : vector<8x32xf32>
    %2 = tpu.matmul %0, %1, %cst {dimension_numbers = #tpu.dot_dimension_numbers<[1], [0], [0], [1], [0, 0, 1, 1], [], []>} : vector<8x128xbf16>, vector<128x32xbf16>, vector<8x32xf32> -> vector<8x32xf32>
    %c0_3 = arith.constant 0 : index
    %c0_4 = arith.constant 0 : index
    %3 = vector.load %arg3[%c0_3, %c0_4] : memref<1x32xf32, #tpu.memory_space<vmem>>, vector<1x32xf32>
    %4 = vector.broadcast %3 : vector<1x32xf32> to vector<8x32xf32>
    %5 = arith.addf %2, %4 : vector<8x32xf32>
    %cst_5 = arith.constant 0.000000e+00 : f32
    %6 = vector.broadcast %cst_5 : f32 to vector<8x32xf32>
    %7 = arith.cmpf oge, %5, %6 : vector<8x32xf32>
    %c0_6 = arith.constant 0 : index
    %c0_7 = arith.constant 0 : index
    %8 = vector.load %arg4[%c0_6, %c0_7] : memref<1x32xf32, #tpu.memory_space<vmem>>, vector<1x32xf32>
    %9 = vector.broadcast %8 : vector<1x32xf32> to vector<8x32xf32>
    %10 = arith.mulf %9, %5 : vector<8x32xf32>
    %11 = arith.select %7, %5, %10 : vector<8x32xi1>, vector<8x32xf32>
    %12 = arith.truncf %11 : vector<8x32xf32> to vector<8x32xbf16>
    %c0_8 = arith.constant 0 : index
    %c0_9 = arith.constant 0 : index
    %13 = vector.load %arg5[%c0_8, %c0_9] : memref<8x32xbf16, #tpu.memory_space<vmem>>, vector<8x32xbf16>
    tpu.vector_store %arg5[%c0_8, %c0_9], %12 {strides = array<i32>} : memref<8x32xbf16, #tpu.memory_space<vmem>>, vector<8x32xbf16>,
    return
  }
  func.func @transform_0(%arg0: i32) -> (i32, i32) {
    %c0_i32 = arith.constant 0 : i32
    %c0_i32_0 = arith.constant 0 : i32
    return %arg0, %c0_i32 : i32, i32
  }
  func.func @transform_1(%arg0: i32) -> (i32, i32) {
    %c0_i32 = arith.constant 0 : i32
    %c0_i32_0 = arith.constant 0 : i32
    %c0_i32_1 = arith.constant 0 : i32
    return %c0_i32, %c0_i32_0 : i32, i32
  }
  func.func @transform_2(%arg0: i32) -> (i32, i32) {
    %c0_i32 = arith.constant 0 : i32
    %c0_i32_0 = arith.constant 0 : i32
    %c0_i32_1 = arith.constant 0 : i32
    return %c0_i32, %c0_i32_0 : i32, i32
  }
  func.func @transform_3(%arg0: i32) -> (i32, i32) {
    %c0_i32 = arith.constant 0 : i32
    %c0_i32_0 = arith.constant 0 : i32
    %c0_i32_1 = arith.constant 0 : i32
    return %c0_i32, %c0_i32_0 : i32, i32
  }
  func.func @transform_4(%arg0: i32) -> (i32, i32) {
    %c0_i32 = arith.constant 0 : i32
    %c0_i32_0 = arith.constant 0 : i32
    return %arg0, %c0_i32 : i32, i32
  }
}

module attributes {stable_mosaic.version = 11 : i64} {
  func.func @_conv_bn_prelu_kernel(%arg0: i32, %arg1: memref<8x288xbf16, #tpu.memory_space<vmem>>, %arg2: memref<288x32xbf16, #tpu.memory_space<vmem>>, %arg3: memref<1x32xf32, #tpu.memory_space<vmem>>, %arg4: memref<1x32xf32, #tpu.memory_space<vmem>>, %arg5: memref<8x32xbf16, #tpu.memory_space<vmem>>) attributes {dimension_semantics = [#tpu.dimension_semantics<parallel>], iteration_bounds = array<i64: 1>, scalar_prefetch = 0 : i64, scratch_operands = 0 : i64, tpu.core_type = #tpu.core_type<tc>, window_params = [{transform_indices = @transform_0, window_bounds = array<i64: 8, 288>}, {pipeline_mode = #tpu.pipeline_mode<synchronous>, transform_indices = @transform_1, window_bounds = array<i64: 288, 32>}, {pipeline_mode = #tpu.pipeline_mode<synchronous>, transform_indices = @transform_2, window_bounds = array<i64: 1, 32>}, {pipeline_mode = #tpu.pipeline_mode<synchronous>, transform_indices = @transform_3, window_bounds = array<i64: 1, 32>}, {transform_indices = @transform_4, window_bounds = array<i64: 8, 32>}]} {
    %c0 = arith.constant 0 : index
    %c0_0 = arith.constant 0 : index
    %0 = vector.load %arg1[%c0, %c0_0] : memref<8x288xbf16, #tpu.memory_space<vmem>>, vector<8x288xbf16>
    %c0_1 = arith.constant 0 : index
    %c0_2 = arith.constant 0 : index
    %1 = vector.load %arg2[%c0_1, %c0_2] : memref<288x32xbf16, #tpu.memory_space<vmem>>, vector<288x32xbf16>
    %cst = arith.constant dense<0.000000e+00> : vector<8x32xf32>
    %2 = tpu.matmul %0, %1, %cst {dimension_numbers = #tpu.dot_dimension_numbers<[1], [0], [0], [1], [0, 0, 1, 1], [], []>} : vector<8x288xbf16>, vector<288x32xbf16>, vector<8x32xf32> -> vector<8x32xf32>
    %c0_3 = arith.constant 0 : index
    %c0_4 = arith.constant 0 : index
    %3 = vector.load %arg3[%c0_3, %c0_4] : memref<1x32xf32, #tpu.memory_space<vmem>>, vector<1x32xf32>
    %4 = vector.broadcast %3 : vector<1x32xf32> to vector<8x32xf32>
    %5 = arith.addf %2, %4 : vector<8x32xf32>
    %cst_5 = arith.constant 0.000000e+00 : f32
    %6 = vector.broadcast %cst_5 : f32 to vector<8x32xf32>
    %7 = arith.cmpf oge, %5, %6 : vector<8x32xf32>
    %c0_6 = arith.constant 0 : index
    %c0_7 = arith.constant 0 : index
    %8 = vector.load %arg4[%c0_6, %c0_7] : memref<1x32xf32, #tpu.memory_space<vmem>>, vector<1x32xf32>
    %9 = vector.broadcast %8 : vector<1x32xf32> to vector<8x32xf32>
    %10 = arith.mulf %9, %5 : vector<8x32xf32>
    %11 = arith.select %7, %5, %10 : vector<8x32xi1>, vector<8x32xf32>
    %12 = arith.truncf %11 : vector<8x32xf32> to vector<8x32xbf16>
    %c0_8 = arith.constant 0 : index
    %c0_9 = arith.constant 0 : index
    %13 = vector.load %arg5[%c0_8, %c0_9] : memref<8x32xbf16, #tpu.memory_space<vmem>>, vector<8x32xbf16>
    tpu.vector_store %arg5[%c0_8, %c0_9], %12 {strides = array<i32>} : memref<8x32xbf16, #tpu.memory_space<vmem>>, vector<8x32xbf16>,
    return
  }
  func.func @transform_0(%arg0: i32) -> (i32, i32) {
    %c0_i32 = arith.constant 0 : i32
    %c0_i32_0 = arith.constant 0 : i32
    return %arg0, %c0_i32 : i32, i32
  }
  func.func @transform_1(%arg0: i32) -> (i32, i32) {
    %c0_i32 = arith.constant 0 : i32
    %c0_i32_0 = arith.constant 0 : i32
    %c0_i32_1 = arith.constant 0 : i32
    return %c0_i32, %c0_i32_0 : i32, i32
  }
  func.func @transform_2(%arg0: i32) -> (i32, i32) {
    %c0_i32 = arith.constant 0 : i32
    %c0_i32_0 = arith.constant 0 : i32
    %c0_i32_1 = arith.constant 0 : i32
    return %c0_i32, %c0_i32_0 : i32, i32
  }
  func.func @transform_3(%arg0: i32) -> (i32, i32) {
    %c0_i32 = arith.constant 0 : i32
    %c0_i32_0 = arith.constant 0 : i32
    %c0_i32_1 = arith.constant 0 : i32
    return %c0_i32, %c0_i32_0 : i32, i32
  }
  func.func @transform_4(%arg0: i32) -> (i32, i32) {
    %c0_i32 = arith.constant 0 : i32
    %c0_i32_0 = arith.constant 0 : i32
    return %arg0, %c0_i32 : i32, i32
  }
}

module attributes {stable_mosaic.version = 11 : i64} {
  func.func @_conv_bn_prelu_res_kernel(%arg0: i32, %arg1: memref<8x32xbf16, #tpu.memory_space<vmem>>, %arg2: memref<32x128xbf16, #tpu.memory_space<vmem>>, %arg3: memref<1x128xf32, #tpu.memory_space<vmem>>, %arg4: memref<1x128xf32, #tpu.memory_space<vmem>>, %arg5: memref<1x128xf32, #tpu.memory_space<vmem>>, %arg6: memref<8x128xbf16, #tpu.memory_space<vmem>>, %arg7: memref<8x128xbf16, #tpu.memory_space<vmem>>) attributes {dimension_semantics = [#tpu.dimension_semantics<parallel>], iteration_bounds = array<i64: 1>, scalar_prefetch = 0 : i64, scratch_operands = 0 : i64, tpu.core_type = #tpu.core_type<tc>, window_params = [{transform_indices = @transform_0, window_bounds = array<i64: 8, 32>}, {pipeline_mode = #tpu.pipeline_mode<synchronous>, transform_indices = @transform_1, window_bounds = array<i64: 32, 128>}, {pipeline_mode = #tpu.pipeline_mode<synchronous>, transform_indices = @transform_2, window_bounds = array<i64: 1, 128>}, {pipeline_mode = #tpu.pipeline_mode<synchronous>, transform_indices = @transform_3, window_bounds = array<i64: 1, 128>}, {pipeline_mode = #tpu.pipeline_mode<synchronous>, transform_indices = @transform_4, window_bounds = array<i64: 1, 128>}, {transform_indices = @transform_5, window_bounds = array<i64: 8, 128>}, {transform_indices = @transform_6, window_bounds = array<i64: 8, 128>}]} {
    %c0 = arith.constant 0 : index
    %c0_0 = arith.constant 0 : index
    %0 = vector.load %arg1[%c0, %c0_0] : memref<8x32xbf16, #tpu.memory_space<vmem>>, vector<8x32xbf16>
    %c0_1 = arith.constant 0 : index
    %c0_2 = arith.constant 0 : index
    %1 = vector.load %arg2[%c0_1, %c0_2] : memref<32x128xbf16, #tpu.memory_space<vmem>>, vector<32x128xbf16>
    %cst = arith.constant dense<0.000000e+00> : vector<8x128xf32>
    %2 = tpu.matmul %0, %1, %cst {dimension_numbers = #tpu.dot_dimension_numbers<[1], [0], [0], [1], [0, 0, 1, 1], [], []>} : vector<8x32xbf16>, vector<32x128xbf16>, vector<8x128xf32> -> vector<8x128xf32>
    %c0_3 = arith.constant 0 : index
    %c0_4 = arith.constant 0 : index
    %3 = vector.load %arg3[%c0_3, %c0_4] : memref<1x128xf32, #tpu.memory_space<vmem>>, vector<1x128xf32>
    %4 = vector.broadcast %3 : vector<1x128xf32> to vector<8x128xf32>
    %5 = arith.addf %2, %4 : vector<8x128xf32>
    %cst_5 = arith.constant 0.000000e+00 : f32
    %6 = vector.broadcast %cst_5 : f32 to vector<8x128xf32>
    %7 = arith.cmpf oge, %5, %6 : vector<8x128xf32>
    %c0_6 = arith.constant 0 : index
    %c0_7 = arith.constant 0 : index
    %8 = vector.load %arg4[%c0_6, %c0_7] : memref<1x128xf32, #tpu.memory_space<vmem>>, vector<1x128xf32>
    %9 = vector.broadcast %8 : vector<1x128xf32> to vector<8x128xf32>
    %10 = arith.mulf %9, %5 : vector<8x128xf32>
    %11 = arith.select %7, %5, %10 : vector<8x128xi1>, vector<8x128xf32>
    %c0_8 = arith.constant 0 : index
    %c0_9 = arith.constant 0 : index
    %12 = vector.load %arg6[%c0_8, %c0_9] : memref<8x128xbf16, #tpu.memory_space<vmem>>, vector<8x128xbf16>
    %13 = arith.extf %12 : vector<8x128xbf16> to vector<8x128xf32>
    %14 = arith.addf %11, %13 : vector<8x128xf32>
    %cst_10 = arith.constant 0.000000e+00 : f32
    %15 = vector.broadcast %cst_10 : f32 to vector<8x128xf32>
    %16 = arith.cmpf oge, %14, %15 : vector<8x128xf32>
    %c0_11 = arith.constant 0 : index
    %c0_12 = arith.constant 0 : index
    %17 = vector.load %arg5[%c0_11, %c0_12] : memref<1x128xf32, #tpu.memory_space<vmem>>, vector<1x128xf32>
    %18 = vector.broadcast %17 : vector<1x128xf32> to vector<8x128xf32>
    %19 = arith.mulf %18, %14 : vector<8x128xf32>
    %20 = arith.select %16, %14, %19 : vector<8x128xi1>, vector<8x128xf32>
    %21 = arith.truncf %20 : vector<8x128xf32> to vector<8x128xbf16>
    %c0_13 = arith.constant 0 : index
    %c0_14 = arith.constant 0 : index
    %22 = vector.load %arg7[%c0_13, %c0_14] : memref<8x128xbf16, #tpu.memory_space<vmem>>, vector<8x128xbf16>
    tpu.vector_store %arg7[%c0_13, %c0_14], %21 {strides = array<i32>} : memref<8x128xbf16, #tpu.memory_space<vmem>>, vector<8x128xbf16>,
    return
  }
  func.func @transform_0(%arg0: i32) -> (i32, i32) {
    %c0_i32 = arith.constant 0 : i32
    %c0_i32_0 = arith.constant 0 : i32
    return %arg0, %c0_i32 : i32, i32
  }
  func.func @transform_1(%arg0: i32) -> (i32, i32) {
    %c0_i32 = arith.constant 0 : i32
    %c0_i32_0 = arith.constant 0 : i32
    %c0_i32_1 = arith.constant 0 : i32
    return %c0_i32, %c0_i32_0 : i32, i32
  }
  func.func @transform_2(%arg0: i32) -> (i32, i32) {
    %c0_i32 = arith.constant 0 : i32
    %c0_i32_0 = arith.constant 0 : i32
    %c0_i32_1 = arith.constant 0 : i32
    return %c0_i32, %c0_i32_0 : i32, i32
  }
  func.func @transform_3(%arg0: i32) -> (i32, i32) {
    %c0_i32 = arith.constant 0 : i32
    %c0_i32_0 = arith.constant 0 : i32
    %c0_i32_1 = arith.constant 0 : i32
    return %c0_i32, %c0_i32_0 : i32, i32
  }
  func.func @transform_4(%arg0: i32) -> (i32, i32) {
    %c0_i32 = arith.constant 0 : i32
    %c0_i32_0 = arith.constant 0 : i32
    %c0_i32_1 = arith.constant 0 : i32
    return %c0_i32, %c0_i32_0 : i32, i32
  }
  func.func @transform_5(%arg0: i32) -> (i32, i32) {
    %c0_i32 = arith.constant 0 : i32
    %c0_i32_0 = arith.constant 0 : i32
    return %arg0, %c0_i32 : i32, i32
  }
  func.func @transform_6(%arg0: i32) -> (i32, i32) {
    %c0_i32 = arith.constant 0 : i32
    %c0_i32_0 = arith.constant 0 : i32
    return %arg0, %c0_i32 : i32, i32
  }
}

module attributes {stable_mosaic.version = 11 : i64} {
  func.func @_conv_bn_prelu_kernel(%arg0: i32, %arg1: memref<8x160xbf16, #tpu.memory_space<vmem>>, %arg2: memref<160x32xbf16, #tpu.memory_space<vmem>>, %arg3: memref<1x32xf32, #tpu.memory_space<vmem>>, %arg4: memref<1x32xf32, #tpu.memory_space<vmem>>, %arg5: memref<8x32xbf16, #tpu.memory_space<vmem>>) attributes {dimension_semantics = [#tpu.dimension_semantics<parallel>], iteration_bounds = array<i64: 1>, scalar_prefetch = 0 : i64, scratch_operands = 0 : i64, tpu.core_type = #tpu.core_type<tc>, window_params = [{transform_indices = @transform_0, window_bounds = array<i64: 8, 160>}, {pipeline_mode = #tpu.pipeline_mode<synchronous>, transform_indices = @transform_1, window_bounds = array<i64: 160, 32>}, {pipeline_mode = #tpu.pipeline_mode<synchronous>, transform_indices = @transform_2, window_bounds = array<i64: 1, 32>}, {pipeline_mode = #tpu.pipeline_mode<synchronous>, transform_indices = @transform_3, window_bounds = array<i64: 1, 32>}, {transform_indices = @transform_4, window_bounds = array<i64: 8, 32>}]} {
    %c0 = arith.constant 0 : index
    %c0_0 = arith.constant 0 : index
    %0 = vector.load %arg1[%c0, %c0_0] : memref<8x160xbf16, #tpu.memory_space<vmem>>, vector<8x160xbf16>
    %c0_1 = arith.constant 0 : index
    %c0_2 = arith.constant 0 : index
    %1 = vector.load %arg2[%c0_1, %c0_2] : memref<160x32xbf16, #tpu.memory_space<vmem>>, vector<160x32xbf16>
    %cst = arith.constant dense<0.000000e+00> : vector<8x32xf32>
    %2 = tpu.matmul %0, %1, %cst {dimension_numbers = #tpu.dot_dimension_numbers<[1], [0], [0], [1], [0, 0, 1, 1], [], []>} : vector<8x160xbf16>, vector<160x32xbf16>, vector<8x32xf32> -> vector<8x32xf32>
    %c0_3 = arith.constant 0 : index
    %c0_4 = arith.constant 0 : index
    %3 = vector.load %arg3[%c0_3, %c0_4] : memref<1x32xf32, #tpu.memory_space<vmem>>, vector<1x32xf32>
    %4 = vector.broadcast %3 : vector<1x32xf32> to vector<8x32xf32>
    %5 = arith.addf %2, %4 : vector<8x32xf32>
    %cst_5 = arith.constant 0.000000e+00 : f32
    %6 = vector.broadcast %cst_5 : f32 to vector<8x32xf32>
    %7 = arith.cmpf oge, %5, %6 : vector<8x32xf32>
    %c0_6 = arith.constant 0 : index
    %c0_7 = arith.constant 0 : index
    %8 = vector.load %arg4[%c0_6, %c0_7] : memref<1x32xf32, #tpu.memory_space<vmem>>, vector<1x32xf32>
    %9 = vector.broadcast %8 : vector<1x32xf32> to vector<8x32xf32>
    %10 = arith.mulf %9, %5 : vector<8x32xf32>
    %11 = arith.select %7, %5, %10 : vector<8x32xi1>, vector<8x32xf32>
    %12 = arith.truncf %11 : vector<8x32xf32> to vector<8x32xbf16>
    %c0_8 = arith.constant 0 : index
    %c0_9 = arith.constant 0 : index
    %13 = vector.load %arg5[%c0_8, %c0_9] : memref<8x32xbf16, #tpu.memory_space<vmem>>, vector<8x32xbf16>
    tpu.vector_store %arg5[%c0_8, %c0_9], %12 {strides = array<i32>} : memref<8x32xbf16, #tpu.memory_space<vmem>>, vector<8x32xbf16>,
    return
  }
  func.func @transform_0(%arg0: i32) -> (i32, i32) {
    %c0_i32 = arith.constant 0 : i32
    %c0_i32_0 = arith.constant 0 : i32
    return %arg0, %c0_i32 : i32, i32
  }
  func.func @transform_1(%arg0: i32) -> (i32, i32) {
    %c0_i32 = arith.constant 0 : i32
    %c0_i32_0 = arith.constant 0 : i32
    %c0_i32_1 = arith.constant 0 : i32
    return %c0_i32, %c0_i32_0 : i32, i32
  }
  func.func @transform_2(%arg0: i32) -> (i32, i32) {
    %c0_i32 = arith.constant 0 : i32
    %c0_i32_0 = arith.constant 0 : i32
    %c0_i32_1 = arith.constant 0 : i32
    return %c0_i32, %c0_i32_0 : i32, i32
  }
  func.func @transform_3(%arg0: i32) -> (i32, i32) {
    %c0_i32 = arith.constant 0 : i32
    %c0_i32_0 = arith.constant 0 : i32
    %c0_i32_1 = arith.constant 0 : i32
    return %c0_i32, %c0_i32_0 : i32, i32
  }
  func.func @transform_4(%arg0: i32) -> (i32, i32) {
    %c0_i32 = arith.constant 0 : i32
    %c0_i32_0 = arith.constant 0 : i32
    return %arg0, %c0_i32 : i32, i32
  }
}

module attributes {stable_mosaic.version = 11 : i64} {
  func.func @_conv_bn_prelu_kernel(%arg0: i32, %arg1: memref<8x128xbf16, #tpu.memory_space<vmem>>, %arg2: memref<128x64xbf16, #tpu.memory_space<vmem>>, %arg3: memref<1x64xf32, #tpu.memory_space<vmem>>, %arg4: memref<1x64xf32, #tpu.memory_space<vmem>>, %arg5: memref<8x64xbf16, #tpu.memory_space<vmem>>) attributes {dimension_semantics = [#tpu.dimension_semantics<parallel>], iteration_bounds = array<i64: 1>, scalar_prefetch = 0 : i64, scratch_operands = 0 : i64, tpu.core_type = #tpu.core_type<tc>, window_params = [{transform_indices = @transform_0, window_bounds = array<i64: 8, 128>}, {pipeline_mode = #tpu.pipeline_mode<synchronous>, transform_indices = @transform_1, window_bounds = array<i64: 128, 64>}, {pipeline_mode = #tpu.pipeline_mode<synchronous>, transform_indices = @transform_2, window_bounds = array<i64: 1, 64>}, {pipeline_mode = #tpu.pipeline_mode<synchronous>, transform_indices = @transform_3, window_bounds = array<i64: 1, 64>}, {transform_indices = @transform_4, window_bounds = array<i64: 8, 64>}]} {
    %c0 = arith.constant 0 : index
    %c0_0 = arith.constant 0 : index
    %0 = vector.load %arg1[%c0, %c0_0] : memref<8x128xbf16, #tpu.memory_space<vmem>>, vector<8x128xbf16>
    %c0_1 = arith.constant 0 : index
    %c0_2 = arith.constant 0 : index
    %1 = vector.load %arg2[%c0_1, %c0_2] : memref<128x64xbf16, #tpu.memory_space<vmem>>, vector<128x64xbf16>
    %cst = arith.constant dense<0.000000e+00> : vector<8x64xf32>
    %2 = tpu.matmul %0, %1, %cst {dimension_numbers = #tpu.dot_dimension_numbers<[1], [0], [0], [1], [0, 0, 1, 1], [], []>} : vector<8x128xbf16>, vector<128x64xbf16>, vector<8x64xf32> -> vector<8x64xf32>
    %c0_3 = arith.constant 0 : index
    %c0_4 = arith.constant 0 : index
    %3 = vector.load %arg3[%c0_3, %c0_4] : memref<1x64xf32, #tpu.memory_space<vmem>>, vector<1x64xf32>
    %4 = vector.broadcast %3 : vector<1x64xf32> to vector<8x64xf32>
    %5 = arith.addf %2, %4 : vector<8x64xf32>
    %cst_5 = arith.constant 0.000000e+00 : f32
    %6 = vector.broadcast %cst_5 : f32 to vector<8x64xf32>
    %7 = arith.cmpf oge, %5, %6 : vector<8x64xf32>
    %c0_6 = arith.constant 0 : index
    %c0_7 = arith.constant 0 : index
    %8 = vector.load %arg4[%c0_6, %c0_7] : memref<1x64xf32, #tpu.memory_space<vmem>>, vector<1x64xf32>
    %9 = vector.broadcast %8 : vector<1x64xf32> to vector<8x64xf32>
    %10 = arith.mulf %9, %5 : vector<8x64xf32>
    %11 = arith.select %7, %5, %10 : vector<8x64xi1>, vector<8x64xf32>
    %12 = arith.truncf %11 : vector<8x64xf32> to vector<8x64xbf16>
    %c0_8 = arith.constant 0 : index
    %c0_9 = arith.constant 0 : index
    %13 = vector.load %arg5[%c0_8, %c0_9] : memref<8x64xbf16, #tpu.memory_space<vmem>>, vector<8x64xbf16>
    tpu.vector_store %arg5[%c0_8, %c0_9], %12 {strides = array<i32>} : memref<8x64xbf16, #tpu.memory_space<vmem>>, vector<8x64xbf16>,
    return
  }
  func.func @transform_0(%arg0: i32) -> (i32, i32) {
    %c0_i32 = arith.constant 0 : i32
    %c0_i32_0 = arith.constant 0 : i32
    return %arg0, %c0_i32 : i32, i32
  }
  func.func @transform_1(%arg0: i32) -> (i32, i32) {
    %c0_i32 = arith.constant 0 : i32
    %c0_i32_0 = arith.constant 0 : i32
    %c0_i32_1 = arith.constant 0 : i32
    return %c0_i32, %c0_i32_0 : i32, i32
  }
  func.func @transform_2(%arg0: i32) -> (i32, i32) {
    %c0_i32 = arith.constant 0 : i32
    %c0_i32_0 = arith.constant 0 : i32
    %c0_i32_1 = arith.constant 0 : i32
    return %c0_i32, %c0_i32_0 : i32, i32
  }
  func.func @transform_3(%arg0: i32) -> (i32, i32) {
    %c0_i32 = arith.constant 0 : i32
    %c0_i32_0 = arith.constant 0 : i32
    %c0_i32_1 = arith.constant 0 : i32
    return %c0_i32, %c0_i32_0 : i32, i32
  }
  func.func @transform_4(%arg0: i32) -> (i32, i32) {
    %c0_i32 = arith.constant 0 : i32
    %c0_i32_0 = arith.constant 0 : i32
    return %arg0, %c0_i32 : i32, i32
  }
}

module attributes {stable_mosaic.version = 11 : i64} {
  func.func @_conv_bn_prelu_kernel(%arg0: i32, %arg1: memref<8x128xbf16, #tpu.memory_space<vmem>>, %arg2: memref<128x16xbf16, #tpu.memory_space<vmem>>, %arg3: memref<1x16xf32, #tpu.memory_space<vmem>>, %arg4: memref<1x16xf32, #tpu.memory_space<vmem>>, %arg5: memref<8x16xbf16, #tpu.memory_space<vmem>>) attributes {dimension_semantics = [#tpu.dimension_semantics<parallel>], iteration_bounds = array<i64: 1>, scalar_prefetch = 0 : i64, scratch_operands = 0 : i64, tpu.core_type = #tpu.core_type<tc>, window_params = [{transform_indices = @transform_0, window_bounds = array<i64: 8, 128>}, {pipeline_mode = #tpu.pipeline_mode<synchronous>, transform_indices = @transform_1, window_bounds = array<i64: 128, 16>}, {pipeline_mode = #tpu.pipeline_mode<synchronous>, transform_indices = @transform_2, window_bounds = array<i64: 1, 16>}, {pipeline_mode = #tpu.pipeline_mode<synchronous>, transform_indices = @transform_3, window_bounds = array<i64: 1, 16>}, {transform_indices = @transform_4, window_bounds = array<i64: 8, 16>}]} {
    %c0 = arith.constant 0 : index
    %c0_0 = arith.constant 0 : index
    %0 = vector.load %arg1[%c0, %c0_0] : memref<8x128xbf16, #tpu.memory_space<vmem>>, vector<8x128xbf16>
    %c0_1 = arith.constant 0 : index
    %c0_2 = arith.constant 0 : index
    %1 = vector.load %arg2[%c0_1, %c0_2] : memref<128x16xbf16, #tpu.memory_space<vmem>>, vector<128x16xbf16>
    %cst = arith.constant dense<0.000000e+00> : vector<8x16xf32>
    %2 = tpu.matmul %0, %1, %cst {dimension_numbers = #tpu.dot_dimension_numbers<[1], [0], [0], [1], [0, 0, 1, 1], [], []>} : vector<8x128xbf16>, vector<128x16xbf16>, vector<8x16xf32> -> vector<8x16xf32>
    %c0_3 = arith.constant 0 : index
    %c0_4 = arith.constant 0 : index
    %3 = vector.load %arg3[%c0_3, %c0_4] : memref<1x16xf32, #tpu.memory_space<vmem>>, vector<1x16xf32>
    %4 = vector.broadcast %3 : vector<1x16xf32> to vector<8x16xf32>
    %5 = arith.addf %2, %4 : vector<8x16xf32>
    %cst_5 = arith.constant 0.000000e+00 : f32
    %6 = vector.broadcast %cst_5 : f32 to vector<8x16xf32>
    %7 = arith.cmpf oge, %5, %6 : vector<8x16xf32>
    %c0_6 = arith.constant 0 : index
    %c0_7 = arith.constant 0 : index
    %8 = vector.load %arg4[%c0_6, %c0_7] : memref<1x16xf32, #tpu.memory_space<vmem>>, vector<1x16xf32>
    %9 = vector.broadcast %8 : vector<1x16xf32> to vector<8x16xf32>
    %10 = arith.mulf %9, %5 : vector<8x16xf32>
    %11 = arith.select %7, %5, %10 : vector<8x16xi1>, vector<8x16xf32>
    %12 = arith.truncf %11 : vector<8x16xf32> to vector<8x16xbf16>
    %c0_8 = arith.constant 0 : index
    %c0_9 = arith.constant 0 : index
    %13 = vector.load %arg5[%c0_8, %c0_9] : memref<8x16xbf16, #tpu.memory_space<vmem>>, vector<8x16xbf16>
    tpu.vector_store %arg5[%c0_8, %c0_9], %12 {strides = array<i32>} : memref<8x16xbf16, #tpu.memory_space<vmem>>, vector<8x16xbf16>,
    return
  }
  func.func @transform_0(%arg0: i32) -> (i32, i32) {
    %c0_i32 = arith.constant 0 : i32
    %c0_i32_0 = arith.constant 0 : i32
    return %arg0, %c0_i32 : i32, i32
  }
  func.func @transform_1(%arg0: i32) -> (i32, i32) {
    %c0_i32 = arith.constant 0 : i32
    %c0_i32_0 = arith.constant 0 : i32
    %c0_i32_1 = arith.constant 0 : i32
    return %c0_i32, %c0_i32_0 : i32, i32
  }
  func.func @transform_2(%arg0: i32) -> (i32, i32) {
    %c0_i32 = arith.constant 0 : i32
    %c0_i32_0 = arith.constant 0 : i32
    %c0_i32_1 = arith.constant 0 : i32
    return %c0_i32, %c0_i32_0 : i32, i32
  }
  func.func @transform_3(%arg0: i32) -> (i32, i32) {
    %c0_i32 = arith.constant 0 : i32
    %c0_i32_0 = arith.constant 0 : i32
    %c0_i32_1 = arith.constant 0 : i32
    return %c0_i32, %c0_i32_0 : i32, i32
  }
  func.func @transform_4(%arg0: i32) -> (i32, i32) {
    %c0_i32 = arith.constant 0 : i32
    %c0_i32_0 = arith.constant 0 : i32
    return %arg0, %c0_i32 : i32, i32
  }
}

module attributes {stable_mosaic.version = 11 : i64} {
  func.func @_conv_bn_prelu_kernel(%arg0: i32, %arg1: memref<8x32xbf16, #tpu.memory_space<vmem>>, %arg2: memref<32x16xbf16, #tpu.memory_space<vmem>>, %arg3: memref<1x16xf32, #tpu.memory_space<vmem>>, %arg4: memref<1x16xf32, #tpu.memory_space<vmem>>, %arg5: memref<8x16xbf16, #tpu.memory_space<vmem>>) attributes {dimension_semantics = [#tpu.dimension_semantics<parallel>], iteration_bounds = array<i64: 1>, scalar_prefetch = 0 : i64, scratch_operands = 0 : i64, tpu.core_type = #tpu.core_type<tc>, window_params = [{transform_indices = @transform_0, window_bounds = array<i64: 8, 32>}, {pipeline_mode = #tpu.pipeline_mode<synchronous>, transform_indices = @transform_1, window_bounds = array<i64: 32, 16>}, {pipeline_mode = #tpu.pipeline_mode<synchronous>, transform_indices = @transform_2, window_bounds = array<i64: 1, 16>}, {pipeline_mode = #tpu.pipeline_mode<synchronous>, transform_indices = @transform_3, window_bounds = array<i64: 1, 16>}, {transform_indices = @transform_4, window_bounds = array<i64: 8, 16>}]} {
    %c0 = arith.constant 0 : index
    %c0_0 = arith.constant 0 : index
    %0 = vector.load %arg1[%c0, %c0_0] : memref<8x32xbf16, #tpu.memory_space<vmem>>, vector<8x32xbf16>
    %c0_1 = arith.constant 0 : index
    %c0_2 = arith.constant 0 : index
    %1 = vector.load %arg2[%c0_1, %c0_2] : memref<32x16xbf16, #tpu.memory_space<vmem>>, vector<32x16xbf16>
    %cst = arith.constant dense<0.000000e+00> : vector<8x16xf32>
    %2 = tpu.matmul %0, %1, %cst {dimension_numbers = #tpu.dot_dimension_numbers<[1], [0], [0], [1], [0, 0, 1, 1], [], []>} : vector<8x32xbf16>, vector<32x16xbf16>, vector<8x16xf32> -> vector<8x16xf32>
    %c0_3 = arith.constant 0 : index
    %c0_4 = arith.constant 0 : index
    %3 = vector.load %arg3[%c0_3, %c0_4] : memref<1x16xf32, #tpu.memory_space<vmem>>, vector<1x16xf32>
    %4 = vector.broadcast %3 : vector<1x16xf32> to vector<8x16xf32>
    %5 = arith.addf %2, %4 : vector<8x16xf32>
    %cst_5 = arith.constant 0.000000e+00 : f32
    %6 = vector.broadcast %cst_5 : f32 to vector<8x16xf32>
    %7 = arith.cmpf oge, %5, %6 : vector<8x16xf32>
    %c0_6 = arith.constant 0 : index
    %c0_7 = arith.constant 0 : index
    %8 = vector.load %arg4[%c0_6, %c0_7] : memref<1x16xf32, #tpu.memory_space<vmem>>, vector<1x16xf32>
    %9 = vector.broadcast %8 : vector<1x16xf32> to vector<8x16xf32>
    %10 = arith.mulf %9, %5 : vector<8x16xf32>
    %11 = arith.select %7, %5, %10 : vector<8x16xi1>, vector<8x16xf32>
    %12 = arith.truncf %11 : vector<8x16xf32> to vector<8x16xbf16>
    %c0_8 = arith.constant 0 : index
    %c0_9 = arith.constant 0 : index
    %13 = vector.load %arg5[%c0_8, %c0_9] : memref<8x16xbf16, #tpu.memory_space<vmem>>, vector<8x16xbf16>
    tpu.vector_store %arg5[%c0_8, %c0_9], %12 {strides = array<i32>} : memref<8x16xbf16, #tpu.memory_space<vmem>>, vector<8x16xbf16>,
    return
  }
  func.func @transform_0(%arg0: i32) -> (i32, i32) {
    %c0_i32 = arith.constant 0 : i32
    %c0_i32_0 = arith.constant 0 : i32
    return %arg0, %c0_i32 : i32, i32
  }
  func.func @transform_1(%arg0: i32) -> (i32, i32) {
    %c0_i32 = arith.constant 0 : i32
    %c0_i32_0 = arith.constant 0 : i32
    %c0_i32_1 = arith.constant 0 : i32
    return %c0_i32, %c0_i32_0 : i32, i32
  }
  func.func @transform_2(%arg0: i32) -> (i32, i32) {
    %c0_i32 = arith.constant 0 : i32
    %c0_i32_0 = arith.constant 0 : i32
    %c0_i32_1 = arith.constant 0 : i32
    return %c0_i32, %c0_i32_0 : i32, i32
  }
  func.func @transform_3(%arg0: i32) -> (i32, i32) {
    %c0_i32 = arith.constant 0 : i32
    %c0_i32_0 = arith.constant 0 : i32
    %c0_i32_1 = arith.constant 0 : i32
    return %c0_i32, %c0_i32_0 : i32, i32
  }
  func.func @transform_4(%arg0: i32) -> (i32, i32) {
    %c0_i32 = arith.constant 0 : i32
    %c0_i32_0 = arith.constant 0 : i32
    return %arg0, %c0_i32 : i32, i32
  }
}

module attributes {stable_mosaic.version = 11 : i64} {
  func.func @_conv_bn_prelu_kernel(%arg0: i32, %arg1: memref<8x64xbf16, #tpu.memory_space<vmem>>, %arg2: memref<64x16xbf16, #tpu.memory_space<vmem>>, %arg3: memref<1x16xf32, #tpu.memory_space<vmem>>, %arg4: memref<1x16xf32, #tpu.memory_space<vmem>>, %arg5: memref<8x16xbf16, #tpu.memory_space<vmem>>) attributes {dimension_semantics = [#tpu.dimension_semantics<parallel>], iteration_bounds = array<i64: 1>, scalar_prefetch = 0 : i64, scratch_operands = 0 : i64, tpu.core_type = #tpu.core_type<tc>, window_params = [{transform_indices = @transform_0, window_bounds = array<i64: 8, 64>}, {pipeline_mode = #tpu.pipeline_mode<synchronous>, transform_indices = @transform_1, window_bounds = array<i64: 64, 16>}, {pipeline_mode = #tpu.pipeline_mode<synchronous>, transform_indices = @transform_2, window_bounds = array<i64: 1, 16>}, {pipeline_mode = #tpu.pipeline_mode<synchronous>, transform_indices = @transform_3, window_bounds = array<i64: 1, 16>}, {transform_indices = @transform_4, window_bounds = array<i64: 8, 16>}]} {
    %c0 = arith.constant 0 : index
    %c0_0 = arith.constant 0 : index
    %0 = vector.load %arg1[%c0, %c0_0] : memref<8x64xbf16, #tpu.memory_space<vmem>>, vector<8x64xbf16>
    %c0_1 = arith.constant 0 : index
    %c0_2 = arith.constant 0 : index
    %1 = vector.load %arg2[%c0_1, %c0_2] : memref<64x16xbf16, #tpu.memory_space<vmem>>, vector<64x16xbf16>
    %cst = arith.constant dense<0.000000e+00> : vector<8x16xf32>
    %2 = tpu.matmul %0, %1, %cst {dimension_numbers = #tpu.dot_dimension_numbers<[1], [0], [0], [1], [0, 0, 1, 1], [], []>} : vector<8x64xbf16>, vector<64x16xbf16>, vector<8x16xf32> -> vector<8x16xf32>
    %c0_3 = arith.constant 0 : index
    %c0_4 = arith.constant 0 : index
    %3 = vector.load %arg3[%c0_3, %c0_4] : memref<1x16xf32, #tpu.memory_space<vmem>>, vector<1x16xf32>
    %4 = vector.broadcast %3 : vector<1x16xf32> to vector<8x16xf32>
    %5 = arith.addf %2, %4 : vector<8x16xf32>
    %cst_5 = arith.constant 0.000000e+00 : f32
    %6 = vector.broadcast %cst_5 : f32 to vector<8x16xf32>
    %7 = arith.cmpf oge, %5, %6 : vector<8x16xf32>
    %c0_6 = arith.constant 0 : index
    %c0_7 = arith.constant 0 : index
    %8 = vector.load %arg4[%c0_6, %c0_7] : memref<1x16xf32, #tpu.memory_space<vmem>>, vector<1x16xf32>
    %9 = vector.broadcast %8 : vector<1x16xf32> to vector<8x16xf32>
    %10 = arith.mulf %9, %5 : vector<8x16xf32>
    %11 = arith.select %7, %5, %10 : vector<8x16xi1>, vector<8x16xf32>
    %12 = arith.truncf %11 : vector<8x16xf32> to vector<8x16xbf16>
    %c0_8 = arith.constant 0 : index
    %c0_9 = arith.constant 0 : index
    %13 = vector.load %arg5[%c0_8, %c0_9] : memref<8x16xbf16, #tpu.memory_space<vmem>>, vector<8x16xbf16>
    tpu.vector_store %arg5[%c0_8, %c0_9], %12 {strides = array<i32>} : memref<8x16xbf16, #tpu.memory_space<vmem>>, vector<8x16xbf16>,
    return
  }
  func.func @transform_0(%arg0: i32) -> (i32, i32) {
    %c0_i32 = arith.constant 0 : i32
    %c0_i32_0 = arith.constant 0 : i32
    return %arg0, %c0_i32 : i32, i32
  }
  func.func @transform_1(%arg0: i32) -> (i32, i32) {
    %c0_i32 = arith.constant 0 : i32
    %c0_i32_0 = arith.constant 0 : i32
    %c0_i32_1 = arith.constant 0 : i32
    return %c0_i32, %c0_i32_0 : i32, i32
  }
  func.func @transform_2(%arg0: i32) -> (i32, i32) {
    %c0_i32 = arith.constant 0 : i32
    %c0_i32_0 = arith.constant 0 : i32
    %c0_i32_1 = arith.constant 0 : i32
    return %c0_i32, %c0_i32_0 : i32, i32
  }
  func.func @transform_3(%arg0: i32) -> (i32, i32) {
    %c0_i32 = arith.constant 0 : i32
    %c0_i32_0 = arith.constant 0 : i32
    %c0_i32_1 = arith.constant 0 : i32
    return %c0_i32, %c0_i32_0 : i32, i32
  }
  func.func @transform_4(%arg0: i32) -> (i32, i32) {
    %c0_i32 = arith.constant 0 : i32
    %c0_i32_0 = arith.constant 0 : i32
    return %arg0, %c0_i32 : i32, i32
  }
}

module attributes {stable_mosaic.version = 11 : i64} {
  func.func @_conv_bn_prelu_kernel(%arg0: i32, %arg1: memref<8x16xbf16, #tpu.memory_space<vmem>>, %arg2: memref<16x16xbf16, #tpu.memory_space<vmem>>, %arg3: memref<1x16xf32, #tpu.memory_space<vmem>>, %arg4: memref<1x16xf32, #tpu.memory_space<vmem>>, %arg5: memref<8x16xbf16, #tpu.memory_space<vmem>>) attributes {dimension_semantics = [#tpu.dimension_semantics<parallel>], iteration_bounds = array<i64: 1>, scalar_prefetch = 0 : i64, scratch_operands = 0 : i64, tpu.core_type = #tpu.core_type<tc>, window_params = [{transform_indices = @transform_0, window_bounds = array<i64: 8, 16>}, {pipeline_mode = #tpu.pipeline_mode<synchronous>, transform_indices = @transform_1, window_bounds = array<i64: 16, 16>}, {pipeline_mode = #tpu.pipeline_mode<synchronous>, transform_indices = @transform_2, window_bounds = array<i64: 1, 16>}, {pipeline_mode = #tpu.pipeline_mode<synchronous>, transform_indices = @transform_3, window_bounds = array<i64: 1, 16>}, {transform_indices = @transform_4, window_bounds = array<i64: 8, 16>}]} {
    %c0 = arith.constant 0 : index
    %c0_0 = arith.constant 0 : index
    %0 = vector.load %arg1[%c0, %c0_0] : memref<8x16xbf16, #tpu.memory_space<vmem>>, vector<8x16xbf16>
    %c0_1 = arith.constant 0 : index
    %c0_2 = arith.constant 0 : index
    %1 = vector.load %arg2[%c0_1, %c0_2] : memref<16x16xbf16, #tpu.memory_space<vmem>>, vector<16x16xbf16>
    %cst = arith.constant dense<0.000000e+00> : vector<8x16xf32>
    %2 = tpu.matmul %0, %1, %cst {dimension_numbers = #tpu.dot_dimension_numbers<[1], [0], [0], [1], [0, 0, 1, 1], [], []>} : vector<8x16xbf16>, vector<16x16xbf16>, vector<8x16xf32> -> vector<8x16xf32>
    %c0_3 = arith.constant 0 : index
    %c0_4 = arith.constant 0 : index
    %3 = vector.load %arg3[%c0_3, %c0_4] : memref<1x16xf32, #tpu.memory_space<vmem>>, vector<1x16xf32>
    %4 = vector.broadcast %3 : vector<1x16xf32> to vector<8x16xf32>
    %5 = arith.addf %2, %4 : vector<8x16xf32>
    %cst_5 = arith.constant 0.000000e+00 : f32
    %6 = vector.broadcast %cst_5 : f32 to vector<8x16xf32>
    %7 = arith.cmpf oge, %5, %6 : vector<8x16xf32>
    %c0_6 = arith.constant 0 : index
    %c0_7 = arith.constant 0 : index
    %8 = vector.load %arg4[%c0_6, %c0_7] : memref<1x16xf32, #tpu.memory_space<vmem>>, vector<1x16xf32>
    %9 = vector.broadcast %8 : vector<1x16xf32> to vector<8x16xf32>
    %10 = arith.mulf %9, %5 : vector<8x16xf32>
    %11 = arith.select %7, %5, %10 : vector<8x16xi1>, vector<8x16xf32>
    %12 = arith.truncf %11 : vector<8x16xf32> to vector<8x16xbf16>
    %c0_8 = arith.constant 0 : index
    %c0_9 = arith.constant 0 : index
    %13 = vector.load %arg5[%c0_8, %c0_9] : memref<8x16xbf16, #tpu.memory_space<vmem>>, vector<8x16xbf16>
    tpu.vector_store %arg5[%c0_8, %c0_9], %12 {strides = array<i32>} : memref<8x16xbf16, #tpu.memory_space<vmem>>, vector<8x16xbf16>,
    return
  }
  func.func @transform_0(%arg0: i32) -> (i32, i32) {
    %c0_i32 = arith.constant 0 : i32
    %c0_i32_0 = arith.constant 0 : i32
    return %arg0, %c0_i32 : i32, i32
  }
  func.func @transform_1(%arg0: i32) -> (i32, i32) {
    %c0_i32 = arith.constant 0 : i32
    %c0_i32_0 = arith.constant 0 : i32
    %c0_i32_1 = arith.constant 0 : i32
    return %c0_i32, %c0_i32_0 : i32, i32
  }
  func.func @transform_2(%arg0: i32) -> (i32, i32) {
    %c0_i32 = arith.constant 0 : i32
    %c0_i32_0 = arith.constant 0 : i32
    %c0_i32_1 = arith.constant 0 : i32
    return %c0_i32, %c0_i32_0 : i32, i32
  }
  func.func @transform_3(%arg0: i32) -> (i32, i32) {
    %c0_i32 = arith.constant 0 : i32
    %c0_i32_0 = arith.constant 0 : i32
    %c0_i32_1 = arith.constant 0 : i32
    return %c0_i32, %c0_i32_0 : i32, i32
  }
  func.func @transform_4(%arg0: i32) -> (i32, i32) {
    %c0_i32 = arith.constant 0 : i32
    %c0_i32_0 = arith.constant 0 : i32
    return %arg0, %c0_i32 : i32, i32
  }
}

module attributes {stable_mosaic.version = 11 : i64} {
  func.func @_conv_bn_prelu_kernel(%arg0: i32, %arg1: memref<32x8xbf16, #tpu.memory_space<vmem>>, %arg2: memref<8x4xbf16, #tpu.memory_space<vmem>>, %arg3: memref<1x4xf32, #tpu.memory_space<vmem>>, %arg4: memref<1x4xf32, #tpu.memory_space<vmem>>, %arg5: memref<32x4xbf16, #tpu.memory_space<vmem>>) attributes {dimension_semantics = [#tpu.dimension_semantics<parallel>], iteration_bounds = array<i64: 1>, scalar_prefetch = 0 : i64, scratch_operands = 0 : i64, tpu.core_type = #tpu.core_type<tc>, window_params = [{transform_indices = @transform_0, window_bounds = array<i64: 32, 8>}, {pipeline_mode = #tpu.pipeline_mode<synchronous>, transform_indices = @transform_1, window_bounds = array<i64: 8, 4>}, {pipeline_mode = #tpu.pipeline_mode<synchronous>, transform_indices = @transform_2, window_bounds = array<i64: 1, 4>}, {pipeline_mode = #tpu.pipeline_mode<synchronous>, transform_indices = @transform_3, window_bounds = array<i64: 1, 4>}, {transform_indices = @transform_4, window_bounds = array<i64: 32, 4>}]} {
    %c0 = arith.constant 0 : index
    %c0_0 = arith.constant 0 : index
    %0 = vector.load %arg1[%c0, %c0_0] : memref<32x8xbf16, #tpu.memory_space<vmem>>, vector<32x8xbf16>
    %c0_1 = arith.constant 0 : index
    %c0_2 = arith.constant 0 : index
    %1 = vector.load %arg2[%c0_1, %c0_2] : memref<8x4xbf16, #tpu.memory_space<vmem>>, vector<8x4xbf16>
    %cst = arith.constant dense<0.000000e+00> : vector<32x4xf32>
    %2 = tpu.matmul %0, %1, %cst {dimension_numbers = #tpu.dot_dimension_numbers<[1], [0], [0], [1], [0, 0, 1, 1], [], []>} : vector<32x8xbf16>, vector<8x4xbf16>, vector<32x4xf32> -> vector<32x4xf32>
    %c0_3 = arith.constant 0 : index
    %c0_4 = arith.constant 0 : index
    %3 = vector.load %arg3[%c0_3, %c0_4] : memref<1x4xf32, #tpu.memory_space<vmem>>, vector<1x4xf32>
    %4 = vector.broadcast %3 : vector<1x4xf32> to vector<32x4xf32>
    %5 = arith.addf %2, %4 : vector<32x4xf32>
    %cst_5 = arith.constant 0.000000e+00 : f32
    %6 = vector.broadcast %cst_5 : f32 to vector<32x4xf32>
    %7 = arith.cmpf oge, %5, %6 : vector<32x4xf32>
    %c0_6 = arith.constant 0 : index
    %c0_7 = arith.constant 0 : index
    %8 = vector.load %arg4[%c0_6, %c0_7] : memref<1x4xf32, #tpu.memory_space<vmem>>, vector<1x4xf32>
    %9 = vector.broadcast %8 : vector<1x4xf32> to vector<32x4xf32>
    %10 = arith.mulf %9, %5 : vector<32x4xf32>
    %11 = arith.select %7, %5, %10 : vector<32x4xi1>, vector<32x4xf32>
    %12 = arith.truncf %11 : vector<32x4xf32> to vector<32x4xbf16>
    %c0_8 = arith.constant 0 : index
    %c0_9 = arith.constant 0 : index
    %13 = vector.load %arg5[%c0_8, %c0_9] : memref<32x4xbf16, #tpu.memory_space<vmem>>, vector<32x4xbf16>
    tpu.vector_store %arg5[%c0_8, %c0_9], %12 {strides = array<i32>} : memref<32x4xbf16, #tpu.memory_space<vmem>>, vector<32x4xbf16>,
    return
  }
  func.func @transform_0(%arg0: i32) -> (i32, i32) {
    %c0_i32 = arith.constant 0 : i32
    %c0_i32_0 = arith.constant 0 : i32
    return %arg0, %c0_i32 : i32, i32
  }
  func.func @transform_1(%arg0: i32) -> (i32, i32) {
    %c0_i32 = arith.constant 0 : i32
    %c0_i32_0 = arith.constant 0 : i32
    %c0_i32_1 = arith.constant 0 : i32
    return %c0_i32, %c0_i32_0 : i32, i32
  }
  func.func @transform_2(%arg0: i32) -> (i32, i32) {
    %c0_i32 = arith.constant 0 : i32
    %c0_i32_0 = arith.constant 0 : i32
    %c0_i32_1 = arith.constant 0 : i32
    return %c0_i32, %c0_i32_0 : i32, i32
  }
  func.func @transform_3(%arg0: i32) -> (i32, i32) {
    %c0_i32 = arith.constant 0 : i32
    %c0_i32_0 = arith.constant 0 : i32
    %c0_i32_1 = arith.constant 0 : i32
    return %c0_i32, %c0_i32_0 : i32, i32
  }
  func.func @transform_4(%arg0: i32) -> (i32, i32) {
    %c0_i32 = arith.constant 0 : i32
    %c0_i32_0 = arith.constant 0 : i32
    return %arg0, %c0_i32 : i32, i32
  }
}

module attributes {stable_mosaic.version = 11 : i64} {
  func.func @_conv_bn_prelu_kernel(%arg0: i32, %arg1: memref<32x4xbf16, #tpu.memory_space<vmem>>, %arg2: memref<4x4xbf16, #tpu.memory_space<vmem>>, %arg3: memref<1x4xf32, #tpu.memory_space<vmem>>, %arg4: memref<1x4xf32, #tpu.memory_space<vmem>>, %arg5: memref<32x4xbf16, #tpu.memory_space<vmem>>) attributes {dimension_semantics = [#tpu.dimension_semantics<parallel>], iteration_bounds = array<i64: 1>, scalar_prefetch = 0 : i64, scratch_operands = 0 : i64, tpu.core_type = #tpu.core_type<tc>, window_params = [{transform_indices = @transform_0, window_bounds = array<i64: 32, 4>}, {pipeline_mode = #tpu.pipeline_mode<synchronous>, transform_indices = @transform_1, window_bounds = array<i64: 4, 4>}, {pipeline_mode = #tpu.pipeline_mode<synchronous>, transform_indices = @transform_2, window_bounds = array<i64: 1, 4>}, {pipeline_mode = #tpu.pipeline_mode<synchronous>, transform_indices = @transform_3, window_bounds = array<i64: 1, 4>}, {transform_indices = @transform_4, window_bounds = array<i64: 32, 4>}]} {
    %c0 = arith.constant 0 : index
    %c0_0 = arith.constant 0 : index
    %0 = vector.load %arg1[%c0, %c0_0] : memref<32x4xbf16, #tpu.memory_space<vmem>>, vector<32x4xbf16>
    %c0_1 = arith.constant 0 : index
    %c0_2 = arith.constant 0 : index
    %1 = vector.load %arg2[%c0_1, %c0_2] : memref<4x4xbf16, #tpu.memory_space<vmem>>, vector<4x4xbf16>
    %cst = arith.constant dense<0.000000e+00> : vector<32x4xf32>
    %2 = tpu.matmul %0, %1, %cst {dimension_numbers = #tpu.dot_dimension_numbers<[1], [0], [0], [1], [0, 0, 1, 1], [], []>} : vector<32x4xbf16>, vector<4x4xbf16>, vector<32x4xf32> -> vector<32x4xf32>
    %c0_3 = arith.constant 0 : index
    %c0_4 = arith.constant 0 : index
    %3 = vector.load %arg3[%c0_3, %c0_4] : memref<1x4xf32, #tpu.memory_space<vmem>>, vector<1x4xf32>
    %4 = vector.broadcast %3 : vector<1x4xf32> to vector<32x4xf32>
    %5 = arith.addf %2, %4 : vector<32x4xf32>
    %cst_5 = arith.constant 0.000000e+00 : f32
    %6 = vector.broadcast %cst_5 : f32 to vector<32x4xf32>
    %7 = arith.cmpf oge, %5, %6 : vector<32x4xf32>
    %c0_6 = arith.constant 0 : index
    %c0_7 = arith.constant 0 : index
    %8 = vector.load %arg4[%c0_6, %c0_7] : memref<1x4xf32, #tpu.memory_space<vmem>>, vector<1x4xf32>
    %9 = vector.broadcast %8 : vector<1x4xf32> to vector<32x4xf32>
    %10 = arith.mulf %9, %5 : vector<32x4xf32>
    %11 = arith.select %7, %5, %10 : vector<32x4xi1>, vector<32x4xf32>
    %12 = arith.truncf %11 : vector<32x4xf32> to vector<32x4xbf16>
    %c0_8 = arith.constant 0 : index
    %c0_9 = arith.constant 0 : index
    %13 = vector.load %arg5[%c0_8, %c0_9] : memref<32x4xbf16, #tpu.memory_space<vmem>>, vector<32x4xbf16>
    tpu.vector_store %arg5[%c0_8, %c0_9], %12 {strides = array<i32>} : memref<32x4xbf16, #tpu.memory_space<vmem>>, vector<32x4xbf16>,
    return
  }
  func.func @transform_0(%arg0: i32) -> (i32, i32) {
    %c0_i32 = arith.constant 0 : i32
    %c0_i32_0 = arith.constant 0 : i32
    return %arg0, %c0_i32 : i32, i32
  }
  func.func @transform_1(%arg0: i32) -> (i32, i32) {
    %c0_i32 = arith.constant 0 : i32
    %c0_i32_0 = arith.constant 0 : i32
    %c0_i32_1 = arith.constant 0 : i32
    return %c0_i32, %c0_i32_0 : i32, i32
  }
  func.func @transform_2(%arg0: i32) -> (i32, i32) {
    %c0_i32 = arith.constant 0 : i32
    %c0_i32_0 = arith.constant 0 : i32
    %c0_i32_1 = arith.constant 0 : i32
    return %c0_i32, %c0_i32_0 : i32, i32
  }
  func.func @transform_3(%arg0: i32) -> (i32, i32) {
    %c0_i32 = arith.constant 0 : i32
    %c0_i32_0 = arith.constant 0 : i32
    %c0_i32_1 = arith.constant 0 : i32
    return %c0_i32, %c0_i32_0 : i32, i32
  }
  func.func @transform_4(%arg0: i32) -> (i32, i32) {
    %c0_i32 = arith.constant 0 : i32
    %c0_i32_0 = arith.constant 0 : i32
    return %arg0, %c0_i32 : i32, i32
  }
}

module attributes {stable_mosaic.version = 11 : i64} {
  func.func @_conv_bn_prelu_kernel(%arg0: i32, %arg1: memref<32x16xbf16, #tpu.memory_space<vmem>>, %arg2: memref<16x4xbf16, #tpu.memory_space<vmem>>, %arg3: memref<1x4xf32, #tpu.memory_space<vmem>>, %arg4: memref<1x4xf32, #tpu.memory_space<vmem>>, %arg5: memref<32x4xbf16, #tpu.memory_space<vmem>>) attributes {dimension_semantics = [#tpu.dimension_semantics<parallel>], iteration_bounds = array<i64: 1>, scalar_prefetch = 0 : i64, scratch_operands = 0 : i64, tpu.core_type = #tpu.core_type<tc>, window_params = [{transform_indices = @transform_0, window_bounds = array<i64: 32, 16>}, {pipeline_mode = #tpu.pipeline_mode<synchronous>, transform_indices = @transform_1, window_bounds = array<i64: 16, 4>}, {pipeline_mode = #tpu.pipeline_mode<synchronous>, transform_indices = @transform_2, window_bounds = array<i64: 1, 4>}, {pipeline_mode = #tpu.pipeline_mode<synchronous>, transform_indices = @transform_3, window_bounds = array<i64: 1, 4>}, {transform_indices = @transform_4, window_bounds = array<i64: 32, 4>}]} {
    %c0 = arith.constant 0 : index
    %c0_0 = arith.constant 0 : index
    %0 = vector.load %arg1[%c0, %c0_0] : memref<32x16xbf16, #tpu.memory_space<vmem>>, vector<32x16xbf16>
    %c0_1 = arith.constant 0 : index
    %c0_2 = arith.constant 0 : index
    %1 = vector.load %arg2[%c0_1, %c0_2] : memref<16x4xbf16, #tpu.memory_space<vmem>>, vector<16x4xbf16>
    %cst = arith.constant dense<0.000000e+00> : vector<32x4xf32>
    %2 = tpu.matmul %0, %1, %cst {dimension_numbers = #tpu.dot_dimension_numbers<[1], [0], [0], [1], [0, 0, 1, 1], [], []>} : vector<32x16xbf16>, vector<16x4xbf16>, vector<32x4xf32> -> vector<32x4xf32>
    %c0_3 = arith.constant 0 : index
    %c0_4 = arith.constant 0 : index
    %3 = vector.load %arg3[%c0_3, %c0_4] : memref<1x4xf32, #tpu.memory_space<vmem>>, vector<1x4xf32>
    %4 = vector.broadcast %3 : vector<1x4xf32> to vector<32x4xf32>
    %5 = arith.addf %2, %4 : vector<32x4xf32>
    %cst_5 = arith.constant 0.000000e+00 : f32
    %6 = vector.broadcast %cst_5 : f32 to vector<32x4xf32>
    %7 = arith.cmpf oge, %5, %6 : vector<32x4xf32>
    %c0_6 = arith.constant 0 : index
    %c0_7 = arith.constant 0 : index
    %8 = vector.load %arg4[%c0_6, %c0_7] : memref<1x4xf32, #tpu.memory_space<vmem>>, vector<1x4xf32>
    %9 = vector.broadcast %8 : vector<1x4xf32> to vector<32x4xf32>
    %10 = arith.mulf %9, %5 : vector<32x4xf32>
    %11 = arith.select %7, %5, %10 : vector<32x4xi1>, vector<32x4xf32>
    %12 = arith.truncf %11 : vector<32x4xf32> to vector<32x4xbf16>
    %c0_8 = arith.constant 0 : index
    %c0_9 = arith.constant 0 : index
    %13 = vector.load %arg5[%c0_8, %c0_9] : memref<32x4xbf16, #tpu.memory_space<vmem>>, vector<32x4xbf16>
    tpu.vector_store %arg5[%c0_8, %c0_9], %12 {strides = array<i32>} : memref<32x4xbf16, #tpu.memory_space<vmem>>, vector<32x4xbf16>,
    return
  }
  func.func @transform_0(%arg0: i32) -> (i32, i32) {
    %c0_i32 = arith.constant 0 : i32
    %c0_i32_0 = arith.constant 0 : i32
    return %arg0, %c0_i32 : i32, i32
  }
  func.func @transform_1(%arg0: i32) -> (i32, i32) {
    %c0_i32 = arith.constant 0 : i32
    %c0_i32_0 = arith.constant 0 : i32
    %c0_i32_1 = arith.constant 0 : i32
    return %c0_i32, %c0_i32_0 : i32, i32
  }
  func.func @transform_2(%arg0: i32) -> (i32, i32) {
    %c0_i32 = arith.constant 0 : i32
    %c0_i32_0 = arith.constant 0 : i32
    %c0_i32_1 = arith.constant 0 : i32
    return %c0_i32, %c0_i32_0 : i32, i32
  }
  func.func @transform_3(%arg0: i32) -> (i32, i32) {
    %c0_i32 = arith.constant 0 : i32
    %c0_i32_0 = arith.constant 0 : i32
    %c0_i32_1 = arith.constant 0 : i32
    return %c0_i32, %c0_i32_0 : i32, i32
  }
  func.func @transform_4(%arg0: i32) -> (i32, i32) {
    %c0_i32 = arith.constant 0 : i32
    %c0_i32_0 = arith.constant 0 : i32
    return %arg0, %c0_i32 : i32, i32
  }
}

module attributes {stable_mosaic.version = 11 : i64} {
  func.func @_conv_bn_prelu_kernel(%arg0: i32, %arg1: memref<128x16xbf16, #tpu.memory_space<vmem>>, %arg2: memref<16x4xbf16, #tpu.memory_space<vmem>>, %arg3: memref<1x4xf32, #tpu.memory_space<vmem>>, %arg4: memref<1x4xf32, #tpu.memory_space<vmem>>, %arg5: memref<128x4xbf16, #tpu.memory_space<vmem>>) attributes {dimension_semantics = [#tpu.dimension_semantics<parallel>], iteration_bounds = array<i64: 1>, scalar_prefetch = 0 : i64, scratch_operands = 0 : i64, tpu.core_type = #tpu.core_type<tc>, window_params = [{transform_indices = @transform_0, window_bounds = array<i64: 128, 16>}, {pipeline_mode = #tpu.pipeline_mode<synchronous>, transform_indices = @transform_1, window_bounds = array<i64: 16, 4>}, {pipeline_mode = #tpu.pipeline_mode<synchronous>, transform_indices = @transform_2, window_bounds = array<i64: 1, 4>}, {pipeline_mode = #tpu.pipeline_mode<synchronous>, transform_indices = @transform_3, window_bounds = array<i64: 1, 4>}, {transform_indices = @transform_4, window_bounds = array<i64: 128, 4>}]} {
    %c0 = arith.constant 0 : index
    %c0_0 = arith.constant 0 : index
    %0 = vector.load %arg1[%c0, %c0_0] : memref<128x16xbf16, #tpu.memory_space<vmem>>, vector<128x16xbf16>
    %c0_1 = arith.constant 0 : index
    %c0_2 = arith.constant 0 : index
    %1 = vector.load %arg2[%c0_1, %c0_2] : memref<16x4xbf16, #tpu.memory_space<vmem>>, vector<16x4xbf16>
    %cst = arith.constant dense<0.000000e+00> : vector<128x4xf32>
    %2 = tpu.matmul %0, %1, %cst {dimension_numbers = #tpu.dot_dimension_numbers<[1], [0], [0], [1], [0, 0, 1, 1], [], []>} : vector<128x16xbf16>, vector<16x4xbf16>, vector<128x4xf32> -> vector<128x4xf32>
    %c0_3 = arith.constant 0 : index
    %c0_4 = arith.constant 0 : index
    %3 = vector.load %arg3[%c0_3, %c0_4] : memref<1x4xf32, #tpu.memory_space<vmem>>, vector<1x4xf32>
    %4 = vector.broadcast %3 : vector<1x4xf32> to vector<128x4xf32>
    %5 = arith.addf %2, %4 : vector<128x4xf32>
    %cst_5 = arith.constant 0.000000e+00 : f32
    %6 = vector.broadcast %cst_5 : f32 to vector<128x4xf32>
    %7 = arith.cmpf oge, %5, %6 : vector<128x4xf32>
    %c0_6 = arith.constant 0 : index
    %c0_7 = arith.constant 0 : index
    %8 = vector.load %arg4[%c0_6, %c0_7] : memref<1x4xf32, #tpu.memory_space<vmem>>, vector<1x4xf32>
    %9 = vector.broadcast %8 : vector<1x4xf32> to vector<128x4xf32>
    %10 = arith.mulf %9, %5 : vector<128x4xf32>
    %11 = arith.select %7, %5, %10 : vector<128x4xi1>, vector<128x4xf32>
    %12 = arith.truncf %11 : vector<128x4xf32> to vector<128x4xbf16>
    %c0_8 = arith.constant 0 : index
    %c0_9 = arith.constant 0 : index
    %13 = vector.load %arg5[%c0_8, %c0_9] : memref<128x4xbf16, #tpu.memory_space<vmem>>, vector<128x4xbf16>
    tpu.vector_store %arg5[%c0_8, %c0_9], %12 {strides = array<i32>} : memref<128x4xbf16, #tpu.memory_space<vmem>>, vector<128x4xbf16>,
    return
  }
  func.func @transform_0(%arg0: i32) -> (i32, i32) {
    %c0_i32 = arith.constant 0 : i32
    %c0_i32_0 = arith.constant 0 : i32
    return %arg0, %c0_i32 : i32, i32
  }
  func.func @transform_1(%arg0: i32) -> (i32, i32) {
    %c0_i32 = arith.constant 0 : i32
    %c0_i32_0 = arith.constant 0 : i32
    %c0_i32_1 = arith.constant 0 : i32
    return %c0_i32, %c0_i32_0 : i32, i32
  }
  func.func @transform_2(%arg0: i32) -> (i32, i32) {
    %c0_i32 = arith.constant 0 : i32
    %c0_i32_0 = arith.constant 0 : i32
    %c0_i32_1 = arith.constant 0 : i32
    return %c0_i32, %c0_i32_0 : i32, i32
  }
  func.func @transform_3(%arg0: i32) -> (i32, i32) {
    %c0_i32 = arith.constant 0 : i32
    %c0_i32_0 = arith.constant 0 : i32
    %c0_i32_1 = arith.constant 0 : i32
    return %c0_i32, %c0_i32_0 : i32, i32
  }
  func.func @transform_4(%arg0: i32) -> (i32, i32) {
    %c0_i32 = arith.constant 0 : i32
    %c0_i32_0 = arith.constant 0 : i32
    return %arg0, %c0_i32 : i32, i32
  }
}

module attributes {stable_mosaic.version = 11 : i64} {
  func.func @_conv_bn_prelu_res_kernel(%arg0: i32, %arg1: memref<128x4xbf16, #tpu.memory_space<vmem>>, %arg2: memref<4x16xbf16, #tpu.memory_space<vmem>>, %arg3: memref<1x16xf32, #tpu.memory_space<vmem>>, %arg4: memref<1x16xf32, #tpu.memory_space<vmem>>, %arg5: memref<1x16xf32, #tpu.memory_space<vmem>>, %arg6: memref<128x16xbf16, #tpu.memory_space<vmem>>, %arg7: memref<128x16xbf16, #tpu.memory_space<vmem>>) attributes {dimension_semantics = [#tpu.dimension_semantics<parallel>], iteration_bounds = array<i64: 1>, scalar_prefetch = 0 : i64, scratch_operands = 0 : i64, tpu.core_type = #tpu.core_type<tc>, window_params = [{transform_indices = @transform_0, window_bounds = array<i64: 128, 4>}, {pipeline_mode = #tpu.pipeline_mode<synchronous>, transform_indices = @transform_1, window_bounds = array<i64: 4, 16>}, {pipeline_mode = #tpu.pipeline_mode<synchronous>, transform_indices = @transform_2, window_bounds = array<i64: 1, 16>}, {pipeline_mode = #tpu.pipeline_mode<synchronous>, transform_indices = @transform_3, window_bounds = array<i64: 1, 16>}, {pipeline_mode = #tpu.pipeline_mode<synchronous>, transform_indices = @transform_4, window_bounds = array<i64: 1, 16>}, {transform_indices = @transform_5, window_bounds = array<i64: 128, 16>}, {transform_indices = @transform_6, window_bounds = array<i64: 128, 16>}]} {
    %c0 = arith.constant 0 : index
    %c0_0 = arith.constant 0 : index
    %0 = vector.load %arg1[%c0, %c0_0] : memref<128x4xbf16, #tpu.memory_space<vmem>>, vector<128x4xbf16>
    %c0_1 = arith.constant 0 : index
    %c0_2 = arith.constant 0 : index
    %1 = vector.load %arg2[%c0_1, %c0_2] : memref<4x16xbf16, #tpu.memory_space<vmem>>, vector<4x16xbf16>
    %cst = arith.constant dense<0.000000e+00> : vector<128x16xf32>
    %2 = tpu.matmul %0, %1, %cst {dimension_numbers = #tpu.dot_dimension_numbers<[1], [0], [0], [1], [0, 0, 1, 1], [], []>} : vector<128x4xbf16>, vector<4x16xbf16>, vector<128x16xf32> -> vector<128x16xf32>
    %c0_3 = arith.constant 0 : index
    %c0_4 = arith.constant 0 : index
    %3 = vector.load %arg3[%c0_3, %c0_4] : memref<1x16xf32, #tpu.memory_space<vmem>>, vector<1x16xf32>
    %4 = vector.broadcast %3 : vector<1x16xf32> to vector<128x16xf32>
    %5 = arith.addf %2, %4 : vector<128x16xf32>
    %cst_5 = arith.constant 0.000000e+00 : f32
    %6 = vector.broadcast %cst_5 : f32 to vector<128x16xf32>
    %7 = arith.cmpf oge, %5, %6 : vector<128x16xf32>
    %c0_6 = arith.constant 0 : index
    %c0_7 = arith.constant 0 : index
    %8 = vector.load %arg4[%c0_6, %c0_7] : memref<1x16xf32, #tpu.memory_space<vmem>>, vector<1x16xf32>
    %9 = vector.broadcast %8 : vector<1x16xf32> to vector<128x16xf32>
    %10 = arith.mulf %9, %5 : vector<128x16xf32>
    %11 = arith.select %7, %5, %10 : vector<128x16xi1>, vector<128x16xf32>
    %c0_8 = arith.constant 0 : index
    %c0_9 = arith.constant 0 : index
    %12 = vector.load %arg6[%c0_8, %c0_9] : memref<128x16xbf16, #tpu.memory_space<vmem>>, vector<128x16xbf16>
    %13 = arith.extf %12 : vector<128x16xbf16> to vector<128x16xf32>
    %14 = arith.addf %11, %13 : vector<128x16xf32>
    %cst_10 = arith.constant 0.000000e+00 : f32
    %15 = vector.broadcast %cst_10 : f32 to vector<128x16xf32>
    %16 = arith.cmpf oge, %14, %15 : vector<128x16xf32>
    %c0_11 = arith.constant 0 : index
    %c0_12 = arith.constant 0 : index
    %17 = vector.load %arg5[%c0_11, %c0_12] : memref<1x16xf32, #tpu.memory_space<vmem>>, vector<1x16xf32>
    %18 = vector.broadcast %17 : vector<1x16xf32> to vector<128x16xf32>
    %19 = arith.mulf %18, %14 : vector<128x16xf32>
    %20 = arith.select %16, %14, %19 : vector<128x16xi1>, vector<128x16xf32>
    %21 = arith.truncf %20 : vector<128x16xf32> to vector<128x16xbf16>
    %c0_13 = arith.constant 0 : index
    %c0_14 = arith.constant 0 : index
    %22 = vector.load %arg7[%c0_13, %c0_14] : memref<128x16xbf16, #tpu.memory_space<vmem>>, vector<128x16xbf16>
    tpu.vector_store %arg7[%c0_13, %c0_14], %21 {strides = array<i32>} : memref<128x16xbf16, #tpu.memory_space<vmem>>, vector<128x16xbf16>,
    return
  }
  func.func @transform_0(%arg0: i32) -> (i32, i32) {
    %c0_i32 = arith.constant 0 : i32
    %c0_i32_0 = arith.constant 0 : i32
    return %arg0, %c0_i32 : i32, i32
  }
  func.func @transform_1(%arg0: i32) -> (i32, i32) {
    %c0_i32 = arith.constant 0 : i32
    %c0_i32_0 = arith.constant 0 : i32
    %c0_i32_1 = arith.constant 0 : i32
    return %c0_i32, %c0_i32_0 : i32, i32
  }
  func.func @transform_2(%arg0: i32) -> (i32, i32) {
    %c0_i32 = arith.constant 0 : i32
    %c0_i32_0 = arith.constant 0 : i32
    %c0_i32_1 = arith.constant 0 : i32
    return %c0_i32, %c0_i32_0 : i32, i32
  }
  func.func @transform_3(%arg0: i32) -> (i32, i32) {
    %c0_i32 = arith.constant 0 : i32
    %c0_i32_0 = arith.constant 0 : i32
    %c0_i32_1 = arith.constant 0 : i32
    return %c0_i32, %c0_i32_0 : i32, i32
  }
  func.func @transform_4(%arg0: i32) -> (i32, i32) {
    %c0_i32 = arith.constant 0 : i32
    %c0_i32_0 = arith.constant 0 : i32
    %c0_i32_1 = arith.constant 0 : i32
    return %c0_i32, %c0_i32_0 : i32, i32
  }
  func.func @transform_5(%arg0: i32) -> (i32, i32) {
    %c0_i32 = arith.constant 0 : i32
    %c0_i32_0 = arith.constant 0 : i32
    return %arg0, %c0_i32 : i32, i32
  }
  func.func @transform_6(%arg0: i32) -> (i32, i32) {
    %c0_i32 = arith.constant 0 : i32
    %c0_i32_0 = arith.constant 0 : i32
    return %arg0, %c0_i32 : i32, i32
  }
}

module attributes {stable_mosaic.version = 11 : i64} {
  func.func @_conv_bn_prelu_kernel(%arg0: i32, %arg1: memref<128x36xbf16, #tpu.memory_space<vmem>>, %arg2: memref<36x4xbf16, #tpu.memory_space<vmem>>, %arg3: memref<1x4xf32, #tpu.memory_space<vmem>>, %arg4: memref<1x4xf32, #tpu.memory_space<vmem>>, %arg5: memref<128x4xbf16, #tpu.memory_space<vmem>>) attributes {dimension_semantics = [#tpu.dimension_semantics<parallel>], iteration_bounds = array<i64: 1>, scalar_prefetch = 0 : i64, scratch_operands = 0 : i64, tpu.core_type = #tpu.core_type<tc>, window_params = [{transform_indices = @transform_0, window_bounds = array<i64: 128, 36>}, {pipeline_mode = #tpu.pipeline_mode<synchronous>, transform_indices = @transform_1, window_bounds = array<i64: 36, 4>}, {pipeline_mode = #tpu.pipeline_mode<synchronous>, transform_indices = @transform_2, window_bounds = array<i64: 1, 4>}, {pipeline_mode = #tpu.pipeline_mode<synchronous>, transform_indices = @transform_3, window_bounds = array<i64: 1, 4>}, {transform_indices = @transform_4, window_bounds = array<i64: 128, 4>}]} {
    %c0 = arith.constant 0 : index
    %c0_0 = arith.constant 0 : index
    %0 = vector.load %arg1[%c0, %c0_0] : memref<128x36xbf16, #tpu.memory_space<vmem>>, vector<128x36xbf16>
    %c0_1 = arith.constant 0 : index
    %c0_2 = arith.constant 0 : index
    %1 = vector.load %arg2[%c0_1, %c0_2] : memref<36x4xbf16, #tpu.memory_space<vmem>>, vector<36x4xbf16>
    %cst = arith.constant dense<0.000000e+00> : vector<128x4xf32>
    %2 = tpu.matmul %0, %1, %cst {dimension_numbers = #tpu.dot_dimension_numbers<[1], [0], [0], [1], [0, 0, 1, 1], [], []>} : vector<128x36xbf16>, vector<36x4xbf16>, vector<128x4xf32> -> vector<128x4xf32>
    %c0_3 = arith.constant 0 : index
    %c0_4 = arith.constant 0 : index
    %3 = vector.load %arg3[%c0_3, %c0_4] : memref<1x4xf32, #tpu.memory_space<vmem>>, vector<1x4xf32>
    %4 = vector.broadcast %3 : vector<1x4xf32> to vector<128x4xf32>
    %5 = arith.addf %2, %4 : vector<128x4xf32>
    %cst_5 = arith.constant 0.000000e+00 : f32
    %6 = vector.broadcast %cst_5 : f32 to vector<128x4xf32>
    %7 = arith.cmpf oge, %5, %6 : vector<128x4xf32>
    %c0_6 = arith.constant 0 : index
    %c0_7 = arith.constant 0 : index
    %8 = vector.load %arg4[%c0_6, %c0_7] : memref<1x4xf32, #tpu.memory_space<vmem>>, vector<1x4xf32>
    %9 = vector.broadcast %8 : vector<1x4xf32> to vector<128x4xf32>
    %10 = arith.mulf %9, %5 : vector<128x4xf32>
    %11 = arith.select %7, %5, %10 : vector<128x4xi1>, vector<128x4xf32>
    %12 = arith.truncf %11 : vector<128x4xf32> to vector<128x4xbf16>
    %c0_8 = arith.constant 0 : index
    %c0_9 = arith.constant 0 : index
    %13 = vector.load %arg5[%c0_8, %c0_9] : memref<128x4xbf16, #tpu.memory_space<vmem>>, vector<128x4xbf16>
    tpu.vector_store %arg5[%c0_8, %c0_9], %12 {strides = array<i32>} : memref<128x4xbf16, #tpu.memory_space<vmem>>, vector<128x4xbf16>,
    return
  }
  func.func @transform_0(%arg0: i32) -> (i32, i32) {
    %c0_i32 = arith.constant 0 : i32
    %c0_i32_0 = arith.constant 0 : i32
    return %arg0, %c0_i32 : i32, i32
  }
  func.func @transform_1(%arg0: i32) -> (i32, i32) {
    %c0_i32 = arith.constant 0 : i32
    %c0_i32_0 = arith.constant 0 : i32
    %c0_i32_1 = arith.constant 0 : i32
    return %c0_i32, %c0_i32_0 : i32, i32
  }
  func.func @transform_2(%arg0: i32) -> (i32, i32) {
    %c0_i32 = arith.constant 0 : i32
    %c0_i32_0 = arith.constant 0 : i32
    %c0_i32_1 = arith.constant 0 : i32
    return %c0_i32, %c0_i32_0 : i32, i32
  }
  func.func @transform_3(%arg0: i32) -> (i32, i32) {
    %c0_i32 = arith.constant 0 : i32
    %c0_i32_0 = arith.constant 0 : i32
    %c0_i32_1 = arith.constant 0 : i32
    return %c0_i32, %c0_i32_0 : i32, i32
  }
  func.func @transform_4(%arg0: i32) -> (i32, i32) {
    %c0_i32 = arith.constant 0 : i32
    %c0_i32_0 = arith.constant 0 : i32
    return %arg0, %c0_i32 : i32, i32
  }
}

module attributes {stable_mosaic.version = 11 : i64} {
  func.func @_conv_bn_prelu_kernel(%arg0: i32, %arg1: memref<128x32xbf16, #tpu.memory_space<vmem>>, %arg2: memref<32x4xbf16, #tpu.memory_space<vmem>>, %arg3: memref<1x4xf32, #tpu.memory_space<vmem>>, %arg4: memref<1x4xf32, #tpu.memory_space<vmem>>, %arg5: memref<128x4xf32, #tpu.memory_space<vmem>>) attributes {dimension_semantics = [#tpu.dimension_semantics<parallel>], iteration_bounds = array<i64: 1>, scalar_prefetch = 0 : i64, scratch_operands = 0 : i64, tpu.core_type = #tpu.core_type<tc>, window_params = [{transform_indices = @transform_0, window_bounds = array<i64: 128, 32>}, {pipeline_mode = #tpu.pipeline_mode<synchronous>, transform_indices = @transform_1, window_bounds = array<i64: 32, 4>}, {pipeline_mode = #tpu.pipeline_mode<synchronous>, transform_indices = @transform_2, window_bounds = array<i64: 1, 4>}, {pipeline_mode = #tpu.pipeline_mode<synchronous>, transform_indices = @transform_3, window_bounds = array<i64: 1, 4>}, {transform_indices = @transform_4, window_bounds = array<i64: 128, 4>}]} {
    %c0 = arith.constant 0 : index
    %c0_0 = arith.constant 0 : index
    %0 = vector.load %arg1[%c0, %c0_0] : memref<128x32xbf16, #tpu.memory_space<vmem>>, vector<128x32xbf16>
    %c0_1 = arith.constant 0 : index
    %c0_2 = arith.constant 0 : index
    %1 = vector.load %arg2[%c0_1, %c0_2] : memref<32x4xbf16, #tpu.memory_space<vmem>>, vector<32x4xbf16>
    %cst = arith.constant dense<0.000000e+00> : vector<128x4xf32>
    %2 = tpu.matmul %0, %1, %cst {dimension_numbers = #tpu.dot_dimension_numbers<[1], [0], [0], [1], [0, 0, 1, 1], [], []>} : vector<128x32xbf16>, vector<32x4xbf16>, vector<128x4xf32> -> vector<128x4xf32>
    %c0_3 = arith.constant 0 : index
    %c0_4 = arith.constant 0 : index
    %3 = vector.load %arg3[%c0_3, %c0_4] : memref<1x4xf32, #tpu.memory_space<vmem>>, vector<1x4xf32>
    %4 = vector.broadcast %3 : vector<1x4xf32> to vector<128x4xf32>
    %5 = arith.addf %2, %4 : vector<128x4xf32>
    %cst_5 = arith.constant 0.000000e+00 : f32
    %6 = vector.broadcast %cst_5 : f32 to vector<128x4xf32>
    %7 = arith.cmpf oge, %5, %6 : vector<128x4xf32>
    %c0_6 = arith.constant 0 : index
    %c0_7 = arith.constant 0 : index
    %8 = vector.load %arg4[%c0_6, %c0_7] : memref<1x4xf32, #tpu.memory_space<vmem>>, vector<1x4xf32>
    %9 = vector.broadcast %8 : vector<1x4xf32> to vector<128x4xf32>
    %10 = arith.mulf %9, %5 : vector<128x4xf32>
    %11 = arith.select %7, %5, %10 : vector<128x4xi1>, vector<128x4xf32>
    %c0_8 = arith.constant 0 : index
    %c0_9 = arith.constant 0 : index
    %12 = vector.load %arg5[%c0_8, %c0_9] : memref<128x4xf32, #tpu.memory_space<vmem>>, vector<128x4xf32>
    tpu.vector_store %arg5[%c0_8, %c0_9], %11 {strides = array<i32>} : memref<128x4xf32, #tpu.memory_space<vmem>>, vector<128x4xf32>,
    return
  }
  func.func @transform_0(%arg0: i32) -> (i32, i32) {
    %c0_i32 = arith.constant 0 : i32
    %c0_i32_0 = arith.constant 0 : i32
    return %arg0, %c0_i32 : i32, i32
  }
  func.func @transform_1(%arg0: i32) -> (i32, i32) {
    %c0_i32 = arith.constant 0 : i32
    %c0_i32_0 = arith.constant 0 : i32
    %c0_i32_1 = arith.constant 0 : i32
    return %c0_i32, %c0_i32_0 : i32, i32
  }
  func.func @transform_2(%arg0: i32) -> (i32, i32) {
    %c0_i32 = arith.constant 0 : i32
    %c0_i32_0 = arith.constant 0 : i32
    %c0_i32_1 = arith.constant 0 : i32
    return %c0_i32, %c0_i32_0 : i32, i32
  }
  func.func @transform_3(%arg0: i32) -> (i32, i32) {
    %c0_i32 = arith.constant 0 : i32
    %c0_i32_0 = arith.constant 0 : i32
    %c0_i32_1 = arith.constant 0 : i32
    return %c0_i32, %c0_i32_0 : i32, i32
  }
  func.func @transform_4(%arg0: i32) -> (i32, i32) {
    %c0_i32 = arith.constant 0 : i32
    %c0_i32_0 = arith.constant 0 : i32
    return %arg0, %c0_i32 : i32, i32
  }
}

module attributes {stable_mosaic.version = 11 : i64} {
  func.func @_conv_bn_prelu_kernel(%arg0: i32, %arg1: memref<128x64xbf16, #tpu.memory_space<vmem>>, %arg2: memref<64x4xbf16, #tpu.memory_space<vmem>>, %arg3: memref<1x4xf32, #tpu.memory_space<vmem>>, %arg4: memref<1x4xf32, #tpu.memory_space<vmem>>, %arg5: memref<128x4xf32, #tpu.memory_space<vmem>>) attributes {dimension_semantics = [#tpu.dimension_semantics<parallel>], iteration_bounds = array<i64: 1>, scalar_prefetch = 0 : i64, scratch_operands = 0 : i64, tpu.core_type = #tpu.core_type<tc>, window_params = [{transform_indices = @transform_0, window_bounds = array<i64: 128, 64>}, {pipeline_mode = #tpu.pipeline_mode<synchronous>, transform_indices = @transform_1, window_bounds = array<i64: 64, 4>}, {pipeline_mode = #tpu.pipeline_mode<synchronous>, transform_indices = @transform_2, window_bounds = array<i64: 1, 4>}, {pipeline_mode = #tpu.pipeline_mode<synchronous>, transform_indices = @transform_3, window_bounds = array<i64: 1, 4>}, {transform_indices = @transform_4, window_bounds = array<i64: 128, 4>}]} {
    %c0 = arith.constant 0 : index
    %c0_0 = arith.constant 0 : index
    %0 = vector.load %arg1[%c0, %c0_0] : memref<128x64xbf16, #tpu.memory_space<vmem>>, vector<128x64xbf16>
    %c0_1 = arith.constant 0 : index
    %c0_2 = arith.constant 0 : index
    %1 = vector.load %arg2[%c0_1, %c0_2] : memref<64x4xbf16, #tpu.memory_space<vmem>>, vector<64x4xbf16>
    %cst = arith.constant dense<0.000000e+00> : vector<128x4xf32>
    %2 = tpu.matmul %0, %1, %cst {dimension_numbers = #tpu.dot_dimension_numbers<[1], [0], [0], [1], [0, 0, 1, 1], [], []>} : vector<128x64xbf16>, vector<64x4xbf16>, vector<128x4xf32> -> vector<128x4xf32>
    %c0_3 = arith.constant 0 : index
    %c0_4 = arith.constant 0 : index
    %3 = vector.load %arg3[%c0_3, %c0_4] : memref<1x4xf32, #tpu.memory_space<vmem>>, vector<1x4xf32>
    %4 = vector.broadcast %3 : vector<1x4xf32> to vector<128x4xf32>
    %5 = arith.addf %2, %4 : vector<128x4xf32>
    %cst_5 = arith.constant 0.000000e+00 : f32
    %6 = vector.broadcast %cst_5 : f32 to vector<128x4xf32>
    %7 = arith.cmpf oge, %5, %6 : vector<128x4xf32>
    %c0_6 = arith.constant 0 : index
    %c0_7 = arith.constant 0 : index
    %8 = vector.load %arg4[%c0_6, %c0_7] : memref<1x4xf32, #tpu.memory_space<vmem>>, vector<1x4xf32>
    %9 = vector.broadcast %8 : vector<1x4xf32> to vector<128x4xf32>
    %10 = arith.mulf %9, %5 : vector<128x4xf32>
    %11 = arith.select %7, %5, %10 : vector<128x4xi1>, vector<128x4xf32>
    %c0_8 = arith.constant 0 : index
    %c0_9 = arith.constant 0 : index
    %12 = vector.load %arg5[%c0_8, %c0_9] : memref<128x4xf32, #tpu.memory_space<vmem>>, vector<128x4xf32>
    tpu.vector_store %arg5[%c0_8, %c0_9], %11 {strides = array<i32>} : memref<128x4xf32, #tpu.memory_space<vmem>>, vector<128x4xf32>,
    return
  }
  func.func @transform_0(%arg0: i32) -> (i32, i32) {
    %c0_i32 = arith.constant 0 : i32
    %c0_i32_0 = arith.constant 0 : i32
    return %arg0, %c0_i32 : i32, i32
  }
  func.func @transform_1(%arg0: i32) -> (i32, i32) {
    %c0_i32 = arith.constant 0 : i32
    %c0_i32_0 = arith.constant 0 : i32
    %c0_i32_1 = arith.constant 0 : i32
    return %c0_i32, %c0_i32_0 : i32, i32
  }
  func.func @transform_2(%arg0: i32) -> (i32, i32) {
    %c0_i32 = arith.constant 0 : i32
    %c0_i32_0 = arith.constant 0 : i32
    %c0_i32_1 = arith.constant 0 : i32
    return %c0_i32, %c0_i32_0 : i32, i32
  }
  func.func @transform_3(%arg0: i32) -> (i32, i32) {
    %c0_i32 = arith.constant 0 : i32
    %c0_i32_0 = arith.constant 0 : i32
    %c0_i32_1 = arith.constant 0 : i32
    return %c0_i32, %c0_i32_0 : i32, i32
  }
  func.func @transform_4(%arg0: i32) -> (i32, i32) {
    %c0_i32 = arith.constant 0 : i32
    %c0_i32_0 = arith.constant 0 : i32
    return %arg0, %c0_i32 : i32, i32
  }
}

module attributes {stable_mosaic.version = 11 : i64} {
  func.func @_conv_bn_prelu_kernel(%arg0: i32, %arg1: memref<128x16xbf16, #tpu.memory_space<vmem>>, %arg2: memref<16x4xbf16, #tpu.memory_space<vmem>>, %arg3: memref<1x4xf32, #tpu.memory_space<vmem>>, %arg4: memref<1x4xf32, #tpu.memory_space<vmem>>, %arg5: memref<128x4xf32, #tpu.memory_space<vmem>>) attributes {dimension_semantics = [#tpu.dimension_semantics<parallel>], iteration_bounds = array<i64: 1>, scalar_prefetch = 0 : i64, scratch_operands = 0 : i64, tpu.core_type = #tpu.core_type<tc>, window_params = [{transform_indices = @transform_0, window_bounds = array<i64: 128, 16>}, {pipeline_mode = #tpu.pipeline_mode<synchronous>, transform_indices = @transform_1, window_bounds = array<i64: 16, 4>}, {pipeline_mode = #tpu.pipeline_mode<synchronous>, transform_indices = @transform_2, window_bounds = array<i64: 1, 4>}, {pipeline_mode = #tpu.pipeline_mode<synchronous>, transform_indices = @transform_3, window_bounds = array<i64: 1, 4>}, {transform_indices = @transform_4, window_bounds = array<i64: 128, 4>}]} {
    %c0 = arith.constant 0 : index
    %c0_0 = arith.constant 0 : index
    %0 = vector.load %arg1[%c0, %c0_0] : memref<128x16xbf16, #tpu.memory_space<vmem>>, vector<128x16xbf16>
    %c0_1 = arith.constant 0 : index
    %c0_2 = arith.constant 0 : index
    %1 = vector.load %arg2[%c0_1, %c0_2] : memref<16x4xbf16, #tpu.memory_space<vmem>>, vector<16x4xbf16>
    %cst = arith.constant dense<0.000000e+00> : vector<128x4xf32>
    %2 = tpu.matmul %0, %1, %cst {dimension_numbers = #tpu.dot_dimension_numbers<[1], [0], [0], [1], [0, 0, 1, 1], [], []>} : vector<128x16xbf16>, vector<16x4xbf16>, vector<128x4xf32> -> vector<128x4xf32>
    %c0_3 = arith.constant 0 : index
    %c0_4 = arith.constant 0 : index
    %3 = vector.load %arg3[%c0_3, %c0_4] : memref<1x4xf32, #tpu.memory_space<vmem>>, vector<1x4xf32>
    %4 = vector.broadcast %3 : vector<1x4xf32> to vector<128x4xf32>
    %5 = arith.addf %2, %4 : vector<128x4xf32>
    %cst_5 = arith.constant 0.000000e+00 : f32
    %6 = vector.broadcast %cst_5 : f32 to vector<128x4xf32>
    %7 = arith.cmpf oge, %5, %6 : vector<128x4xf32>
    %c0_6 = arith.constant 0 : index
    %c0_7 = arith.constant 0 : index
    %8 = vector.load %arg4[%c0_6, %c0_7] : memref<1x4xf32, #tpu.memory_space<vmem>>, vector<1x4xf32>
    %9 = vector.broadcast %8 : vector<1x4xf32> to vector<128x4xf32>
    %10 = arith.mulf %9, %5 : vector<128x4xf32>
    %11 = arith.select %7, %5, %10 : vector<128x4xi1>, vector<128x4xf32>
    %c0_8 = arith.constant 0 : index
    %c0_9 = arith.constant 0 : index
    %12 = vector.load %arg5[%c0_8, %c0_9] : memref<128x4xf32, #tpu.memory_space<vmem>>, vector<128x4xf32>
    tpu.vector_store %arg5[%c0_8, %c0_9], %11 {strides = array<i32>} : memref<128x4xf32, #tpu.memory_space<vmem>>, vector<128x4xf32>,
    return
  }
  func.func @transform_0(%arg0: i32) -> (i32, i32) {
    %c0_i32 = arith.constant 0 : i32
    %c0_i32_0 = arith.constant 0 : i32
    return %arg0, %c0_i32 : i32, i32
  }
  func.func @transform_1(%arg0: i32) -> (i32, i32) {
    %c0_i32 = arith.constant 0 : i32
    %c0_i32_0 = arith.constant 0 : i32
    %c0_i32_1 = arith.constant 0 : i32
    return %c0_i32, %c0_i32_0 : i32, i32
  }
  func.func @transform_2(%arg0: i32) -> (i32, i32) {
    %c0_i32 = arith.constant 0 : i32
    %c0_i32_0 = arith.constant 0 : i32
    %c0_i32_1 = arith.constant 0 : i32
    return %c0_i32, %c0_i32_0 : i32, i32
  }
  func.func @transform_3(%arg0: i32) -> (i32, i32) {
    %c0_i32 = arith.constant 0 : i32
    %c0_i32_0 = arith.constant 0 : i32
    %c0_i32_1 = arith.constant 0 : i32
    return %c0_i32, %c0_i32_0 : i32, i32
  }
  func.func @transform_4(%arg0: i32) -> (i32, i32) {
    %c0_i32 = arith.constant 0 : i32
    %c0_i32_0 = arith.constant 0 : i32
    return %arg0, %c0_i32 : i32, i32
  }
}

</mosaic_0001>

<llo_original>
// kernel: enet_forward.98
$region0: #{enet_forward.98}
  #allocation0 [shape = 'u32[]', space=smem, size = 0x4, offset = 0x4, fixed_abs, tag = 'smem constant byte address 0x4 - core index']
  #allocation1 [shape = 'u32[144,128]{1,0:T(1,128)}', space=vmem, size = 0x12000, scoped, tag = 'internal scratch']
  %s0 = inlined_call_operand.vmem [shape: bf16[128,27], index: 0, kind: input, shape index: {}]
  %s1 = inlined_call_operand.vmem [shape: bf16[27,13], index: 1, kind: input, shape index: {}]
  %s2 = inlined_call_operand.vmem [shape: f32[1,13], index: 2, kind: input, shape index: {}]
  %s3 = inlined_call_operand.vmem [shape: f32[1,13], index: 3, kind: input, shape index: {}]
  %s4 = inlined_call_operand.vmem [shape: bf16[128,13], index: 4, kind: output, shape index: {}]
  %s5 = sld [smem:[#allocation0]]
  $region26: #{enet_forward.98} parent=0
    _
  %s7 = ssub.s32 1, %s5
  %s8 = scalar_select 0, %s7, %s5
  // Predicated region
  $region2: #{enet_forward.98} parent=0 // pred_check
    _
  $region3: #{enet_forward.98} parent=0 // pred_check_branch
    %10 = sbr.rel (0) target = $region5
  $region4: #{enet_forward.98} parent=0 // pred_region
    _
  $region5: #{enet_forward.98} parent=0 // pred_fallthru
    _
  // Predicated region
  $region6: #{enet_forward.98} parent=0 // pred_check
    _
  $region7: #{enet_forward.98} parent=0 // pred_check_branch
    %12 = sbr.rel (0) target = $region9
  $region8: #{enet_forward.98} parent=0 // pred_region
    _
  $region9: #{enet_forward.98} parent=0 // pred_fallthru
    _
  // Predicated region
  $region10: #{enet_forward.98} parent=0 // pred_check
    _
  $region11: #{enet_forward.98} parent=0 // pred_check_branch
    %14 = sbr.rel (0) target = $region13
  $region12: #{enet_forward.98} parent=0 // pred_region
    _
  $region13: #{enet_forward.98} parent=0 // pred_fallthru
    _
  // Predicated region
  $region14: #{enet_forward.98} parent=0 // pred_check
    _
  $region15: #{enet_forward.98} parent=0 // pred_check_branch
    %16 = sbr.rel (0) target = $region17
  $region16: #{enet_forward.98} parent=0 // pred_region
    _
  $region17: #{enet_forward.98} parent=0 // pred_fallthru
    _
  %v18 = vld [vmem:[%s0] sm:$0xf]
  %v19 = vld [vmem:[%s0 + $0x4] sm:$0xf]
  %v20 = vld [vmem:[%s0 + $0x8] sm:$0xf]
  %v21 = vld [vmem:[%s0 + $0xc] sm:$0xf]
  %v22 = vld [vmem:[%s0 + $0x10] sm:$0xf]
  %v23 = vld [vmem:[%s0 + $0x14] sm:$0xf]
  %v24 = vld [vmem:[%s0 + $0x18] sm:$0xf]
  %v25 = vld [vmem:[%s0 + $0x1c] sm:$0xf]
  %v26 = vld [vmem:[%s0 + $0x20] sm:$0xf]
  %v27 = vld [vmem:[%s0 + $0x24] sm:$0xf]
  %v28 = vld [vmem:[%s0 + $0x28] sm:$0xf]
  %v29 = vld [vmem:[%s0 + $0x2c] sm:$0xf]
  %v30 = vld [vmem:[%s0 + $0x30] sm:$0xf]
  %v31 = vld [vmem:[%s0 + $0x34] sm:$0xf]
  %v32 = vld [vmem:[%s0 + $0x38] sm:$0xf]
  %v33 = vld [vmem:[%s0 + $0x3c] sm:$0xf]
  %v34 = vld [vmem:[%s1] sm:$0xf]
  %v35 = vld [vmem:[%s1 + $0x4] sm:$0xf]
  %v36 = vld [vmem:[%s1 + $0x8] sm:$0xf]
  %v37 = vld [vmem:[%s1 + $0xc] sm:$0x3]
  %v38 = vld [vmem:[%s2] sm:$0x1]
  %v40 = vlaneseq
  %v41 = vshrl.u32 %v40, 7
  %v42 = vsub.s32 0, %v41
  %v43 = vrot.slane %v38, %v42
  %v61 = vunpack.c.l.b16 %v18
  %v62 = vunpack.c.l.b16 %v19
  %v63 = vunpack.c.l.b16 %v20
  %v64 = vunpack.c.l.b16 %v21
  %v65 = vunpack.c.l.b16 %v22
  %v66 = vunpack.c.l.b16 %v23
  %v67 = vunpack.c.l.b16 %v24
  %v68 = vunpack.c.l.b16 %v25
  %v69 = vunpack.c.l.b16 %v26
  %v70 = vunpack.c.l.b16 %v27
  %v71 = vunpack.c.l.b16 %v28
  %v72 = vunpack.c.l.b16 %v29
  %v73 = vunpack.c.l.b16 %v30
  %v74 = vunpack.c.l.b16 %v31
  %v75 = vunpack.c.l.b16 %v32
  %v76 = vunpack.c.l.b16 %v33
  %v77 = vpack.c.b16 %v62, %v61
  %v78 = vpack.c.b16 %v64, %v63
  %v79 = vpack.c.b16 %v66, %v65
  %v80 = vpack.c.b16 %v68, %v67
  %v81 = vpack.c.b16 %v70, %v69
  %v82 = vpack.c.b16 %v72, %v71
  %v83 = vpack.c.b16 %v74, %v73
  %v84 = vpack.c.b16 %v76, %v75
  %v89 = vunpack.c.l.b16 %v34
  %v90 = vunpack.c.l.b16 %v35
  %v91 = vunpack.c.l.b16 %v36
  %v92 = vunpack.c.l.b16 %v37
  %v93 = vpack.c.b16 %v90, %v89
  %v94 = vpack.c.b16 %v92, %v91
  %vm96 = vcmask 220160
  %v98 = vsel %vm96, %v77, 0
  %v101 = vsel %vm96, %v78, 0
  %v104 = vsel %vm96, %v79, 0
  %v107 = vsel %vm96, %v80, 0
  %v110 = vsel %vm96, %v81, 0
  %v113 = vsel %vm96, %v82, 0
  %v116 = vsel %vm96, %v83, 0
  %v119 = vsel %vm96, %v84, 0
  %vm121 = vcmask 1044480
  %vm122 = vcmask 1045504
  %v123 = vsel %vm121, 4294967295, 65535
  %v124 = vsel %vm122, %v123, 0
  %v126 = vand.u32 %v94, %v124
  %128 = vmatprep.subr.bf16.mxu0 0
  %129 = vmatpush1.bf16.msra.mxu0 0
  %130 = vmatprep.subr.bf16.mxu0 0
  %131 = vmatpush1.bf16.msra.mxu0 0
  %132 = vmatprep.subr.bf16.mxu0 0
  %133 = vmatpush1.bf16.msra.mxu0 0
  %134 = vmatprep.subr.bf16.mxu0 0
  %135 = vmatpush1.bf16.msra.mxu0 0
  %136 = vmatprep.subr.bf16.mxu0 0
  %137 = vmatpush1.bf16.msra.mxu0 0
  %138 = vmatprep.subr.bf16.mxu0 0
  %139 = vmatpush1.bf16.msra.mxu0 0
  %140 = vmatprep.subr.bf16.mxu0 0
  %141 = vmatpush1.bf16.msra.mxu0 %v126
  %142 = vmatprep.subr.bf16.mxu0 0
  %143 = vmatpush1.bf16.msra.mxu0 %v93
  %144 = vmatprep.subr.bf16.mxu0 0
  %145 = vmatpush2.bf16.msra.mxu0 0
  %146 = vmatprep.subr.bf16.mxu0 0
  %147 = vmatpush2.bf16.msra.mxu0 0
  %148 = vmatprep.subr.bf16.mxu0 0
  %149 = vmatpush2.bf16.msra.mxu0 0
  %150 = vmatprep.subr.bf16.mxu0 0
  %151 = vmatpush2.bf16.msra.mxu0 0
  %152 = vmatprep.subr.bf16.mxu0 0
  %153 = vmatpush2.bf16.msra.mxu0 0
  %154 = vmatprep.subr.bf16.mxu0 0
  %155 = vmatpush2.bf16.msra.mxu0 0
  %156 = vmatprep.subr.bf16.mxu0 0
  %157 = vmatpush2.bf16.msra.mxu0 0
  %158 = vmatprep.subr.bf16.mxu0 0
  %159 = vmatpush2.bf16.msra.mxu0 0
  %160 = vmatprep.mubr.bf16.mxu0 0
  %161 = vmatmul.mubr.bf16.gmra.mxu0 %v98
  %v162 = vpop.f32.mrf.mxu0
  %v163 = vadd.f32 %v43, %v162
  %v164 = vpop.f32.mrf.mxu0
  %v165 = vpop.f32.mrf.mxu0
  %v166 = vadd.f32 %v43, %v165
  %v167 = vpop.f32.mrf.mxu0
  %168 = vmatprep.mubr.bf16.mxu0 0
  %169 = vmatmul.mubr.bf16.gmra.mxu0 %v101
  %v170 = vpop.f32.mrf.mxu0
  %v171 = vadd.f32 %v43, %v170
  %v172 = vpop.f32.mrf.mxu0
  %v173 = vpop.f32.mrf.mxu0
  %v174 = vadd.f32 %v43, %v173
  %v175 = vpop.f32.mrf.mxu0
  %176 = vmatprep.mubr.bf16.mxu0 0
  %177 = vmatmul.mubr.bf16.gmra.mxu0 %v104
  %v178 = vpop.f32.mrf.mxu0
  %v179 = vadd.f32 %v43, %v178
  %v180 = vpop.f32.mrf.mxu0
  %v181 = vpop.f32.mrf.mxu0
  %v182 = vadd.f32 %v43, %v181
  %v183 = vpop.f32.mrf.mxu0
  %184 = vmatprep.mubr.bf16.mxu0 0
  %185 = vmatmul.mubr.bf16.gmra.mxu0 %v107
  %v186 = vpop.f32.mrf.mxu0
  %v187 = vadd.f32 %v43, %v186
  %v188 = vpop.f32.mrf.mxu0
  %v189 = vpop.f32.mrf.mxu0
  %v190 = vadd.f32 %v43, %v189
  %v191 = vpop.f32.mrf.mxu0
  %192 = vmatprep.mubr.bf16.mxu0 0
  %193 = vmatmul.mubr.bf16.gmra.mxu0 %v110
  %v194 = vpop.f32.mrf.mxu0
  %v195 = vadd.f32 %v43, %v194
  %v196 = vpop.f32.mrf.mxu0
  %v197 = vpop.f32.mrf.mxu0
  %v198 = vadd.f32 %v43, %v197
  %v199 = vpop.f32.mrf.mxu0
  %200 = vmatprep.mubr.bf16.mxu0 0
  %201 = vmatmul.mubr.bf16.gmra.mxu0 %v113
  %v202 = vpop.f32.mrf.mxu0
  %v203 = vadd.f32 %v43, %v202
  %v204 = vpop.f32.mrf.mxu0
  %v205 = vpop.f32.mrf.mxu0
  %v206 = vadd.f32 %v43, %v205
  %v207 = vpop.f32.mrf.mxu0
  %208 = vmatprep.mubr.bf16.mxu0 0
  %209 = vmatmul.mubr.bf16.gmra.mxu0 %v116
  %v210 = vpop.f32.mrf.mxu0
  %v211 = vadd.f32 %v43, %v210
  %v212 = vpop.f32.mrf.mxu0
  %v213 = vpop.f32.mrf.mxu0
  %v214 = vadd.f32 %v43, %v213
  %v215 = vpop.f32.mrf.mxu0
  %216 = vmatprep.mubr.bf16.mxu0 0
  %217 = vmatmul.mubr.bf16.gmra.mxu0 %v119
  %v218 = vpop.f32.mrf.mxu0
  %v219 = vadd.f32 %v43, %v218
  %v220 = vpop.f32.mrf.mxu0
  %v221 = vpop.f32.mrf.mxu0
  %v222 = vadd.f32 %v43, %v221
  %v223 = vpop.f32.mrf.mxu0
  %224 = vdwg.mxu0
  %vm225 = vcmp.ge.f32.partialorder %v163, 0.0
  %vm226 = vcmp.ge.f32.partialorder %v166, 0.0
  %vm227 = vcmp.ge.f32.partialorder %v171, 0.0
  %vm228 = vcmp.ge.f32.partialorder %v174, 0.0
  %vm229 = vcmp.ge.f32.partialorder %v179, 0.0
  %vm230 = vcmp.ge.f32.partialorder %v182, 0.0
  %vm231 = vcmp.ge.f32.partialorder %v187, 0.0
  %vm232 = vcmp.ge.f32.partialorder %v190, 0.0
  %vm233 = vcmp.ge.f32.partialorder %v195, 0.0
  %vm234 = vcmp.ge.f32.partialorder %v198, 0.0
  %vm235 = vcmp.ge.f32.partialorder %v203, 0.0
  %vm236 = vcmp.ge.f32.partialorder %v206, 0.0
  %vm237 = vcmp.ge.f32.partialorder %v211, 0.0
  %vm238 = vcmp.ge.f32.partialorder %v214, 0.0
  %vm239 = vcmp.ge.f32.partialorder %v219, 0.0
  %vm240 = vcmp.ge.f32.partialorder %v222, 0.0
  %v241 = vld [vmem:[%s3] sm:$0x1]
  %v243 = vlaneseq
  %v244 = vshrl.u32 %v243, 7
  %v245 = vsub.s32 0, %v244
  %v246 = vrot.slane %v241, %v245
  %v248 = vmul.f32 %v246, %v163
  %v249 = vmul.f32 %v246, %v166
  %v250 = vmul.f32 %v246, %v171
  %v251 = vmul.f32 %v246, %v174
  %v252 = vmul.f32 %v246, %v179
  %v253 = vmul.f32 %v246, %v182
  %v254 = vmul.f32 %v246, %v187
  %v255 = vmul.f32 %v246, %v190
  %v256 = vmul.f32 %v246, %v195
  %v257 = vmul.f32 %v246, %v198
  %v258 = vmul.f32 %v246, %v203
  %v259 = vmul.f32 %v246, %v206
  %v260 = vmul.f32 %v246, %v211
  %v261 = vmul.f32 %v246, %v214
  %v262 = vmul.f32 %v246, %v219
  %v263 = vmul.f32 %v246, %v222
  %v264 = vsel %vm225, %v163, %v248
  %v265 = vsel %vm226, %v166, %v249
  %v266 = vsel %vm227, %v171, %v250
  %v267 = vsel %vm228, %v174, %v251
  %v268 = vsel %vm229, %v179, %v252
  %v269 = vsel %vm230, %v182, %v253
  %v270 = vsel %vm231, %v187, %v254
  %v271 = vsel %vm232, %v190, %v255
  %v272 = vsel %vm233, %v195, %v256
  %v273 = vsel %vm234, %v198, %v257
  %v274 = vsel %vm235, %v203, %v258
  %v275 = vsel %vm236, %v206, %v259
  %v276 = vsel %vm237, %v211, %v260
  %v277 = vsel %vm238, %v214, %v261
  %v278 = vsel %vm239, %v219, %v262
  %v279 = vsel %vm240, %v222, %v263
  %v280 = vpack.c.bf16 %v265, %v264
  %v281 = vpack.c.bf16 %v267, %v266
  %v282 = vpack.c.bf16 %v269, %v268
  %v283 = vpack.c.bf16 %v271, %v270
  %v284 = vpack.c.bf16 %v273, %v272
  %v285 = vpack.c.bf16 %v275, %v274
  %v286 = vpack.c.bf16 %v277, %v276
  %v287 = vpack.c.bf16 %v279, %v278
  %v296 = vunpack.c.l.b16 %v280
  %v297 = vunpack.c.h.b16 %v280
  %v298 = vunpack.c.l.b16 %v281
  %v299 = vunpack.c.h.b16 %v281
  %v300 = vunpack.c.l.b16 %v282
  %v301 = vunpack.c.h.b16 %v282
  %v302 = vunpack.c.l.b16 %v283
  %v303 = vunpack.c.h.b16 %v283
  %v304 = vunpack.c.l.b16 %v284
  %v305 = vunpack.c.h.b16 %v284
  %v306 = vunpack.c.l.b16 %v285
  %v307 = vunpack.c.h.b16 %v285
  %v308 = vunpack.c.l.b16 %v286
  %v309 = vunpack.c.h.b16 %v286
  %v310 = vunpack.c.l.b16 %v287
  %v311 = vunpack.c.h.b16 %v287
  %v312 = vpack.c.b16 %v296, %v296
  %v313 = vpack.c.b16 %v297, %v297
  %v314 = vpack.c.b16 %v298, %v298
  %v315 = vpack.c.b16 %v299, %v299
  %v316 = vpack.c.b16 %v300, %v300
  %v317 = vpack.c.b16 %v301, %v301
  %v318 = vpack.c.b16 %v302, %v302
  %v319 = vpack.c.b16 %v303, %v303
  %v320 = vpack.c.b16 %v304, %v304
  %v321 = vpack.c.b16 %v305, %v305
  %v322 = vpack.c.b16 %v306, %v306
  %v323 = vpack.c.b16 %v307, %v307
  %v324 = vpack.c.b16 %v308, %v308
  %v325 = vpack.c.b16 %v309, %v309
  %v326 = vpack.c.b16 %v310, %v310
  %v327 = vpack.c.b16 %v311, %v311
  %vm344 = vcmask 101376
  %345 = vst.msk [vmem:[%s4] sm:$0xf] %vm344, %v312
  %346 = vst.msk [vmem:[%s4 + $0x4] sm:$0xf] %vm344, %v313
  %347 = vst.msk [vmem:[%s4 + $0x8] sm:$0xf] %vm344, %v314
  %348 = vst.msk [vmem:[%s4 + $0xc] sm:$0xf] %vm344, %v315
  %349 = vst.msk [vmem:[%s4 + $0x10] sm:$0xf] %vm344, %v316
  %350 = vst.msk [vmem:[%s4 + $0x14] sm:$0xf] %vm344, %v317
  %351 = vst.msk [vmem:[%s4 + $0x18] sm:$0xf] %vm344, %v318
  %352 = vst.msk [vmem:[%s4 + $0x1c] sm:$0xf] %vm344, %v319
  %353 = vst.msk [vmem:[%s4 + $0x20] sm:$0xf] %vm344, %v320
  %354 = vst.msk [vmem:[%s4 + $0x24] sm:$0xf] %vm344, %v321
  %355 = vst.msk [vmem:[%s4 + $0x28] sm:$0xf] %vm344, %v322
  %356 = vst.msk [vmem:[%s4 + $0x2c] sm:$0xf] %vm344, %v323
  %357 = vst.msk [vmem:[%s4 + $0x30] sm:$0xf] %vm344, %v324
  %358 = vst.msk [vmem:[%s4 + $0x34] sm:$0xf] %vm344, %v325
  %359 = vst.msk [vmem:[%s4 + $0x38] sm:$0xf] %vm344, %v326
  %360 = vst.msk [vmem:[%s4 + $0x3c] sm:$0xf] %vm344, %v327
  // Predicated region
  $region18: #{enet_forward.98} parent=0 // pred_check
    _
  $region19: #{enet_forward.98} parent=0 // pred_check_branch
    %362 = sbr.rel (0) target = $region21
  $region20: #{enet_forward.98} parent=0 // pred_region
    _
  $region21: #{enet_forward.98} parent=0 // pred_fallthru
    _
  // Predicated region
  $region22: #{enet_forward.98} parent=0 // pred_check
    _
  $region23: #{enet_forward.98} parent=0 // pred_check_branch
    %364 = sbr.rel (0) target = $region25
  $region24: #{enet_forward.98} parent=0 // pred_region
    _
  $region25: #{enet_forward.98} parent=0 // pred_fallthru
    _

// kernel: enet_forward.99
$region0: #{enet_forward.99}
  #allocation0 [shape = 'u32[]', space=smem, size = 0x4, offset = 0x4, fixed_abs, tag = 'smem constant byte address 0x4 - core index']
  #allocation1 [shape = 'u32[144,128]{1,0:T(1,128)}', space=vmem, size = 0x12000, scoped, tag = 'internal scratch']
  %s0 = inlined_call_operand.vmem [shape: bf16[32,64], index: 0, kind: input, shape index: {}]
  %s1 = inlined_call_operand.vmem [shape: bf16[64,4], index: 1, kind: input, shape index: {}]
  %s2 = inlined_call_operand.vmem [shape: f32[1,4], index: 2, kind: input, shape index: {}]
  %s3 = inlined_call_operand.vmem [shape: f32[1,4], index: 3, kind: input, shape index: {}]
  %s4 = inlined_call_operand.vmem [shape: bf16[32,4], index: 4, kind: output, shape index: {}]
  %s5 = sld [smem:[#allocation0]]
  $region26: #{enet_forward.99} parent=0
    _
  %s7 = ssub.s32 1, %s5
  %s8 = scalar_select 0, %s7, %s5
  // Predicated region
  $region2: #{enet_forward.99} parent=0 // pred_check
    _
  $region3: #{enet_forward.99} parent=0 // pred_check_branch
    %10 = sbr.rel (0) target = $region5
  $region4: #{enet_forward.99} parent=0 // pred_region
    _
  $region5: #{enet_forward.99} parent=0 // pred_fallthru
    _
  // Predicated region
  $region6: #{enet_forward.99} parent=0 // pred_check
    _
  $region7: #{enet_forward.99} parent=0 // pred_check_branch
    %12 = sbr.rel (0) target = $region9
  $region8: #{enet_forward.99} parent=0 // pred_region
    _
  $region9: #{enet_forward.99} parent=0 // pred_fallthru
    _
  // Predicated region
  $region10: #{enet_forward.99} parent=0 // pred_check
    _
  $region11: #{enet_forward.99} parent=0 // pred_check_branch
    %14 = sbr.rel (0) target = $region13
  $region12: #{enet_forward.99} parent=0 // pred_region
    _
  $region13: #{enet_forward.99} parent=0 // pred_fallthru
    _
  // Predicated region
  $region14: #{enet_forward.99} parent=0 // pred_check
    _
  $region15: #{enet_forward.99} parent=0 // pred_check_branch
    %16 = sbr.rel (0) target = $region17
  $region16: #{enet_forward.99} parent=0 // pred_region
    _
  $region17: #{enet_forward.99} parent=0 // pred_fallthru
    _
  %v18 = vld [vmem:[%s0] sm:$0xf]
  %v19 = vld [vmem:[%s0 + $0x4] sm:$0xf]
  %v20 = vld [vmem:[%s0 + $0x8] sm:$0xf]
  %v21 = vld [vmem:[%s0 + $0xc] sm:$0xf]
  %v22 = vld [vmem:[%s1] sm:$0xf]
  %v23 = vld [vmem:[%s1 + $0x4] sm:$0xf]
  %v24 = vld [vmem:[%s1 + $0x8] sm:$0xf]
  %v25 = vld [vmem:[%s1 + $0xc] sm:$0xf]
  %v26 = vld [vmem:[%s1 + $0x10] sm:$0xf]
  %v27 = vld [vmem:[%s1 + $0x14] sm:$0xf]
  %v28 = vld [vmem:[%s1 + $0x18] sm:$0xf]
  %v29 = vld [vmem:[%s1 + $0x1c] sm:$0xf]
  %v30 = vld [vmem:[%s2] sm:$0x1]
  %v32 = vlaneseq
  %v33 = vshrl.u32 %v32, 7
  %v34 = vsub.s32 0, %v33
  %v35 = vrot.slane %v30, %v34
  %v41 = vunpack.c.l.b16 %v18
  %v42 = vunpack.c.l.b16 %v19
  %v43 = vunpack.c.l.b16 %v20
  %v44 = vunpack.c.l.b16 %v21
  %v45 = vpack.c.b16 %v42, %v41
  %v46 = vpack.c.b16 %v44, %v43
  %v55 = vunpack.c.l.b16 %v22
  %v56 = vunpack.c.l.b16 %v23
  %v57 = vunpack.c.l.b16 %v24
  %v58 = vunpack.c.l.b16 %v25
  %v59 = vunpack.c.l.b16 %v26
  %v60 = vunpack.c.l.b16 %v27
  %v61 = vunpack.c.l.b16 %v28
  %v62 = vunpack.c.l.b16 %v29
  %v63 = vpack.c.b16 %v56, %v55
  %v64 = vpack.c.b16 %v58, %v57
  %v65 = vpack.c.b16 %v60, %v59
  %v66 = vpack.c.b16 %v62, %v61
  %vm71 = vcmask 523264
  %v73 = vsel %vm71, %v45, 0
  %v76 = vsel %vm71, %v46, 0
  %78 = vmatprep.subr.bf16.mxu0 0
  %79 = vmatpush1.bf16.msra.mxu0 0
  %80 = vmatprep.subr.bf16.mxu0 0
  %81 = vmatpush1.bf16.msra.mxu0 0
  %82 = vmatprep.subr.bf16.mxu0 0
  %83 = vmatpush1.bf16.msra.mxu0 0
  %84 = vmatprep.subr.bf16.mxu0 0
  %85 = vmatpush1.bf16.msra.mxu0 0
  %86 = vmatprep.subr.bf16.mxu0 0
  %87 = vmatpush1.bf16.msra.mxu0 %v66
  %88 = vmatprep.subr.bf16.mxu0 0
  %89 = vmatpush1.bf16.msra.mxu0 %v65
  %90 = vmatprep.subr.bf16.mxu0 0
  %91 = vmatpush1.bf16.msra.mxu0 %v64
  %92 = vmatprep.subr.bf16.mxu0 0
  %93 = vmatpush1.bf16.msra.mxu0 %v63
  %94 = vmatprep.subr.bf16.mxu0 0
  %95 = vmatpush2.bf16.msra.mxu0 0
  %96 = vmatprep.subr.bf16.mxu0 0
  %97 = vmatpush2.bf16.msra.mxu0 0
  %98 = vmatprep.subr.bf16.mxu0 0
  %99 = vmatpush2.bf16.msra.mxu0 0
  %100 = vmatprep.subr.bf16.mxu0 0
  %101 = vmatpush2.bf16.msra.mxu0 0
  %102 = vmatprep.subr.bf16.mxu0 0
  %103 = vmatpush2.bf16.msra.mxu0 0
  %104 = vmatprep.subr.bf16.mxu0 0
  %105 = vmatpush2.bf16.msra.mxu0 0
  %106 = vmatprep.subr.bf16.mxu0 0
  %107 = vmatpush2.bf16.msra.mxu0 0
  %108 = vmatprep.subr.bf16.mxu0 0
  %109 = vmatpush2.bf16.msra.mxu0 0
  %110 = vmatprep.mubr.bf16.mxu0 0
  %111 = vmatmul.mubr.bf16.gmra.mxu0 %v73
  %v112 = vpop.f32.mrf.mxu0
  %v113 = vadd.f32 %v35, %v112
  %v114 = vpop.f32.mrf.mxu0
  %v115 = vpop.f32.mrf.mxu0
  %v116 = vadd.f32 %v35, %v115
  %v117 = vpop.f32.mrf.mxu0
  %118 = vmatprep.mubr.bf16.mxu0 0
  %119 = vmatmul.mubr.bf16.gmra.mxu0 %v76
  %v120 = vpop.f32.mrf.mxu0
  %v121 = vadd.f32 %v35, %v120
  %v122 = vpop.f32.mrf.mxu0
  %v123 = vpop.f32.mrf.mxu0
  %v124 = vadd.f32 %v35, %v123
  %v125 = vpop.f32.mrf.mxu0
  %126 = vdwg.mxu0
  %vm127 = vcmp.ge.f32.partialorder %v113, 0.0
  %vm128 = vcmp.ge.f32.partialorder %v116, 0.0
  %vm129 = vcmp.ge.f32.partialorder %v121, 0.0
  %vm130 = vcmp.ge.f32.partialorder %v124, 0.0
  %v131 = vld [vmem:[%s3] sm:$0x1]
  %v133 = vlaneseq
  %v134 = vshrl.u32 %v133, 7
  %v135 = vsub.s32 0, %v134
  %v136 = vrot.slane %v131, %v135
  %v138 = vmul.f32 %v136, %v113
  %v139 = vmul.f32 %v136, %v116
  %v140 = vmul.f32 %v136, %v121
  %v141 = vmul.f32 %v136, %v124
  %v142 = vsel %vm127, %v113, %v138
  %v143 = vsel %vm128, %v116, %v139
  %v144 = vsel %vm129, %v121, %v140
  %v145 = vsel %vm130, %v124, %v141
  %v146 = vpack.c.bf16 %v143, %v142
  %v147 = vpack.c.bf16 %v145, %v144
  %v150 = vunpack.c.l.b16 %v146
  %v151 = vunpack.c.h.b16 %v146
  %v152 = vunpack.c.l.b16 %v147
  %v153 = vunpack.c.h.b16 %v147
  %v154 = vpack.c.b16 %v150, %v150
  %v155 = vpack.c.b16 %v151, %v151
  %v156 = vpack.c.b16 %v152, %v152
  %v157 = vpack.c.b16 %v153, %v153
  %vm162 = vcmask 27648
  %163 = vst.msk [vmem:[%s4] sm:$0xf] %vm162, %v154
  %164 = vst.msk [vmem:[%s4 + $0x4] sm:$0xf] %vm162, %v155
  %165 = vst.msk [vmem:[%s4 + $0x8] sm:$0xf] %vm162, %v156
  %166 = vst.msk [vmem:[%s4 + $0xc] sm:$0xf] %vm162, %v157
  // Predicated region
  $region18: #{enet_forward.99} parent=0 // pred_check
    _
  $region19: #{enet_forward.99} parent=0 // pred_check_branch
    %168 = sbr.rel (0) target = $region21
  $region20: #{enet_forward.99} parent=0 // pred_region
    _
  $region21: #{enet_forward.99} parent=0 // pred_fallthru
    _
  // Predicated region
  $region22: #{enet_forward.99} parent=0 // pred_check
    _
  $region23: #{enet_forward.99} parent=0 // pred_check_branch
    %170 = sbr.rel (0) target = $region25
  $region24: #{enet_forward.99} parent=0 // pred_region
    _
  $region25: #{enet_forward.99} parent=0 // pred_fallthru
    _

// kernel: enet_forward.100
$region0: #{enet_forward.100}
  #allocation0 [shape = 'u32[]', space=smem, size = 0x4, offset = 0x4, fixed_abs, tag = 'smem constant byte address 0x4 - core index']
  #allocation1 [shape = 'u32[144,128]{1,0:T(1,128)}', space=vmem, size = 0x12000, scoped, tag = 'internal scratch']
  %s0 = inlined_call_operand.vmem [shape: bf16[32,36], index: 0, kind: input, shape index: {}]
  %s1 = inlined_call_operand.vmem [shape: bf16[36,4], index: 1, kind: input, shape index: {}]
  %s2 = inlined_call_operand.vmem [shape: f32[1,4], index: 2, kind: input, shape index: {}]
  %s3 = inlined_call_operand.vmem [shape: f32[1,4], index: 3, kind: input, shape index: {}]
  %s4 = inlined_call_operand.vmem [shape: bf16[32,4], index: 4, kind: output, shape index: {}]
  %s5 = sld [smem:[#allocation0]]
  $region26: #{enet_forward.100} parent=0
    _
  %s7 = ssub.s32 1, %s5
  %s8 = scalar_select 0, %s7, %s5
  // Predicated region
  $region2: #{enet_forward.100} parent=0 // pred_check
    _
  $region3: #{enet_forward.100} parent=0 // pred_check_branch
    %10 = sbr.rel (0) target = $region5
  $region4: #{enet_forward.100} parent=0 // pred_region
    _
  $region5: #{enet_forward.100} parent=0 // pred_fallthru
    _
  // Predicated region
  $region6: #{enet_forward.100} parent=0 // pred_check
    _
  $region7: #{enet_forward.100} parent=0 // pred_check_branch
    %12 = sbr.rel (0) target = $region9
  $region8: #{enet_forward.100} parent=0 // pred_region
    _
  $region9: #{enet_forward.100} parent=0 // pred_fallthru
    _
  // Predicated region
  $region10: #{enet_forward.100} parent=0 // pred_check
    _
  $region11: #{enet_forward.100} parent=0 // pred_check_branch
    %14 = sbr.rel (0) target = $region13
  $region12: #{enet_forward.100} parent=0 // pred_region
    _
  $region13: #{enet_forward.100} parent=0 // pred_fallthru
    _
  // Predicated region
  $region14: #{enet_forward.100} parent=0 // pred_check
    _
  $region15: #{enet_forward.100} parent=0 // pred_check_branch
    %16 = sbr.rel (0) target = $region17
  $region16: #{enet_forward.100} parent=0 // pred_region
    _
  $region17: #{enet_forward.100} parent=0 // pred_fallthru
    _
  %v18 = vld [vmem:[%s0] sm:$0xf]
  %v19 = vld [vmem:[%s0 + $0x4] sm:$0xf]
  %v20 = vld [vmem:[%s0 + $0x8] sm:$0xf]
  %v21 = vld [vmem:[%s0 + $0xc] sm:$0xf]
  %v22 = vld [vmem:[%s1] sm:$0xf]
  %v23 = vld [vmem:[%s1 + $0x4] sm:$0xf]
  %v24 = vld [vmem:[%s1 + $0x8] sm:$0xf]
  %v25 = vld [vmem:[%s1 + $0xc] sm:$0xf]
  %v26 = vld [vmem:[%s1 + $0x10] sm:$0x3]
  %v27 = vld [vmem:[%s2] sm:$0x1]
  %v29 = vlaneseq
  %v30 = vshrl.u32 %v29, 7
  %v31 = vsub.s32 0, %v30
  %v32 = vrot.slane %v27, %v31
  %v38 = vunpack.c.l.b16 %v18
  %v39 = vunpack.c.l.b16 %v19
  %v40 = vunpack.c.l.b16 %v20
  %v41 = vunpack.c.l.b16 %v21
  %v42 = vpack.c.b16 %v39, %v38
  %v43 = vpack.c.b16 %v41, %v40
  %v49 = vunpack.c.l.b16 %v22
  %v50 = vunpack.c.l.b16 %v23
  %v51 = vunpack.c.l.b16 %v24
  %v52 = vunpack.c.l.b16 %v25
  %v53 = vunpack.c.l.b16 %v26
  %v54 = vpack.c.b16 %v50, %v49
  %v55 = vpack.c.b16 %v52, %v51
  %v56 = vpack.c.b16 %v53, %v53
  %vm59 = vcmask 293888
  %v61 = vsel %vm59, %v42, 0
  %v64 = vsel %vm59, %v43, 0
  %vm66 = vcmask 1041408
  %v68 = vsel %vm66, %v56, 0
  %70 = vmatprep.subr.bf16.mxu0 0
  %71 = vmatpush1.bf16.msra.mxu0 0
  %72 = vmatprep.subr.bf16.mxu0 0
  %73 = vmatpush1.bf16.msra.mxu0 0
  %74 = vmatprep.subr.bf16.mxu0 0
  %75 = vmatpush1.bf16.msra.mxu0 0
  %76 = vmatprep.subr.bf16.mxu0 0
  %77 = vmatpush1.bf16.msra.mxu0 0
  %78 = vmatprep.subr.bf16.mxu0 0
  %79 = vmatpush1.bf16.msra.mxu0 0
  %80 = vmatprep.subr.bf16.mxu0 0
  %81 = vmatpush1.bf16.msra.mxu0 %v68
  %82 = vmatprep.subr.bf16.mxu0 0
  %83 = vmatpush1.bf16.msra.mxu0 %v55
  %84 = vmatprep.subr.bf16.mxu0 0
  %85 = vmatpush1.bf16.msra.mxu0 %v54
  %86 = vmatprep.subr.bf16.mxu0 0
  %87 = vmatpush2.bf16.msra.mxu0 0
  %88 = vmatprep.subr.bf16.mxu0 0
  %89 = vmatpush2.bf16.msra.mxu0 0
  %90 = vmatprep.subr.bf16.mxu0 0
  %91 = vmatpush2.bf16.msra.mxu0 0
  %92 = vmatprep.subr.bf16.mxu0 0
  %93 = vmatpush2.bf16.msra.mxu0 0
  %94 = vmatprep.subr.bf16.mxu0 0
  %95 = vmatpush2.bf16.msra.mxu0 0
  %96 = vmatprep.subr.bf16.mxu0 0
  %97 = vmatpush2.bf16.msra.mxu0 0
  %98 = vmatprep.subr.bf16.mxu0 0
  %99 = vmatpush2.bf16.msra.mxu0 0
  %100 = vmatprep.subr.bf16.mxu0 0
  %101 = vmatpush2.bf16.msra.mxu0 0
  %102 = vmatprep.mubr.bf16.mxu0 0
  %103 = vmatmul.mubr.bf16.gmra.mxu0 %v61
  %v104 = vpop.f32.mrf.mxu0
  %v105 = vadd.f32 %v32, %v104
  %v106 = vpop.f32.mrf.mxu0
  %v107 = vpop.f32.mrf.mxu0
  %v108 = vadd.f32 %v32, %v107
  %v109 = vpop.f32.mrf.mxu0
  %110 = vmatprep.mubr.bf16.mxu0 0
  %111 = vmatmul.mubr.bf16.gmra.mxu0 %v64
  %v112 = vpop.f32.mrf.mxu0
  %v113 = vadd.f32 %v32, %v112
  %v114 = vpop.f32.mrf.mxu0
  %v115 = vpop.f32.mrf.mxu0
  %v116 = vadd.f32 %v32, %v115
  %v117 = vpop.f32.mrf.mxu0
  %118 = vdwg.mxu0
  %vm119 = vcmp.ge.f32.partialorder %v105, 0.0
  %vm120 = vcmp.ge.f32.partialorder %v108, 0.0
  %vm121 = vcmp.ge.f32.partialorder %v113, 0.0
  %vm122 = vcmp.ge.f32.partialorder %v116, 0.0
  %v123 = vld [vmem:[%s3] sm:$0x1]
  %v125 = vlaneseq
  %v126 = vshrl.u32 %v125, 7
  %v127 = vsub.s32 0, %v126
  %v128 = vrot.slane %v123, %v127
  %v130 = vmul.f32 %v128, %v105
  %v131 = vmul.f32 %v128, %v108
  %v132 = vmul.f32 %v128, %v113
  %v133 = vmul.f32 %v128, %v116
  %v134 = vsel %vm119, %v105, %v130
  %v135 = vsel %vm120, %v108, %v131
  %v136 = vsel %vm121, %v113, %v132
  %v137 = vsel %vm122, %v116, %v133
  %v138 = vpack.c.bf16 %v135, %v134
  %v139 = vpack.c.bf16 %v137, %v136
  %v142 = vunpack.c.l.b16 %v138
  %v143 = vunpack.c.h.b16 %v138
  %v144 = vunpack.c.l.b16 %v139
  %v145 = vunpack.c.h.b16 %v139
  %v146 = vpack.c.b16 %v142, %v142
  %v147 = vpack.c.b16 %v143, %v143
  %v148 = vpack.c.b16 %v144, %v144
  %v149 = vpack.c.b16 %v145, %v145
  %vm154 = vcmask 27648
  %155 = vst.msk [vmem:[%s4] sm:$0xf] %vm154, %v146
  %156 = vst.msk [vmem:[%s4 + $0x4] sm:$0xf] %vm154, %v147
  %157 = vst.msk [vmem:[%s4 + $0x8] sm:$0xf] %vm154, %v148
  %158 = vst.msk [vmem:[%s4 + $0xc] sm:$0xf] %vm154, %v149
  // Predicated region
  $region18: #{enet_forward.100} parent=0 // pred_check
    _
  $region19: #{enet_forward.100} parent=0 // pred_check_branch
    %160 = sbr.rel (0) target = $region21
  $region20: #{enet_forward.100} parent=0 // pred_region
    _
  $region21: #{enet_forward.100} parent=0 // pred_fallthru
    _
  // Predicated region
  $region22: #{enet_forward.100} parent=0 // pred_check
    _
  $region23: #{enet_forward.100} parent=0 // pred_check_branch
    %162 = sbr.rel (0) target = $region25
  $region24: #{enet_forward.100} parent=0 // pred_region
    _
  $region25: #{enet_forward.100} parent=0 // pred_fallthru
    _

// kernel: enet_forward.101
$region0: #{enet_forward.101}
  #allocation0 [shape = 'u32[]', space=smem, size = 0x4, offset = 0x4, fixed_abs, tag = 'smem constant byte address 0x4 - core index']
  #allocation1 [shape = 'u32[144,128]{1,0:T(1,128)}', space=vmem, size = 0x12000, scoped, tag = 'internal scratch']
  %s0 = inlined_call_operand.vmem [shape: bf16[32,4], index: 0, kind: input, shape index: {}]
  %s1 = inlined_call_operand.vmem [shape: bf16[4,64], index: 1, kind: input, shape index: {}]
  %s2 = inlined_call_operand.vmem [shape: f32[1,64], index: 2, kind: input, shape index: {}]
  %s3 = inlined_call_operand.vmem [shape: f32[1,64], index: 3, kind: input, shape index: {}]
  %s4 = inlined_call_operand.vmem [shape: f32[1,64], index: 4, kind: input, shape index: {}]
  %s5 = inlined_call_operand.vmem [shape: bf16[32,64], index: 5, kind: input, shape index: {}]
  %s6 = inlined_call_operand.vmem [shape: bf16[32,64], index: 6, kind: output, shape index: {}]
  %s7 = sld [smem:[#allocation0]]
  $region34: #{enet_forward.101} parent=0
    _
  %s9 = ssub.s32 1, %s7
  %s10 = scalar_select 0, %s9, %s7
  // Predicated region
  $region2: #{enet_forward.101} parent=0 // pred_check
    _
  $region3: #{enet_forward.101} parent=0 // pred_check_branch
    %12 = sbr.rel (0) target = $region5
  $region4: #{enet_forward.101} parent=0 // pred_region
    _
  $region5: #{enet_forward.101} parent=0 // pred_fallthru
    _
  // Predicated region
  $region6: #{enet_forward.101} parent=0 // pred_check
    _
  $region7: #{enet_forward.101} parent=0 // pred_check_branch
    %14 = sbr.rel (0) target = $region9
  $region8: #{enet_forward.101} parent=0 // pred_region
    _
  $region9: #{enet_forward.101} parent=0 // pred_fallthru
    _
  // Predicated region
  $region10: #{enet_forward.101} parent=0 // pred_check
    _
  $region11: #{enet_forward.101} parent=0 // pred_check_branch
    %16 = sbr.rel (0) target = $region13
  $region12: #{enet_forward.101} parent=0 // pred_region
    _
  $region13: #{enet_forward.101} parent=0 // pred_fallthru
    _
  // Predicated region
  $region14: #{enet_forward.101} parent=0 // pred_check
    _
  $region15: #{enet_forward.101} parent=0 // pred_check_branch
    %18 = sbr.rel (0) target = $region17
  $region16: #{enet_forward.101} parent=0 // pred_region
    _
  $region17: #{enet_forward.101} parent=0 // pred_fallthru
    _
  // Predicated region
  $region18: #{enet_forward.101} parent=0 // pred_check
    _
  $region19: #{enet_forward.101} parent=0 // pred_check_branch
    %20 = sbr.rel (0) target = $region21
  $region20: #{enet_forward.101} parent=0 // pred_region
    _
  $region21: #{enet_forward.101} parent=0 // pred_fallthru
    _
  // Predicated region
  $region22: #{enet_forward.101} parent=0 // pred_check
    _
  $region23: #{enet_forward.101} parent=0 // pred_check_branch
    %22 = sbr.rel (0) target = $region25
  $region24: #{enet_forward.101} parent=0 // pred_region
    _
  $region25: #{enet_forward.101} parent=0 // pred_fallthru
    _
  %v24 = vld [vmem:[%s0] sm:$0xf]
  %v25 = vld [vmem:[%s0 + $0x4] sm:$0xf]
  %v26 = vld [vmem:[%s0 + $0x8] sm:$0xf]
  %v27 = vld [vmem:[%s0 + $0xc] sm:$0xf]
  %v28 = vld [vmem:[%s1] sm:$0x3]
  %v29 = vld [vmem:[%s2] sm:$0x1]
  %v31 = vlaneseq
  %v32 = vshrl.u32 %v31, 7
  %v33 = vsub.s32 0, %v32
  %v34 = vrot.slane %v29, %v33
  %v40 = vunpack.c.l.b16 %v24
  %v41 = vunpack.c.l.b16 %v25
  %v42 = vunpack.c.l.b16 %v26
  %v43 = vunpack.c.l.b16 %v27
  %v44 = vpack.c.b16 %v41, %v40
  %v45 = vpack.c.b16 %v43, %v42
  %vm46 = vcmask 31744
  %v48 = vsel %vm46, %v44, 0
  %v51 = vsel %vm46, %v45, 0
  %vm53 = vcmask 1041408
  %v55 = vsel %vm53, %v28, 0
  %57 = vmatprep.subr.bf16.mxu0 0
  %58 = vmatpush1.bf16.msra.mxu0 0
  %59 = vmatprep.subr.bf16.mxu0 0
  %60 = vmatpush1.bf16.msra.mxu0 0
  %61 = vmatprep.subr.bf16.mxu0 0
  %62 = vmatpush1.bf16.msra.mxu0 0
  %63 = vmatprep.subr.bf16.mxu0 0
  %64 = vmatpush1.bf16.msra.mxu0 0
  %65 = vmatprep.subr.bf16.mxu0 0
  %66 = vmatpush1.bf16.msra.mxu0 0
  %67 = vmatprep.subr.bf16.mxu0 0
  %68 = vmatpush1.bf16.msra.mxu0 0
  %69 = vmatprep.subr.bf16.mxu0 0
  %70 = vmatpush1.bf16.msra.mxu0 0
  %71 = vmatprep.subr.bf16.mxu0 0
  %72 = vmatpush1.bf16.msra.mxu0 %v55
  %73 = vmatprep.subr.bf16.mxu0 0
  %74 = vmatpush2.bf16.msra.mxu0 0
  %75 = vmatprep.subr.bf16.mxu0 0
  %76 = vmatpush2.bf16.msra.mxu0 0
  %77 = vmatprep.subr.bf16.mxu0 0
  %78 = vmatpush2.bf16.msra.mxu0 0
  %79 = vmatprep.subr.bf16.mxu0 0
  %80 = vmatpush2.bf16.msra.mxu0 0
  %81 = vmatprep.subr.bf16.mxu0 0
  %82 = vmatpush2.bf16.msra.mxu0 0
  %83 = vmatprep.subr.bf16.mxu0 0
  %84 = vmatpush2.bf16.msra.mxu0 0
  %85 = vmatprep.subr.bf16.mxu0 0
  %86 = vmatpush2.bf16.msra.mxu0 0
  %87 = vmatprep.subr.bf16.mxu0 0
  %88 = vmatpush2.bf16.msra.mxu0 0
  %89 = vmatprep.mubr.bf16.mxu0 0
  %90 = vmatmul.mubr.bf16.gmra.mxu0 %v48
  %v91 = vpop.f32.mrf.mxu0
  %v92 = vadd.f32 %v34, %v91
  %v93 = vpop.f32.mrf.mxu0
  %v94 = vpop.f32.mrf.mxu0
  %v95 = vadd.f32 %v34, %v94
  %v96 = vpop.f32.mrf.mxu0
  %97 = vmatprep.mubr.bf16.mxu0 0
  %98 = vmatmul.mubr.bf16.gmra.mxu0 %v51
  %v99 = vpop.f32.mrf.mxu0
  %v100 = vadd.f32 %v34, %v99
  %v101 = vpop.f32.mrf.mxu0
  %v102 = vpop.f32.mrf.mxu0
  %v103 = vadd.f32 %v34, %v102
  %v104 = vpop.f32.mrf.mxu0
  %105 = vdwg.mxu0
  %vm106 = vcmp.ge.f32.partialorder %v92, 0.0
  %vm107 = vcmp.ge.f32.partialorder %v95, 0.0
  %vm108 = vcmp.ge.f32.partialorder %v100, 0.0
  %vm109 = vcmp.ge.f32.partialorder %v103, 0.0
  %v110 = vld [vmem:[%s3] sm:$0x1]
  %v112 = vlaneseq
  %v113 = vshrl.u32 %v112, 7
  %v114 = vsub.s32 0, %v113
  %v115 = vrot.slane %v110, %v114
  %v117 = vmul.f32 %v115, %v92
  %v118 = vmul.f32 %v115, %v95
  %v119 = vmul.f32 %v115, %v100
  %v120 = vmul.f32 %v115, %v103
  %v121 = vsel %vm106, %v92, %v117
  %v122 = vsel %vm107, %v95, %v118
  %v123 = vsel %vm108, %v100, %v119
  %v124 = vsel %vm109, %v103, %v120
  %v125 = vld [vmem:[%s5] sm:$0xf]
  %v126 = vld [vmem:[%s5 + $0x4] sm:$0xf]
  %v127 = vld [vmem:[%s5 + $0x8] sm:$0xf]
  %v128 = vld [vmem:[%s5 + $0xc] sm:$0xf]
  %v129 = vunpack.c.l.bf16 %v125
  %v130 = vunpack.c.l.bf16 %v126
  %v131 = vunpack.c.l.bf16 %v127
  %v132 = vunpack.c.l.bf16 %v128
  %v133 = vadd.f32 %v121, %v129
  %v134 = vadd.f32 %v122, %v130
  %v135 = vadd.f32 %v123, %v131
  %v136 = vadd.f32 %v124, %v132
  %vm137 = vcmp.ge.f32.partialorder %v133, 0.0
  %vm138 = vcmp.ge.f32.partialorder %v134, 0.0
  %vm139 = vcmp.ge.f32.partialorder %v135, 0.0
  %vm140 = vcmp.ge.f32.partialorder %v136, 0.0
  %v141 = vld [vmem:[%s4] sm:$0x1]
  %v143 = vlaneseq
  %v144 = vshrl.u32 %v143, 7
  %v145 = vsub.s32 0, %v144
  %v146 = vrot.slane %v141, %v145
  %v148 = vmul.f32 %v146, %v133
  %v149 = vmul.f32 %v146, %v134
  %v150 = vmul.f32 %v146, %v135
  %v151 = vmul.f32 %v146, %v136
  %v152 = vsel %vm137, %v133, %v148
  %v153 = vsel %vm138, %v134, %v149
  %v154 = vsel %vm139, %v135, %v150
  %v155 = vsel %vm140, %v136, %v151
  %v156 = vpack.c.bf16 %v153, %v152
  %v157 = vpack.c.bf16 %v155, %v154
  %v160 = vunpack.c.l.b16 %v156
  %v161 = vunpack.c.h.b16 %v156
  %v162 = vunpack.c.l.b16 %v157
  %v163 = vunpack.c.h.b16 %v157
  %v164 = vpack.c.b16 %v160, %v160
  %v165 = vpack.c.b16 %v161, %v161
  %v166 = vpack.c.b16 %v162, %v162
  %v167 = vpack.c.b16 %v163, %v163
  %vm172 = vcmask 519168
  %173 = vst.msk [vmem:[%s6] sm:$0xf] %vm172, %v164
  %174 = vst.msk [vmem:[%s6 + $0x4] sm:$0xf] %vm172, %v165
  %175 = vst.msk [vmem:[%s6 + $0x8] sm:$0xf] %vm172, %v166
  %176 = vst.msk [vmem:[%s6 + $0xc] sm:$0xf] %vm172, %v167
  // Predicated region
  $region26: #{enet_forward.101} parent=0 // pred_check
    _
  $region27: #{enet_forward.101} parent=0 // pred_check_branch
    %178 = sbr.rel (0) target = $region29
  $region28: #{enet_forward.101} parent=0 // pred_region
    _
  $region29: #{enet_forward.101} parent=0 // pred_fallthru
    _
  // Predicated region
  $region30: #{enet_forward.101} parent=0 // pred_check
    _
  $region31: #{enet_forward.101} parent=0 // pred_check_branch
    %180 = sbr.rel (0) target = $region33
  $region32: #{enet_forward.101} parent=0 // pred_region
    _
  $region33: #{enet_forward.101} parent=0 // pred_fallthru
    _

// kernel: enet_forward.102
$region0: #{enet_forward.102}
  #allocation0 [shape = 'u32[]', space=smem, size = 0x4, offset = 0x4, fixed_abs, tag = 'smem constant byte address 0x4 - core index']
  #allocation1 [shape = 'u32[144,128]{1,0:T(1,128)}', space=vmem, size = 0x12000, scoped, tag = 'internal scratch']
  %s0 = inlined_call_operand.vmem [shape: bf16[32,64], index: 0, kind: input, shape index: {}]
  %s1 = inlined_call_operand.vmem [shape: bf16[64,16], index: 1, kind: input, shape index: {}]
  %s2 = inlined_call_operand.vmem [shape: f32[1,16], index: 2, kind: input, shape index: {}]
  %s3 = inlined_call_operand.vmem [shape: f32[1,16], index: 3, kind: input, shape index: {}]
  %s4 = inlined_call_operand.vmem [shape: bf16[32,16], index: 4, kind: output, shape index: {}]
  %s5 = sld [smem:[#allocation0]]
  $region26: #{enet_forward.102} parent=0
    _
  %s7 = ssub.s32 1, %s5
  %s8 = scalar_select 0, %s7, %s5
  // Predicated region
  $region2: #{enet_forward.102} parent=0 // pred_check
    _
  $region3: #{enet_forward.102} parent=0 // pred_check_branch
    %10 = sbr.rel (0) target = $region5
  $region4: #{enet_forward.102} parent=0 // pred_region
    _
  $region5: #{enet_forward.102} parent=0 // pred_fallthru
    _
  // Predicated region
  $region6: #{enet_forward.102} parent=0 // pred_check
    _
  $region7: #{enet_forward.102} parent=0 // pred_check_branch
    %12 = sbr.rel (0) target = $region9
  $region8: #{enet_forward.102} parent=0 // pred_region
    _
  $region9: #{enet_forward.102} parent=0 // pred_fallthru
    _
  // Predicated region
  $region10: #{enet_forward.102} parent=0 // pred_check
    _
  $region11: #{enet_forward.102} parent=0 // pred_check_branch
    %14 = sbr.rel (0) target = $region13
  $region12: #{enet_forward.102} parent=0 // pred_region
    _
  $region13: #{enet_forward.102} parent=0 // pred_fallthru
    _
  // Predicated region
  $region14: #{enet_forward.102} parent=0 // pred_check
    _
  $region15: #{enet_forward.102} parent=0 // pred_check_branch
    %16 = sbr.rel (0) target = $region17
  $region16: #{enet_forward.102} parent=0 // pred_region
    _
  $region17: #{enet_forward.102} parent=0 // pred_fallthru
    _
  %v18 = vld [vmem:[%s0] sm:$0xf]
  %v19 = vld [vmem:[%s0 + $0x4] sm:$0xf]
  %v20 = vld [vmem:[%s0 + $0x8] sm:$0xf]
  %v21 = vld [vmem:[%s0 + $0xc] sm:$0xf]
  %v22 = vld [vmem:[%s1] sm:$0xf]
  %v23 = vld [vmem:[%s1 + $0x4] sm:$0xf]
  %v24 = vld [vmem:[%s1 + $0x8] sm:$0xf]
  %v25 = vld [vmem:[%s1 + $0xc] sm:$0xf]
  %v26 = vld [vmem:[%s1 + $0x10] sm:$0xf]
  %v27 = vld [vmem:[%s1 + $0x14] sm:$0xf]
  %v28 = vld [vmem:[%s1 + $0x18] sm:$0xf]
  %v29 = vld [vmem:[%s1 + $0x1c] sm:$0xf]
  %v30 = vld [vmem:[%s2] sm:$0x1]
  %v32 = vlaneseq
  %v33 = vshrl.u32 %v32, 7
  %v34 = vsub.s32 0, %v33
  %v35 = vrot.slane %v30, %v34
  %v41 = vunpack.c.l.b16 %v18
  %v42 = vunpack.c.l.b16 %v19
  %v43 = vunpack.c.l.b16 %v20
  %v44 = vunpack.c.l.b16 %v21
  %v45 = vpack.c.b16 %v42, %v41
  %v46 = vpack.c.b16 %v44, %v43
  %v55 = vunpack.c.l.b16 %v22
  %v56 = vunpack.c.l.b16 %v23
  %v57 = vunpack.c.l.b16 %v24
  %v58 = vunpack.c.l.b16 %v25
  %v59 = vunpack.c.l.b16 %v26
  %v60 = vunpack.c.l.b16 %v27
  %v61 = vunpack.c.l.b16 %v28
  %v62 = vunpack.c.l.b16 %v29
  %v63 = vpack.c.b16 %v56, %v55
  %v64 = vpack.c.b16 %v58, %v57
  %v65 = vpack.c.b16 %v60, %v59
  %v66 = vpack.c.b16 %v62, %v61
  %vm71 = vcmask 523264
  %v73 = vsel %vm71, %v45, 0
  %v76 = vsel %vm71, %v46, 0
  %78 = vmatprep.subr.bf16.mxu0 0
  %79 = vmatpush1.bf16.msra.mxu0 0
  %80 = vmatprep.subr.bf16.mxu0 0
  %81 = vmatpush1.bf16.msra.mxu0 0
  %82 = vmatprep.subr.bf16.mxu0 0
  %83 = vmatpush1.bf16.msra.mxu0 0
  %84 = vmatprep.subr.bf16.mxu0 0
  %85 = vmatpush1.bf16.msra.mxu0 0
  %86 = vmatprep.subr.bf16.mxu0 0
  %87 = vmatpush1.bf16.msra.mxu0 %v66
  %88 = vmatprep.subr.bf16.mxu0 0
  %89 = vmatpush1.bf16.msra.mxu0 %v65
  %90 = vmatprep.subr.bf16.mxu0 0
  %91 = vmatpush1.bf16.msra.mxu0 %v64
  %92 = vmatprep.subr.bf16.mxu0 0
  %93 = vmatpush1.bf16.msra.mxu0 %v63
  %94 = vmatprep.subr.bf16.mxu0 0
  %95 = vmatpush2.bf16.msra.mxu0 0
  %96 = vmatprep.subr.bf16.mxu0 0
  %97 = vmatpush2.bf16.msra.mxu0 0
  %98 = vmatprep.subr.bf16.mxu0 0
  %99 = vmatpush2.bf16.msra.mxu0 0
  %100 = vmatprep.subr.bf16.mxu0 0
  %101 = vmatpush2.bf16.msra.mxu0 0
  %102 = vmatprep.subr.bf16.mxu0 0
  %103 = vmatpush2.bf16.msra.mxu0 0
  %104 = vmatprep.subr.bf16.mxu0 0
  %105 = vmatpush2.bf16.msra.mxu0 0
  %106 = vmatprep.subr.bf16.mxu0 0
  %107 = vmatpush2.bf16.msra.mxu0 0
  %108 = vmatprep.subr.bf16.mxu0 0
  %109 = vmatpush2.bf16.msra.mxu0 0
  %110 = vmatprep.mubr.bf16.mxu0 0
  %111 = vmatmul.mubr.bf16.gmra.mxu0 %v73
  %v112 = vpop.f32.mrf.mxu0
  %v113 = vadd.f32 %v35, %v112
  %v114 = vpop.f32.mrf.mxu0
  %v115 = vpop.f32.mrf.mxu0
  %v116 = vadd.f32 %v35, %v115
  %v117 = vpop.f32.mrf.mxu0
  %118 = vmatprep.mubr.bf16.mxu0 0
  %119 = vmatmul.mubr.bf16.gmra.mxu0 %v76
  %v120 = vpop.f32.mrf.mxu0
  %v121 = vadd.f32 %v35, %v120
  %v122 = vpop.f32.mrf.mxu0
  %v123 = vpop.f32.mrf.mxu0
  %v124 = vadd.f32 %v35, %v123
  %v125 = vpop.f32.mrf.mxu0
  %126 = vdwg.mxu0
  %vm127 = vcmp.ge.f32.partialorder %v113, 0.0
  %vm128 = vcmp.ge.f32.partialorder %v116, 0.0
  %vm129 = vcmp.ge.f32.partialorder %v121, 0.0
  %vm130 = vcmp.ge.f32.partialorder %v124, 0.0
  %v131 = vld [vmem:[%s3] sm:$0x1]
  %v133 = vlaneseq
  %v134 = vshrl.u32 %v133, 7
  %v135 = vsub.s32 0, %v134
  %v136 = vrot.slane %v131, %v135
  %v138 = vmul.f32 %v136, %v113
  %v139 = vmul.f32 %v136, %v116
  %v140 = vmul.f32 %v136, %v121
  %v141 = vmul.f32 %v136, %v124
  %v142 = vsel %vm127, %v113, %v138
  %v143 = vsel %vm128, %v116, %v139
  %v144 = vsel %vm129, %v121, %v140
  %v145 = vsel %vm130, %v124, %v141
  %v146 = vpack.c.bf16 %v143, %v142
  %v147 = vpack.c.bf16 %v145, %v144
  %v150 = vunpack.c.l.b16 %v146
  %v151 = vunpack.c.h.b16 %v146
  %v152 = vunpack.c.l.b16 %v147
  %v153 = vunpack.c.h.b16 %v147
  %v154 = vpack.c.b16 %v150, %v150
  %v155 = vpack.c.b16 %v151, %v151
  %v156 = vpack.c.b16 %v152, %v152
  %v157 = vpack.c.b16 %v153, %v153
  %vm162 = vcmask 125952
  %163 = vst.msk [vmem:[%s4] sm:$0xf] %vm162, %v154
  %164 = vst.msk [vmem:[%s4 + $0x4] sm:$0xf] %vm162, %v155
  %165 = vst.msk [vmem:[%s4 + $0x8] sm:$0xf] %vm162, %v156
  %166 = vst.msk [vmem:[%s4 + $0xc] sm:$0xf] %vm162, %v157
  // Predicated region
  $region18: #{enet_forward.102} parent=0 // pred_check
    _
  $region19: #{enet_forward.102} parent=0 // pred_check_branch
    %168 = sbr.rel (0) target = $region21
  $region20: #{enet_forward.102} parent=0 // pred_region
    _
  $region21: #{enet_forward.102} parent=0 // pred_fallthru
    _
  // Predicated region
  $region22: #{enet_forward.102} parent=0 // pred_check
    _
  $region23: #{enet_forward.102} parent=0 // pred_check_branch
    %170 = sbr.rel (0) target = $region25
  $region24: #{enet_forward.102} parent=0 // pred_region
    _
  $region25: #{enet_forward.102} parent=0 // pred_fallthru
    _

// kernel: enet_forward.103
$region0: #{enet_forward.103}
  #allocation0 [shape = 'u32[]', space=smem, size = 0x4, offset = 0x4, fixed_abs, tag = 'smem constant byte address 0x4 - core index']
  #allocation1 [shape = 'u32[144,128]{1,0:T(1,128)}', space=vmem, size = 0x12000, scoped, tag = 'internal scratch']
  %s0 = inlined_call_operand.vmem [shape: bf16[32,144], index: 0, kind: input, shape index: {}]
  %s1 = inlined_call_operand.vmem [shape: bf16[144,16], index: 1, kind: input, shape index: {}]
  %s2 = inlined_call_operand.vmem [shape: f32[1,16], index: 2, kind: input, shape index: {}]
  %s3 = inlined_call_operand.vmem [shape: f32[1,16], index: 3, kind: input, shape index: {}]
  %s4 = inlined_call_operand.vmem [shape: bf16[32,16], index: 4, kind: output, shape index: {}]
  %s5 = sld [smem:[#allocation0]]
  $region26: #{enet_forward.103} parent=0
    _
  %s7 = ssub.s32 1, %s5
  %s8 = scalar_select 0, %s7, %s5
  // Predicated region
  $region2: #{enet_forward.103} parent=0 // pred_check
    _
  $region3: #{enet_forward.103} parent=0 // pred_check_branch
    %10 = sbr.rel (0) target = $region5
  $region4: #{enet_forward.103} parent=0 // pred_region
    _
  $region5: #{enet_forward.103} parent=0 // pred_fallthru
    _
  // Predicated region
  $region6: #{enet_forward.103} parent=0 // pred_check
    _
  $region7: #{enet_forward.103} parent=0 // pred_check_branch
    %12 = sbr.rel (0) target = $region9
  $region8: #{enet_forward.103} parent=0 // pred_region
    _
  $region9: #{enet_forward.103} parent=0 // pred_fallthru
    _
  // Predicated region
  $region10: #{enet_forward.103} parent=0 // pred_check
    _
  $region11: #{enet_forward.103} parent=0 // pred_check_branch
    %14 = sbr.rel (0) target = $region13
  $region12: #{enet_forward.103} parent=0 // pred_region
    _
  $region13: #{enet_forward.103} parent=0 // pred_fallthru
    _
  // Predicated region
  $region14: #{enet_forward.103} parent=0 // pred_check
    _
  $region15: #{enet_forward.103} parent=0 // pred_check_branch
    %16 = sbr.rel (0) target = $region17
  $region16: #{enet_forward.103} parent=0 // pred_region
    _
  $region17: #{enet_forward.103} parent=0 // pred_fallthru
    _
  %v18 = vld [vmem:[%s0] sm:$0xff]
  %v19 = vld [vmem:[%s0 + $0x8] sm:$0xff]
  %v20 = vld [vmem:[%s0 + $0x10] sm:$0xff]
  %v21 = vld [vmem:[%s0 + $0x18] sm:$0xff]
  %v22 = vld [vmem:[%s1] sm:$0xf]
  %v23 = vld [vmem:[%s1 + $0x4] sm:$0xf]
  %v24 = vld [vmem:[%s1 + $0x8] sm:$0xf]
  %v25 = vld [vmem:[%s1 + $0xc] sm:$0xf]
  %v26 = vld [vmem:[%s1 + $0x10] sm:$0xf]
  %v27 = vld [vmem:[%s1 + $0x14] sm:$0xf]
  %v28 = vld [vmem:[%s1 + $0x18] sm:$0xf]
  %v29 = vld [vmem:[%s1 + $0x1c] sm:$0xf]
  %v30 = vld [vmem:[%s1 + $0x20] sm:$0xf]
  %v31 = vld [vmem:[%s1 + $0x24] sm:$0xf]
  %v32 = vld [vmem:[%s1 + $0x28] sm:$0xf]
  %v33 = vld [vmem:[%s1 + $0x2c] sm:$0xf]
  %v34 = vld [vmem:[%s1 + $0x30] sm:$0xf]
  %v35 = vld [vmem:[%s1 + $0x34] sm:$0xf]
  %v36 = vld [vmem:[%s1 + $0x38] sm:$0xf]
  %v37 = vld [vmem:[%s1 + $0x3c] sm:$0xf]
  %v38 = vld [vmem:[%s1 + $0x40] sm:$0xf]
  %v39 = vld [vmem:[%s1 + $0x44] sm:$0xf]
  %v40 = vld [vmem:[%s2] sm:$0x1]
  %v42 = vlaneseq
  %v43 = vshrl.u32 %v42, 7
  %v44 = vsub.s32 0, %v43
  %v45 = vrot.slane %v40, %v44
  %v51 = vunpack.c.l.b16 %v18
  %v52 = vunpack.c.h.b16 %v18
  %v53 = vunpack.c.l.b16 %v19
  %v54 = vunpack.c.h.b16 %v19
  %v55 = vunpack.c.l.b16 %v20
  %v56 = vunpack.c.h.b16 %v20
  %v57 = vunpack.c.l.b16 %v21
  %v58 = vunpack.c.h.b16 %v21
  %v59 = vpack.c.b16 %v53, %v51
  %v60 = vpack.c.b16 %v54, %v52
  %v61 = vpack.c.b16 %v57, %v55
  %v62 = vpack.c.b16 %v58, %v56
  %v83 = vunpack.c.l.b16 %v22
  %v84 = vunpack.c.l.b16 %v23
  %v85 = vunpack.c.l.b16 %v24
  %v86 = vunpack.c.l.b16 %v25
  %v87 = vunpack.c.l.b16 %v26
  %v88 = vunpack.c.l.b16 %v27
  %v89 = vunpack.c.l.b16 %v28
  %v90 = vunpack.c.l.b16 %v29
  %v91 = vunpack.c.l.b16 %v30
  %v92 = vunpack.c.l.b16 %v31
  %v93 = vunpack.c.l.b16 %v32
  %v94 = vunpack.c.l.b16 %v33
  %v95 = vunpack.c.l.b16 %v34
  %v96 = vunpack.c.l.b16 %v35
  %v97 = vunpack.c.l.b16 %v36
  %v98 = vunpack.c.l.b16 %v37
  %v99 = vunpack.c.l.b16 %v38
  %v100 = vunpack.c.l.b16 %v39
  %v101 = vpack.c.b16 %v84, %v83
  %v102 = vpack.c.b16 %v86, %v85
  %v103 = vpack.c.b16 %v88, %v87
  %v104 = vpack.c.b16 %v90, %v89
  %v105 = vpack.c.b16 %v92, %v91
  %v106 = vpack.c.b16 %v94, %v93
  %v107 = vpack.c.b16 %v96, %v95
  %v108 = vpack.c.b16 %v98, %v97
  %v109 = vpack.c.b16 %v100, %v99
  %vm119 = vcmask 130048
  %v121 = vsel %vm119, %v60, 0
  %v124 = vsel %vm119, %v62, 0
  %126 = vmatprep.subr.bf16.mxu0 0
  %127 = vmatpush1.bf16.msra.mxu0 %v108
  %128 = vmatprep.subr.bf16.mxu0 0
  %129 = vmatpush1.bf16.msra.mxu0 %v107
  %130 = vmatprep.subr.bf16.mxu0 0
  %131 = vmatpush1.bf16.msra.mxu0 %v106
  %132 = vmatprep.subr.bf16.mxu0 0
  %133 = vmatpush1.bf16.msra.mxu0 %v105
  %134 = vmatprep.subr.bf16.mxu0 0
  %135 = vmatpush1.bf16.msra.mxu0 %v104
  %136 = vmatprep.subr.bf16.mxu0 0
  %137 = vmatpush1.bf16.msra.mxu0 %v103
  %138 = vmatprep.subr.bf16.mxu0 0
  %139 = vmatpush1.bf16.msra.mxu0 %v102
  %140 = vmatprep.subr.bf16.mxu0 0
  %141 = vmatpush1.bf16.msra.mxu0 %v101
  %142 = vmatprep.subr.bf16.mxu0 0
  %143 = vmatpush2.bf16.msra.mxu0 0
  %144 = vmatprep.subr.bf16.mxu0 0
  %145 = vmatpush2.bf16.msra.mxu0 0
  %146 = vmatprep.subr.bf16.mxu0 0
  %147 = vmatpush2.bf16.msra.mxu0 0
  %148 = vmatprep.subr.bf16.mxu0 0
  %149 = vmatpush2.bf16.msra.mxu0 0
  %150 = vmatprep.subr.bf16.mxu0 0
  %151 = vmatpush2.bf16.msra.mxu0 0
  %152 = vmatprep.subr.bf16.mxu0 0
  %153 = vmatpush2.bf16.msra.mxu0 0
  %154 = vmatprep.subr.bf16.mxu0 0
  %155 = vmatpush2.bf16.msra.mxu0 0
  %156 = vmatprep.subr.bf16.mxu0 0
  %157 = vmatpush2.bf16.msra.mxu0 %v109
  %158 = vmatprep.mubr.bf16.mxu0 %v121
  %159 = vmatmul.mubr.bf16.gmra.mxu0 %v59
  %v160 = vpop.f32.mrf.mxu0
  %v161 = vadd.f32 %v45, %v160
  %v162 = vpop.f32.mrf.mxu0
  %v163 = vpop.f32.mrf.mxu0
  %v164 = vadd.f32 %v45, %v163
  %v165 = vpop.f32.mrf.mxu0
  %166 = vmatprep.mubr.bf16.mxu0 %v124
  %167 = vmatmul.mubr.bf16.gmra.mxu0 %v61
  %v168 = vpop.f32.mrf.mxu0
  %v169 = vadd.f32 %v45, %v168
  %v170 = vpop.f32.mrf.mxu0
  %v171 = vpop.f32.mrf.mxu0
  %v172 = vadd.f32 %v45, %v171
  %v173 = vpop.f32.mrf.mxu0
  %174 = vdwg.mxu0
  %vm175 = vcmp.ge.f32.partialorder %v161, 0.0
  %vm176 = vcmp.ge.f32.partialorder %v164, 0.0
  %vm177 = vcmp.ge.f32.partialorder %v169, 0.0
  %vm178 = vcmp.ge.f32.partialorder %v172, 0.0
  %v179 = vld [vmem:[%s3] sm:$0x1]
  %v181 = vlaneseq
  %v182 = vshrl.u32 %v181, 7
  %v183 = vsub.s32 0, %v182
  %v184 = vrot.slane %v179, %v183
  %v186 = vmul.f32 %v184, %v161
  %v187 = vmul.f32 %v184, %v164
  %v188 = vmul.f32 %v184, %v169
  %v189 = vmul.f32 %v184, %v172
  %v190 = vsel %vm175, %v161, %v186
  %v191 = vsel %vm176, %v164, %v187
  %v192 = vsel %vm177, %v169, %v188
  %v193 = vsel %vm178, %v172, %v189
  %v194 = vpack.c.bf16 %v191, %v190
  %v195 = vpack.c.bf16 %v193, %v192
  %v198 = vunpack.c.l.b16 %v194
  %v199 = vunpack.c.h.b16 %v194
  %v200 = vunpack.c.l.b16 %v195
  %v201 = vunpack.c.h.b16 %v195
  %v202 = vpack.c.b16 %v198, %v198
  %v203 = vpack.c.b16 %v199, %v199
  %v204 = vpack.c.b16 %v200, %v200
  %v205 = vpack.c.b16 %v201, %v201
  %vm210 = vcmask 125952
  %211 = vst.msk [vmem:[%s4] sm:$0xf] %vm210, %v202
  %212 = vst.msk [vmem:[%s4 + $0x4] sm:$0xf] %vm210, %v203
  %213 = vst.msk [vmem:[%s4 + $0x8] sm:$0xf] %vm210, %v204
  %214 = vst.msk [vmem:[%s4 + $0xc] sm:$0xf] %vm210, %v205
  // Predicated region
  $region18: #{enet_forward.103} parent=0 // pred_check
    _
  $region19: #{enet_forward.103} parent=0 // pred_check_branch
    %216 = sbr.rel (0) target = $region21
  $region20: #{enet_forward.103} parent=0 // pred_region
    _
  $region21: #{enet_forward.103} parent=0 // pred_fallthru
    _
  // Predicated region
  $region22: #{enet_forward.103} parent=0 // pred_check
    _
  $region23: #{enet_forward.103} parent=0 // pred_check_branch
    %218 = sbr.rel (0) target = $region25
  $region24: #{enet_forward.103} parent=0 // pred_region
    _
  $region25: #{enet_forward.103} parent=0 // pred_fallthru
    _

// kernel: enet_forward.104
$region0: #{enet_forward.104}
  #allocation0 [shape = 'u32[]', space=smem, size = 0x4, offset = 0x4, fixed_abs, tag = 'smem constant byte address 0x4 - core index']
  #allocation1 [shape = 'u32[144,128]{1,0:T(1,128)}', space=vmem, size = 0x12000, scoped, tag = 'internal scratch']
  %s0 = inlined_call_operand.vmem [shape: bf16[32,16], index: 0, kind: input, shape index: {}]
  %s1 = inlined_call_operand.vmem [shape: bf16[16,64], index: 1, kind: input, shape index: {}]
  %s2 = inlined_call_operand.vmem [shape: f32[1,64], index: 2, kind: input, shape index: {}]
  %s3 = inlined_call_operand.vmem [shape: f32[1,64], index: 3, kind: input, shape index: {}]
  %s4 = inlined_call_operand.vmem [shape: f32[1,64], index: 4, kind: input, shape index: {}]
  %s5 = inlined_call_operand.vmem [shape: bf16[32,64], index: 5, kind: input, shape index: {}]
  %s6 = inlined_call_operand.vmem [shape: bf16[32,64], index: 6, kind: output, shape index: {}]
  %s7 = sld [smem:[#allocation0]]
  $region34: #{enet_forward.104} parent=0
    _
  %s9 = ssub.s32 1, %s7
  %s10 = scalar_select 0, %s9, %s7
  // Predicated region
  $region2: #{enet_forward.104} parent=0 // pred_check
    _
  $region3: #{enet_forward.104} parent=0 // pred_check_branch
    %12 = sbr.rel (0) target = $region5
  $region4: #{enet_forward.104} parent=0 // pred_region
    _
  $region5: #{enet_forward.104} parent=0 // pred_fallthru
    _
  // Predicated region
  $region6: #{enet_forward.104} parent=0 // pred_check
    _
  $region7: #{enet_forward.104} parent=0 // pred_check_branch
    %14 = sbr.rel (0) target = $region9
  $region8: #{enet_forward.104} parent=0 // pred_region
    _
  $region9: #{enet_forward.104} parent=0 // pred_fallthru
    _
  // Predicated region
  $region10: #{enet_forward.104} parent=0 // pred_check
    _
  $region11: #{enet_forward.104} parent=0 // pred_check_branch
    %16 = sbr.rel (0) target = $region13
  $region12: #{enet_forward.104} parent=0 // pred_region
    _
  $region13: #{enet_forward.104} parent=0 // pred_fallthru
    _
  // Predicated region
  $region14: #{enet_forward.104} parent=0 // pred_check
    _
  $region15: #{enet_forward.104} parent=0 // pred_check_branch
    %18 = sbr.rel (0) target = $region17
  $region16: #{enet_forward.104} parent=0 // pred_region
    _
  $region17: #{enet_forward.104} parent=0 // pred_fallthru
    _
  // Predicated region
  $region18: #{enet_forward.104} parent=0 // pred_check
    _
  $region19: #{enet_forward.104} parent=0 // pred_check_branch
    %20 = sbr.rel (0) target = $region21
  $region20: #{enet_forward.104} parent=0 // pred_region
    _
  $region21: #{enet_forward.104} parent=0 // pred_fallthru
    _
  // Predicated region
  $region22: #{enet_forward.104} parent=0 // pred_check
    _
  $region23: #{enet_forward.104} parent=0 // pred_check_branch
    %22 = sbr.rel (0) target = $region25
  $region24: #{enet_forward.104} parent=0 // pred_region
    _
  $region25: #{enet_forward.104} parent=0 // pred_fallthru
    _
  %v24 = vld [vmem:[%s0] sm:$0xf]
  %v25 = vld [vmem:[%s0 + $0x4] sm:$0xf]
  %v26 = vld [vmem:[%s0 + $0x8] sm:$0xf]
  %v27 = vld [vmem:[%s0 + $0xc] sm:$0xf]
  %v28 = vld [vmem:[%s1] sm:$0xf]
  %v29 = vld [vmem:[%s1 + $0x4] sm:$0xf]
  %v30 = vld [vmem:[%s2] sm:$0x1]
  %v32 = vlaneseq
  %v33 = vshrl.u32 %v32, 7
  %v34 = vsub.s32 0, %v33
  %v35 = vrot.slane %v30, %v34
  %v41 = vunpack.c.l.b16 %v24
  %v42 = vunpack.c.l.b16 %v25
  %v43 = vunpack.c.l.b16 %v26
  %v44 = vunpack.c.l.b16 %v27
  %v45 = vpack.c.b16 %v42, %v41
  %v46 = vpack.c.b16 %v44, %v43
  %v49 = vunpack.c.l.b16 %v28
  %v50 = vunpack.c.l.b16 %v29
  %v51 = vpack.c.b16 %v50, %v49
  %vm53 = vcmask 130048
  %v55 = vsel %vm53, %v45, 0
  %v58 = vsel %vm53, %v46, 0
  %60 = vmatprep.subr.bf16.mxu0 0
  %61 = vmatpush1.bf16.msra.mxu0 0
  %62 = vmatprep.subr.bf16.mxu0 0
  %63 = vmatpush1.bf16.msra.mxu0 0
  %64 = vmatprep.subr.bf16.mxu0 0
  %65 = vmatpush1.bf16.msra.mxu0 0
  %66 = vmatprep.subr.bf16.mxu0 0
  %67 = vmatpush1.bf16.msra.mxu0 0
  %68 = vmatprep.subr.bf16.mxu0 0
  %69 = vmatpush1.bf16.msra.mxu0 0
  %70 = vmatprep.subr.bf16.mxu0 0
  %71 = vmatpush1.bf16.msra.mxu0 0
  %72 = vmatprep.subr.bf16.mxu0 0
  %73 = vmatpush1.bf16.msra.mxu0 0
  %74 = vmatprep.subr.bf16.mxu0 0
  %75 = vmatpush1.bf16.msra.mxu0 %v51
  %76 = vmatprep.subr.bf16.mxu0 0
  %77 = vmatpush2.bf16.msra.mxu0 0
  %78 = vmatprep.subr.bf16.mxu0 0
  %79 = vmatpush2.bf16.msra.mxu0 0
  %80 = vmatprep.subr.bf16.mxu0 0
  %81 = vmatpush2.bf16.msra.mxu0 0
  %82 = vmatprep.subr.bf16.mxu0 0
  %83 = vmatpush2.bf16.msra.mxu0 0
  %84 = vmatprep.subr.bf16.mxu0 0
  %85 = vmatpush2.bf16.msra.mxu0 0
  %86 = vmatprep.subr.bf16.mxu0 0
  %87 = vmatpush2.bf16.msra.mxu0 0
  %88 = vmatprep.subr.bf16.mxu0 0
  %89 = vmatpush2.bf16.msra.mxu0 0
  %90 = vmatprep.subr.bf16.mxu0 0
  %91 = vmatpush2.bf16.msra.mxu0 0
  %92 = vmatprep.mubr.bf16.mxu0 0
  %93 = vmatmul.mubr.bf16.gmra.mxu0 %v55
  %v94 = vpop.f32.mrf.mxu0
  %v95 = vadd.f32 %v35, %v94
  %v96 = vpop.f32.mrf.mxu0
  %v97 = vpop.f32.mrf.mxu0
  %v98 = vadd.f32 %v35, %v97
  %v99 = vpop.f32.mrf.mxu0
  %100 = vmatprep.mubr.bf16.mxu0 0
  %101 = vmatmul.mubr.bf16.gmra.mxu0 %v58
  %v102 = vpop.f32.mrf.mxu0
  %v103 = vadd.f32 %v35, %v102
  %v104 = vpop.f32.mrf.mxu0
  %v105 = vpop.f32.mrf.mxu0
  %v106 = vadd.f32 %v35, %v105
  %v107 = vpop.f32.mrf.mxu0
  %108 = vdwg.mxu0
  %vm109 = vcmp.ge.f32.partialorder %v95, 0.0
  %vm110 = vcmp.ge.f32.partialorder %v98, 0.0
  %vm111 = vcmp.ge.f32.partialorder %v103, 0.0
  %vm112 = vcmp.ge.f32.partialorder %v106, 0.0
  %v113 = vld [vmem:[%s3] sm:$0x1]
  %v115 = vlaneseq
  %v116 = vshrl.u32 %v115, 7
  %v117 = vsub.s32 0, %v116
  %v118 = vrot.slane %v113, %v117
  %v120 = vmul.f32 %v118, %v95
  %v121 = vmul.f32 %v118, %v98
  %v122 = vmul.f32 %v118, %v103
  %v123 = vmul.f32 %v118, %v106
  %v124 = vsel %vm109, %v95, %v120
  %v125 = vsel %vm110, %v98, %v121
  %v126 = vsel %vm111, %v103, %v122
  %v127 = vsel %vm112, %v106, %v123
  %v128 = vld [vmem:[%s5] sm:$0xf]
  %v129 = vld [vmem:[%s5 + $0x4] sm:$0xf]
  %v130 = vld [vmem:[%s5 + $0x8] sm:$0xf]
  %v131 = vld [vmem:[%s5 + $0xc] sm:$0xf]
  %v132 = vunpack.c.l.bf16 %v128
  %v133 = vunpack.c.l.bf16 %v129
  %v134 = vunpack.c.l.bf16 %v130
  %v135 = vunpack.c.l.bf16 %v131
  %v136 = vadd.f32 %v124, %v132
  %v137 = vadd.f32 %v125, %v133
  %v138 = vadd.f32 %v126, %v134
  %v139 = vadd.f32 %v127, %v135
  %vm140 = vcmp.ge.f32.partialorder %v136, 0.0
  %vm141 = vcmp.ge.f32.partialorder %v137, 0.0
  %vm142 = vcmp.ge.f32.partialorder %v138, 0.0
  %vm143 = vcmp.ge.f32.partialorder %v139, 0.0
  %v144 = vld [vmem:[%s4] sm:$0x1]
  %v146 = vlaneseq
  %v147 = vshrl.u32 %v146, 7
  %v148 = vsub.s32 0, %v147
  %v149 = vrot.slane %v144, %v148
  %v151 = vmul.f32 %v149, %v136
  %v152 = vmul.f32 %v149, %v137
  %v153 = vmul.f32 %v149, %v138
  %v154 = vmul.f32 %v149, %v139
  %v155 = vsel %vm140, %v136, %v151
  %v156 = vsel %vm141, %v137, %v152
  %v157 = vsel %vm142, %v138, %v153
  %v158 = vsel %vm143, %v139, %v154
  %v159 = vpack.c.bf16 %v156, %v155
  %v160 = vpack.c.bf16 %v158, %v157
  %v163 = vunpack.c.l.b16 %v159
  %v164 = vunpack.c.h.b16 %v159
  %v165 = vunpack.c.l.b16 %v160
  %v166 = vunpack.c.h.b16 %v160
  %v167 = vpack.c.b16 %v163, %v163
  %v168 = vpack.c.b16 %v164, %v164
  %v169 = vpack.c.b16 %v165, %v165
  %v170 = vpack.c.b16 %v166, %v166
  %vm175 = vcmask 519168
  %176 = vst.msk [vmem:[%s6] sm:$0xf] %vm175, %v167
  %177 = vst.msk [vmem:[%s6 + $0x4] sm:$0xf] %vm175, %v168
  %178 = vst.msk [vmem:[%s6 + $0x8] sm:$0xf] %vm175, %v169
  %179 = vst.msk [vmem:[%s6 + $0xc] sm:$0xf] %vm175, %v170
  // Predicated region
  $region26: #{enet_forward.104} parent=0 // pred_check
    _
  $region27: #{enet_forward.104} parent=0 // pred_check_branch
    %181 = sbr.rel (0) target = $region29
  $region28: #{enet_forward.104} parent=0 // pred_region
    _
  $region29: #{enet_forward.104} parent=0 // pred_fallthru
    _
  // Predicated region
  $region30: #{enet_forward.104} parent=0 // pred_check
    _
  $region31: #{enet_forward.104} parent=0 // pred_check_branch
    %183 = sbr.rel (0) target = $region33
  $region32: #{enet_forward.104} parent=0 // pred_region
    _
  $region33: #{enet_forward.104} parent=0 // pred_fallthru
    _

// kernel: enet_forward.114
$region0: #{enet_forward.114}
  #allocation0 [shape = 'u32[]', space=smem, size = 0x4, offset = 0x4, fixed_abs, tag = 'smem constant byte address 0x4 - core index']
  #allocation1 [shape = 'u32[144,128]{1,0:T(1,128)}', space=vmem, size = 0x12000, scoped, tag = 'internal scratch']
  %s0 = inlined_call_operand.vmem [shape: bf16[8,256], index: 0, kind: input, shape index: {}]
  %s1 = inlined_call_operand.vmem [shape: bf16[256,16], index: 1, kind: input, shape index: {}]
  %s2 = inlined_call_operand.vmem [shape: f32[1,16], index: 2, kind: input, shape index: {}]
  %s3 = inlined_call_operand.vmem [shape: f32[1,16], index: 3, kind: input, shape index: {}]
  %s4 = inlined_call_operand.vmem [shape: bf16[8,16], index: 4, kind: output, shape index: {}]
  %s5 = sld [smem:[#allocation0]]
  $region26: #{enet_forward.114} parent=0
    _
  %s7 = ssub.s32 1, %s5
  %s8 = scalar_select 0, %s7, %s5
  // Predicated region
  $region2: #{enet_forward.114} parent=0 // pred_check
    _
  $region3: #{enet_forward.114} parent=0 // pred_check_branch
    %10 = sbr.rel (0) target = $region5
  $region4: #{enet_forward.114} parent=0 // pred_region
    _
  $region5: #{enet_forward.114} parent=0 // pred_fallthru
    _
  // Predicated region
  $region6: #{enet_forward.114} parent=0 // pred_check
    _
  $region7: #{enet_forward.114} parent=0 // pred_check_branch
    %12 = sbr.rel (0) target = $region9
  $region8: #{enet_forward.114} parent=0 // pred_region
    _
  $region9: #{enet_forward.114} parent=0 // pred_fallthru
    _
  // Predicated region
  $region10: #{enet_forward.114} parent=0 // pred_check
    _
  $region11: #{enet_forward.114} parent=0 // pred_check_branch
    %14 = sbr.rel (0) target = $region13
  $region12: #{enet_forward.114} parent=0 // pred_region
    _
  $region13: #{enet_forward.114} parent=0 // pred_fallthru
    _
  // Predicated region
  $region14: #{enet_forward.114} parent=0 // pred_check
    _
  $region15: #{enet_forward.114} parent=0 // pred_check_branch
    %16 = sbr.rel (0) target = $region17
  $region16: #{enet_forward.114} parent=0 // pred_region
    _
  $region17: #{enet_forward.114} parent=0 // pred_fallthru
    _
  %v18 = vld [vmem:[%s0] sm:$0xff]
  %v19 = vld [vmem:[%s1] sm:$0xf]
  %v20 = vld [vmem:[%s1 + $0x4] sm:$0xf]
  %v21 = vld [vmem:[%s1 + $0x8] sm:$0xf]
  %v22 = vld [vmem:[%s1 + $0xc] sm:$0xf]
  %v23 = vld [vmem:[%s1 + $0x10] sm:$0xf]
  %v24 = vld [vmem:[%s1 + $0x14] sm:$0xf]
  %v25 = vld [vmem:[%s1 + $0x18] sm:$0xf]
  %v26 = vld [vmem:[%s1 + $0x1c] sm:$0xf]
  %v27 = vld [vmem:[%s1 + $0x20] sm:$0xf]
  %v28 = vld [vmem:[%s1 + $0x24] sm:$0xf]
  %v29 = vld [vmem:[%s1 + $0x28] sm:$0xf]
  %v30 = vld [vmem:[%s1 + $0x2c] sm:$0xf]
  %v31 = vld [vmem:[%s1 + $0x30] sm:$0xf]
  %v32 = vld [vmem:[%s1 + $0x34] sm:$0xf]
  %v33 = vld [vmem:[%s1 + $0x38] sm:$0xf]
  %v34 = vld [vmem:[%s1 + $0x3c] sm:$0xf]
  %v35 = vld [vmem:[%s1 + $0x40] sm:$0xf]
  %v36 = vld [vmem:[%s1 + $0x44] sm:$0xf]
  %v37 = vld [vmem:[%s1 + $0x48] sm:$0xf]
  %v38 = vld [vmem:[%s1 + $0x4c] sm:$0xf]
  %v39 = vld [vmem:[%s1 + $0x50] sm:$0xf]
  %v40 = vld [vmem:[%s1 + $0x54] sm:$0xf]
  %v41 = vld [vmem:[%s1 + $0x58] sm:$0xf]
  %v42 = vld [vmem:[%s1 + $0x5c] sm:$0xf]
  %v43 = vld [vmem:[%s1 + $0x60] sm:$0xf]
  %v44 = vld [vmem:[%s1 + $0x64] sm:$0xf]
  %v45 = vld [vmem:[%s1 + $0x68] sm:$0xf]
  %v46 = vld [vmem:[%s1 + $0x6c] sm:$0xf]
  %v47 = vld [vmem:[%s1 + $0x70] sm:$0xf]
  %v48 = vld [vmem:[%s1 + $0x74] sm:$0xf]
  %v49 = vld [vmem:[%s1 + $0x78] sm:$0xf]
  %v50 = vld [vmem:[%s1 + $0x7c] sm:$0xf]
  %v51 = vld [vmem:[%s2] sm:$0x1]
  %v53 = vlaneseq
  %v54 = vshrl.u32 %v53, 7
  %v55 = vsub.s32 0, %v54
  %v56 = vrot.slane %v51, %v55
  %v59 = vunpack.c.l.b16 %v18
  %v60 = vunpack.c.h.b16 %v18
  %v61 = vpack.c.b16 %v59, %v59
  %v62 = vpack.c.b16 %v60, %v60
  %v97 = vunpack.c.l.b16 %v19
  %v98 = vunpack.c.l.b16 %v20
  %v99 = vunpack.c.l.b16 %v21
  %v100 = vunpack.c.l.b16 %v22
  %v101 = vunpack.c.l.b16 %v23
  %v102 = vunpack.c.l.b16 %v24
  %v103 = vunpack.c.l.b16 %v25
  %v104 = vunpack.c.l.b16 %v26
  %v105 = vunpack.c.l.b16 %v27
  %v106 = vunpack.c.l.b16 %v28
  %v107 = vunpack.c.l.b16 %v29
  %v108 = vunpack.c.l.b16 %v30
  %v109 = vunpack.c.l.b16 %v31
  %v110 = vunpack.c.l.b16 %v32
  %v111 = vunpack.c.l.b16 %v33
  %v112 = vunpack.c.l.b16 %v34
  %v113 = vunpack.c.l.b16 %v35
  %v114 = vunpack.c.l.b16 %v36
  %v115 = vunpack.c.l.b16 %v37
  %v116 = vunpack.c.l.b16 %v38
  %v117 = vunpack.c.l.b16 %v39
  %v118 = vunpack.c.l.b16 %v40
  %v119 = vunpack.c.l.b16 %v41
  %v120 = vunpack.c.l.b16 %v42
  %v121 = vunpack.c.l.b16 %v43
  %v122 = vunpack.c.l.b16 %v44
  %v123 = vunpack.c.l.b16 %v45
  %v124 = vunpack.c.l.b16 %v46
  %v125 = vunpack.c.l.b16 %v47
  %v126 = vunpack.c.l.b16 %v48
  %v127 = vunpack.c.l.b16 %v49
  %v128 = vunpack.c.l.b16 %v50
  %v129 = vpack.c.b16 %v98, %v97
  %v130 = vpack.c.b16 %v100, %v99
  %v131 = vpack.c.b16 %v102, %v101
  %v132 = vpack.c.b16 %v104, %v103
  %v133 = vpack.c.b16 %v106, %v105
  %v134 = vpack.c.b16 %v108, %v107
  %v135 = vpack.c.b16 %v110, %v109
  %v136 = vpack.c.b16 %v112, %v111
  %v137 = vpack.c.b16 %v114, %v113
  %v138 = vpack.c.b16 %v116, %v115
  %v139 = vpack.c.b16 %v118, %v117
  %v140 = vpack.c.b16 %v120, %v119
  %v141 = vpack.c.b16 %v122, %v121
  %v142 = vpack.c.b16 %v124, %v123
  %v143 = vpack.c.b16 %v126, %v125
  %v144 = vpack.c.b16 %v128, %v127
  %161 = vmatprep.subr.bf16.mxu0 0
  %162 = vmatpush1.bf16.msra.mxu0 %v136
  %163 = vmatprep.subr.bf16.mxu0 0
  %164 = vmatpush1.bf16.msra.mxu0 %v135
  %165 = vmatprep.subr.bf16.mxu0 0
  %166 = vmatpush1.bf16.msra.mxu0 %v134
  %167 = vmatprep.subr.bf16.mxu0 0
  %168 = vmatpush1.bf16.msra.mxu0 %v133
  %169 = vmatprep.subr.bf16.mxu0 0
  %170 = vmatpush1.bf16.msra.mxu0 %v132
  %171 = vmatprep.subr.bf16.mxu0 0
  %172 = vmatpush1.bf16.msra.mxu0 %v131
  %173 = vmatprep.subr.bf16.mxu0 0
  %174 = vmatpush1.bf16.msra.mxu0 %v130
  %175 = vmatprep.subr.bf16.mxu0 0
  %176 = vmatpush1.bf16.msra.mxu0 %v129
  %177 = vmatprep.subr.bf16.mxu0 0
  %178 = vmatpush2.bf16.msra.mxu0 %v144
  %179 = vmatprep.subr.bf16.mxu0 0
  %180 = vmatpush2.bf16.msra.mxu0 %v143
  %181 = vmatprep.subr.bf16.mxu0 0
  %182 = vmatpush2.bf16.msra.mxu0 %v142
  %183 = vmatprep.subr.bf16.mxu0 0
  %184 = vmatpush2.bf16.msra.mxu0 %v141
  %185 = vmatprep.subr.bf16.mxu0 0
  %186 = vmatpush2.bf16.msra.mxu0 %v140
  %187 = vmatprep.subr.bf16.mxu0 0
  %188 = vmatpush2.bf16.msra.mxu0 %v139
  %189 = vmatprep.subr.bf16.mxu0 0
  %190 = vmatpush2.bf16.msra.mxu0 %v138
  %191 = vmatprep.subr.bf16.mxu0 0
  %192 = vmatpush2.bf16.msra.mxu0 %v137
  %193 = vmatprep.mubr.bf16.mxu0 %v62
  %194 = vmatmul.mubr.bf16.gmra.mxu0 %v61
  %v195 = vpop.f32.mrf.mxu0
  %v196 = vadd.f32 %v56, %v195
  %v197 = vpop.f32.mrf.mxu0
  %v198 = vpop.f32.mrf.mxu0
  %v199 = vpop.f32.mrf.mxu0
  %200 = vdwg.mxu0
  %vm201 = vcmp.ge.f32.partialorder %v196, 0.0
  %v202 = vld [vmem:[%s3] sm:$0x1]
  %v204 = vlaneseq
  %v205 = vshrl.u32 %v204, 7
  %v206 = vsub.s32 0, %v205
  %v207 = vrot.slane %v202, %v206
  %v209 = vmul.f32 %v207, %v196
  %v210 = vsel %vm201, %v196, %v209
  %v211 = vpack.c.bf16 %v210, %v210
  %vm212 = vcmask 125952
  %213 = vst.msk [vmem:[%s4] sm:$0xf] %vm212, %v211
  // Predicated region
  $region18: #{enet_forward.114} parent=0 // pred_check
    _
  $region19: #{enet_forward.114} parent=0 // pred_check_branch
    %215 = sbr.rel (0) target = $region21
  $region20: #{enet_forward.114} parent=0 // pred_region
    _
  $region21: #{enet_forward.114} parent=0 // pred_fallthru
    _
  // Predicated region
  $region22: #{enet_forward.114} parent=0 // pred_check
    _
  $region23: #{enet_forward.114} parent=0 // pred_check_branch
    %217 = sbr.rel (0) target = $region25
  $region24: #{enet_forward.114} parent=0 // pred_region
    _
  $region25: #{enet_forward.114} parent=0 // pred_fallthru
    _

// kernel: enet_forward.115
$region0: #{enet_forward.115}
  #allocation0 [shape = 'u32[]', space=smem, size = 0x4, offset = 0x4, fixed_abs, tag = 'smem constant byte address 0x4 - core index']
  #allocation1 [shape = 'u32[144,128]{1,0:T(1,128)}', space=vmem, size = 0x12000, scoped, tag = 'internal scratch']
  %s0 = inlined_call_operand.vmem [shape: bf16[8,144], index: 0, kind: input, shape index: {}]
  %s1 = inlined_call_operand.vmem [shape: bf16[144,16], index: 1, kind: input, shape index: {}]
  %s2 = inlined_call_operand.vmem [shape: f32[1,16], index: 2, kind: input, shape index: {}]
  %s3 = inlined_call_operand.vmem [shape: f32[1,16], index: 3, kind: input, shape index: {}]
  %s4 = inlined_call_operand.vmem [shape: bf16[8,16], index: 4, kind: output, shape index: {}]
  %s5 = sld [smem:[#allocation0]]
  $region26: #{enet_forward.115} parent=0
    _
  %s7 = ssub.s32 1, %s5
  %s8 = scalar_select 0, %s7, %s5
  // Predicated region
  $region2: #{enet_forward.115} parent=0 // pred_check
    _
  $region3: #{enet_forward.115} parent=0 // pred_check_branch
    %10 = sbr.rel (0) target = $region5
  $region4: #{enet_forward.115} parent=0 // pred_region
    _
  $region5: #{enet_forward.115} parent=0 // pred_fallthru
    _
  // Predicated region
  $region6: #{enet_forward.115} parent=0 // pred_check
    _
  $region7: #{enet_forward.115} parent=0 // pred_check_branch
    %12 = sbr.rel (0) target = $region9
  $region8: #{enet_forward.115} parent=0 // pred_region
    _
  $region9: #{enet_forward.115} parent=0 // pred_fallthru
    _
  // Predicated region
  $region10: #{enet_forward.115} parent=0 // pred_check
    _
  $region11: #{enet_forward.115} parent=0 // pred_check_branch
    %14 = sbr.rel (0) target = $region13
  $region12: #{enet_forward.115} parent=0 // pred_region
    _
  $region13: #{enet_forward.115} parent=0 // pred_fallthru
    _
  // Predicated region
  $region14: #{enet_forward.115} parent=0 // pred_check
    _
  $region15: #{enet_forward.115} parent=0 // pred_check_branch
    %16 = sbr.rel (0) target = $region17
  $region16: #{enet_forward.115} parent=0 // pred_region
    _
  $region17: #{enet_forward.115} parent=0 // pred_fallthru
    _
  %v18 = vld [vmem:[%s0] sm:$0xff]
  %v19 = vld [vmem:[%s1] sm:$0xf]
  %v20 = vld [vmem:[%s1 + $0x4] sm:$0xf]
  %v21 = vld [vmem:[%s1 + $0x8] sm:$0xf]
  %v22 = vld [vmem:[%s1 + $0xc] sm:$0xf]
  %v23 = vld [vmem:[%s1 + $0x10] sm:$0xf]
  %v24 = vld [vmem:[%s1 + $0x14] sm:$0xf]
  %v25 = vld [vmem:[%s1 + $0x18] sm:$0xf]
  %v26 = vld [vmem:[%s1 + $0x1c] sm:$0xf]
  %v27 = vld [vmem:[%s1 + $0x20] sm:$0xf]
  %v28 = vld [vmem:[%s1 + $0x24] sm:$0xf]
  %v29 = vld [vmem:[%s1 + $0x28] sm:$0xf]
  %v30 = vld [vmem:[%s1 + $0x2c] sm:$0xf]
  %v31 = vld [vmem:[%s1 + $0x30] sm:$0xf]
  %v32 = vld [vmem:[%s1 + $0x34] sm:$0xf]
  %v33 = vld [vmem:[%s1 + $0x38] sm:$0xf]
  %v34 = vld [vmem:[%s1 + $0x3c] sm:$0xf]
  %v35 = vld [vmem:[%s1 + $0x40] sm:$0xf]
  %v36 = vld [vmem:[%s1 + $0x44] sm:$0xf]
  %v37 = vld [vmem:[%s2] sm:$0x1]
  %v39 = vlaneseq
  %v40 = vshrl.u32 %v39, 7
  %v41 = vsub.s32 0, %v40
  %v42 = vrot.slane %v37, %v41
  %v45 = vunpack.c.l.b16 %v18
  %v46 = vunpack.c.h.b16 %v18
  %v47 = vpack.c.b16 %v45, %v45
  %v48 = vpack.c.b16 %v46, %v46
  %v68 = vunpack.c.l.b16 %v19
  %v69 = vunpack.c.l.b16 %v20
  %v70 = vunpack.c.l.b16 %v21
  %v71 = vunpack.c.l.b16 %v22
  %v72 = vunpack.c.l.b16 %v23
  %v73 = vunpack.c.l.b16 %v24
  %v74 = vunpack.c.l.b16 %v25
  %v75 = vunpack.c.l.b16 %v26
  %v76 = vunpack.c.l.b16 %v27
  %v77 = vunpack.c.l.b16 %v28
  %v78 = vunpack.c.l.b16 %v29
  %v79 = vunpack.c.l.b16 %v30
  %v80 = vunpack.c.l.b16 %v31
  %v81 = vunpack.c.l.b16 %v32
  %v82 = vunpack.c.l.b16 %v33
  %v83 = vunpack.c.l.b16 %v34
  %v84 = vunpack.c.l.b16 %v35
  %v85 = vunpack.c.l.b16 %v36
  %v86 = vpack.c.b16 %v69, %v68
  %v87 = vpack.c.b16 %v71, %v70
  %v88 = vpack.c.b16 %v73, %v72
  %v89 = vpack.c.b16 %v75, %v74
  %v90 = vpack.c.b16 %v77, %v76
  %v91 = vpack.c.b16 %v79, %v78
  %v92 = vpack.c.b16 %v81, %v80
  %v93 = vpack.c.b16 %v83, %v82
  %v94 = vpack.c.b16 %v85, %v84
  %vm104 = vcmask 130048
  %v106 = vsel %vm104, %v48, 0
  %108 = vmatprep.subr.bf16.mxu0 0
  %109 = vmatpush1.bf16.msra.mxu0 %v93
  %110 = vmatprep.subr.bf16.mxu0 0
  %111 = vmatpush1.bf16.msra.mxu0 %v92
  %112 = vmatprep.subr.bf16.mxu0 0
  %113 = vmatpush1.bf16.msra.mxu0 %v91
  %114 = vmatprep.subr.bf16.mxu0 0
  %115 = vmatpush1.bf16.msra.mxu0 %v90
  %116 = vmatprep.subr.bf16.mxu0 0
  %117 = vmatpush1.bf16.msra.mxu0 %v89
  %118 = vmatprep.subr.bf16.mxu0 0
  %119 = vmatpush1.bf16.msra.mxu0 %v88
  %120 = vmatprep.subr.bf16.mxu0 0
  %121 = vmatpush1.bf16.msra.mxu0 %v87
  %122 = vmatprep.subr.bf16.mxu0 0
  %123 = vmatpush1.bf16.msra.mxu0 %v86
  %124 = vmatprep.subr.bf16.mxu0 0
  %125 = vmatpush2.bf16.msra.mxu0 0
  %126 = vmatprep.subr.bf16.mxu0 0
  %127 = vmatpush2.bf16.msra.mxu0 0
  %128 = vmatprep.subr.bf16.mxu0 0
  %129 = vmatpush2.bf16.msra.mxu0 0
  %130 = vmatprep.subr.bf16.mxu0 0
  %131 = vmatpush2.bf16.msra.mxu0 0
  %132 = vmatprep.subr.bf16.mxu0 0
  %133 = vmatpush2.bf16.msra.mxu0 0
  %134 = vmatprep.subr.bf16.mxu0 0
  %135 = vmatpush2.bf16.msra.mxu0 0
  %136 = vmatprep.subr.bf16.mxu0 0
  %137 = vmatpush2.bf16.msra.mxu0 0
  %138 = vmatprep.subr.bf16.mxu0 0
  %139 = vmatpush2.bf16.msra.mxu0 %v94
  %140 = vmatprep.mubr.bf16.mxu0 %v106
  %141 = vmatmul.mubr.bf16.gmra.mxu0 %v47
  %v142 = vpop.f32.mrf.mxu0
  %v143 = vadd.f32 %v42, %v142
  %v144 = vpop.f32.mrf.mxu0
  %v145 = vpop.f32.mrf.mxu0
  %v146 = vpop.f32.mrf.mxu0
  %147 = vdwg.mxu0
  %vm148 = vcmp.ge.f32.partialorder %v143, 0.0
  %v149 = vld [vmem:[%s3] sm:$0x1]
  %v151 = vlaneseq
  %v152 = vshrl.u32 %v151, 7
  %v153 = vsub.s32 0, %v152
  %v154 = vrot.slane %v149, %v153
  %v156 = vmul.f32 %v154, %v143
  %v157 = vsel %vm148, %v143, %v156
  %v158 = vpack.c.bf16 %v157, %v157
  %vm159 = vcmask 125952
  %160 = vst.msk [vmem:[%s4] sm:$0xf] %vm159, %v158
  // Predicated region
  $region18: #{enet_forward.115} parent=0 // pred_check
    _
  $region19: #{enet_forward.115} parent=0 // pred_check_branch
    %162 = sbr.rel (0) target = $region21
  $region20: #{enet_forward.115} parent=0 // pred_region
    _
  $region21: #{enet_forward.115} parent=0 // pred_fallthru
    _
  // Predicated region
  $region22: #{enet_forward.115} parent=0 // pred_check
    _
  $region23: #{enet_forward.115} parent=0 // pred_check_branch
    %164 = sbr.rel (0) target = $region25
  $region24: #{enet_forward.115} parent=0 // pred_region
    _
  $region25: #{enet_forward.115} parent=0 // pred_fallthru
    _

// kernel: enet_forward.116
$region0: #{enet_forward.116}
  #allocation0 [shape = 'u32[]', space=smem, size = 0x4, offset = 0x4, fixed_abs, tag = 'smem constant byte address 0x4 - core index']
  #allocation1 [shape = 'u32[144,128]{1,0:T(1,128)}', space=vmem, size = 0x12000, scoped, tag = 'internal scratch']
  %s0 = inlined_call_operand.vmem [shape: bf16[8,16], index: 0, kind: input, shape index: {}]
  %s1 = inlined_call_operand.vmem [shape: bf16[16,128], index: 1, kind: input, shape index: {}]
  %s2 = inlined_call_operand.vmem [shape: f32[1,128], index: 2, kind: input, shape index: {}]
  %s3 = inlined_call_operand.vmem [shape: f32[1,128], index: 3, kind: input, shape index: {}]
  %s4 = inlined_call_operand.vmem [shape: f32[1,128], index: 4, kind: input, shape index: {}]
  %s5 = inlined_call_operand.vmem [shape: bf16[8,128], index: 5, kind: input, shape index: {}]
  %s6 = inlined_call_operand.vmem [shape: bf16[8,128], index: 6, kind: output, shape index: {}]
  %s7 = sld [smem:[#allocation0]]
  $region34: #{enet_forward.116} parent=0
    _
  %s9 = ssub.s32 1, %s7
  %s10 = scalar_select 0, %s9, %s7
  // Predicated region
  $region2: #{enet_forward.116} parent=0 // pred_check
    _
  $region3: #{enet_forward.116} parent=0 // pred_check_branch
    %12 = sbr.rel (0) target = $region5
  $region4: #{enet_forward.116} parent=0 // pred_region
    _
  $region5: #{enet_forward.116} parent=0 // pred_fallthru
    _
  // Predicated region
  $region6: #{enet_forward.116} parent=0 // pred_check
    _
  $region7: #{enet_forward.116} parent=0 // pred_check_branch
    %14 = sbr.rel (0) target = $region9
  $region8: #{enet_forward.116} parent=0 // pred_region
    _
  $region9: #{enet_forward.116} parent=0 // pred_fallthru
    _
  // Predicated region
  $region10: #{enet_forward.116} parent=0 // pred_check
    _
  $region11: #{enet_forward.116} parent=0 // pred_check_branch
    %16 = sbr.rel (0) target = $region13
  $region12: #{enet_forward.116} parent=0 // pred_region
    _
  $region13: #{enet_forward.116} parent=0 // pred_fallthru
    _
  // Predicated region
  $region14: #{enet_forward.116} parent=0 // pred_check
    _
  $region15: #{enet_forward.116} parent=0 // pred_check_branch
    %18 = sbr.rel (0) target = $region17
  $region16: #{enet_forward.116} parent=0 // pred_region
    _
  $region17: #{enet_forward.116} parent=0 // pred_fallthru
    _
  // Predicated region
  $region18: #{enet_forward.116} parent=0 // pred_check
    _
  $region19: #{enet_forward.116} parent=0 // pred_check_branch
    %20 = sbr.rel (0) target = $region21
  $region20: #{enet_forward.116} parent=0 // pred_region
    _
  $region21: #{enet_forward.116} parent=0 // pred_fallthru
    _
  // Predicated region
  $region22: #{enet_forward.116} parent=0 // pred_check
    _
  $region23: #{enet_forward.116} parent=0 // pred_check_branch
    %22 = sbr.rel (0) target = $region25
  $region24: #{enet_forward.116} parent=0 // pred_region
    _
  $region25: #{enet_forward.116} parent=0 // pred_fallthru
    _
  %v24 = vld [vmem:[%s0] sm:$0xf]
  %v25 = vld [vmem:[%s1] sm:$0xf]
  %v26 = vld [vmem:[%s1 + $0x4] sm:$0xf]
  %v27 = vld [vmem:[%s2] sm:$0x1]
  %v29 = vlaneseq
  %v30 = vshrl.u32 %v29, 7
  %v31 = vsub.s32 0, %v30
  %v32 = vrot.slane %v27, %v31
  %v36 = vunpack.c.l.b16 %v25
  %v37 = vunpack.c.l.b16 %v26
  %v38 = vpack.c.b16 %v37, %v36
  %vm40 = vcmask 130048
  %v42 = vsel %vm40, %v24, 0
  %44 = vmatprep.subr.bf16.mxu0 0
  %45 = vmatpush1.bf16.msra.mxu0 0
  %46 = vmatprep.subr.bf16.mxu0 0
  %47 = vmatpush1.bf16.msra.mxu0 0
  %48 = vmatprep.subr.bf16.mxu0 0
  %49 = vmatpush1.bf16.msra.mxu0 0
  %50 = vmatprep.subr.bf16.mxu0 0
  %51 = vmatpush1.bf16.msra.mxu0 0
  %52 = vmatprep.subr.bf16.mxu0 0
  %53 = vmatpush1.bf16.msra.mxu0 0
  %54 = vmatprep.subr.bf16.mxu0 0
  %55 = vmatpush1.bf16.msra.mxu0 0
  %56 = vmatprep.subr.bf16.mxu0 0
  %57 = vmatpush1.bf16.msra.mxu0 0
  %58 = vmatprep.subr.bf16.mxu0 0
  %59 = vmatpush1.bf16.msra.mxu0 %v38
  %60 = vmatprep.subr.bf16.mxu0 0
  %61 = vmatpush2.bf16.msra.mxu0 0
  %62 = vmatprep.subr.bf16.mxu0 0
  %63 = vmatpush2.bf16.msra.mxu0 0
  %64 = vmatprep.subr.bf16.mxu0 0
  %65 = vmatpush2.bf16.msra.mxu0 0
  %66 = vmatprep.subr.bf16.mxu0 0
  %67 = vmatpush2.bf16.msra.mxu0 0
  %68 = vmatprep.subr.bf16.mxu0 0
  %69 = vmatpush2.bf16.msra.mxu0 0
  %70 = vmatprep.subr.bf16.mxu0 0
  %71 = vmatpush2.bf16.msra.mxu0 0
  %72 = vmatprep.subr.bf16.mxu0 0
  %73 = vmatpush2.bf16.msra.mxu0 0
  %74 = vmatprep.subr.bf16.mxu0 0
  %75 = vmatpush2.bf16.msra.mxu0 0
  %76 = vmatprep.mubr.bf16.mxu0 0
  %77 = vmatmul.mubr.bf16.gmra.mxu0 %v42
  %v78 = vpop.f32.mrf.mxu0
  %v79 = vadd.f32 %v32, %v78
  %v80 = vpop.f32.mrf.mxu0
  %v81 = vpop.f32.mrf.mxu0
  %v82 = vpop.f32.mrf.mxu0
  %83 = vdwg.mxu0
  %vm84 = vcmp.ge.f32.partialorder %v79, 0.0
  %v85 = vld [vmem:[%s3] sm:$0x1]
  %v87 = vlaneseq
  %v88 = vshrl.u32 %v87, 7
  %v89 = vsub.s32 0, %v88
  %v90 = vrot.slane %v85, %v89
  %v92 = vmul.f32 %v90, %v79
  %v93 = vsel %vm84, %v79, %v92
  %v94 = vld [vmem:[%s5] sm:$0xf]
  %v95 = vunpack.c.l.bf16 %v94
  %v96 = vadd.f32 %v93, %v95
  %vm97 = vcmp.ge.f32.partialorder %v96, 0.0
  %v98 = vld [vmem:[%s4] sm:$0x1]
  %v100 = vlaneseq
  %v101 = vshrl.u32 %v100, 7
  %v102 = vsub.s32 0, %v101
  %v103 = vrot.slane %v98, %v102
  %v105 = vmul.f32 %v103, %v96
  %v106 = vsel %vm97, %v96, %v105
  %v107 = vpack.c.bf16 %v106, %v106
  %108 = vst [vmem:[%s6] sm:$0xf] %v107
  // Predicated region
  $region26: #{enet_forward.116} parent=0 // pred_check
    _
  $region27: #{enet_forward.116} parent=0 // pred_check_branch
    %110 = sbr.rel (0) target = $region29
  $region28: #{enet_forward.116} parent=0 // pred_region
    _
  $region29: #{enet_forward.116} parent=0 // pred_fallthru
    _
  // Predicated region
  $region30: #{enet_forward.116} parent=0 // pred_check
    _
  $region31: #{enet_forward.116} parent=0 // pred_check_branch
    %112 = sbr.rel (0) target = $region33
  $region32: #{enet_forward.116} parent=0 // pred_region
    _
  $region33: #{enet_forward.116} parent=0 // pred_fallthru
    _

// kernel: enet_forward.117
$region0: #{enet_forward.117}
  #allocation0 [shape = 'u32[]', space=smem, size = 0x4, offset = 0x4, fixed_abs, tag = 'smem constant byte address 0x4 - core index']
  #allocation1 [shape = 'u32[144,128]{1,0:T(1,128)}', space=vmem, size = 0x12000, scoped, tag = 'internal scratch']
  %s0 = inlined_call_operand.vmem [shape: bf16[8,128], index: 0, kind: input, shape index: {}]
  %s1 = inlined_call_operand.vmem [shape: bf16[128,32], index: 1, kind: input, shape index: {}]
  %s2 = inlined_call_operand.vmem [shape: f32[1,32], index: 2, kind: input, shape index: {}]
  %s3 = inlined_call_operand.vmem [shape: f32[1,32], index: 3, kind: input, shape index: {}]
  %s4 = inlined_call_operand.vmem [shape: bf16[8,32], index: 4, kind: output, shape index: {}]
  %s5 = sld [smem:[#allocation0]]
  $region26: #{enet_forward.117} parent=0
    _
  %s7 = ssub.s32 1, %s5
  %s8 = scalar_select 0, %s7, %s5
  // Predicated region
  $region2: #{enet_forward.117} parent=0 // pred_check
    _
  $region3: #{enet_forward.117} parent=0 // pred_check_branch
    %10 = sbr.rel (0) target = $region5
  $region4: #{enet_forward.117} parent=0 // pred_region
    _
  $region5: #{enet_forward.117} parent=0 // pred_fallthru
    _
  // Predicated region
  $region6: #{enet_forward.117} parent=0 // pred_check
    _
  $region7: #{enet_forward.117} parent=0 // pred_check_branch
    %12 = sbr.rel (0) target = $region9
  $region8: #{enet_forward.117} parent=0 // pred_region
    _
  $region9: #{enet_forward.117} parent=0 // pred_fallthru
    _
  // Predicated region
  $region10: #{enet_forward.117} parent=0 // pred_check
    _
  $region11: #{enet_forward.117} parent=0 // pred_check_branch
    %14 = sbr.rel (0) target = $region13
  $region12: #{enet_forward.117} parent=0 // pred_region
    _
  $region13: #{enet_forward.117} parent=0 // pred_fallthru
    _
  // Predicated region
  $region14: #{enet_forward.117} parent=0 // pred_check
    _
  $region15: #{enet_forward.117} parent=0 // pred_check_branch
    %16 = sbr.rel (0) target = $region17
  $region16: #{enet_forward.117} parent=0 // pred_region
    _
  $region17: #{enet_forward.117} parent=0 // pred_fallthru
    _
  %v18 = vld [vmem:[%s0] sm:$0xf]
  %v19 = vld [vmem:[%s1] sm:$0xf]
  %v20 = vld [vmem:[%s1 + $0x4] sm:$0xf]
  %v21 = vld [vmem:[%s1 + $0x8] sm:$0xf]
  %v22 = vld [vmem:[%s1 + $0xc] sm:$0xf]
  %v23 = vld [vmem:[%s1 + $0x10] sm:$0xf]
  %v24 = vld [vmem:[%s1 + $0x14] sm:$0xf]
  %v25 = vld [vmem:[%s1 + $0x18] sm:$0xf]
  %v26 = vld [vmem:[%s1 + $0x1c] sm:$0xf]
  %v27 = vld [vmem:[%s1 + $0x20] sm:$0xf]
  %v28 = vld [vmem:[%s1 + $0x24] sm:$0xf]
  %v29 = vld [vmem:[%s1 + $0x28] sm:$0xf]
  %v30 = vld [vmem:[%s1 + $0x2c] sm:$0xf]
  %v31 = vld [vmem:[%s1 + $0x30] sm:$0xf]
  %v32 = vld [vmem:[%s1 + $0x34] sm:$0xf]
  %v33 = vld [vmem:[%s1 + $0x38] sm:$0xf]
  %v34 = vld [vmem:[%s1 + $0x3c] sm:$0xf]
  %v35 = vld [vmem:[%s2] sm:$0x1]
  %v37 = vlaneseq
  %v38 = vshrl.u32 %v37, 7
  %v39 = vsub.s32 0, %v38
  %v40 = vrot.slane %v35, %v39
  %v58 = vunpack.c.l.b16 %v19
  %v59 = vunpack.c.l.b16 %v20
  %v60 = vunpack.c.l.b16 %v21
  %v61 = vunpack.c.l.b16 %v22
  %v62 = vunpack.c.l.b16 %v23
  %v63 = vunpack.c.l.b16 %v24
  %v64 = vunpack.c.l.b16 %v25
  %v65 = vunpack.c.l.b16 %v26
  %v66 = vunpack.c.l.b16 %v27
  %v67 = vunpack.c.l.b16 %v28
  %v68 = vunpack.c.l.b16 %v29
  %v69 = vunpack.c.l.b16 %v30
  %v70 = vunpack.c.l.b16 %v31
  %v71 = vunpack.c.l.b16 %v32
  %v72 = vunpack.c.l.b16 %v33
  %v73 = vunpack.c.l.b16 %v34
  %v74 = vpack.c.b16 %v59, %v58
  %v75 = vpack.c.b16 %v61, %v60
  %v76 = vpack.c.b16 %v63, %v62
  %v77 = vpack.c.b16 %v65, %v64
  %v78 = vpack.c.b16 %v67, %v66
  %v79 = vpack.c.b16 %v69, %v68
  %v80 = vpack.c.b16 %v71, %v70
  %v81 = vpack.c.b16 %v73, %v72
  %90 = vmatprep.subr.bf16.mxu0 0
  %91 = vmatpush1.bf16.msra.mxu0 %v81
  %92 = vmatprep.subr.bf16.mxu0 0
  %93 = vmatpush1.bf16.msra.mxu0 %v80
  %94 = vmatprep.subr.bf16.mxu0 0
  %95 = vmatpush1.bf16.msra.mxu0 %v79
  %96 = vmatprep.subr.bf16.mxu0 0
  %97 = vmatpush1.bf16.msra.mxu0 %v78
  %98 = vmatprep.subr.bf16.mxu0 0
  %99 = vmatpush1.bf16.msra.mxu0 %v77
  %100 = vmatprep.subr.bf16.mxu0 0
  %101 = vmatpush1.bf16.msra.mxu0 %v76
  %102 = vmatprep.subr.bf16.mxu0 0
  %103 = vmatpush1.bf16.msra.mxu0 %v75
  %104 = vmatprep.subr.bf16.mxu0 0
  %105 = vmatpush1.bf16.msra.mxu0 %v74
  %106 = vmatprep.subr.bf16.mxu0 0
  %107 = vmatpush2.bf16.msra.mxu0 0
  %108 = vmatprep.subr.bf16.mxu0 0
  %109 = vmatpush2.bf16.msra.mxu0 0
  %110 = vmatprep.subr.bf16.mxu0 0
  %111 = vmatpush2.bf16.msra.mxu0 0
  %112 = vmatprep.subr.bf16.mxu0 0
  %113 = vmatpush2.bf16.msra.mxu0 0
  %114 = vmatprep.subr.bf16.mxu0 0
  %115 = vmatpush2.bf16.msra.mxu0 0
  %116 = vmatprep.subr.bf16.mxu0 0
  %117 = vmatpush2.bf16.msra.mxu0 0
  %118 = vmatprep.subr.bf16.mxu0 0
  %119 = vmatpush2.bf16.msra.mxu0 0
  %120 = vmatprep.subr.bf16.mxu0 0
  %121 = vmatpush2.bf16.msra.mxu0 0
  %122 = vmatprep.mubr.bf16.mxu0 0
  %123 = vmatmul.mubr.bf16.gmra.mxu0 %v18
  %v124 = vpop.f32.mrf.mxu0
  %v125 = vadd.f32 %v40, %v124
  %v126 = vpop.f32.mrf.mxu0
  %v127 = vpop.f32.mrf.mxu0
  %v128 = vpop.f32.mrf.mxu0
  %129 = vdwg.mxu0
  %vm130 = vcmp.ge.f32.partialorder %v125, 0.0
  %v131 = vld [vmem:[%s3] sm:$0x1]
  %v133 = vlaneseq
  %v134 = vshrl.u32 %v133, 7
  %v135 = vsub.s32 0, %v134
  %v136 = vrot.slane %v131, %v135
  %v138 = vmul.f32 %v136, %v125
  %v139 = vsel %vm130, %v125, %v138
  %v140 = vpack.c.bf16 %v139, %v139
  %vm141 = vcmask 257024
  %142 = vst.msk [vmem:[%s4] sm:$0xf] %vm141, %v140
  // Predicated region
  $region18: #{enet_forward.117} parent=0 // pred_check
    _
  $region19: #{enet_forward.117} parent=0 // pred_check_branch
    %144 = sbr.rel (0) target = $region21
  $region20: #{enet_forward.117} parent=0 // pred_region
    _
  $region21: #{enet_forward.117} parent=0 // pred_fallthru
    _
  // Predicated region
  $region22: #{enet_forward.117} parent=0 // pred_check
    _
  $region23: #{enet_forward.117} parent=0 // pred_check_branch
    %146 = sbr.rel (0) target = $region25
  $region24: #{enet_forward.117} parent=0 // pred_region
    _
  $region25: #{enet_forward.117} parent=0 // pred_fallthru
    _

// kernel: enet_forward.118
$region0: #{enet_forward.118}
  #allocation0 [shape = 'u32[]', space=smem, size = 0x4, offset = 0x4, fixed_abs, tag = 'smem constant byte address 0x4 - core index']
  #allocation1 [shape = 'u32[144,128]{1,0:T(1,128)}', space=vmem, size = 0x12000, scoped, tag = 'internal scratch']
  %s0 = inlined_call_operand.vmem [shape: bf16[8,288], index: 0, kind: input, shape index: {}]
  %s1 = inlined_call_operand.vmem [shape: bf16[288,32], index: 1, kind: input, shape index: {}]
  %s2 = inlined_call_operand.vmem [shape: f32[1,32], index: 2, kind: input, shape index: {}]
  %s3 = inlined_call_operand.vmem [shape: f32[1,32], index: 3, kind: input, shape index: {}]
  %s4 = inlined_call_operand.vmem [shape: bf16[8,32], index: 4, kind: output, shape index: {}]
  %s5 = sld [smem:[#allocation0]]
  $region26: #{enet_forward.118} parent=0
    _
  %s7 = ssub.s32 1, %s5
  %s8 = scalar_select 0, %s7, %s5
  // Predicated region
  $region2: #{enet_forward.118} parent=0 // pred_check
    _
  $region3: #{enet_forward.118} parent=0 // pred_check_branch
    %10 = sbr.rel (0) target = $region5
  $region4: #{enet_forward.118} parent=0 // pred_region
    _
  $region5: #{enet_forward.118} parent=0 // pred_fallthru
    _
  // Predicated region
  $region6: #{enet_forward.118} parent=0 // pred_check
    _
  $region7: #{enet_forward.118} parent=0 // pred_check_branch
    %12 = sbr.rel (0) target = $region9
  $region8: #{enet_forward.118} parent=0 // pred_region
    _
  $region9: #{enet_forward.118} parent=0 // pred_fallthru
    _
  // Predicated region
  $region10: #{enet_forward.118} parent=0 // pred_check
    _
  $region11: #{enet_forward.118} parent=0 // pred_check_branch
    %14 = sbr.rel (0) target = $region13
  $region12: #{enet_forward.118} parent=0 // pred_region
    _
  $region13: #{enet_forward.118} parent=0 // pred_fallthru
    _
  // Predicated region
  $region14: #{enet_forward.118} parent=0 // pred_check
    _
  $region15: #{enet_forward.118} parent=0 // pred_check_branch
    %16 = sbr.rel (0) target = $region17
  $region16: #{enet_forward.118} parent=0 // pred_region
    _
  $region17: #{enet_forward.118} parent=0 // pred_fallthru
    _
  %v18 = vld [vmem:[%s0] sm:$0xff]
  %v19 = vld [vmem:[%s0 + $0x8] sm:$0xf]
  %v20 = vld [vmem:[%s1] sm:$0xf]
  %v21 = vld [vmem:[%s1 + $0x4] sm:$0xf]
  %v22 = vld [vmem:[%s1 + $0x8] sm:$0xf]
  %v23 = vld [vmem:[%s1 + $0xc] sm:$0xf]
  %v24 = vld [vmem:[%s1 + $0x10] sm:$0xf]
  %v25 = vld [vmem:[%s1 + $0x14] sm:$0xf]
  %v26 = vld [vmem:[%s1 + $0x18] sm:$0xf]
  %v27 = vld [vmem:[%s1 + $0x1c] sm:$0xf]
  %v28 = vld [vmem:[%s1 + $0x20] sm:$0xf]
  %v29 = vld [vmem:[%s1 + $0x24] sm:$0xf]
  %v30 = vld [vmem:[%s1 + $0x28] sm:$0xf]
  %v31 = vld [vmem:[%s1 + $0x2c] sm:$0xf]
  %v32 = vld [vmem:[%s1 + $0x30] sm:$0xf]
  %v33 = vld [vmem:[%s1 + $0x34] sm:$0xf]
  %v34 = vld [vmem:[%s1 + $0x38] sm:$0xf]
  %v35 = vld [vmem:[%s1 + $0x3c] sm:$0xf]
  %v36 = vld [vmem:[%s1 + $0x40] sm:$0xf]
  %v37 = vld [vmem:[%s1 + $0x44] sm:$0xf]
  %v38 = vld [vmem:[%s1 + $0x48] sm:$0xf]
  %v39 = vld [vmem:[%s1 + $0x4c] sm:$0xf]
  %v40 = vld [vmem:[%s1 + $0x50] sm:$0xf]
  %v41 = vld [vmem:[%s1 + $0x54] sm:$0xf]
  %v42 = vld [vmem:[%s1 + $0x58] sm:$0xf]
  %v43 = vld [vmem:[%s1 + $0x5c] sm:$0xf]
  %v44 = vld [vmem:[%s1 + $0x60] sm:$0xf]
  %v45 = vld [vmem:[%s1 + $0x64] sm:$0xf]
  %v46 = vld [vmem:[%s1 + $0x68] sm:$0xf]
  %v47 = vld [vmem:[%s1 + $0x6c] sm:$0xf]
  %v48 = vld [vmem:[%s1 + $0x70] sm:$0xf]
  %v49 = vld [vmem:[%s1 + $0x74] sm:$0xf]
  %v50 = vld [vmem:[%s1 + $0x78] sm:$0xf]
  %v51 = vld [vmem:[%s1 + $0x7c] sm:$0xf]
  %v52 = vld [vmem:[%s1 + $0x80] sm:$0xf]
  %v53 = vld [vmem:[%s1 + $0x84] sm:$0xf]
  %v54 = vld [vmem:[%s1 + $0x88] sm:$0xf]
  %v55 = vld [vmem:[%s1 + $0x8c] sm:$0xf]
  %v56 = vld [vmem:[%s2] sm:$0x1]
  %v58 = vlaneseq
  %v59 = vshrl.u32 %v58, 7
  %v60 = vsub.s32 0, %v59
  %v61 = vrot.slane %v56, %v60
  %v65 = vunpack.c.l.b16 %v18
  %v66 = vunpack.c.h.b16 %v18
  %v67 = vunpack.c.l.b16 %v19
  %v68 = vpack.c.b16 %v65, %v65
  %v69 = vpack.c.b16 %v66, %v66
  %v70 = vpack.c.b16 %v67, %v67
  %v109 = vunpack.c.l.b16 %v20
  %v110 = vunpack.c.l.b16 %v21
  %v111 = vunpack.c.l.b16 %v22
  %v112 = vunpack.c.l.b16 %v23
  %v113 = vunpack.c.l.b16 %v24
  %v114 = vunpack.c.l.b16 %v25
  %v115 = vunpack.c.l.b16 %v26
  %v116 = vunpack.c.l.b16 %v27
  %v117 = vunpack.c.l.b16 %v28
  %v118 = vunpack.c.l.b16 %v29
  %v119 = vunpack.c.l.b16 %v30
  %v120 = vunpack.c.l.b16 %v31
  %v121 = vunpack.c.l.b16 %v32
  %v122 = vunpack.c.l.b16 %v33
  %v123 = vunpack.c.l.b16 %v34
  %v124 = vunpack.c.l.b16 %v35
  %v125 = vunpack.c.l.b16 %v36
  %v126 = vunpack.c.l.b16 %v37
  %v127 = vunpack.c.l.b16 %v38
  %v128 = vunpack.c.l.b16 %v39
  %v129 = vunpack.c.l.b16 %v40
  %v130 = vunpack.c.l.b16 %v41
  %v131 = vunpack.c.l.b16 %v42
  %v132 = vunpack.c.l.b16 %v43
  %v133 = vunpack.c.l.b16 %v44
  %v134 = vunpack.c.l.b16 %v45
  %v135 = vunpack.c.l.b16 %v46
  %v136 = vunpack.c.l.b16 %v47
  %v137 = vunpack.c.l.b16 %v48
  %v138 = vunpack.c.l.b16 %v49
  %v139 = vunpack.c.l.b16 %v50
  %v140 = vunpack.c.l.b16 %v51
  %v141 = vunpack.c.l.b16 %v52
  %v142 = vunpack.c.l.b16 %v53
  %v143 = vunpack.c.l.b16 %v54
  %v144 = vunpack.c.l.b16 %v55
  %v145 = vpack.c.b16 %v110, %v109
  %v146 = vpack.c.b16 %v112, %v111
  %v147 = vpack.c.b16 %v114, %v113
  %v148 = vpack.c.b16 %v116, %v115
  %v149 = vpack.c.b16 %v118, %v117
  %v150 = vpack.c.b16 %v120, %v119
  %v151 = vpack.c.b16 %v122, %v121
  %v152 = vpack.c.b16 %v124, %v123
  %v153 = vpack.c.b16 %v126, %v125
  %v154 = vpack.c.b16 %v128, %v127
  %v155 = vpack.c.b16 %v130, %v129
  %v156 = vpack.c.b16 %v132, %v131
  %v157 = vpack.c.b16 %v134, %v133
  %v158 = vpack.c.b16 %v136, %v135
  %v159 = vpack.c.b16 %v138, %v137
  %v160 = vpack.c.b16 %v140, %v139
  %v161 = vpack.c.b16 %v142, %v141
  %v162 = vpack.c.b16 %v144, %v143
  %vm181 = vcmask 261120
  %v183 = vsel %vm181, %v70, 0
  %185 = vmatprep.subr.bf16.mxu0 0
  %186 = vmatpush1.bf16.msra.mxu0 %v152
  %187 = vmatprep.subr.bf16.mxu0 0
  %188 = vmatpush1.bf16.msra.mxu0 %v151
  %189 = vmatprep.subr.bf16.mxu0 0
  %190 = vmatpush1.bf16.msra.mxu0 %v150
  %191 = vmatprep.subr.bf16.mxu0 0
  %192 = vmatpush1.bf16.msra.mxu0 %v149
  %193 = vmatprep.subr.bf16.mxu0 0
  %194 = vmatpush1.bf16.msra.mxu0 %v148
  %195 = vmatprep.subr.bf16.mxu0 0
  %196 = vmatpush1.bf16.msra.mxu0 %v147
  %197 = vmatprep.subr.bf16.mxu0 0
  %198 = vmatpush1.bf16.msra.mxu0 %v146
  %199 = vmatprep.subr.bf16.mxu0 0
  %200 = vmatpush1.bf16.msra.mxu0 %v145
  %201 = vmatprep.subr.bf16.mxu0 0
  %202 = vmatpush2.bf16.msra.mxu0 %v160
  %203 = vmatprep.subr.bf16.mxu0 0
  %204 = vmatpush2.bf16.msra.mxu0 %v159
  %205 = vmatprep.subr.bf16.mxu0 0
  %206 = vmatpush2.bf16.msra.mxu0 %v158
  %207 = vmatprep.subr.bf16.mxu0 0
  %208 = vmatpush2.bf16.msra.mxu0 %v157
  %209 = vmatprep.subr.bf16.mxu0 0
  %210 = vmatpush2.bf16.msra.mxu0 %v156
  %211 = vmatprep.subr.bf16.mxu0 0
  %212 = vmatpush2.bf16.msra.mxu0 %v155
  %213 = vmatprep.subr.bf16.mxu0 0
  %214 = vmatpush2.bf16.msra.mxu0 %v154
  %215 = vmatprep.subr.bf16.mxu0 0
  %216 = vmatpush2.bf16.msra.mxu0 %v153
  %217 = vmatprep.mubr.bf16.mxu0 %v69
  %218 = vmatmul.mubr.bf16.gmra.mxu0 %v68
  %v219 = vpop.f32.mrf.mxu0
  %v220 = vadd.f32 %v61, %v219
  %v221 = vpop.f32.mrf.mxu0
  %v222 = vpop.f32.mrf.mxu0
  %v223 = vpop.f32.mrf.mxu0
  %224 = vdwg.mxu0
  %225 = vmatprep.subr.bf16.mxu0 0
  %226 = vmatpush1.bf16.msra.mxu0 0
  %227 = vmatprep.subr.bf16.mxu0 0
  %228 = vmatpush1.bf16.msra.mxu0 0
  %229 = vmatprep.subr.bf16.mxu0 0
  %230 = vmatpush1.bf16.msra.mxu0 0
  %231 = vmatprep.subr.bf16.mxu0 0
  %232 = vmatpush1.bf16.msra.mxu0 0
  %233 = vmatprep.subr.bf16.mxu0 0
  %234 = vmatpush1.bf16.msra.mxu0 0
  %235 = vmatprep.subr.bf16.mxu0 0
  %236 = vmatpush1.bf16.msra.mxu0 0
  %237 = vmatprep.subr.bf16.mxu0 0
  %238 = vmatpush1.bf16.msra.mxu0 %v162
  %239 = vmatprep.subr.bf16.mxu0 0
  %240 = vmatpush1.bf16.msra.mxu0 %v161
  %241 = vmatprep.subr.bf16.mxu0 0
  %242 = vmatpush2.bf16.msra.mxu0 0
  %243 = vmatprep.subr.bf16.mxu0 0
  %244 = vmatpush2.bf16.msra.mxu0 0
  %245 = vmatprep.subr.bf16.mxu0 0
  %246 = vmatpush2.bf16.msra.mxu0 0
  %247 = vmatprep.subr.bf16.mxu0 0
  %248 = vmatpush2.bf16.msra.mxu0 0
  %249 = vmatprep.subr.bf16.mxu0 0
  %250 = vmatpush2.bf16.msra.mxu0 0
  %251 = vmatprep.subr.bf16.mxu0 0
  %252 = vmatpush2.bf16.msra.mxu0 0
  %253 = vmatprep.subr.bf16.mxu0 0
  %254 = vmatpush2.bf16.msra.mxu0 0
  %255 = vmatprep.subr.bf16.mxu0 0
  %256 = vmatpush2.bf16.msra.mxu0 0
  %257 = vmatprep.mubr.bf16.mxu0 0
  %258 = vmatmul.mubr.bf16.gmra.mxu0 %v183
  %v259 = vpop.f32.mrf.mxu0
  %v260 = vadd.f32 %v220, %v259
  %v261 = vpop.f32.mrf.mxu0
  %v262 = vpop.f32.mrf.mxu0
  %v263 = vpop.f32.mrf.mxu0
  %264 = vdwg.mxu0
  %vm265 = vcmp.ge.f32.partialorder %v260, 0.0
  %v266 = vld [vmem:[%s3] sm:$0x1]
  %v268 = vlaneseq
  %v269 = vshrl.u32 %v268, 7
  %v270 = vsub.s32 0, %v269
  %v271 = vrot.slane %v266, %v270
  %v273 = vmul.f32 %v271, %v260
  %v274 = vsel %vm265, %v260, %v273
  %v275 = vpack.c.bf16 %v274, %v274
  %vm276 = vcmask 257024
  %277 = vst.msk [vmem:[%s4] sm:$0xf] %vm276, %v275
  // Predicated region
  $region18: #{enet_forward.118} parent=0 // pred_check
    _
  $region19: #{enet_forward.118} parent=0 // pred_check_branch
    %279 = sbr.rel (0) target = $region21
  $region20: #{enet_forward.118} parent=0 // pred_region
    _
  $region21: #{enet_forward.118} parent=0 // pred_fallthru
    _
  // Predicated region
  $region22: #{enet_forward.118} parent=0 // pred_check
    _
  $region23: #{enet_forward.118} parent=0 // pred_check_branch
    %281 = sbr.rel (0) target = $region25
  $region24: #{enet_forward.118} parent=0 // pred_region
    _
  $region25: #{enet_forward.118} parent=0 // pred_fallthru
    _

// kernel: enet_forward.119
$region0: #{enet_forward.119}
  #allocation0 [shape = 'u32[]', space=smem, size = 0x4, offset = 0x4, fixed_abs, tag = 'smem constant byte address 0x4 - core index']
  #allocation1 [shape = 'u32[144,128]{1,0:T(1,128)}', space=vmem, size = 0x12000, scoped, tag = 'internal scratch']
  %s0 = inlined_call_operand.vmem [shape: bf16[8,32], index: 0, kind: input, shape index: {}]
  %s1 = inlined_call_operand.vmem [shape: bf16[32,128], index: 1, kind: input, shape index: {}]
  %s2 = inlined_call_operand.vmem [shape: f32[1,128], index: 2, kind: input, shape index: {}]
  %s3 = inlined_call_operand.vmem [shape: f32[1,128], index: 3, kind: input, shape index: {}]
  %s4 = inlined_call_operand.vmem [shape: f32[1,128], index: 4, kind: input, shape index: {}]
  %s5 = inlined_call_operand.vmem [shape: bf16[8,128], index: 5, kind: input, shape index: {}]
  %s6 = inlined_call_operand.vmem [shape: bf16[8,128], index: 6, kind: output, shape index: {}]
  %s7 = sld [smem:[#allocation0]]
  $region34: #{enet_forward.119} parent=0
    _
  %s9 = ssub.s32 1, %s7
  %s10 = scalar_select 0, %s9, %s7
  // Predicated region
  $region2: #{enet_forward.119} parent=0 // pred_check
    _
  $region3: #{enet_forward.119} parent=0 // pred_check_branch
    %12 = sbr.rel (0) target = $region5
  $region4: #{enet_forward.119} parent=0 // pred_region
    _
  $region5: #{enet_forward.119} parent=0 // pred_fallthru
    _
  // Predicated region
  $region6: #{enet_forward.119} parent=0 // pred_check
    _
  $region7: #{enet_forward.119} parent=0 // pred_check_branch
    %14 = sbr.rel (0) target = $region9
  $region8: #{enet_forward.119} parent=0 // pred_region
    _
  $region9: #{enet_forward.119} parent=0 // pred_fallthru
    _
  // Predicated region
  $region10: #{enet_forward.119} parent=0 // pred_check
    _
  $region11: #{enet_forward.119} parent=0 // pred_check_branch
    %16 = sbr.rel (0) target = $region13
  $region12: #{enet_forward.119} parent=0 // pred_region
    _
  $region13: #{enet_forward.119} parent=0 // pred_fallthru
    _
  // Predicated region
  $region14: #{enet_forward.119} parent=0 // pred_check
    _
  $region15: #{enet_forward.119} parent=0 // pred_check_branch
    %18 = sbr.rel (0) target = $region17
  $region16: #{enet_forward.119} parent=0 // pred_region
    _
  $region17: #{enet_forward.119} parent=0 // pred_fallthru
    _
  // Predicated region
  $region18: #{enet_forward.119} parent=0 // pred_check
    _
  $region19: #{enet_forward.119} parent=0 // pred_check_branch
    %20 = sbr.rel (0) target = $region21
  $region20: #{enet_forward.119} parent=0 // pred_region
    _
  $region21: #{enet_forward.119} parent=0 // pred_fallthru
    _
  // Predicated region
  $region22: #{enet_forward.119} parent=0 // pred_check
    _
  $region23: #{enet_forward.119} parent=0 // pred_check_branch
    %22 = sbr.rel (0) target = $region25
  $region24: #{enet_forward.119} parent=0 // pred_region
    _
  $region25: #{enet_forward.119} parent=0 // pred_fallthru
    _
  %v24 = vld [vmem:[%s0] sm:$0xf]
  %v25 = vld [vmem:[%s1] sm:$0xf]
  %v26 = vld [vmem:[%s1 + $0x4] sm:$0xf]
  %v27 = vld [vmem:[%s1 + $0x8] sm:$0xf]
  %v28 = vld [vmem:[%s1 + $0xc] sm:$0xf]
  %v29 = vld [vmem:[%s2] sm:$0x1]
  %v31 = vlaneseq
  %v32 = vshrl.u32 %v31, 7
  %v33 = vsub.s32 0, %v32
  %v34 = vrot.slane %v29, %v33
  %v40 = vunpack.c.l.b16 %v25
  %v41 = vunpack.c.l.b16 %v26
  %v42 = vunpack.c.l.b16 %v27
  %v43 = vunpack.c.l.b16 %v28
  %v44 = vpack.c.b16 %v41, %v40
  %v45 = vpack.c.b16 %v43, %v42
  %vm48 = vcmask 261120
  %v50 = vsel %vm48, %v24, 0
  %52 = vmatprep.subr.bf16.mxu0 0
  %53 = vmatpush1.bf16.msra.mxu0 0
  %54 = vmatprep.subr.bf16.mxu0 0
  %55 = vmatpush1.bf16.msra.mxu0 0
  %56 = vmatprep.subr.bf16.mxu0 0
  %57 = vmatpush1.bf16.msra.mxu0 0
  %58 = vmatprep.subr.bf16.mxu0 0
  %59 = vmatpush1.bf16.msra.mxu0 0
  %60 = vmatprep.subr.bf16.mxu0 0
  %61 = vmatpush1.bf16.msra.mxu0 0
  %62 = vmatprep.subr.bf16.mxu0 0
  %63 = vmatpush1.bf16.msra.mxu0 0
  %64 = vmatprep.subr.bf16.mxu0 0
  %65 = vmatpush1.bf16.msra.mxu0 %v45
  %66 = vmatprep.subr.bf16.mxu0 0
  %67 = vmatpush1.bf16.msra.mxu0 %v44
  %68 = vmatprep.subr.bf16.mxu0 0
  %69 = vmatpush2.bf16.msra.mxu0 0
  %70 = vmatprep.subr.bf16.mxu0 0
  %71 = vmatpush2.bf16.msra.mxu0 0
  %72 = vmatprep.subr.bf16.mxu0 0
  %73 = vmatpush2.bf16.msra.mxu0 0
  %74 = vmatprep.subr.bf16.mxu0 0
  %75 = vmatpush2.bf16.msra.mxu0 0
  %76 = vmatprep.subr.bf16.mxu0 0
  %77 = vmatpush2.bf16.msra.mxu0 0
  %78 = vmatprep.subr.bf16.mxu0 0
  %79 = vmatpush2.bf16.msra.mxu0 0
  %80 = vmatprep.subr.bf16.mxu0 0
  %81 = vmatpush2.bf16.msra.mxu0 0
  %82 = vmatprep.subr.bf16.mxu0 0
  %83 = vmatpush2.bf16.msra.mxu0 0
  %84 = vmatprep.mubr.bf16.mxu0 0
  %85 = vmatmul.mubr.bf16.gmra.mxu0 %v50
  %v86 = vpop.f32.mrf.mxu0
  %v87 = vadd.f32 %v34, %v86
  %v88 = vpop.f32.mrf.mxu0
  %v89 = vpop.f32.mrf.mxu0
  %v90 = vpop.f32.mrf.mxu0
  %91 = vdwg.mxu0
  %vm92 = vcmp.ge.f32.partialorder %v87, 0.0
  %v93 = vld [vmem:[%s3] sm:$0x1]
  %v95 = vlaneseq
  %v96 = vshrl.u32 %v95, 7
  %v97 = vsub.s32 0, %v96
  %v98 = vrot.slane %v93, %v97
  %v100 = vmul.f32 %v98, %v87
  %v101 = vsel %vm92, %v87, %v100
  %v102 = vld [vmem:[%s5] sm:$0xf]
  %v103 = vunpack.c.l.bf16 %v102
  %v104 = vadd.f32 %v101, %v103
  %vm105 = vcmp.ge.f32.partialorder %v104, 0.0
  %v106 = vld [vmem:[%s4] sm:$0x1]
  %v108 = vlaneseq
  %v109 = vshrl.u32 %v108, 7
  %v110 = vsub.s32 0, %v109
  %v111 = vrot.slane %v106, %v110
  %v113 = vmul.f32 %v111, %v104
  %v114 = vsel %vm105, %v104, %v113
  %v115 = vpack.c.bf16 %v114, %v114
  %116 = vst [vmem:[%s6] sm:$0xf] %v115
  // Predicated region
  $region26: #{enet_forward.119} parent=0 // pred_check
    _
  $region27: #{enet_forward.119} parent=0 // pred_check_branch
    %118 = sbr.rel (0) target = $region29
  $region28: #{enet_forward.119} parent=0 // pred_region
    _
  $region29: #{enet_forward.119} parent=0 // pred_fallthru
    _
  // Predicated region
  $region30: #{enet_forward.119} parent=0 // pred_check
    _
  $region31: #{enet_forward.119} parent=0 // pred_check_branch
    %120 = sbr.rel (0) target = $region33
  $region32: #{enet_forward.119} parent=0 // pred_region
    _
  $region33: #{enet_forward.119} parent=0 // pred_fallthru
    _

// kernel: enet_forward.124
$region0: #{enet_forward.124}
  #allocation0 [shape = 'u32[]', space=smem, size = 0x4, offset = 0x4, fixed_abs, tag = 'smem constant byte address 0x4 - core index']
  #allocation1 [shape = 'u32[144,128]{1,0:T(1,128)}', space=vmem, size = 0x12000, scoped, tag = 'internal scratch']
  %s0 = inlined_call_operand.vmem [shape: bf16[8,160], index: 0, kind: input, shape index: {}]
  %s1 = inlined_call_operand.vmem [shape: bf16[160,32], index: 1, kind: input, shape index: {}]
  %s2 = inlined_call_operand.vmem [shape: f32[1,32], index: 2, kind: input, shape index: {}]
  %s3 = inlined_call_operand.vmem [shape: f32[1,32], index: 3, kind: input, shape index: {}]
  %s4 = inlined_call_operand.vmem [shape: bf16[8,32], index: 4, kind: output, shape index: {}]
  %s5 = sld [smem:[#allocation0]]
  $region26: #{enet_forward.124} parent=0
    _
  %s7 = ssub.s32 1, %s5
  %s8 = scalar_select 0, %s7, %s5
  // Predicated region
  $region2: #{enet_forward.124} parent=0 // pred_check
    _
  $region3: #{enet_forward.124} parent=0 // pred_check_branch
    %10 = sbr.rel (0) target = $region5
  $region4: #{enet_forward.124} parent=0 // pred_region
    _
  $region5: #{enet_forward.124} parent=0 // pred_fallthru
    _
  // Predicated region
  $region6: #{enet_forward.124} parent=0 // pred_check
    _
  $region7: #{enet_forward.124} parent=0 // pred_check_branch
    %12 = sbr.rel (0) target = $region9
  $region8: #{enet_forward.124} parent=0 // pred_region
    _
  $region9: #{enet_forward.124} parent=0 // pred_fallthru
    _
  // Predicated region
  $region10: #{enet_forward.124} parent=0 // pred_check
    _
  $region11: #{enet_forward.124} parent=0 // pred_check_branch
    %14 = sbr.rel (0) target = $region13
  $region12: #{enet_forward.124} parent=0 // pred_region
    _
  $region13: #{enet_forward.124} parent=0 // pred_fallthru
    _
  // Predicated region
  $region14: #{enet_forward.124} parent=0 // pred_check
    _
  $region15: #{enet_forward.124} parent=0 // pred_check_branch
    %16 = sbr.rel (0) target = $region17
  $region16: #{enet_forward.124} parent=0 // pred_region
    _
  $region17: #{enet_forward.124} parent=0 // pred_fallthru
    _
  %v18 = vld [vmem:[%s0] sm:$0xff]
  %v19 = vld [vmem:[%s1] sm:$0xf]
  %v20 = vld [vmem:[%s1 + $0x4] sm:$0xf]
  %v21 = vld [vmem:[%s1 + $0x8] sm:$0xf]
  %v22 = vld [vmem:[%s1 + $0xc] sm:$0xf]
  %v23 = vld [vmem:[%s1 + $0x10] sm:$0xf]
  %v24 = vld [vmem:[%s1 + $0x14] sm:$0xf]
  %v25 = vld [vmem:[%s1 + $0x18] sm:$0xf]
  %v26 = vld [vmem:[%s1 + $0x1c] sm:$0xf]
  %v27 = vld [vmem:[%s1 + $0x20] sm:$0xf]
  %v28 = vld [vmem:[%s1 + $0x24] sm:$0xf]
  %v29 = vld [vmem:[%s1 + $0x28] sm:$0xf]
  %v30 = vld [vmem:[%s1 + $0x2c] sm:$0xf]
  %v31 = vld [vmem:[%s1 + $0x30] sm:$0xf]
  %v32 = vld [vmem:[%s1 + $0x34] sm:$0xf]
  %v33 = vld [vmem:[%s1 + $0x38] sm:$0xf]
  %v34 = vld [vmem:[%s1 + $0x3c] sm:$0xf]
  %v35 = vld [vmem:[%s1 + $0x40] sm:$0xf]
  %v36 = vld [vmem:[%s1 + $0x44] sm:$0xf]
  %v37 = vld [vmem:[%s1 + $0x48] sm:$0xf]
  %v38 = vld [vmem:[%s1 + $0x4c] sm:$0xf]
  %v39 = vld [vmem:[%s2] sm:$0x1]
  %v41 = vlaneseq
  %v42 = vshrl.u32 %v41, 7
  %v43 = vsub.s32 0, %v42
  %v44 = vrot.slane %v39, %v43
  %v47 = vunpack.c.l.b16 %v18
  %v48 = vunpack.c.h.b16 %v18
  %v49 = vpack.c.b16 %v47, %v47
  %v50 = vpack.c.b16 %v48, %v48
  %v72 = vunpack.c.l.b16 %v19
  %v73 = vunpack.c.l.b16 %v20
  %v74 = vunpack.c.l.b16 %v21
  %v75 = vunpack.c.l.b16 %v22
  %v76 = vunpack.c.l.b16 %v23
  %v77 = vunpack.c.l.b16 %v24
  %v78 = vunpack.c.l.b16 %v25
  %v79 = vunpack.c.l.b16 %v26
  %v80 = vunpack.c.l.b16 %v27
  %v81 = vunpack.c.l.b16 %v28
  %v82 = vunpack.c.l.b16 %v29
  %v83 = vunpack.c.l.b16 %v30
  %v84 = vunpack.c.l.b16 %v31
  %v85 = vunpack.c.l.b16 %v32
  %v86 = vunpack.c.l.b16 %v33
  %v87 = vunpack.c.l.b16 %v34
  %v88 = vunpack.c.l.b16 %v35
  %v89 = vunpack.c.l.b16 %v36
  %v90 = vunpack.c.l.b16 %v37
  %v91 = vunpack.c.l.b16 %v38
  %v92 = vpack.c.b16 %v73, %v72
  %v93 = vpack.c.b16 %v75, %v74
  %v94 = vpack.c.b16 %v77, %v76
  %v95 = vpack.c.b16 %v79, %v78
  %v96 = vpack.c.b16 %v81, %v80
  %v97 = vpack.c.b16 %v83, %v82
  %v98 = vpack.c.b16 %v85, %v84
  %v99 = vpack.c.b16 %v87, %v86
  %v100 = vpack.c.b16 %v89, %v88
  %v101 = vpack.c.b16 %v91, %v90
  %vm112 = vcmask 261120
  %v114 = vsel %vm112, %v50, 0
  %116 = vmatprep.subr.bf16.mxu0 0
  %117 = vmatpush1.bf16.msra.mxu0 %v99
  %118 = vmatprep.subr.bf16.mxu0 0
  %119 = vmatpush1.bf16.msra.mxu0 %v98
  %120 = vmatprep.subr.bf16.mxu0 0
  %121 = vmatpush1.bf16.msra.mxu0 %v97
  %122 = vmatprep.subr.bf16.mxu0 0
  %123 = vmatpush1.bf16.msra.mxu0 %v96
  %124 = vmatprep.subr.bf16.mxu0 0
  %125 = vmatpush1.bf16.msra.mxu0 %v95
  %126 = vmatprep.subr.bf16.mxu0 0
  %127 = vmatpush1.bf16.msra.mxu0 %v94
  %128 = vmatprep.subr.bf16.mxu0 0
  %129 = vmatpush1.bf16.msra.mxu0 %v93
  %130 = vmatprep.subr.bf16.mxu0 0
  %131 = vmatpush1.bf16.msra.mxu0 %v92
  %132 = vmatprep.subr.bf16.mxu0 0
  %133 = vmatpush2.bf16.msra.mxu0 0
  %134 = vmatprep.subr.bf16.mxu0 0
  %135 = vmatpush2.bf16.msra.mxu0 0
  %136 = vmatprep.subr.bf16.mxu0 0
  %137 = vmatpush2.bf16.msra.mxu0 0
  %138 = vmatprep.subr.bf16.mxu0 0
  %139 = vmatpush2.bf16.msra.mxu0 0
  %140 = vmatprep.subr.bf16.mxu0 0
  %141 = vmatpush2.bf16.msra.mxu0 0
  %142 = vmatprep.subr.bf16.mxu0 0
  %143 = vmatpush2.bf16.msra.mxu0 0
  %144 = vmatprep.subr.bf16.mxu0 0
  %145 = vmatpush2.bf16.msra.mxu0 %v101
  %146 = vmatprep.subr.bf16.mxu0 0
  %147 = vmatpush2.bf16.msra.mxu0 %v100
  %148 = vmatprep.mubr.bf16.mxu0 %v114
  %149 = vmatmul.mubr.bf16.gmra.mxu0 %v49
  %v150 = vpop.f32.mrf.mxu0
  %v151 = vadd.f32 %v44, %v150
  %v152 = vpop.f32.mrf.mxu0
  %v153 = vpop.f32.mrf.mxu0
  %v154 = vpop.f32.mrf.mxu0
  %155 = vdwg.mxu0
  %vm156 = vcmp.ge.f32.partialorder %v151, 0.0
  %v157 = vld [vmem:[%s3] sm:$0x1]
  %v159 = vlaneseq
  %v160 = vshrl.u32 %v159, 7
  %v161 = vsub.s32 0, %v160
  %v162 = vrot.slane %v157, %v161
  %v164 = vmul.f32 %v162, %v151
  %v165 = vsel %vm156, %v151, %v164
  %v166 = vpack.c.bf16 %v165, %v165
  %vm167 = vcmask 257024
  %168 = vst.msk [vmem:[%s4] sm:$0xf] %vm167, %v166
  // Predicated region
  $region18: #{enet_forward.124} parent=0 // pred_check
    _
  $region19: #{enet_forward.124} parent=0 // pred_check_branch
    %170 = sbr.rel (0) target = $region21
  $region20: #{enet_forward.124} parent=0 // pred_region
    _
  $region21: #{enet_forward.124} parent=0 // pred_fallthru
    _
  // Predicated region
  $region22: #{enet_forward.124} parent=0 // pred_check
    _
  $region23: #{enet_forward.124} parent=0 // pred_check_branch
    %172 = sbr.rel (0) target = $region25
  $region24: #{enet_forward.124} parent=0 // pred_region
    _
  $region25: #{enet_forward.124} parent=0 // pred_fallthru
    _

// kernel: enet_forward.174
$region0: #{enet_forward.174}
  #allocation0 [shape = 'u32[]', space=smem, size = 0x4, offset = 0x4, fixed_abs, tag = 'smem constant byte address 0x4 - core index']
  #allocation1 [shape = 'u32[144,128]{1,0:T(1,128)}', space=vmem, size = 0x12000, scoped, tag = 'internal scratch']
  %s0 = inlined_call_operand.vmem [shape: bf16[8,128], index: 0, kind: input, shape index: {}]
  %s1 = inlined_call_operand.vmem [shape: bf16[128,64], index: 1, kind: input, shape index: {}]
  %s2 = inlined_call_operand.vmem [shape: f32[1,64], index: 2, kind: input, shape index: {}]
  %s3 = inlined_call_operand.vmem [shape: f32[1,64], index: 3, kind: input, shape index: {}]
  %s4 = inlined_call_operand.vmem [shape: bf16[8,64], index: 4, kind: output, shape index: {}]
  %s5 = sld [smem:[#allocation0]]
  $region26: #{enet_forward.174} parent=0
    _
  %s7 = ssub.s32 1, %s5
  %s8 = scalar_select 0, %s7, %s5
  // Predicated region
  $region2: #{enet_forward.174} parent=0 // pred_check
    _
  $region3: #{enet_forward.174} parent=0 // pred_check_branch
    %10 = sbr.rel (0) target = $region5
  $region4: #{enet_forward.174} parent=0 // pred_region
    _
  $region5: #{enet_forward.174} parent=0 // pred_fallthru
    _
  // Predicated region
  $region6: #{enet_forward.174} parent=0 // pred_check
    _
  $region7: #{enet_forward.174} parent=0 // pred_check_branch
    %12 = sbr.rel (0) target = $region9
  $region8: #{enet_forward.174} parent=0 // pred_region
    _
  $region9: #{enet_forward.174} parent=0 // pred_fallthru
    _
  // Predicated region
  $region10: #{enet_forward.174} parent=0 // pred_check
    _
  $region11: #{enet_forward.174} parent=0 // pred_check_branch
    %14 = sbr.rel (0) target = $region13
  $region12: #{enet_forward.174} parent=0 // pred_region
    _
  $region13: #{enet_forward.174} parent=0 // pred_fallthru
    _
  // Predicated region
  $region14: #{enet_forward.174} parent=0 // pred_check
    _
  $region15: #{enet_forward.174} parent=0 // pred_check_branch
    %16 = sbr.rel (0) target = $region17
  $region16: #{enet_forward.174} parent=0 // pred_region
    _
  $region17: #{enet_forward.174} parent=0 // pred_fallthru
    _
  %v18 = vld [vmem:[%s0] sm:$0xf]
  %v19 = vld [vmem:[%s1] sm:$0xf]
  %v20 = vld [vmem:[%s1 + $0x4] sm:$0xf]
  %v21 = vld [vmem:[%s1 + $0x8] sm:$0xf]
  %v22 = vld [vmem:[%s1 + $0xc] sm:$0xf]
  %v23 = vld [vmem:[%s1 + $0x10] sm:$0xf]
  %v24 = vld [vmem:[%s1 + $0x14] sm:$0xf]
  %v25 = vld [vmem:[%s1 + $0x18] sm:$0xf]
  %v26 = vld [vmem:[%s1 + $0x1c] sm:$0xf]
  %v27 = vld [vmem:[%s1 + $0x20] sm:$0xf]
  %v28 = vld [vmem:[%s1 + $0x24] sm:$0xf]
  %v29 = vld [vmem:[%s1 + $0x28] sm:$0xf]
  %v30 = vld [vmem:[%s1 + $0x2c] sm:$0xf]
  %v31 = vld [vmem:[%s1 + $0x30] sm:$0xf]
  %v32 = vld [vmem:[%s1 + $0x34] sm:$0xf]
  %v33 = vld [vmem:[%s1 + $0x38] sm:$0xf]
  %v34 = vld [vmem:[%s1 + $0x3c] sm:$0xf]
  %v35 = vld [vmem:[%s2] sm:$0x1]
  %v37 = vlaneseq
  %v38 = vshrl.u32 %v37, 7
  %v39 = vsub.s32 0, %v38
  %v40 = vrot.slane %v35, %v39
  %v58 = vunpack.c.l.b16 %v19
  %v59 = vunpack.c.l.b16 %v20
  %v60 = vunpack.c.l.b16 %v21
  %v61 = vunpack.c.l.b16 %v22
  %v62 = vunpack.c.l.b16 %v23
  %v63 = vunpack.c.l.b16 %v24
  %v64 = vunpack.c.l.b16 %v25
  %v65 = vunpack.c.l.b16 %v26
  %v66 = vunpack.c.l.b16 %v27
  %v67 = vunpack.c.l.b16 %v28
  %v68 = vunpack.c.l.b16 %v29
  %v69 = vunpack.c.l.b16 %v30
  %v70 = vunpack.c.l.b16 %v31
  %v71 = vunpack.c.l.b16 %v32
  %v72 = vunpack.c.l.b16 %v33
  %v73 = vunpack.c.l.b16 %v34
  %v74 = vpack.c.b16 %v59, %v58
  %v75 = vpack.c.b16 %v61, %v60
  %v76 = vpack.c.b16 %v63, %v62
  %v77 = vpack.c.b16 %v65, %v64
  %v78 = vpack.c.b16 %v67, %v66
  %v79 = vpack.c.b16 %v69, %v68
  %v80 = vpack.c.b16 %v71, %v70
  %v81 = vpack.c.b16 %v73, %v72
  %90 = vmatprep.subr.bf16.mxu0 0
  %91 = vmatpush1.bf16.msra.mxu0 %v81
  %92 = vmatprep.subr.bf16.mxu0 0
  %93 = vmatpush1.bf16.msra.mxu0 %v80
  %94 = vmatprep.subr.bf16.mxu0 0
  %95 = vmatpush1.bf16.msra.mxu0 %v79
  %96 = vmatprep.subr.bf16.mxu0 0
  %97 = vmatpush1.bf16.msra.mxu0 %v78
  %98 = vmatprep.subr.bf16.mxu0 0
  %99 = vmatpush1.bf16.msra.mxu0 %v77
  %100 = vmatprep.subr.bf16.mxu0 0
  %101 = vmatpush1.bf16.msra.mxu0 %v76
  %102 = vmatprep.subr.bf16.mxu0 0
  %103 = vmatpush1.bf16.msra.mxu0 %v75
  %104 = vmatprep.subr.bf16.mxu0 0
  %105 = vmatpush1.bf16.msra.mxu0 %v74
  %106 = vmatprep.subr.bf16.mxu0 0
  %107 = vmatpush2.bf16.msra.mxu0 0
  %108 = vmatprep.subr.bf16.mxu0 0
  %109 = vmatpush2.bf16.msra.mxu0 0
  %110 = vmatprep.subr.bf16.mxu0 0
  %111 = vmatpush2.bf16.msra.mxu0 0
  %112 = vmatprep.subr.bf16.mxu0 0
  %113 = vmatpush2.bf16.msra.mxu0 0
  %114 = vmatprep.subr.bf16.mxu0 0
  %115 = vmatpush2.bf16.msra.mxu0 0
  %116 = vmatprep.subr.bf16.mxu0 0
  %117 = vmatpush2.bf16.msra.mxu0 0
  %118 = vmatprep.subr.bf16.mxu0 0
  %119 = vmatpush2.bf16.msra.mxu0 0
  %120 = vmatprep.subr.bf16.mxu0 0
  %121 = vmatpush2.bf16.msra.mxu0 0
  %122 = vmatprep.mubr.bf16.mxu0 0
  %123 = vmatmul.mubr.bf16.gmra.mxu0 %v18
  %v124 = vpop.f32.mrf.mxu0
  %v125 = vadd.f32 %v40, %v124
  %v126 = vpop.f32.mrf.mxu0
  %v127 = vpop.f32.mrf.mxu0
  %v128 = vpop.f32.mrf.mxu0
  %129 = vdwg.mxu0
  %vm130 = vcmp.ge.f32.partialorder %v125, 0.0
  %v131 = vld [vmem:[%s3] sm:$0x1]
  %v133 = vlaneseq
  %v134 = vshrl.u32 %v133, 7
  %v135 = vsub.s32 0, %v134
  %v136 = vrot.slane %v131, %v135
  %v138 = vmul.f32 %v136, %v125
  %v139 = vsel %vm130, %v125, %v138
  %v140 = vpack.c.bf16 %v139, %v139
  %vm141 = vcmask 519168
  %142 = vst.msk [vmem:[%s4] sm:$0xf] %vm141, %v140
  // Predicated region
  $region18: #{enet_forward.174} parent=0 // pred_check
    _
  $region19: #{enet_forward.174} parent=0 // pred_check_branch
    %144 = sbr.rel (0) target = $region21
  $region20: #{enet_forward.174} parent=0 // pred_region
    _
  $region21: #{enet_forward.174} parent=0 // pred_fallthru
    _
  // Predicated region
  $region22: #{enet_forward.174} parent=0 // pred_check
    _
  $region23: #{enet_forward.174} parent=0 // pred_check_branch
    %146 = sbr.rel (0) target = $region25
  $region24: #{enet_forward.174} parent=0 // pred_region
    _
  $region25: #{enet_forward.174} parent=0 // pred_fallthru
    _

// kernel: enet_forward.169
$region0: #{enet_forward.169}
  #allocation0 [shape = 'u32[]', space=smem, size = 0x4, offset = 0x4, fixed_abs, tag = 'smem constant byte address 0x4 - core index']
  #allocation1 [shape = 'u32[144,128]{1,0:T(1,128)}', space=vmem, size = 0x12000, scoped, tag = 'internal scratch']
  %s0 = inlined_call_operand.vmem [shape: bf16[8,128], index: 0, kind: input, shape index: {}]
  %s1 = inlined_call_operand.vmem [shape: bf16[128,16], index: 1, kind: input, shape index: {}]
  %s2 = inlined_call_operand.vmem [shape: f32[1,16], index: 2, kind: input, shape index: {}]
  %s3 = inlined_call_operand.vmem [shape: f32[1,16], index: 3, kind: input, shape index: {}]
  %s4 = inlined_call_operand.vmem [shape: bf16[8,16], index: 4, kind: output, shape index: {}]
  %s5 = sld [smem:[#allocation0]]
  $region26: #{enet_forward.169} parent=0
    _
  %s7 = ssub.s32 1, %s5
  %s8 = scalar_select 0, %s7, %s5
  // Predicated region
  $region2: #{enet_forward.169} parent=0 // pred_check
    _
  $region3: #{enet_forward.169} parent=0 // pred_check_branch
    %10 = sbr.rel (0) target = $region5
  $region4: #{enet_forward.169} parent=0 // pred_region
    _
  $region5: #{enet_forward.169} parent=0 // pred_fallthru
    _
  // Predicated region
  $region6: #{enet_forward.169} parent=0 // pred_check
    _
  $region7: #{enet_forward.169} parent=0 // pred_check_branch
    %12 = sbr.rel (0) target = $region9
  $region8: #{enet_forward.169} parent=0 // pred_region
    _
  $region9: #{enet_forward.169} parent=0 // pred_fallthru
    _
  // Predicated region
  $region10: #{enet_forward.169} parent=0 // pred_check
    _
  $region11: #{enet_forward.169} parent=0 // pred_check_branch
    %14 = sbr.rel (0) target = $region13
  $region12: #{enet_forward.169} parent=0 // pred_region
    _
  $region13: #{enet_forward.169} parent=0 // pred_fallthru
    _
  // Predicated region
  $region14: #{enet_forward.169} parent=0 // pred_check
    _
  $region15: #{enet_forward.169} parent=0 // pred_check_branch
    %16 = sbr.rel (0) target = $region17
  $region16: #{enet_forward.169} parent=0 // pred_region
    _
  $region17: #{enet_forward.169} parent=0 // pred_fallthru
    _
  %v18 = vld [vmem:[%s0] sm:$0xf]
  %v19 = vld [vmem:[%s1] sm:$0xf]
  %v20 = vld [vmem:[%s1 + $0x4] sm:$0xf]
  %v21 = vld [vmem:[%s1 + $0x8] sm:$0xf]
  %v22 = vld [vmem:[%s1 + $0xc] sm:$0xf]
  %v23 = vld [vmem:[%s1 + $0x10] sm:$0xf]
  %v24 = vld [vmem:[%s1 + $0x14] sm:$0xf]
  %v25 = vld [vmem:[%s1 + $0x18] sm:$0xf]
  %v26 = vld [vmem:[%s1 + $0x1c] sm:$0xf]
  %v27 = vld [vmem:[%s1 + $0x20] sm:$0xf]
  %v28 = vld [vmem:[%s1 + $0x24] sm:$0xf]
  %v29 = vld [vmem:[%s1 + $0x28] sm:$0xf]
  %v30 = vld [vmem:[%s1 + $0x2c] sm:$0xf]
  %v31 = vld [vmem:[%s1 + $0x30] sm:$0xf]
  %v32 = vld [vmem:[%s1 + $0x34] sm:$0xf]
  %v33 = vld [vmem:[%s1 + $0x38] sm:$0xf]
  %v34 = vld [vmem:[%s1 + $0x3c] sm:$0xf]
  %v35 = vld [vmem:[%s2] sm:$0x1]
  %v37 = vlaneseq
  %v38 = vshrl.u32 %v37, 7
  %v39 = vsub.s32 0, %v38
  %v40 = vrot.slane %v35, %v39
  %v58 = vunpack.c.l.b16 %v19
  %v59 = vunpack.c.l.b16 %v20
  %v60 = vunpack.c.l.b16 %v21
  %v61 = vunpack.c.l.b16 %v22
  %v62 = vunpack.c.l.b16 %v23
  %v63 = vunpack.c.l.b16 %v24
  %v64 = vunpack.c.l.b16 %v25
  %v65 = vunpack.c.l.b16 %v26
  %v66 = vunpack.c.l.b16 %v27
  %v67 = vunpack.c.l.b16 %v28
  %v68 = vunpack.c.l.b16 %v29
  %v69 = vunpack.c.l.b16 %v30
  %v70 = vunpack.c.l.b16 %v31
  %v71 = vunpack.c.l.b16 %v32
  %v72 = vunpack.c.l.b16 %v33
  %v73 = vunpack.c.l.b16 %v34
  %v74 = vpack.c.b16 %v59, %v58
  %v75 = vpack.c.b16 %v61, %v60
  %v76 = vpack.c.b16 %v63, %v62
  %v77 = vpack.c.b16 %v65, %v64
  %v78 = vpack.c.b16 %v67, %v66
  %v79 = vpack.c.b16 %v69, %v68
  %v80 = vpack.c.b16 %v71, %v70
  %v81 = vpack.c.b16 %v73, %v72
  %90 = vmatprep.subr.bf16.mxu0 0
  %91 = vmatpush1.bf16.msra.mxu0 %v81
  %92 = vmatprep.subr.bf16.mxu0 0
  %93 = vmatpush1.bf16.msra.mxu0 %v80
  %94 = vmatprep.subr.bf16.mxu0 0
  %95 = vmatpush1.bf16.msra.mxu0 %v79
  %96 = vmatprep.subr.bf16.mxu0 0
  %97 = vmatpush1.bf16.msra.mxu0 %v78
  %98 = vmatprep.subr.bf16.mxu0 0
  %99 = vmatpush1.bf16.msra.mxu0 %v77
  %100 = vmatprep.subr.bf16.mxu0 0
  %101 = vmatpush1.bf16.msra.mxu0 %v76
  %102 = vmatprep.subr.bf16.mxu0 0
  %103 = vmatpush1.bf16.msra.mxu0 %v75
  %104 = vmatprep.subr.bf16.mxu0 0
  %105 = vmatpush1.bf16.msra.mxu0 %v74
  %106 = vmatprep.subr.bf16.mxu0 0
  %107 = vmatpush2.bf16.msra.mxu0 0
  %108 = vmatprep.subr.bf16.mxu0 0
  %109 = vmatpush2.bf16.msra.mxu0 0
  %110 = vmatprep.subr.bf16.mxu0 0
  %111 = vmatpush2.bf16.msra.mxu0 0
  %112 = vmatprep.subr.bf16.mxu0 0
  %113 = vmatpush2.bf16.msra.mxu0 0
  %114 = vmatprep.subr.bf16.mxu0 0
  %115 = vmatpush2.bf16.msra.mxu0 0
  %116 = vmatprep.subr.bf16.mxu0 0
  %117 = vmatpush2.bf16.msra.mxu0 0
  %118 = vmatprep.subr.bf16.mxu0 0
  %119 = vmatpush2.bf16.msra.mxu0 0
  %120 = vmatprep.subr.bf16.mxu0 0
  %121 = vmatpush2.bf16.msra.mxu0 0
  %122 = vmatprep.mubr.bf16.mxu0 0
  %123 = vmatmul.mubr.bf16.gmra.mxu0 %v18
  %v124 = vpop.f32.mrf.mxu0
  %v125 = vadd.f32 %v40, %v124
  %v126 = vpop.f32.mrf.mxu0
  %v127 = vpop.f32.mrf.mxu0
  %v128 = vpop.f32.mrf.mxu0
  %129 = vdwg.mxu0
  %vm130 = vcmp.ge.f32.partialorder %v125, 0.0
  %v131 = vld [vmem:[%s3] sm:$0x1]
  %v133 = vlaneseq
  %v134 = vshrl.u32 %v133, 7
  %v135 = vsub.s32 0, %v134
  %v136 = vrot.slane %v131, %v135
  %v138 = vmul.f32 %v136, %v125
  %v139 = vsel %vm130, %v125, %v138
  %v140 = vpack.c.bf16 %v139, %v139
  %vm141 = vcmask 125952
  %142 = vst.msk [vmem:[%s4] sm:$0xf] %vm141, %v140
  // Predicated region
  $region18: #{enet_forward.169} parent=0 // pred_check
    _
  $region19: #{enet_forward.169} parent=0 // pred_check_branch
    %144 = sbr.rel (0) target = $region21
  $region20: #{enet_forward.169} parent=0 // pred_region
    _
  $region21: #{enet_forward.169} parent=0 // pred_fallthru
    _
  // Predicated region
  $region22: #{enet_forward.169} parent=0 // pred_check
    _
  $region23: #{enet_forward.169} parent=0 // pred_check_branch
    %146 = sbr.rel (0) target = $region25
  $region24: #{enet_forward.169} parent=0 // pred_region
    _
  $region25: #{enet_forward.169} parent=0 // pred_fallthru
    _

// kernel: enet_forward.171
$region0: #{enet_forward.171}
  #allocation0 [shape = 'u32[]', space=smem, size = 0x4, offset = 0x4, fixed_abs, tag = 'smem constant byte address 0x4 - core index']
  #allocation1 [shape = 'u32[144,128]{1,0:T(1,128)}', space=vmem, size = 0x12000, scoped, tag = 'internal scratch']
  %s0 = inlined_call_operand.vmem [shape: bf16[8,32], index: 0, kind: input, shape index: {}]
  %s1 = inlined_call_operand.vmem [shape: bf16[32,16], index: 1, kind: input, shape index: {}]
  %s2 = inlined_call_operand.vmem [shape: f32[1,16], index: 2, kind: input, shape index: {}]
  %s3 = inlined_call_operand.vmem [shape: f32[1,16], index: 3, kind: input, shape index: {}]
  %s4 = inlined_call_operand.vmem [shape: bf16[8,16], index: 4, kind: output, shape index: {}]
  %s5 = sld [smem:[#allocation0]]
  $region26: #{enet_forward.171} parent=0
    _
  %s7 = ssub.s32 1, %s5
  %s8 = scalar_select 0, %s7, %s5
  // Predicated region
  $region2: #{enet_forward.171} parent=0 // pred_check
    _
  $region3: #{enet_forward.171} parent=0 // pred_check_branch
    %10 = sbr.rel (0) target = $region5
  $region4: #{enet_forward.171} parent=0 // pred_region
    _
  $region5: #{enet_forward.171} parent=0 // pred_fallthru
    _
  // Predicated region
  $region6: #{enet_forward.171} parent=0 // pred_check
    _
  $region7: #{enet_forward.171} parent=0 // pred_check_branch
    %12 = sbr.rel (0) target = $region9
  $region8: #{enet_forward.171} parent=0 // pred_region
    _
  $region9: #{enet_forward.171} parent=0 // pred_fallthru
    _
  // Predicated region
  $region10: #{enet_forward.171} parent=0 // pred_check
    _
  $region11: #{enet_forward.171} parent=0 // pred_check_branch
    %14 = sbr.rel (0) target = $region13
  $region12: #{enet_forward.171} parent=0 // pred_region
    _
  $region13: #{enet_forward.171} parent=0 // pred_fallthru
    _
  // Predicated region
  $region14: #{enet_forward.171} parent=0 // pred_check
    _
  $region15: #{enet_forward.171} parent=0 // pred_check_branch
    %16 = sbr.rel (0) target = $region17
  $region16: #{enet_forward.171} parent=0 // pred_region
    _
  $region17: #{enet_forward.171} parent=0 // pred_fallthru
    _
  %v18 = vld [vmem:[%s0] sm:$0xf]
  %v19 = vld [vmem:[%s1] sm:$0xf]
  %v20 = vld [vmem:[%s1 + $0x4] sm:$0xf]
  %v21 = vld [vmem:[%s1 + $0x8] sm:$0xf]
  %v22 = vld [vmem:[%s1 + $0xc] sm:$0xf]
  %v23 = vld [vmem:[%s2] sm:$0x1]
  %v25 = vlaneseq
  %v26 = vshrl.u32 %v25, 7
  %v27 = vsub.s32 0, %v26
  %v28 = vrot.slane %v23, %v27
  %v34 = vunpack.c.l.b16 %v19
  %v35 = vunpack.c.l.b16 %v20
  %v36 = vunpack.c.l.b16 %v21
  %v37 = vunpack.c.l.b16 %v22
  %v38 = vpack.c.b16 %v35, %v34
  %v39 = vpack.c.b16 %v37, %v36
  %vm42 = vcmask 261120
  %v44 = vsel %vm42, %v18, 0
  %46 = vmatprep.subr.bf16.mxu0 0
  %47 = vmatpush1.bf16.msra.mxu0 0
  %48 = vmatprep.subr.bf16.mxu0 0
  %49 = vmatpush1.bf16.msra.mxu0 0
  %50 = vmatprep.subr.bf16.mxu0 0
  %51 = vmatpush1.bf16.msra.mxu0 0
  %52 = vmatprep.subr.bf16.mxu0 0
  %53 = vmatpush1.bf16.msra.mxu0 0
  %54 = vmatprep.subr.bf16.mxu0 0
  %55 = vmatpush1.bf16.msra.mxu0 0
  %56 = vmatprep.subr.bf16.mxu0 0
  %57 = vmatpush1.bf16.msra.mxu0 0
  %58 = vmatprep.subr.bf16.mxu0 0
  %59 = vmatpush1.bf16.msra.mxu0 %v39
  %60 = vmatprep.subr.bf16.mxu0 0
  %61 = vmatpush1.bf16.msra.mxu0 %v38
  %62 = vmatprep.subr.bf16.mxu0 0
  %63 = vmatpush2.bf16.msra.mxu0 0
  %64 = vmatprep.subr.bf16.mxu0 0
  %65 = vmatpush2.bf16.msra.mxu0 0
  %66 = vmatprep.subr.bf16.mxu0 0
  %67 = vmatpush2.bf16.msra.mxu0 0
  %68 = vmatprep.subr.bf16.mxu0 0
  %69 = vmatpush2.bf16.msra.mxu0 0
  %70 = vmatprep.subr.bf16.mxu0 0
  %71 = vmatpush2.bf16.msra.mxu0 0
  %72 = vmatprep.subr.bf16.mxu0 0
  %73 = vmatpush2.bf16.msra.mxu0 0
  %74 = vmatprep.subr.bf16.mxu0 0
  %75 = vmatpush2.bf16.msra.mxu0 0
  %76 = vmatprep.subr.bf16.mxu0 0
  %77 = vmatpush2.bf16.msra.mxu0 0
  %78 = vmatprep.mubr.bf16.mxu0 0
  %79 = vmatmul.mubr.bf16.gmra.mxu0 %v44
  %v80 = vpop.f32.mrf.mxu0
  %v81 = vadd.f32 %v28, %v80
  %v82 = vpop.f32.mrf.mxu0
  %v83 = vpop.f32.mrf.mxu0
  %v84 = vpop.f32.mrf.mxu0
  %85 = vdwg.mxu0
  %vm86 = vcmp.ge.f32.partialorder %v81, 0.0
  %v87 = vld [vmem:[%s3] sm:$0x1]
  %v89 = vlaneseq
  %v90 = vshrl.u32 %v89, 7
  %v91 = vsub.s32 0, %v90
  %v92 = vrot.slane %v87, %v91
  %v94 = vmul.f32 %v92, %v81
  %v95 = vsel %vm86, %v81, %v94
  %v96 = vpack.c.bf16 %v95, %v95
  %vm97 = vcmask 125952
  %98 = vst.msk [vmem:[%s4] sm:$0xf] %vm97, %v96
  // Predicated region
  $region18: #{enet_forward.171} parent=0 // pred_check
    _
  $region19: #{enet_forward.171} parent=0 // pred_check_branch
    %100 = sbr.rel (0) target = $region21
  $region20: #{enet_forward.171} parent=0 // pred_region
    _
  $region21: #{enet_forward.171} parent=0 // pred_fallthru
    _
  // Predicated region
  $region22: #{enet_forward.171} parent=0 // pred_check
    _
  $region23: #{enet_forward.171} parent=0 // pred_check_branch
    %102 = sbr.rel (0) target = $region25
  $region24: #{enet_forward.171} parent=0 // pred_region
    _
  $region25: #{enet_forward.171} parent=0 // pred_fallthru
    _

// kernel: enet_forward.173
$region0: #{enet_forward.173}
  #allocation0 [shape = 'u32[]', space=smem, size = 0x4, offset = 0x4, fixed_abs, tag = 'smem constant byte address 0x4 - core index']
  #allocation1 [shape = 'u32[144,128]{1,0:T(1,128)}', space=vmem, size = 0x12000, scoped, tag = 'internal scratch']
  %s0 = inlined_call_operand.vmem [shape: bf16[8,64], index: 0, kind: input, shape index: {}]
  %s1 = inlined_call_operand.vmem [shape: bf16[64,16], index: 1, kind: input, shape index: {}]
  %s2 = inlined_call_operand.vmem [shape: f32[1,16], index: 2, kind: input, shape index: {}]
  %s3 = inlined_call_operand.vmem [shape: f32[1,16], index: 3, kind: input, shape index: {}]
  %s4 = inlined_call_operand.vmem [shape: bf16[8,16], index: 4, kind: output, shape index: {}]
  %s5 = sld [smem:[#allocation0]]
  $region26: #{enet_forward.173} parent=0
    _
  %s7 = ssub.s32 1, %s5
  %s8 = scalar_select 0, %s7, %s5
  // Predicated region
  $region2: #{enet_forward.173} parent=0 // pred_check
    _
  $region3: #{enet_forward.173} parent=0 // pred_check_branch
    %10 = sbr.rel (0) target = $region5
  $region4: #{enet_forward.173} parent=0 // pred_region
    _
  $region5: #{enet_forward.173} parent=0 // pred_fallthru
    _
  // Predicated region
  $region6: #{enet_forward.173} parent=0 // pred_check
    _
  $region7: #{enet_forward.173} parent=0 // pred_check_branch
    %12 = sbr.rel (0) target = $region9
  $region8: #{enet_forward.173} parent=0 // pred_region
    _
  $region9: #{enet_forward.173} parent=0 // pred_fallthru
    _
  // Predicated region
  $region10: #{enet_forward.173} parent=0 // pred_check
    _
  $region11: #{enet_forward.173} parent=0 // pred_check_branch
    %14 = sbr.rel (0) target = $region13
  $region12: #{enet_forward.173} parent=0 // pred_region
    _
  $region13: #{enet_forward.173} parent=0 // pred_fallthru
    _
  // Predicated region
  $region14: #{enet_forward.173} parent=0 // pred_check
    _
  $region15: #{enet_forward.173} parent=0 // pred_check_branch
    %16 = sbr.rel (0) target = $region17
  $region16: #{enet_forward.173} parent=0 // pred_region
    _
  $region17: #{enet_forward.173} parent=0 // pred_fallthru
    _
  %v18 = vld [vmem:[%s0] sm:$0xf]
  %v19 = vld [vmem:[%s1] sm:$0xf]
  %v20 = vld [vmem:[%s1 + $0x4] sm:$0xf]
  %v21 = vld [vmem:[%s1 + $0x8] sm:$0xf]
  %v22 = vld [vmem:[%s1 + $0xc] sm:$0xf]
  %v23 = vld [vmem:[%s1 + $0x10] sm:$0xf]
  %v24 = vld [vmem:[%s1 + $0x14] sm:$0xf]
  %v25 = vld [vmem:[%s1 + $0x18] sm:$0xf]
  %v26 = vld [vmem:[%s1 + $0x1c] sm:$0xf]
  %v27 = vld [vmem:[%s2] sm:$0x1]
  %v29 = vlaneseq
  %v30 = vshrl.u32 %v29, 7
  %v31 = vsub.s32 0, %v30
  %v32 = vrot.slane %v27, %v31
  %v42 = vunpack.c.l.b16 %v19
  %v43 = vunpack.c.l.b16 %v20
  %v44 = vunpack.c.l.b16 %v21
  %v45 = vunpack.c.l.b16 %v22
  %v46 = vunpack.c.l.b16 %v23
  %v47 = vunpack.c.l.b16 %v24
  %v48 = vunpack.c.l.b16 %v25
  %v49 = vunpack.c.l.b16 %v26
  %v50 = vpack.c.b16 %v43, %v42
  %v51 = vpack.c.b16 %v45, %v44
  %v52 = vpack.c.b16 %v47, %v46
  %v53 = vpack.c.b16 %v49, %v48
  %vm58 = vcmask 523264
  %v60 = vsel %vm58, %v18, 0
  %62 = vmatprep.subr.bf16.mxu0 0
  %63 = vmatpush1.bf16.msra.mxu0 0
  %64 = vmatprep.subr.bf16.mxu0 0
  %65 = vmatpush1.bf16.msra.mxu0 0
  %66 = vmatprep.subr.bf16.mxu0 0
  %67 = vmatpush1.bf16.msra.mxu0 0
  %68 = vmatprep.subr.bf16.mxu0 0
  %69 = vmatpush1.bf16.msra.mxu0 0
  %70 = vmatprep.subr.bf16.mxu0 0
  %71 = vmatpush1.bf16.msra.mxu0 %v53
  %72 = vmatprep.subr.bf16.mxu0 0
  %73 = vmatpush1.bf16.msra.mxu0 %v52
  %74 = vmatprep.subr.bf16.mxu0 0
  %75 = vmatpush1.bf16.msra.mxu0 %v51
  %76 = vmatprep.subr.bf16.mxu0 0
  %77 = vmatpush1.bf16.msra.mxu0 %v50
  %78 = vmatprep.subr.bf16.mxu0 0
  %79 = vmatpush2.bf16.msra.mxu0 0
  %80 = vmatprep.subr.bf16.mxu0 0
  %81 = vmatpush2.bf16.msra.mxu0 0
  %82 = vmatprep.subr.bf16.mxu0 0
  %83 = vmatpush2.bf16.msra.mxu0 0
  %84 = vmatprep.subr.bf16.mxu0 0
  %85 = vmatpush2.bf16.msra.mxu0 0
  %86 = vmatprep.subr.bf16.mxu0 0
  %87 = vmatpush2.bf16.msra.mxu0 0
  %88 = vmatprep.subr.bf16.mxu0 0
  %89 = vmatpush2.bf16.msra.mxu0 0
  %90 = vmatprep.subr.bf16.mxu0 0
  %91 = vmatpush2.bf16.msra.mxu0 0
  %92 = vmatprep.subr.bf16.mxu0 0
  %93 = vmatpush2.bf16.msra.mxu0 0
  %94 = vmatprep.mubr.bf16.mxu0 0
  %95 = vmatmul.mubr.bf16.gmra.mxu0 %v60
  %v96 = vpop.f32.mrf.mxu0
  %v97 = vadd.f32 %v32, %v96
  %v98 = vpop.f32.mrf.mxu0
  %v99 = vpop.f32.mrf.mxu0
  %v100 = vpop.f32.mrf.mxu0
  %101 = vdwg.mxu0
  %vm102 = vcmp.ge.f32.partialorder %v97, 0.0
  %v103 = vld [vmem:[%s3] sm:$0x1]
  %v105 = vlaneseq
  %v106 = vshrl.u32 %v105, 7
  %v107 = vsub.s32 0, %v106
  %v108 = vrot.slane %v103, %v107
  %v110 = vmul.f32 %v108, %v97
  %v111 = vsel %vm102, %v97, %v110
  %v112 = vpack.c.bf16 %v111, %v111
  %vm113 = vcmask 125952
  %114 = vst.msk [vmem:[%s4] sm:$0xf] %vm113, %v112
  // Predicated region
  $region18: #{enet_forward.173} parent=0 // pred_check
    _
  $region19: #{enet_forward.173} parent=0 // pred_check_branch
    %116 = sbr.rel (0) target = $region21
  $region20: #{enet_forward.173} parent=0 // pred_region
    _
  $region21: #{enet_forward.173} parent=0 // pred_fallthru
    _
  // Predicated region
  $region22: #{enet_forward.173} parent=0 // pred_check
    _
  $region23: #{enet_forward.173} parent=0 // pred_check_branch
    %118 = sbr.rel (0) target = $region25
  $region24: #{enet_forward.173} parent=0 // pred_region
    _
  $region25: #{enet_forward.173} parent=0 // pred_fallthru
    _

// kernel: enet_forward.170
$region0: #{enet_forward.170}
  #allocation0 [shape = 'u32[]', space=smem, size = 0x4, offset = 0x4, fixed_abs, tag = 'smem constant byte address 0x4 - core index']
  #allocation1 [shape = 'u32[144,128]{1,0:T(1,128)}', space=vmem, size = 0x12000, scoped, tag = 'internal scratch']
  %s0 = inlined_call_operand.vmem [shape: bf16[8,16], index: 0, kind: input, shape index: {}]
  %s1 = inlined_call_operand.vmem [shape: bf16[16,16], index: 1, kind: input, shape index: {}]
  %s2 = inlined_call_operand.vmem [shape: f32[1,16], index: 2, kind: input, shape index: {}]
  %s3 = inlined_call_operand.vmem [shape: f32[1,16], index: 3, kind: input, shape index: {}]
  %s4 = inlined_call_operand.vmem [shape: bf16[8,16], index: 4, kind: output, shape index: {}]
  %s5 = sld [smem:[#allocation0]]
  $region26: #{enet_forward.170} parent=0
    _
  %s7 = ssub.s32 1, %s5
  %s8 = scalar_select 0, %s7, %s5
  // Predicated region
  $region2: #{enet_forward.170} parent=0 // pred_check
    _
  $region3: #{enet_forward.170} parent=0 // pred_check_branch
    %10 = sbr.rel (0) target = $region5
  $region4: #{enet_forward.170} parent=0 // pred_region
    _
  $region5: #{enet_forward.170} parent=0 // pred_fallthru
    _
  // Predicated region
  $region6: #{enet_forward.170} parent=0 // pred_check
    _
  $region7: #{enet_forward.170} parent=0 // pred_check_branch
    %12 = sbr.rel (0) target = $region9
  $region8: #{enet_forward.170} parent=0 // pred_region
    _
  $region9: #{enet_forward.170} parent=0 // pred_fallthru
    _
  // Predicated region
  $region10: #{enet_forward.170} parent=0 // pred_check
    _
  $region11: #{enet_forward.170} parent=0 // pred_check_branch
    %14 = sbr.rel (0) target = $region13
  $region12: #{enet_forward.170} parent=0 // pred_region
    _
  $region13: #{enet_forward.170} parent=0 // pred_fallthru
    _
  // Predicated region
  $region14: #{enet_forward.170} parent=0 // pred_check
    _
  $region15: #{enet_forward.170} parent=0 // pred_check_branch
    %16 = sbr.rel (0) target = $region17
  $region16: #{enet_forward.170} parent=0 // pred_region
    _
  $region17: #{enet_forward.170} parent=0 // pred_fallthru
    _
  %v18 = vld [vmem:[%s0] sm:$0xf]
  %v19 = vld [vmem:[%s1] sm:$0xf]
  %v20 = vld [vmem:[%s1 + $0x4] sm:$0xf]
  %v21 = vld [vmem:[%s2] sm:$0x1]
  %v23 = vlaneseq
  %v24 = vshrl.u32 %v23, 7
  %v25 = vsub.s32 0, %v24
  %v26 = vrot.slane %v21, %v25
  %v30 = vunpack.c.l.b16 %v19
  %v31 = vunpack.c.l.b16 %v20
  %v32 = vpack.c.b16 %v31, %v30
  %vm34 = vcmask 130048
  %v36 = vsel %vm34, %v18, 0
  %38 = vmatprep.subr.bf16.mxu0 0
  %39 = vmatpush1.bf16.msra.mxu0 0
  %40 = vmatprep.subr.bf16.mxu0 0
  %41 = vmatpush1.bf16.msra.mxu0 0
  %42 = vmatprep.subr.bf16.mxu0 0
  %43 = vmatpush1.bf16.msra.mxu0 0
  %44 = vmatprep.subr.bf16.mxu0 0
  %45 = vmatpush1.bf16.msra.mxu0 0
  %46 = vmatprep.subr.bf16.mxu0 0
  %47 = vmatpush1.bf16.msra.mxu0 0
  %48 = vmatprep.subr.bf16.mxu0 0
  %49 = vmatpush1.bf16.msra.mxu0 0
  %50 = vmatprep.subr.bf16.mxu0 0
  %51 = vmatpush1.bf16.msra.mxu0 0
  %52 = vmatprep.subr.bf16.mxu0 0
  %53 = vmatpush1.bf16.msra.mxu0 %v32
  %54 = vmatprep.subr.bf16.mxu0 0
  %55 = vmatpush2.bf16.msra.mxu0 0
  %56 = vmatprep.subr.bf16.mxu0 0
  %57 = vmatpush2.bf16.msra.mxu0 0
  %58 = vmatprep.subr.bf16.mxu0 0
  %59 = vmatpush2.bf16.msra.mxu0 0
  %60 = vmatprep.subr.bf16.mxu0 0
  %61 = vmatpush2.bf16.msra.mxu0 0
  %62 = vmatprep.subr.bf16.mxu0 0
  %63 = vmatpush2.bf16.msra.mxu0 0
  %64 = vmatprep.subr.bf16.mxu0 0
  %65 = vmatpush2.bf16.msra.mxu0 0
  %66 = vmatprep.subr.bf16.mxu0 0
  %67 = vmatpush2.bf16.msra.mxu0 0
  %68 = vmatprep.subr.bf16.mxu0 0
  %69 = vmatpush2.bf16.msra.mxu0 0
  %70 = vmatprep.mubr.bf16.mxu0 0
  %71 = vmatmul.mubr.bf16.gmra.mxu0 %v36
  %v72 = vpop.f32.mrf.mxu0
  %v73 = vadd.f32 %v26, %v72
  %v74 = vpop.f32.mrf.mxu0
  %v75 = vpop.f32.mrf.mxu0
  %v76 = vpop.f32.mrf.mxu0
  %77 = vdwg.mxu0
  %vm78 = vcmp.ge.f32.partialorder %v73, 0.0
  %v79 = vld [vmem:[%s3] sm:$0x1]
  %v81 = vlaneseq
  %v82 = vshrl.u32 %v81, 7
  %v83 = vsub.s32 0, %v82
  %v84 = vrot.slane %v79, %v83
  %v86 = vmul.f32 %v84, %v73
  %v87 = vsel %vm78, %v73, %v86
  %v88 = vpack.c.bf16 %v87, %v87
  %vm89 = vcmask 125952
  %90 = vst.msk [vmem:[%s4] sm:$0xf] %vm89, %v88
  // Predicated region
  $region18: #{enet_forward.170} parent=0 // pred_check
    _
  $region19: #{enet_forward.170} parent=0 // pred_check_branch
    %92 = sbr.rel (0) target = $region21
  $region20: #{enet_forward.170} parent=0 // pred_region
    _
  $region21: #{enet_forward.170} parent=0 // pred_fallthru
    _
  // Predicated region
  $region22: #{enet_forward.170} parent=0 // pred_check
    _
  $region23: #{enet_forward.170} parent=0 // pred_check_branch
    %94 = sbr.rel (0) target = $region25
  $region24: #{enet_forward.170} parent=0 // pred_region
    _
  $region25: #{enet_forward.170} parent=0 // pred_fallthru
    _

// kernel: enet_forward.184
$region0: #{enet_forward.184}
  #allocation0 [shape = 'u32[]', space=smem, size = 0x4, offset = 0x4, fixed_abs, tag = 'smem constant byte address 0x4 - core index']
  #allocation1 [shape = 'u32[144,128]{1,0:T(1,128)}', space=vmem, size = 0x12000, scoped, tag = 'internal scratch']
  %s0 = inlined_call_operand.vmem [shape: bf16[32,8], index: 0, kind: input, shape index: {}]
  %s1 = inlined_call_operand.vmem [shape: bf16[8,4], index: 1, kind: input, shape index: {}]
  %s2 = inlined_call_operand.vmem [shape: f32[1,4], index: 2, kind: input, shape index: {}]
  %s3 = inlined_call_operand.vmem [shape: f32[1,4], index: 3, kind: input, shape index: {}]
  %s4 = inlined_call_operand.vmem [shape: bf16[32,4], index: 4, kind: output, shape index: {}]
  %s5 = sld [smem:[#allocation0]]
  $region26: #{enet_forward.184} parent=0
    _
  %s7 = ssub.s32 1, %s5
  %s8 = scalar_select 0, %s7, %s5
  // Predicated region
  $region2: #{enet_forward.184} parent=0 // pred_check
    _
  $region3: #{enet_forward.184} parent=0 // pred_check_branch
    %10 = sbr.rel (0) target = $region5
  $region4: #{enet_forward.184} parent=0 // pred_region
    _
  $region5: #{enet_forward.184} parent=0 // pred_fallthru
    _
  // Predicated region
  $region6: #{enet_forward.184} parent=0 // pred_check
    _
  $region7: #{enet_forward.184} parent=0 // pred_check_branch
    %12 = sbr.rel (0) target = $region9
  $region8: #{enet_forward.184} parent=0 // pred_region
    _
  $region9: #{enet_forward.184} parent=0 // pred_fallthru
    _
  // Predicated region
  $region10: #{enet_forward.184} parent=0 // pred_check
    _
  $region11: #{enet_forward.184} parent=0 // pred_check_branch
    %14 = sbr.rel (0) target = $region13
  $region12: #{enet_forward.184} parent=0 // pred_region
    _
  $region13: #{enet_forward.184} parent=0 // pred_fallthru
    _
  // Predicated region
  $region14: #{enet_forward.184} parent=0 // pred_check
    _
  $region15: #{enet_forward.184} parent=0 // pred_check_branch
    %16 = sbr.rel (0) target = $region17
  $region16: #{enet_forward.184} parent=0 // pred_region
    _
  $region17: #{enet_forward.184} parent=0 // pred_fallthru
    _
  %v18 = vld [vmem:[%s0] sm:$0xf]
  %v19 = vld [vmem:[%s0 + $0x4] sm:$0xf]
  %v20 = vld [vmem:[%s0 + $0x8] sm:$0xf]
  %v21 = vld [vmem:[%s0 + $0xc] sm:$0xf]
  %v22 = vld [vmem:[%s1] sm:$0xf]
  %v23 = vld [vmem:[%s2] sm:$0x1]
  %v25 = vlaneseq
  %v26 = vshrl.u32 %v25, 7
  %v27 = vsub.s32 0, %v26
  %v28 = vrot.slane %v23, %v27
  %v34 = vunpack.c.l.b16 %v18
  %v35 = vunpack.c.l.b16 %v19
  %v36 = vunpack.c.l.b16 %v20
  %v37 = vunpack.c.l.b16 %v21
  %v38 = vpack.c.b16 %v35, %v34
  %v39 = vpack.c.b16 %v37, %v36
  %vm40 = vcmask 64512
  %v42 = vsel %vm40, %v38, 0
  %v45 = vsel %vm40, %v39, 0
  %vm47 = vcmask 1043456
  %v49 = vsel %vm47, %v22, 0
  %51 = vmatprep.subr.bf16.mxu0 0
  %52 = vmatpush1.bf16.msra.mxu0 0
  %53 = vmatprep.subr.bf16.mxu0 0
  %54 = vmatpush1.bf16.msra.mxu0 0
  %55 = vmatprep.subr.bf16.mxu0 0
  %56 = vmatpush1.bf16.msra.mxu0 0
  %57 = vmatprep.subr.bf16.mxu0 0
  %58 = vmatpush1.bf16.msra.mxu0 0
  %59 = vmatprep.subr.bf16.mxu0 0
  %60 = vmatpush1.bf16.msra.mxu0 0
  %61 = vmatprep.subr.bf16.mxu0 0
  %62 = vmatpush1.bf16.msra.mxu0 0
  %63 = vmatprep.subr.bf16.mxu0 0
  %64 = vmatpush1.bf16.msra.mxu0 0
  %65 = vmatprep.subr.bf16.mxu0 0
  %66 = vmatpush1.bf16.msra.mxu0 %v49
  %67 = vmatprep.subr.bf16.mxu0 0
  %68 = vmatpush2.bf16.msra.mxu0 0
  %69 = vmatprep.subr.bf16.mxu0 0
  %70 = vmatpush2.bf16.msra.mxu0 0
  %71 = vmatprep.subr.bf16.mxu0 0
  %72 = vmatpush2.bf16.msra.mxu0 0
  %73 = vmatprep.subr.bf16.mxu0 0
  %74 = vmatpush2.bf16.msra.mxu0 0
  %75 = vmatprep.subr.bf16.mxu0 0
  %76 = vmatpush2.bf16.msra.mxu0 0
  %77 = vmatprep.subr.bf16.mxu0 0
  %78 = vmatpush2.bf16.msra.mxu0 0
  %79 = vmatprep.subr.bf16.mxu0 0
  %80 = vmatpush2.bf16.msra.mxu0 0
  %81 = vmatprep.subr.bf16.mxu0 0
  %82 = vmatpush2.bf16.msra.mxu0 0
  %83 = vmatprep.mubr.bf16.mxu0 0
  %84 = vmatmul.mubr.bf16.gmra.mxu0 %v42
  %v85 = vpop.f32.mrf.mxu0
  %v86 = vadd.f32 %v28, %v85
  %v87 = vpop.f32.mrf.mxu0
  %v88 = vpop.f32.mrf.mxu0
  %v89 = vadd.f32 %v28, %v88
  %v90 = vpop.f32.mrf.mxu0
  %91 = vmatprep.mubr.bf16.mxu0 0
  %92 = vmatmul.mubr.bf16.gmra.mxu0 %v45
  %v93 = vpop.f32.mrf.mxu0
  %v94 = vadd.f32 %v28, %v93
  %v95 = vpop.f32.mrf.mxu0
  %v96 = vpop.f32.mrf.mxu0
  %v97 = vadd.f32 %v28, %v96
  %v98 = vpop.f32.mrf.mxu0
  %99 = vdwg.mxu0
  %vm100 = vcmp.ge.f32.partialorder %v86, 0.0
  %vm101 = vcmp.ge.f32.partialorder %v89, 0.0
  %vm102 = vcmp.ge.f32.partialorder %v94, 0.0
  %vm103 = vcmp.ge.f32.partialorder %v97, 0.0
  %v104 = vld [vmem:[%s3] sm:$0x1]
  %v106 = vlaneseq
  %v107 = vshrl.u32 %v106, 7
  %v108 = vsub.s32 0, %v107
  %v109 = vrot.slane %v104, %v108
  %v111 = vmul.f32 %v109, %v86
  %v112 = vmul.f32 %v109, %v89
  %v113 = vmul.f32 %v109, %v94
  %v114 = vmul.f32 %v109, %v97
  %v115 = vsel %vm100, %v86, %v111
  %v116 = vsel %vm101, %v89, %v112
  %v117 = vsel %vm102, %v94, %v113
  %v118 = vsel %vm103, %v97, %v114
  %v119 = vpack.c.bf16 %v116, %v115
  %v120 = vpack.c.bf16 %v118, %v117
  %v123 = vunpack.c.l.b16 %v119
  %v124 = vunpack.c.h.b16 %v119
  %v125 = vunpack.c.l.b16 %v120
  %v126 = vunpack.c.h.b16 %v120
  %v127 = vpack.c.b16 %v123, %v123
  %v128 = vpack.c.b16 %v124, %v124
  %v129 = vpack.c.b16 %v125, %v125
  %v130 = vpack.c.b16 %v126, %v126
  %vm135 = vcmask 27648
  %136 = vst.msk [vmem:[%s4] sm:$0xf] %vm135, %v127
  %137 = vst.msk [vmem:[%s4 + $0x4] sm:$0xf] %vm135, %v128
  %138 = vst.msk [vmem:[%s4 + $0x8] sm:$0xf] %vm135, %v129
  %139 = vst.msk [vmem:[%s4 + $0xc] sm:$0xf] %vm135, %v130
  // Predicated region
  $region18: #{enet_forward.184} parent=0 // pred_check
    _
  $region19: #{enet_forward.184} parent=0 // pred_check_branch
    %141 = sbr.rel (0) target = $region21
  $region20: #{enet_forward.184} parent=0 // pred_region
    _
  $region21: #{enet_forward.184} parent=0 // pred_fallthru
    _
  // Predicated region
  $region22: #{enet_forward.184} parent=0 // pred_check
    _
  $region23: #{enet_forward.184} parent=0 // pred_check_branch
    %143 = sbr.rel (0) target = $region25
  $region24: #{enet_forward.184} parent=0 // pred_region
    _
  $region25: #{enet_forward.184} parent=0 // pred_fallthru
    _

// kernel: enet_forward.183
$region0: #{enet_forward.183}
  #allocation0 [shape = 'u32[]', space=smem, size = 0x4, offset = 0x4, fixed_abs, tag = 'smem constant byte address 0x4 - core index']
  #allocation1 [shape = 'u32[144,128]{1,0:T(1,128)}', space=vmem, size = 0x12000, scoped, tag = 'internal scratch']
  %s0 = inlined_call_operand.vmem [shape: bf16[32,4], index: 0, kind: input, shape index: {}]
  %s1 = inlined_call_operand.vmem [shape: bf16[4,4], index: 1, kind: input, shape index: {}]
  %s2 = inlined_call_operand.vmem [shape: f32[1,4], index: 2, kind: input, shape index: {}]
  %s3 = inlined_call_operand.vmem [shape: f32[1,4], index: 3, kind: input, shape index: {}]
  %s4 = inlined_call_operand.vmem [shape: bf16[32,4], index: 4, kind: output, shape index: {}]
  %s5 = sld [smem:[#allocation0]]
  $region26: #{enet_forward.183} parent=0
    _
  %s7 = ssub.s32 1, %s5
  %s8 = scalar_select 0, %s7, %s5
  // Predicated region
  $region2: #{enet_forward.183} parent=0 // pred_check
    _
  $region3: #{enet_forward.183} parent=0 // pred_check_branch
    %10 = sbr.rel (0) target = $region5
  $region4: #{enet_forward.183} parent=0 // pred_region
    _
  $region5: #{enet_forward.183} parent=0 // pred_fallthru
    _
  // Predicated region
  $region6: #{enet_forward.183} parent=0 // pred_check
    _
  $region7: #{enet_forward.183} parent=0 // pred_check_branch
    %12 = sbr.rel (0) target = $region9
  $region8: #{enet_forward.183} parent=0 // pred_region
    _
  $region9: #{enet_forward.183} parent=0 // pred_fallthru
    _
  // Predicated region
  $region10: #{enet_forward.183} parent=0 // pred_check
    _
  $region11: #{enet_forward.183} parent=0 // pred_check_branch
    %14 = sbr.rel (0) target = $region13
  $region12: #{enet_forward.183} parent=0 // pred_region
    _
  $region13: #{enet_forward.183} parent=0 // pred_fallthru
    _
  // Predicated region
  $region14: #{enet_forward.183} parent=0 // pred_check
    _
  $region15: #{enet_forward.183} parent=0 // pred_check_branch
    %16 = sbr.rel (0) target = $region17
  $region16: #{enet_forward.183} parent=0 // pred_region
    _
  $region17: #{enet_forward.183} parent=0 // pred_fallthru
    _
  %v18 = vld [vmem:[%s0] sm:$0xf]
  %v19 = vld [vmem:[%s0 + $0x4] sm:$0xf]
  %v20 = vld [vmem:[%s0 + $0x8] sm:$0xf]
  %v21 = vld [vmem:[%s0 + $0xc] sm:$0xf]
  %v22 = vld [vmem:[%s1] sm:$0x3]
  %v23 = vld [vmem:[%s2] sm:$0x1]
  %v25 = vlaneseq
  %v26 = vshrl.u32 %v25, 7
  %v27 = vsub.s32 0, %v26
  %v28 = vrot.slane %v23, %v27
  %v34 = vunpack.c.l.b16 %v18
  %v35 = vunpack.c.l.b16 %v19
  %v36 = vunpack.c.l.b16 %v20
  %v37 = vunpack.c.l.b16 %v21
  %v38 = vpack.c.b16 %v35, %v34
  %v39 = vpack.c.b16 %v37, %v36
  %vm40 = vcmask 31744
  %v42 = vsel %vm40, %v38, 0
  %v45 = vsel %vm40, %v39, 0
  %vm47 = vcmask 1041408
  %v49 = vsel %vm47, %v22, 0
  %51 = vmatprep.subr.bf16.mxu0 0
  %52 = vmatpush1.bf16.msra.mxu0 0
  %53 = vmatprep.subr.bf16.mxu0 0
  %54 = vmatpush1.bf16.msra.mxu0 0
  %55 = vmatprep.subr.bf16.mxu0 0
  %56 = vmatpush1.bf16.msra.mxu0 0
  %57 = vmatprep.subr.bf16.mxu0 0
  %58 = vmatpush1.bf16.msra.mxu0 0
  %59 = vmatprep.subr.bf16.mxu0 0
  %60 = vmatpush1.bf16.msra.mxu0 0
  %61 = vmatprep.subr.bf16.mxu0 0
  %62 = vmatpush1.bf16.msra.mxu0 0
  %63 = vmatprep.subr.bf16.mxu0 0
  %64 = vmatpush1.bf16.msra.mxu0 0
  %65 = vmatprep.subr.bf16.mxu0 0
  %66 = vmatpush1.bf16.msra.mxu0 %v49
  %67 = vmatprep.subr.bf16.mxu0 0
  %68 = vmatpush2.bf16.msra.mxu0 0
  %69 = vmatprep.subr.bf16.mxu0 0
  %70 = vmatpush2.bf16.msra.mxu0 0
  %71 = vmatprep.subr.bf16.mxu0 0
  %72 = vmatpush2.bf16.msra.mxu0 0
  %73 = vmatprep.subr.bf16.mxu0 0
  %74 = vmatpush2.bf16.msra.mxu0 0
  %75 = vmatprep.subr.bf16.mxu0 0
  %76 = vmatpush2.bf16.msra.mxu0 0
  %77 = vmatprep.subr.bf16.mxu0 0
  %78 = vmatpush2.bf16.msra.mxu0 0
  %79 = vmatprep.subr.bf16.mxu0 0
  %80 = vmatpush2.bf16.msra.mxu0 0
  %81 = vmatprep.subr.bf16.mxu0 0
  %82 = vmatpush2.bf16.msra.mxu0 0
  %83 = vmatprep.mubr.bf16.mxu0 0
  %84 = vmatmul.mubr.bf16.gmra.mxu0 %v42
  %v85 = vpop.f32.mrf.mxu0
  %v86 = vadd.f32 %v28, %v85
  %v87 = vpop.f32.mrf.mxu0
  %v88 = vpop.f32.mrf.mxu0
  %v89 = vadd.f32 %v28, %v88
  %v90 = vpop.f32.mrf.mxu0
  %91 = vmatprep.mubr.bf16.mxu0 0
  %92 = vmatmul.mubr.bf16.gmra.mxu0 %v45
  %v93 = vpop.f32.mrf.mxu0
  %v94 = vadd.f32 %v28, %v93
  %v95 = vpop.f32.mrf.mxu0
  %v96 = vpop.f32.mrf.mxu0
  %v97 = vadd.f32 %v28, %v96
  %v98 = vpop.f32.mrf.mxu0
  %99 = vdwg.mxu0
  %vm100 = vcmp.ge.f32.partialorder %v86, 0.0
  %vm101 = vcmp.ge.f32.partialorder %v89, 0.0
  %vm102 = vcmp.ge.f32.partialorder %v94, 0.0
  %vm103 = vcmp.ge.f32.partialorder %v97, 0.0
  %v104 = vld [vmem:[%s3] sm:$0x1]
  %v106 = vlaneseq
  %v107 = vshrl.u32 %v106, 7
  %v108 = vsub.s32 0, %v107
  %v109 = vrot.slane %v104, %v108
  %v111 = vmul.f32 %v109, %v86
  %v112 = vmul.f32 %v109, %v89
  %v113 = vmul.f32 %v109, %v94
  %v114 = vmul.f32 %v109, %v97
  %v115 = vsel %vm100, %v86, %v111
  %v116 = vsel %vm101, %v89, %v112
  %v117 = vsel %vm102, %v94, %v113
  %v118 = vsel %vm103, %v97, %v114
  %v119 = vpack.c.bf16 %v116, %v115
  %v120 = vpack.c.bf16 %v118, %v117
  %v123 = vunpack.c.l.b16 %v119
  %v124 = vunpack.c.h.b16 %v119
  %v125 = vunpack.c.l.b16 %v120
  %v126 = vunpack.c.h.b16 %v120
  %v127 = vpack.c.b16 %v123, %v123
  %v128 = vpack.c.b16 %v124, %v124
  %v129 = vpack.c.b16 %v125, %v125
  %v130 = vpack.c.b16 %v126, %v126
  %vm135 = vcmask 27648
  %136 = vst.msk [vmem:[%s4] sm:$0xf] %vm135, %v127
  %137 = vst.msk [vmem:[%s4 + $0x4] sm:$0xf] %vm135, %v128
  %138 = vst.msk [vmem:[%s4 + $0x8] sm:$0xf] %vm135, %v129
  %139 = vst.msk [vmem:[%s4 + $0xc] sm:$0xf] %vm135, %v130
  // Predicated region
  $region18: #{enet_forward.183} parent=0 // pred_check
    _
  $region19: #{enet_forward.183} parent=0 // pred_check_branch
    %141 = sbr.rel (0) target = $region21
  $region20: #{enet_forward.183} parent=0 // pred_region
    _
  $region21: #{enet_forward.183} parent=0 // pred_fallthru
    _
  // Predicated region
  $region22: #{enet_forward.183} parent=0 // pred_check
    _
  $region23: #{enet_forward.183} parent=0 // pred_check_branch
    %143 = sbr.rel (0) target = $region25
  $region24: #{enet_forward.183} parent=0 // pred_region
    _
  $region25: #{enet_forward.183} parent=0 // pred_fallthru
    _

// kernel: enet_forward.186
$region0: #{enet_forward.186}
  #allocation0 [shape = 'u32[]', space=smem, size = 0x4, offset = 0x4, fixed_abs, tag = 'smem constant byte address 0x4 - core index']
  #allocation1 [shape = 'u32[144,128]{1,0:T(1,128)}', space=vmem, size = 0x12000, scoped, tag = 'internal scratch']
  %s0 = inlined_call_operand.vmem [shape: bf16[32,16], index: 0, kind: input, shape index: {}]
  %s1 = inlined_call_operand.vmem [shape: bf16[16,4], index: 1, kind: input, shape index: {}]
  %s2 = inlined_call_operand.vmem [shape: f32[1,4], index: 2, kind: input, shape index: {}]
  %s3 = inlined_call_operand.vmem [shape: f32[1,4], index: 3, kind: input, shape index: {}]
  %s4 = inlined_call_operand.vmem [shape: bf16[32,4], index: 4, kind: output, shape index: {}]
  %s5 = sld [smem:[#allocation0]]
  $region26: #{enet_forward.186} parent=0
    _
  %s7 = ssub.s32 1, %s5
  %s8 = scalar_select 0, %s7, %s5
  // Predicated region
  $region2: #{enet_forward.186} parent=0 // pred_check
    _
  $region3: #{enet_forward.186} parent=0 // pred_check_branch
    %10 = sbr.rel (0) target = $region5
  $region4: #{enet_forward.186} parent=0 // pred_region
    _
  $region5: #{enet_forward.186} parent=0 // pred_fallthru
    _
  // Predicated region
  $region6: #{enet_forward.186} parent=0 // pred_check
    _
  $region7: #{enet_forward.186} parent=0 // pred_check_branch
    %12 = sbr.rel (0) target = $region9
  $region8: #{enet_forward.186} parent=0 // pred_region
    _
  $region9: #{enet_forward.186} parent=0 // pred_fallthru
    _
  // Predicated region
  $region10: #{enet_forward.186} parent=0 // pred_check
    _
  $region11: #{enet_forward.186} parent=0 // pred_check_branch
    %14 = sbr.rel (0) target = $region13
  $region12: #{enet_forward.186} parent=0 // pred_region
    _
  $region13: #{enet_forward.186} parent=0 // pred_fallthru
    _
  // Predicated region
  $region14: #{enet_forward.186} parent=0 // pred_check
    _
  $region15: #{enet_forward.186} parent=0 // pred_check_branch
    %16 = sbr.rel (0) target = $region17
  $region16: #{enet_forward.186} parent=0 // pred_region
    _
  $region17: #{enet_forward.186} parent=0 // pred_fallthru
    _
  %v18 = vld [vmem:[%s0] sm:$0xf]
  %v19 = vld [vmem:[%s0 + $0x4] sm:$0xf]
  %v20 = vld [vmem:[%s0 + $0x8] sm:$0xf]
  %v21 = vld [vmem:[%s0 + $0xc] sm:$0xf]
  %v22 = vld [vmem:[%s1] sm:$0xf]
  %v23 = vld [vmem:[%s1 + $0x4] sm:$0xf]
  %v24 = vld [vmem:[%s2] sm:$0x1]
  %v26 = vlaneseq
  %v27 = vshrl.u32 %v26, 7
  %v28 = vsub.s32 0, %v27
  %v29 = vrot.slane %v24, %v28
  %v35 = vunpack.c.l.b16 %v18
  %v36 = vunpack.c.l.b16 %v19
  %v37 = vunpack.c.l.b16 %v20
  %v38 = vunpack.c.l.b16 %v21
  %v39 = vpack.c.b16 %v36, %v35
  %v40 = vpack.c.b16 %v38, %v37
  %v43 = vunpack.c.l.b16 %v22
  %v44 = vunpack.c.l.b16 %v23
  %v45 = vpack.c.b16 %v44, %v43
  %vm47 = vcmask 130048
  %v49 = vsel %vm47, %v39, 0
  %v52 = vsel %vm47, %v40, 0
  %54 = vmatprep.subr.bf16.mxu0 0
  %55 = vmatpush1.bf16.msra.mxu0 0
  %56 = vmatprep.subr.bf16.mxu0 0
  %57 = vmatpush1.bf16.msra.mxu0 0
  %58 = vmatprep.subr.bf16.mxu0 0
  %59 = vmatpush1.bf16.msra.mxu0 0
  %60 = vmatprep.subr.bf16.mxu0 0
  %61 = vmatpush1.bf16.msra.mxu0 0
  %62 = vmatprep.subr.bf16.mxu0 0
  %63 = vmatpush1.bf16.msra.mxu0 0
  %64 = vmatprep.subr.bf16.mxu0 0
  %65 = vmatpush1.bf16.msra.mxu0 0
  %66 = vmatprep.subr.bf16.mxu0 0
  %67 = vmatpush1.bf16.msra.mxu0 0
  %68 = vmatprep.subr.bf16.mxu0 0
  %69 = vmatpush1.bf16.msra.mxu0 %v45
  %70 = vmatprep.subr.bf16.mxu0 0
  %71 = vmatpush2.bf16.msra.mxu0 0
  %72 = vmatprep.subr.bf16.mxu0 0
  %73 = vmatpush2.bf16.msra.mxu0 0
  %74 = vmatprep.subr.bf16.mxu0 0
  %75 = vmatpush2.bf16.msra.mxu0 0
  %76 = vmatprep.subr.bf16.mxu0 0
  %77 = vmatpush2.bf16.msra.mxu0 0
  %78 = vmatprep.subr.bf16.mxu0 0
  %79 = vmatpush2.bf16.msra.mxu0 0
  %80 = vmatprep.subr.bf16.mxu0 0
  %81 = vmatpush2.bf16.msra.mxu0 0
  %82 = vmatprep.subr.bf16.mxu0 0
  %83 = vmatpush2.bf16.msra.mxu0 0
  %84 = vmatprep.subr.bf16.mxu0 0
  %85 = vmatpush2.bf16.msra.mxu0 0
  %86 = vmatprep.mubr.bf16.mxu0 0
  %87 = vmatmul.mubr.bf16.gmra.mxu0 %v49
  %v88 = vpop.f32.mrf.mxu0
  %v89 = vadd.f32 %v29, %v88
  %v90 = vpop.f32.mrf.mxu0
  %v91 = vpop.f32.mrf.mxu0
  %v92 = vadd.f32 %v29, %v91
  %v93 = vpop.f32.mrf.mxu0
  %94 = vmatprep.mubr.bf16.mxu0 0
  %95 = vmatmul.mubr.bf16.gmra.mxu0 %v52
  %v96 = vpop.f32.mrf.mxu0
  %v97 = vadd.f32 %v29, %v96
  %v98 = vpop.f32.mrf.mxu0
  %v99 = vpop.f32.mrf.mxu0
  %v100 = vadd.f32 %v29, %v99
  %v101 = vpop.f32.mrf.mxu0
  %102 = vdwg.mxu0
  %vm103 = vcmp.ge.f32.partialorder %v89, 0.0
  %vm104 = vcmp.ge.f32.partialorder %v92, 0.0
  %vm105 = vcmp.ge.f32.partialorder %v97, 0.0
  %vm106 = vcmp.ge.f32.partialorder %v100, 0.0
  %v107 = vld [vmem:[%s3] sm:$0x1]
  %v109 = vlaneseq
  %v110 = vshrl.u32 %v109, 7
  %v111 = vsub.s32 0, %v110
  %v112 = vrot.slane %v107, %v111
  %v114 = vmul.f32 %v112, %v89
  %v115 = vmul.f32 %v112, %v92
  %v116 = vmul.f32 %v112, %v97
  %v117 = vmul.f32 %v112, %v100
  %v118 = vsel %vm103, %v89, %v114
  %v119 = vsel %vm104, %v92, %v115
  %v120 = vsel %vm105, %v97, %v116
  %v121 = vsel %vm106, %v100, %v117
  %v122 = vpack.c.bf16 %v119, %v118
  %v123 = vpack.c.bf16 %v121, %v120
  %v126 = vunpack.c.l.b16 %v122
  %v127 = vunpack.c.h.b16 %v122
  %v128 = vunpack.c.l.b16 %v123
  %v129 = vunpack.c.h.b16 %v123
  %v130 = vpack.c.b16 %v126, %v126
  %v131 = vpack.c.b16 %v127, %v127
  %v132 = vpack.c.b16 %v128, %v128
  %v133 = vpack.c.b16 %v129, %v129
  %vm138 = vcmask 27648
  %139 = vst.msk [vmem:[%s4] sm:$0xf] %vm138, %v130
  %140 = vst.msk [vmem:[%s4 + $0x4] sm:$0xf] %vm138, %v131
  %141 = vst.msk [vmem:[%s4 + $0x8] sm:$0xf] %vm138, %v132
  %142 = vst.msk [vmem:[%s4 + $0xc] sm:$0xf] %vm138, %v133
  // Predicated region
  $region18: #{enet_forward.186} parent=0 // pred_check
    _
  $region19: #{enet_forward.186} parent=0 // pred_check_branch
    %144 = sbr.rel (0) target = $region21
  $region20: #{enet_forward.186} parent=0 // pred_region
    _
  $region21: #{enet_forward.186} parent=0 // pred_fallthru
    _
  // Predicated region
  $region22: #{enet_forward.186} parent=0 // pred_check
    _
  $region23: #{enet_forward.186} parent=0 // pred_check_branch
    %146 = sbr.rel (0) target = $region25
  $region24: #{enet_forward.186} parent=0 // pred_region
    _
  $region25: #{enet_forward.186} parent=0 // pred_fallthru
    _

// kernel: enet_forward.189
$region0: #{enet_forward.189}
  #allocation0 [shape = 'u32[]', space=smem, size = 0x4, offset = 0x4, fixed_abs, tag = 'smem constant byte address 0x4 - core index']
  #allocation1 [shape = 'u32[144,128]{1,0:T(1,128)}', space=vmem, size = 0x12000, scoped, tag = 'internal scratch']
  %s0 = inlined_call_operand.vmem [shape: bf16[128,16], index: 0, kind: input, shape index: {}]
  %s1 = inlined_call_operand.vmem [shape: bf16[16,4], index: 1, kind: input, shape index: {}]
  %s2 = inlined_call_operand.vmem [shape: f32[1,4], index: 2, kind: input, shape index: {}]
  %s3 = inlined_call_operand.vmem [shape: f32[1,4], index: 3, kind: input, shape index: {}]
  %s4 = inlined_call_operand.vmem [shape: bf16[128,4], index: 4, kind: output, shape index: {}]
  %s5 = sld [smem:[#allocation0]]
  $region26: #{enet_forward.189} parent=0
    _
  %s7 = ssub.s32 1, %s5
  %s8 = scalar_select 0, %s7, %s5
  // Predicated region
  $region2: #{enet_forward.189} parent=0 // pred_check
    _
  $region3: #{enet_forward.189} parent=0 // pred_check_branch
    %10 = sbr.rel (0) target = $region5
  $region4: #{enet_forward.189} parent=0 // pred_region
    _
  $region5: #{enet_forward.189} parent=0 // pred_fallthru
    _
  // Predicated region
  $region6: #{enet_forward.189} parent=0 // pred_check
    _
  $region7: #{enet_forward.189} parent=0 // pred_check_branch
    %12 = sbr.rel (0) target = $region9
  $region8: #{enet_forward.189} parent=0 // pred_region
    _
  $region9: #{enet_forward.189} parent=0 // pred_fallthru
    _
  // Predicated region
  $region10: #{enet_forward.189} parent=0 // pred_check
    _
  $region11: #{enet_forward.189} parent=0 // pred_check_branch
    %14 = sbr.rel (0) target = $region13
  $region12: #{enet_forward.189} parent=0 // pred_region
    _
  $region13: #{enet_forward.189} parent=0 // pred_fallthru
    _
  // Predicated region
  $region14: #{enet_forward.189} parent=0 // pred_check
    _
  $region15: #{enet_forward.189} parent=0 // pred_check_branch
    %16 = sbr.rel (0) target = $region17
  $region16: #{enet_forward.189} parent=0 // pred_region
    _
  $region17: #{enet_forward.189} parent=0 // pred_fallthru
    _
  %v18 = vld [vmem:[%s0] sm:$0xf]
  %v19 = vld [vmem:[%s0 + $0x4] sm:$0xf]
  %v20 = vld [vmem:[%s0 + $0x8] sm:$0xf]
  %v21 = vld [vmem:[%s0 + $0xc] sm:$0xf]
  %v22 = vld [vmem:[%s0 + $0x10] sm:$0xf]
  %v23 = vld [vmem:[%s0 + $0x14] sm:$0xf]
  %v24 = vld [vmem:[%s0 + $0x18] sm:$0xf]
  %v25 = vld [vmem:[%s0 + $0x1c] sm:$0xf]
  %v26 = vld [vmem:[%s0 + $0x20] sm:$0xf]
  %v27 = vld [vmem:[%s0 + $0x24] sm:$0xf]
  %v28 = vld [vmem:[%s0 + $0x28] sm:$0xf]
  %v29 = vld [vmem:[%s0 + $0x2c] sm:$0xf]
  %v30 = vld [vmem:[%s0 + $0x30] sm:$0xf]
  %v31 = vld [vmem:[%s0 + $0x34] sm:$0xf]
  %v32 = vld [vmem:[%s0 + $0x38] sm:$0xf]
  %v33 = vld [vmem:[%s0 + $0x3c] sm:$0xf]
  %v34 = vld [vmem:[%s1] sm:$0xf]
  %v35 = vld [vmem:[%s1 + $0x4] sm:$0xf]
  %v36 = vld [vmem:[%s2] sm:$0x1]
  %v38 = vlaneseq
  %v39 = vshrl.u32 %v38, 7
  %v40 = vsub.s32 0, %v39
  %v41 = vrot.slane %v36, %v40
  %v59 = vunpack.c.l.b16 %v18
  %v60 = vunpack.c.l.b16 %v19
  %v61 = vunpack.c.l.b16 %v20
  %v62 = vunpack.c.l.b16 %v21
  %v63 = vunpack.c.l.b16 %v22
  %v64 = vunpack.c.l.b16 %v23
  %v65 = vunpack.c.l.b16 %v24
  %v66 = vunpack.c.l.b16 %v25
  %v67 = vunpack.c.l.b16 %v26
  %v68 = vunpack.c.l.b16 %v27
  %v69 = vunpack.c.l.b16 %v28
  %v70 = vunpack.c.l.b16 %v29
  %v71 = vunpack.c.l.b16 %v30
  %v72 = vunpack.c.l.b16 %v31
  %v73 = vunpack.c.l.b16 %v32
  %v74 = vunpack.c.l.b16 %v33
  %v75 = vpack.c.b16 %v60, %v59
  %v76 = vpack.c.b16 %v62, %v61
  %v77 = vpack.c.b16 %v64, %v63
  %v78 = vpack.c.b16 %v66, %v65
  %v79 = vpack.c.b16 %v68, %v67
  %v80 = vpack.c.b16 %v70, %v69
  %v81 = vpack.c.b16 %v72, %v71
  %v82 = vpack.c.b16 %v74, %v73
  %v85 = vunpack.c.l.b16 %v34
  %v86 = vunpack.c.l.b16 %v35
  %v87 = vpack.c.b16 %v86, %v85
  %vm89 = vcmask 130048
  %v91 = vsel %vm89, %v75, 0
  %v94 = vsel %vm89, %v76, 0
  %v97 = vsel %vm89, %v77, 0
  %v100 = vsel %vm89, %v78, 0
  %v103 = vsel %vm89, %v79, 0
  %v106 = vsel %vm89, %v80, 0
  %v109 = vsel %vm89, %v81, 0
  %v112 = vsel %vm89, %v82, 0
  %114 = vmatprep.subr.bf16.mxu0 0
  %115 = vmatpush1.bf16.msra.mxu0 0
  %116 = vmatprep.subr.bf16.mxu0 0
  %117 = vmatpush1.bf16.msra.mxu0 0
  %118 = vmatprep.subr.bf16.mxu0 0
  %119 = vmatpush1.bf16.msra.mxu0 0
  %120 = vmatprep.subr.bf16.mxu0 0
  %121 = vmatpush1.bf16.msra.mxu0 0
  %122 = vmatprep.subr.bf16.mxu0 0
  %123 = vmatpush1.bf16.msra.mxu0 0
  %124 = vmatprep.subr.bf16.mxu0 0
  %125 = vmatpush1.bf16.msra.mxu0 0
  %126 = vmatprep.subr.bf16.mxu0 0
  %127 = vmatpush1.bf16.msra.mxu0 0
  %128 = vmatprep.subr.bf16.mxu0 0
  %129 = vmatpush1.bf16.msra.mxu0 %v87
  %130 = vmatprep.subr.bf16.mxu0 0
  %131 = vmatpush2.bf16.msra.mxu0 0
  %132 = vmatprep.subr.bf16.mxu0 0
  %133 = vmatpush2.bf16.msra.mxu0 0
  %134 = vmatprep.subr.bf16.mxu0 0
  %135 = vmatpush2.bf16.msra.mxu0 0
  %136 = vmatprep.subr.bf16.mxu0 0
  %137 = vmatpush2.bf16.msra.mxu0 0
  %138 = vmatprep.subr.bf16.mxu0 0
  %139 = vmatpush2.bf16.msra.mxu0 0
  %140 = vmatprep.subr.bf16.mxu0 0
  %141 = vmatpush2.bf16.msra.mxu0 0
  %142 = vmatprep.subr.bf16.mxu0 0
  %143 = vmatpush2.bf16.msra.mxu0 0
  %144 = vmatprep.subr.bf16.mxu0 0
  %145 = vmatpush2.bf16.msra.mxu0 0
  %146 = vmatprep.mubr.bf16.mxu0 0
  %147 = vmatmul.mubr.bf16.gmra.mxu0 %v91
  %v148 = vpop.f32.mrf.mxu0
  %v149 = vadd.f32 %v41, %v148
  %v150 = vpop.f32.mrf.mxu0
  %v151 = vpop.f32.mrf.mxu0
  %v152 = vadd.f32 %v41, %v151
  %v153 = vpop.f32.mrf.mxu0
  %154 = vmatprep.mubr.bf16.mxu0 0
  %155 = vmatmul.mubr.bf16.gmra.mxu0 %v94
  %v156 = vpop.f32.mrf.mxu0
  %v157 = vadd.f32 %v41, %v156
  %v158 = vpop.f32.mrf.mxu0
  %v159 = vpop.f32.mrf.mxu0
  %v160 = vadd.f32 %v41, %v159
  %v161 = vpop.f32.mrf.mxu0
  %162 = vmatprep.mubr.bf16.mxu0 0
  %163 = vmatmul.mubr.bf16.gmra.mxu0 %v97
  %v164 = vpop.f32.mrf.mxu0
  %v165 = vadd.f32 %v41, %v164
  %v166 = vpop.f32.mrf.mxu0
  %v167 = vpop.f32.mrf.mxu0
  %v168 = vadd.f32 %v41, %v167
  %v169 = vpop.f32.mrf.mxu0
  %170 = vmatprep.mubr.bf16.mxu0 0
  %171 = vmatmul.mubr.bf16.gmra.mxu0 %v100
  %v172 = vpop.f32.mrf.mxu0
  %v173 = vadd.f32 %v41, %v172
  %v174 = vpop.f32.mrf.mxu0
  %v175 = vpop.f32.mrf.mxu0
  %v176 = vadd.f32 %v41, %v175
  %v177 = vpop.f32.mrf.mxu0
  %178 = vmatprep.mubr.bf16.mxu0 0
  %179 = vmatmul.mubr.bf16.gmra.mxu0 %v103
  %v180 = vpop.f32.mrf.mxu0
  %v181 = vadd.f32 %v41, %v180
  %v182 = vpop.f32.mrf.mxu0
  %v183 = vpop.f32.mrf.mxu0
  %v184 = vadd.f32 %v41, %v183
  %v185 = vpop.f32.mrf.mxu0
  %186 = vmatprep.mubr.bf16.mxu0 0
  %187 = vmatmul.mubr.bf16.gmra.mxu0 %v106
  %v188 = vpop.f32.mrf.mxu0
  %v189 = vadd.f32 %v41, %v188
  %v190 = vpop.f32.mrf.mxu0
  %v191 = vpop.f32.mrf.mxu0
  %v192 = vadd.f32 %v41, %v191
  %v193 = vpop.f32.mrf.mxu0
  %194 = vmatprep.mubr.bf16.mxu0 0
  %195 = vmatmul.mubr.bf16.gmra.mxu0 %v109
  %v196 = vpop.f32.mrf.mxu0
  %v197 = vadd.f32 %v41, %v196
  %v198 = vpop.f32.mrf.mxu0
  %v199 = vpop.f32.mrf.mxu0
  %v200 = vadd.f32 %v41, %v199
  %v201 = vpop.f32.mrf.mxu0
  %202 = vmatprep.mubr.bf16.mxu0 0
  %203 = vmatmul.mubr.bf16.gmra.mxu0 %v112
  %v204 = vpop.f32.mrf.mxu0
  %v205 = vadd.f32 %v41, %v204
  %v206 = vpop.f32.mrf.mxu0
  %v207 = vpop.f32.mrf.mxu0
  %v208 = vadd.f32 %v41, %v207
  %v209 = vpop.f32.mrf.mxu0
  %210 = vdwg.mxu0
  %vm211 = vcmp.ge.f32.partialorder %v149, 0.0
  %vm212 = vcmp.ge.f32.partialorder %v152, 0.0
  %vm213 = vcmp.ge.f32.partialorder %v157, 0.0
  %vm214 = vcmp.ge.f32.partialorder %v160, 0.0
  %vm215 = vcmp.ge.f32.partialorder %v165, 0.0
  %vm216 = vcmp.ge.f32.partialorder %v168, 0.0
  %vm217 = vcmp.ge.f32.partialorder %v173, 0.0
  %vm218 = vcmp.ge.f32.partialorder %v176, 0.0
  %vm219 = vcmp.ge.f32.partialorder %v181, 0.0
  %vm220 = vcmp.ge.f32.partialorder %v184, 0.0
  %vm221 = vcmp.ge.f32.partialorder %v189, 0.0
  %vm222 = vcmp.ge.f32.partialorder %v192, 0.0
  %vm223 = vcmp.ge.f32.partialorder %v197, 0.0
  %vm224 = vcmp.ge.f32.partialorder %v200, 0.0
  %vm225 = vcmp.ge.f32.partialorder %v205, 0.0
  %vm226 = vcmp.ge.f32.partialorder %v208, 0.0
  %v227 = vld [vmem:[%s3] sm:$0x1]
  %v229 = vlaneseq
  %v230 = vshrl.u32 %v229, 7
  %v231 = vsub.s32 0, %v230
  %v232 = vrot.slane %v227, %v231
  %v234 = vmul.f32 %v232, %v149
  %v235 = vmul.f32 %v232, %v152
  %v236 = vmul.f32 %v232, %v157
  %v237 = vmul.f32 %v232, %v160
  %v238 = vmul.f32 %v232, %v165
  %v239 = vmul.f32 %v232, %v168
  %v240 = vmul.f32 %v232, %v173
  %v241 = vmul.f32 %v232, %v176
  %v242 = vmul.f32 %v232, %v181
  %v243 = vmul.f32 %v232, %v184
  %v244 = vmul.f32 %v232, %v189
  %v245 = vmul.f32 %v232, %v192
  %v246 = vmul.f32 %v232, %v197
  %v247 = vmul.f32 %v232, %v200
  %v248 = vmul.f32 %v232, %v205
  %v249 = vmul.f32 %v232, %v208
  %v250 = vsel %vm211, %v149, %v234
  %v251 = vsel %vm212, %v152, %v235
  %v252 = vsel %vm213, %v157, %v236
  %v253 = vsel %vm214, %v160, %v237
  %v254 = vsel %vm215, %v165, %v238
  %v255 = vsel %vm216, %v168, %v239
  %v256 = vsel %vm217, %v173, %v240
  %v257 = vsel %vm218, %v176, %v241
  %v258 = vsel %vm219, %v181, %v242
  %v259 = vsel %vm220, %v184, %v243
  %v260 = vsel %vm221, %v189, %v244
  %v261 = vsel %vm222, %v192, %v245
  %v262 = vsel %vm223, %v197, %v246
  %v263 = vsel %vm224, %v200, %v247
  %v264 = vsel %vm225, %v205, %v248
  %v265 = vsel %vm226, %v208, %v249
  %v266 = vpack.c.bf16 %v251, %v250
  %v267 = vpack.c.bf16 %v253, %v252
  %v268 = vpack.c.bf16 %v255, %v254
  %v269 = vpack.c.bf16 %v257, %v256
  %v270 = vpack.c.bf16 %v259, %v258
  %v271 = vpack.c.bf16 %v261, %v260
  %v272 = vpack.c.bf16 %v263, %v262
  %v273 = vpack.c.bf16 %v265, %v264
  %v282 = vunpack.c.l.b16 %v266
  %v283 = vunpack.c.h.b16 %v266
  %v284 = vunpack.c.l.b16 %v267
  %v285 = vunpack.c.h.b16 %v267
  %v286 = vunpack.c.l.b16 %v268
  %v287 = vunpack.c.h.b16 %v268
  %v288 = vunpack.c.l.b16 %v269
  %v289 = vunpack.c.h.b16 %v269
  %v290 = vunpack.c.l.b16 %v270
  %v291 = vunpack.c.h.b16 %v270
  %v292 = vunpack.c.l.b16 %v271
  %v293 = vunpack.c.h.b16 %v271
  %v294 = vunpack.c.l.b16 %v272
  %v295 = vunpack.c.h.b16 %v272
  %v296 = vunpack.c.l.b16 %v273
  %v297 = vunpack.c.h.b16 %v273
  %v298 = vpack.c.b16 %v282, %v282
  %v299 = vpack.c.b16 %v283, %v283
  %v300 = vpack.c.b16 %v284, %v284
  %v301 = vpack.c.b16 %v285, %v285
  %v302 = vpack.c.b16 %v286, %v286
  %v303 = vpack.c.b16 %v287, %v287
  %v304 = vpack.c.b16 %v288, %v288
  %v305 = vpack.c.b16 %v289, %v289
  %v306 = vpack.c.b16 %v290, %v290
  %v307 = vpack.c.b16 %v291, %v291
  %v308 = vpack.c.b16 %v292, %v292
  %v309 = vpack.c.b16 %v293, %v293
  %v310 = vpack.c.b16 %v294, %v294
  %v311 = vpack.c.b16 %v295, %v295
  %v312 = vpack.c.b16 %v296, %v296
  %v313 = vpack.c.b16 %v297, %v297
  %vm330 = vcmask 27648
  %331 = vst.msk [vmem:[%s4] sm:$0xf] %vm330, %v298
  %332 = vst.msk [vmem:[%s4 + $0x4] sm:$0xf] %vm330, %v299
  %333 = vst.msk [vmem:[%s4 + $0x8] sm:$0xf] %vm330, %v300
  %334 = vst.msk [vmem:[%s4 + $0xc] sm:$0xf] %vm330, %v301
  %335 = vst.msk [vmem:[%s4 + $0x10] sm:$0xf] %vm330, %v302
  %336 = vst.msk [vmem:[%s4 + $0x14] sm:$0xf] %vm330, %v303
  %337 = vst.msk [vmem:[%s4 + $0x18] sm:$0xf] %vm330, %v304
  %338 = vst.msk [vmem:[%s4 + $0x1c] sm:$0xf] %vm330, %v305
  %339 = vst.msk [vmem:[%s4 + $0x20] sm:$0xf] %vm330, %v306
  %340 = vst.msk [vmem:[%s4 + $0x24] sm:$0xf] %vm330, %v307
  %341 = vst.msk [vmem:[%s4 + $0x28] sm:$0xf] %vm330, %v308
  %342 = vst.msk [vmem:[%s4 + $0x2c] sm:$0xf] %vm330, %v309
  %343 = vst.msk [vmem:[%s4 + $0x30] sm:$0xf] %vm330, %v310
  %344 = vst.msk [vmem:[%s4 + $0x34] sm:$0xf] %vm330, %v311
  %345 = vst.msk [vmem:[%s4 + $0x38] sm:$0xf] %vm330, %v312
  %346 = vst.msk [vmem:[%s4 + $0x3c] sm:$0xf] %vm330, %v313
  // Predicated region
  $region18: #{enet_forward.189} parent=0 // pred_check
    _
  $region19: #{enet_forward.189} parent=0 // pred_check_branch
    %348 = sbr.rel (0) target = $region21
  $region20: #{enet_forward.189} parent=0 // pred_region
    _
  $region21: #{enet_forward.189} parent=0 // pred_fallthru
    _
  // Predicated region
  $region22: #{enet_forward.189} parent=0 // pred_check
    _
  $region23: #{enet_forward.189} parent=0 // pred_check_branch
    %350 = sbr.rel (0) target = $region25
  $region24: #{enet_forward.189} parent=0 // pred_region
    _
  $region25: #{enet_forward.189} parent=0 // pred_fallthru
    _

// kernel: enet_forward.188
$region0: #{enet_forward.188}
  #allocation0 [shape = 'u32[]', space=smem, size = 0x4, offset = 0x4, fixed_abs, tag = 'smem constant byte address 0x4 - core index']
  #allocation1 [shape = 'u32[144,128]{1,0:T(1,128)}', space=vmem, size = 0x12000, scoped, tag = 'internal scratch']
  %s0 = inlined_call_operand.vmem [shape: bf16[128,4], index: 0, kind: input, shape index: {}]
  %s1 = inlined_call_operand.vmem [shape: bf16[4,16], index: 1, kind: input, shape index: {}]
  %s2 = inlined_call_operand.vmem [shape: f32[1,16], index: 2, kind: input, shape index: {}]
  %s3 = inlined_call_operand.vmem [shape: f32[1,16], index: 3, kind: input, shape index: {}]
  %s4 = inlined_call_operand.vmem [shape: f32[1,16], index: 4, kind: input, shape index: {}]
  %s5 = inlined_call_operand.vmem [shape: bf16[128,16], index: 5, kind: input, shape index: {}]
  %s6 = inlined_call_operand.vmem [shape: bf16[128,16], index: 6, kind: output, shape index: {}]
  %s7 = sld [smem:[#allocation0]]
  $region34: #{enet_forward.188} parent=0
    _
  %s9 = ssub.s32 1, %s7
  %s10 = scalar_select 0, %s9, %s7
  // Predicated region
  $region2: #{enet_forward.188} parent=0 // pred_check
    _
  $region3: #{enet_forward.188} parent=0 // pred_check_branch
    %12 = sbr.rel (0) target = $region5
  $region4: #{enet_forward.188} parent=0 // pred_region
    _
  $region5: #{enet_forward.188} parent=0 // pred_fallthru
    _
  // Predicated region
  $region6: #{enet_forward.188} parent=0 // pred_check
    _
  $region7: #{enet_forward.188} parent=0 // pred_check_branch
    %14 = sbr.rel (0) target = $region9
  $region8: #{enet_forward.188} parent=0 // pred_region
    _
  $region9: #{enet_forward.188} parent=0 // pred_fallthru
    _
  // Predicated region
  $region10: #{enet_forward.188} parent=0 // pred_check
    _
  $region11: #{enet_forward.188} parent=0 // pred_check_branch
    %16 = sbr.rel (0) target = $region13
  $region12: #{enet_forward.188} parent=0 // pred_region
    _
  $region13: #{enet_forward.188} parent=0 // pred_fallthru
    _
  // Predicated region
  $region14: #{enet_forward.188} parent=0 // pred_check
    _
  $region15: #{enet_forward.188} parent=0 // pred_check_branch
    %18 = sbr.rel (0) target = $region17
  $region16: #{enet_forward.188} parent=0 // pred_region
    _
  $region17: #{enet_forward.188} parent=0 // pred_fallthru
    _
  // Predicated region
  $region18: #{enet_forward.188} parent=0 // pred_check
    _
  $region19: #{enet_forward.188} parent=0 // pred_check_branch
    %20 = sbr.rel (0) target = $region21
  $region20: #{enet_forward.188} parent=0 // pred_region
    _
  $region21: #{enet_forward.188} parent=0 // pred_fallthru
    _
  // Predicated region
  $region22: #{enet_forward.188} parent=0 // pred_check
    _
  $region23: #{enet_forward.188} parent=0 // pred_check_branch
    %22 = sbr.rel (0) target = $region25
  $region24: #{enet_forward.188} parent=0 // pred_region
    _
  $region25: #{enet_forward.188} parent=0 // pred_fallthru
    _
  %v24 = vld [vmem:[%s0] sm:$0xf]
  %v25 = vld [vmem:[%s0 + $0x4] sm:$0xf]
  %v26 = vld [vmem:[%s0 + $0x8] sm:$0xf]
  %v27 = vld [vmem:[%s0 + $0xc] sm:$0xf]
  %v28 = vld [vmem:[%s0 + $0x10] sm:$0xf]
  %v29 = vld [vmem:[%s0 + $0x14] sm:$0xf]
  %v30 = vld [vmem:[%s0 + $0x18] sm:$0xf]
  %v31 = vld [vmem:[%s0 + $0x1c] sm:$0xf]
  %v32 = vld [vmem:[%s0 + $0x20] sm:$0xf]
  %v33 = vld [vmem:[%s0 + $0x24] sm:$0xf]
  %v34 = vld [vmem:[%s0 + $0x28] sm:$0xf]
  %v35 = vld [vmem:[%s0 + $0x2c] sm:$0xf]
  %v36 = vld [vmem:[%s0 + $0x30] sm:$0xf]
  %v37 = vld [vmem:[%s0 + $0x34] sm:$0xf]
  %v38 = vld [vmem:[%s0 + $0x38] sm:$0xf]
  %v39 = vld [vmem:[%s0 + $0x3c] sm:$0xf]
  %v40 = vld [vmem:[%s1] sm:$0x3]
  %v41 = vld [vmem:[%s2] sm:$0x1]
  %v43 = vlaneseq
  %v44 = vshrl.u32 %v43, 7
  %v45 = vsub.s32 0, %v44
  %v46 = vrot.slane %v41, %v45
  %v64 = vunpack.c.l.b16 %v24
  %v65 = vunpack.c.l.b16 %v25
  %v66 = vunpack.c.l.b16 %v26
  %v67 = vunpack.c.l.b16 %v27
  %v68 = vunpack.c.l.b16 %v28
  %v69 = vunpack.c.l.b16 %v29
  %v70 = vunpack.c.l.b16 %v30
  %v71 = vunpack.c.l.b16 %v31
  %v72 = vunpack.c.l.b16 %v32
  %v73 = vunpack.c.l.b16 %v33
  %v74 = vunpack.c.l.b16 %v34
  %v75 = vunpack.c.l.b16 %v35
  %v76 = vunpack.c.l.b16 %v36
  %v77 = vunpack.c.l.b16 %v37
  %v78 = vunpack.c.l.b16 %v38
  %v79 = vunpack.c.l.b16 %v39
  %v80 = vpack.c.b16 %v65, %v64
  %v81 = vpack.c.b16 %v67, %v66
  %v82 = vpack.c.b16 %v69, %v68
  %v83 = vpack.c.b16 %v71, %v70
  %v84 = vpack.c.b16 %v73, %v72
  %v85 = vpack.c.b16 %v75, %v74
  %v86 = vpack.c.b16 %v77, %v76
  %v87 = vpack.c.b16 %v79, %v78
  %vm88 = vcmask 31744
  %v90 = vsel %vm88, %v80, 0
  %v93 = vsel %vm88, %v81, 0
  %v96 = vsel %vm88, %v82, 0
  %v99 = vsel %vm88, %v83, 0
  %v102 = vsel %vm88, %v84, 0
  %v105 = vsel %vm88, %v85, 0
  %v108 = vsel %vm88, %v86, 0
  %v111 = vsel %vm88, %v87, 0
  %vm113 = vcmask 1041408
  %v115 = vsel %vm113, %v40, 0
  %117 = vmatprep.subr.bf16.mxu0 0
  %118 = vmatpush1.bf16.msra.mxu0 0
  %119 = vmatprep.subr.bf16.mxu0 0
  %120 = vmatpush1.bf16.msra.mxu0 0
  %121 = vmatprep.subr.bf16.mxu0 0
  %122 = vmatpush1.bf16.msra.mxu0 0
  %123 = vmatprep.subr.bf16.mxu0 0
  %124 = vmatpush1.bf16.msra.mxu0 0
  %125 = vmatprep.subr.bf16.mxu0 0
  %126 = vmatpush1.bf16.msra.mxu0 0
  %127 = vmatprep.subr.bf16.mxu0 0
  %128 = vmatpush1.bf16.msra.mxu0 0
  %129 = vmatprep.subr.bf16.mxu0 0
  %130 = vmatpush1.bf16.msra.mxu0 0
  %131 = vmatprep.subr.bf16.mxu0 0
  %132 = vmatpush1.bf16.msra.mxu0 %v115
  %133 = vmatprep.subr.bf16.mxu0 0
  %134 = vmatpush2.bf16.msra.mxu0 0
  %135 = vmatprep.subr.bf16.mxu0 0
  %136 = vmatpush2.bf16.msra.mxu0 0
  %137 = vmatprep.subr.bf16.mxu0 0
  %138 = vmatpush2.bf16.msra.mxu0 0
  %139 = vmatprep.subr.bf16.mxu0 0
  %140 = vmatpush2.bf16.msra.mxu0 0
  %141 = vmatprep.subr.bf16.mxu0 0
  %142 = vmatpush2.bf16.msra.mxu0 0
  %143 = vmatprep.subr.bf16.mxu0 0
  %144 = vmatpush2.bf16.msra.mxu0 0
  %145 = vmatprep.subr.bf16.mxu0 0
  %146 = vmatpush2.bf16.msra.mxu0 0
  %147 = vmatprep.subr.bf16.mxu0 0
  %148 = vmatpush2.bf16.msra.mxu0 0
  %149 = vmatprep.mubr.bf16.mxu0 0
  %150 = vmatmul.mubr.bf16.gmra.mxu0 %v90
  %v151 = vpop.f32.mrf.mxu0
  %v152 = vadd.f32 %v46, %v151
  %v153 = vpop.f32.mrf.mxu0
  %v154 = vpop.f32.mrf.mxu0
  %v155 = vadd.f32 %v46, %v154
  %v156 = vpop.f32.mrf.mxu0
  %157 = vmatprep.mubr.bf16.mxu0 0
  %158 = vmatmul.mubr.bf16.gmra.mxu0 %v93
  %v159 = vpop.f32.mrf.mxu0
  %v160 = vadd.f32 %v46, %v159
  %v161 = vpop.f32.mrf.mxu0
  %v162 = vpop.f32.mrf.mxu0
  %v163 = vadd.f32 %v46, %v162
  %v164 = vpop.f32.mrf.mxu0
  %165 = vmatprep.mubr.bf16.mxu0 0
  %166 = vmatmul.mubr.bf16.gmra.mxu0 %v96
  %v167 = vpop.f32.mrf.mxu0
  %v168 = vadd.f32 %v46, %v167
  %v169 = vpop.f32.mrf.mxu0
  %v170 = vpop.f32.mrf.mxu0
  %v171 = vadd.f32 %v46, %v170
  %v172 = vpop.f32.mrf.mxu0
  %173 = vmatprep.mubr.bf16.mxu0 0
  %174 = vmatmul.mubr.bf16.gmra.mxu0 %v99
  %v175 = vpop.f32.mrf.mxu0
  %v176 = vadd.f32 %v46, %v175
  %v177 = vpop.f32.mrf.mxu0
  %v178 = vpop.f32.mrf.mxu0
  %v179 = vadd.f32 %v46, %v178
  %v180 = vpop.f32.mrf.mxu0
  %181 = vmatprep.mubr.bf16.mxu0 0
  %182 = vmatmul.mubr.bf16.gmra.mxu0 %v102
  %v183 = vpop.f32.mrf.mxu0
  %v184 = vadd.f32 %v46, %v183
  %v185 = vpop.f32.mrf.mxu0
  %v186 = vpop.f32.mrf.mxu0
  %v187 = vadd.f32 %v46, %v186
  %v188 = vpop.f32.mrf.mxu0
  %189 = vmatprep.mubr.bf16.mxu0 0
  %190 = vmatmul.mubr.bf16.gmra.mxu0 %v105
  %v191 = vpop.f32.mrf.mxu0
  %v192 = vadd.f32 %v46, %v191
  %v193 = vpop.f32.mrf.mxu0
  %v194 = vpop.f32.mrf.mxu0
  %v195 = vadd.f32 %v46, %v194
  %v196 = vpop.f32.mrf.mxu0
  %197 = vmatprep.mubr.bf16.mxu0 0
  %198 = vmatmul.mubr.bf16.gmra.mxu0 %v108
  %v199 = vpop.f32.mrf.mxu0
  %v200 = vadd.f32 %v46, %v199
  %v201 = vpop.f32.mrf.mxu0
  %v202 = vpop.f32.mrf.mxu0
  %v203 = vadd.f32 %v46, %v202
  %v204 = vpop.f32.mrf.mxu0
  %205 = vmatprep.mubr.bf16.mxu0 0
  %206 = vmatmul.mubr.bf16.gmra.mxu0 %v111
  %v207 = vpop.f32.mrf.mxu0
  %v208 = vadd.f32 %v46, %v207
  %v209 = vpop.f32.mrf.mxu0
  %v210 = vpop.f32.mrf.mxu0
  %v211 = vadd.f32 %v46, %v210
  %v212 = vpop.f32.mrf.mxu0
  %213 = vdwg.mxu0
  %vm214 = vcmp.ge.f32.partialorder %v152, 0.0
  %vm215 = vcmp.ge.f32.partialorder %v155, 0.0
  %vm216 = vcmp.ge.f32.partialorder %v160, 0.0
  %vm217 = vcmp.ge.f32.partialorder %v163, 0.0
  %vm218 = vcmp.ge.f32.partialorder %v168, 0.0
  %vm219 = vcmp.ge.f32.partialorder %v171, 0.0
  %vm220 = vcmp.ge.f32.partialorder %v176, 0.0
  %vm221 = vcmp.ge.f32.partialorder %v179, 0.0
  %vm222 = vcmp.ge.f32.partialorder %v184, 0.0
  %vm223 = vcmp.ge.f32.partialorder %v187, 0.0
  %vm224 = vcmp.ge.f32.partialorder %v192, 0.0
  %vm225 = vcmp.ge.f32.partialorder %v195, 0.0
  %vm226 = vcmp.ge.f32.partialorder %v200, 0.0
  %vm227 = vcmp.ge.f32.partialorder %v203, 0.0
  %vm228 = vcmp.ge.f32.partialorder %v208, 0.0
  %vm229 = vcmp.ge.f32.partialorder %v211, 0.0
  %v230 = vld [vmem:[%s3] sm:$0x1]
  %v232 = vlaneseq
  %v233 = vshrl.u32 %v232, 7
  %v234 = vsub.s32 0, %v233
  %v235 = vrot.slane %v230, %v234
  %v237 = vmul.f32 %v235, %v152
  %v238 = vmul.f32 %v235, %v155
  %v239 = vmul.f32 %v235, %v160
  %v240 = vmul.f32 %v235, %v163
  %v241 = vmul.f32 %v235, %v168
  %v242 = vmul.f32 %v235, %v171
  %v243 = vmul.f32 %v235, %v176
  %v244 = vmul.f32 %v235, %v179
  %v245 = vmul.f32 %v235, %v184
  %v246 = vmul.f32 %v235, %v187
  %v247 = vmul.f32 %v235, %v192
  %v248 = vmul.f32 %v235, %v195
  %v249 = vmul.f32 %v235, %v200
  %v250 = vmul.f32 %v235, %v203
  %v251 = vmul.f32 %v235, %v208
  %v252 = vmul.f32 %v235, %v211
  %v253 = vsel %vm214, %v152, %v237
  %v254 = vsel %vm215, %v155, %v238
  %v255 = vsel %vm216, %v160, %v239
  %v256 = vsel %vm217, %v163, %v240
  %v257 = vsel %vm218, %v168, %v241
  %v258 = vsel %vm219, %v171, %v242
  %v259 = vsel %vm220, %v176, %v243
  %v260 = vsel %vm221, %v179, %v244
  %v261 = vsel %vm222, %v184, %v245
  %v262 = vsel %vm223, %v187, %v246
  %v263 = vsel %vm224, %v192, %v247
  %v264 = vsel %vm225, %v195, %v248
  %v265 = vsel %vm226, %v200, %v249
  %v266 = vsel %vm227, %v203, %v250
  %v267 = vsel %vm228, %v208, %v251
  %v268 = vsel %vm229, %v211, %v252
  %v269 = vld [vmem:[%s5] sm:$0xf]
  %v270 = vld [vmem:[%s5 + $0x4] sm:$0xf]
  %v271 = vld [vmem:[%s5 + $0x8] sm:$0xf]
  %v272 = vld [vmem:[%s5 + $0xc] sm:$0xf]
  %v273 = vld [vmem:[%s5 + $0x10] sm:$0xf]
  %v274 = vld [vmem:[%s5 + $0x14] sm:$0xf]
  %v275 = vld [vmem:[%s5 + $0x18] sm:$0xf]
  %v276 = vld [vmem:[%s5 + $0x1c] sm:$0xf]
  %v277 = vld [vmem:[%s5 + $0x20] sm:$0xf]
  %v278 = vld [vmem:[%s5 + $0x24] sm:$0xf]
  %v279 = vld [vmem:[%s5 + $0x28] sm:$0xf]
  %v280 = vld [vmem:[%s5 + $0x2c] sm:$0xf]
  %v281 = vld [vmem:[%s5 + $0x30] sm:$0xf]
  %v282 = vld [vmem:[%s5 + $0x34] sm:$0xf]
  %v283 = vld [vmem:[%s5 + $0x38] sm:$0xf]
  %v284 = vld [vmem:[%s5 + $0x3c] sm:$0xf]
  %v285 = vunpack.c.l.bf16 %v269
  %v286 = vunpack.c.l.bf16 %v270
  %v287 = vunpack.c.l.bf16 %v271
  %v288 = vunpack.c.l.bf16 %v272
  %v289 = vunpack.c.l.bf16 %v273
  %v290 = vunpack.c.l.bf16 %v274
  %v291 = vunpack.c.l.bf16 %v275
  %v292 = vunpack.c.l.bf16 %v276
  %v293 = vunpack.c.l.bf16 %v277
  %v294 = vunpack.c.l.bf16 %v278
  %v295 = vunpack.c.l.bf16 %v279
  %v296 = vunpack.c.l.bf16 %v280
  %v297 = vunpack.c.l.bf16 %v281
  %v298 = vunpack.c.l.bf16 %v282
  %v299 = vunpack.c.l.bf16 %v283
  %v300 = vunpack.c.l.bf16 %v284
  %v301 = vadd.f32 %v253, %v285
  %v302 = vadd.f32 %v254, %v286
  %v303 = vadd.f32 %v255, %v287
  %v304 = vadd.f32 %v256, %v288
  %v305 = vadd.f32 %v257, %v289
  %v306 = vadd.f32 %v258, %v290
  %v307 = vadd.f32 %v259, %v291
  %v308 = vadd.f32 %v260, %v292
  %v309 = vadd.f32 %v261, %v293
  %v310 = vadd.f32 %v262, %v294
  %v311 = vadd.f32 %v263, %v295
  %v312 = vadd.f32 %v264, %v296
  %v313 = vadd.f32 %v265, %v297
  %v314 = vadd.f32 %v266, %v298
  %v315 = vadd.f32 %v267, %v299
  %v316 = vadd.f32 %v268, %v300
  %vm317 = vcmp.ge.f32.partialorder %v301, 0.0
  %vm318 = vcmp.ge.f32.partialorder %v302, 0.0
  %vm319 = vcmp.ge.f32.partialorder %v303, 0.0
  %vm320 = vcmp.ge.f32.partialorder %v304, 0.0
  %vm321 = vcmp.ge.f32.partialorder %v305, 0.0
  %vm322 = vcmp.ge.f32.partialorder %v306, 0.0
  %vm323 = vcmp.ge.f32.partialorder %v307, 0.0
  %vm324 = vcmp.ge.f32.partialorder %v308, 0.0
  %vm325 = vcmp.ge.f32.partialorder %v309, 0.0
  %vm326 = vcmp.ge.f32.partialorder %v310, 0.0
  %vm327 = vcmp.ge.f32.partialorder %v311, 0.0
  %vm328 = vcmp.ge.f32.partialorder %v312, 0.0
  %vm329 = vcmp.ge.f32.partialorder %v313, 0.0
  %vm330 = vcmp.ge.f32.partialorder %v314, 0.0
  %vm331 = vcmp.ge.f32.partialorder %v315, 0.0
  %vm332 = vcmp.ge.f32.partialorder %v316, 0.0
  %v333 = vld [vmem:[%s4] sm:$0x1]
  %v335 = vlaneseq
  %v336 = vshrl.u32 %v335, 7
  %v337 = vsub.s32 0, %v336
  %v338 = vrot.slane %v333, %v337
  %v340 = vmul.f32 %v338, %v301
  %v341 = vmul.f32 %v338, %v302
  %v342 = vmul.f32 %v338, %v303
  %v343 = vmul.f32 %v338, %v304
  %v344 = vmul.f32 %v338, %v305
  %v345 = vmul.f32 %v338, %v306
  %v346 = vmul.f32 %v338, %v307
  %v347 = vmul.f32 %v338, %v308
  %v348 = vmul.f32 %v338, %v309
  %v349 = vmul.f32 %v338, %v310
  %v350 = vmul.f32 %v338, %v311
  %v351 = vmul.f32 %v338, %v312
  %v352 = vmul.f32 %v338, %v313
  %v353 = vmul.f32 %v338, %v314
  %v354 = vmul.f32 %v338, %v315
  %v355 = vmul.f32 %v338, %v316
  %v356 = vsel %vm317, %v301, %v340
  %v357 = vsel %vm318, %v302, %v341
  %v358 = vsel %vm319, %v303, %v342
  %v359 = vsel %vm320, %v304, %v343
  %v360 = vsel %vm321, %v305, %v344
  %v361 = vsel %vm322, %v306, %v345
  %v362 = vsel %vm323, %v307, %v346
  %v363 = vsel %vm324, %v308, %v347
  %v364 = vsel %vm325, %v309, %v348
  %v365 = vsel %vm326, %v310, %v349
  %v366 = vsel %vm327, %v311, %v350
  %v367 = vsel %vm328, %v312, %v351
  %v368 = vsel %vm329, %v313, %v352
  %v369 = vsel %vm330, %v314, %v353
  %v370 = vsel %vm331, %v315, %v354
  %v371 = vsel %vm332, %v316, %v355
  %v372 = vpack.c.bf16 %v357, %v356
  %v373 = vpack.c.bf16 %v359, %v358
  %v374 = vpack.c.bf16 %v361, %v360
  %v375 = vpack.c.bf16 %v363, %v362
  %v376 = vpack.c.bf16 %v365, %v364
  %v377 = vpack.c.bf16 %v367, %v366
  %v378 = vpack.c.bf16 %v369, %v368
  %v379 = vpack.c.bf16 %v371, %v370
  %v388 = vunpack.c.l.b16 %v372
  %v389 = vunpack.c.h.b16 %v372
  %v390 = vunpack.c.l.b16 %v373
  %v391 = vunpack.c.h.b16 %v373
  %v392 = vunpack.c.l.b16 %v374
  %v393 = vunpack.c.h.b16 %v374
  %v394 = vunpack.c.l.b16 %v375
  %v395 = vunpack.c.h.b16 %v375
  %v396 = vunpack.c.l.b16 %v376
  %v397 = vunpack.c.h.b16 %v376
  %v398 = vunpack.c.l.b16 %v377
  %v399 = vunpack.c.h.b16 %v377
  %v400 = vunpack.c.l.b16 %v378
  %v401 = vunpack.c.h.b16 %v378
  %v402 = vunpack.c.l.b16 %v379
  %v403 = vunpack.c.h.b16 %v379
  %v404 = vpack.c.b16 %v388, %v388
  %v405 = vpack.c.b16 %v389, %v389
  %v406 = vpack.c.b16 %v390, %v390
  %v407 = vpack.c.b16 %v391, %v391
  %v408 = vpack.c.b16 %v392, %v392
  %v409 = vpack.c.b16 %v393, %v393
  %v410 = vpack.c.b16 %v394, %v394
  %v411 = vpack.c.b16 %v395, %v395
  %v412 = vpack.c.b16 %v396, %v396
  %v413 = vpack.c.b16 %v397, %v397
  %v414 = vpack.c.b16 %v398, %v398
  %v415 = vpack.c.b16 %v399, %v399
  %v416 = vpack.c.b16 %v400, %v400
  %v417 = vpack.c.b16 %v401, %v401
  %v418 = vpack.c.b16 %v402, %v402
  %v419 = vpack.c.b16 %v403, %v403
  %vm436 = vcmask 125952
  %437 = vst.msk [vmem:[%s6] sm:$0xf] %vm436, %v404
  %438 = vst.msk [vmem:[%s6 + $0x4] sm:$0xf] %vm436, %v405
  %439 = vst.msk [vmem:[%s6 + $0x8] sm:$0xf] %vm436, %v406
  %440 = vst.msk [vmem:[%s6 + $0xc] sm:$0xf] %vm436, %v407
  %441 = vst.msk [vmem:[%s6 + $0x10] sm:$0xf] %vm436, %v408
  %442 = vst.msk [vmem:[%s6 + $0x14] sm:$0xf] %vm436, %v409
  %443 = vst.msk [vmem:[%s6 + $0x18] sm:$0xf] %vm436, %v410
  %444 = vst.msk [vmem:[%s6 + $0x1c] sm:$0xf] %vm436, %v411
  %445 = vst.msk [vmem:[%s6 + $0x20] sm:$0xf] %vm436, %v412
  %446 = vst.msk [vmem:[%s6 + $0x24] sm:$0xf] %vm436, %v413
  %447 = vst.msk [vmem:[%s6 + $0x28] sm:$0xf] %vm436, %v414
  %448 = vst.msk [vmem:[%s6 + $0x2c] sm:$0xf] %vm436, %v415
  %449 = vst.msk [vmem:[%s6 + $0x30] sm:$0xf] %vm436, %v416
  %450 = vst.msk [vmem:[%s6 + $0x34] sm:$0xf] %vm436, %v417
  %451 = vst.msk [vmem:[%s6 + $0x38] sm:$0xf] %vm436, %v418
  %452 = vst.msk [vmem:[%s6 + $0x3c] sm:$0xf] %vm436, %v419
  // Predicated region
  $region26: #{enet_forward.188} parent=0 // pred_check
    _
  $region27: #{enet_forward.188} parent=0 // pred_check_branch
    %454 = sbr.rel (0) target = $region29
  $region28: #{enet_forward.188} parent=0 // pred_region
    _
  $region29: #{enet_forward.188} parent=0 // pred_fallthru
    _
  // Predicated region
  $region30: #{enet_forward.188} parent=0 // pred_check
    _
  $region31: #{enet_forward.188} parent=0 // pred_check_branch
    %456 = sbr.rel (0) target = $region33
  $region32: #{enet_forward.188} parent=0 // pred_region
    _
  $region33: #{enet_forward.188} parent=0 // pred_fallthru
    _

// kernel: enet_forward.190
$region0: #{enet_forward.190}
  #allocation0 [shape = 'u32[]', space=smem, size = 0x4, offset = 0x4, fixed_abs, tag = 'smem constant byte address 0x4 - core index']
  #allocation1 [shape = 'u32[144,128]{1,0:T(1,128)}', space=vmem, size = 0x12000, scoped, tag = 'internal scratch']
  %s0 = inlined_call_operand.vmem [shape: bf16[128,36], index: 0, kind: input, shape index: {}]
  %s1 = inlined_call_operand.vmem [shape: bf16[36,4], index: 1, kind: input, shape index: {}]
  %s2 = inlined_call_operand.vmem [shape: f32[1,4], index: 2, kind: input, shape index: {}]
  %s3 = inlined_call_operand.vmem [shape: f32[1,4], index: 3, kind: input, shape index: {}]
  %s4 = inlined_call_operand.vmem [shape: bf16[128,4], index: 4, kind: output, shape index: {}]
  %s5 = sld [smem:[#allocation0]]
  $region26: #{enet_forward.190} parent=0
    _
  %s7 = ssub.s32 1, %s5
  %s8 = scalar_select 0, %s7, %s5
  // Predicated region
  $region2: #{enet_forward.190} parent=0 // pred_check
    _
  $region3: #{enet_forward.190} parent=0 // pred_check_branch
    %10 = sbr.rel (0) target = $region5
  $region4: #{enet_forward.190} parent=0 // pred_region
    _
  $region5: #{enet_forward.190} parent=0 // pred_fallthru
    _
  // Predicated region
  $region6: #{enet_forward.190} parent=0 // pred_check
    _
  $region7: #{enet_forward.190} parent=0 // pred_check_branch
    %12 = sbr.rel (0) target = $region9
  $region8: #{enet_forward.190} parent=0 // pred_region
    _
  $region9: #{enet_forward.190} parent=0 // pred_fallthru
    _
  // Predicated region
  $region10: #{enet_forward.190} parent=0 // pred_check
    _
  $region11: #{enet_forward.190} parent=0 // pred_check_branch
    %14 = sbr.rel (0) target = $region13
  $region12: #{enet_forward.190} parent=0 // pred_region
    _
  $region13: #{enet_forward.190} parent=0 // pred_fallthru
    _
  // Predicated region
  $region14: #{enet_forward.190} parent=0 // pred_check
    _
  $region15: #{enet_forward.190} parent=0 // pred_check_branch
    %16 = sbr.rel (0) target = $region17
  $region16: #{enet_forward.190} parent=0 // pred_region
    _
  $region17: #{enet_forward.190} parent=0 // pred_fallthru
    _
  %v18 = vld [vmem:[%s0] sm:$0xf]
  %v19 = vld [vmem:[%s0 + $0x4] sm:$0xf]
  %v20 = vld [vmem:[%s0 + $0x8] sm:$0xf]
  %v21 = vld [vmem:[%s0 + $0xc] sm:$0xf]
  %v22 = vld [vmem:[%s0 + $0x10] sm:$0xf]
  %v23 = vld [vmem:[%s0 + $0x14] sm:$0xf]
  %v24 = vld [vmem:[%s0 + $0x18] sm:$0xf]
  %v25 = vld [vmem:[%s0 + $0x1c] sm:$0xf]
  %v26 = vld [vmem:[%s0 + $0x20] sm:$0xf]
  %v27 = vld [vmem:[%s0 + $0x24] sm:$0xf]
  %v28 = vld [vmem:[%s0 + $0x28] sm:$0xf]
  %v29 = vld [vmem:[%s0 + $0x2c] sm:$0xf]
  %v30 = vld [vmem:[%s0 + $0x30] sm:$0xf]
  %v31 = vld [vmem:[%s0 + $0x34] sm:$0xf]
  %v32 = vld [vmem:[%s0 + $0x38] sm:$0xf]
  %v33 = vld [vmem:[%s0 + $0x3c] sm:$0xf]
  %v34 = vld [vmem:[%s1] sm:$0xf]
  %v35 = vld [vmem:[%s1 + $0x4] sm:$0xf]
  %v36 = vld [vmem:[%s1 + $0x8] sm:$0xf]
  %v37 = vld [vmem:[%s1 + $0xc] sm:$0xf]
  %v38 = vld [vmem:[%s1 + $0x10] sm:$0x3]
  %v39 = vld [vmem:[%s2] sm:$0x1]
  %v41 = vlaneseq
  %v42 = vshrl.u32 %v41, 7
  %v43 = vsub.s32 0, %v42
  %v44 = vrot.slane %v39, %v43
  %v62 = vunpack.c.l.b16 %v18
  %v63 = vunpack.c.l.b16 %v19
  %v64 = vunpack.c.l.b16 %v20
  %v65 = vunpack.c.l.b16 %v21
  %v66 = vunpack.c.l.b16 %v22
  %v67 = vunpack.c.l.b16 %v23
  %v68 = vunpack.c.l.b16 %v24
  %v69 = vunpack.c.l.b16 %v25
  %v70 = vunpack.c.l.b16 %v26
  %v71 = vunpack.c.l.b16 %v27
  %v72 = vunpack.c.l.b16 %v28
  %v73 = vunpack.c.l.b16 %v29
  %v74 = vunpack.c.l.b16 %v30
  %v75 = vunpack.c.l.b16 %v31
  %v76 = vunpack.c.l.b16 %v32
  %v77 = vunpack.c.l.b16 %v33
  %v78 = vpack.c.b16 %v63, %v62
  %v79 = vpack.c.b16 %v65, %v64
  %v80 = vpack.c.b16 %v67, %v66
  %v81 = vpack.c.b16 %v69, %v68
  %v82 = vpack.c.b16 %v71, %v70
  %v83 = vpack.c.b16 %v73, %v72
  %v84 = vpack.c.b16 %v75, %v74
  %v85 = vpack.c.b16 %v77, %v76
  %v91 = vunpack.c.l.b16 %v34
  %v92 = vunpack.c.l.b16 %v35
  %v93 = vunpack.c.l.b16 %v36
  %v94 = vunpack.c.l.b16 %v37
  %v95 = vunpack.c.l.b16 %v38
  %v96 = vpack.c.b16 %v92, %v91
  %v97 = vpack.c.b16 %v94, %v93
  %v98 = vpack.c.b16 %v95, %v95
  %vm101 = vcmask 293888
  %v103 = vsel %vm101, %v78, 0
  %v106 = vsel %vm101, %v79, 0
  %v109 = vsel %vm101, %v80, 0
  %v112 = vsel %vm101, %v81, 0
  %v115 = vsel %vm101, %v82, 0
  %v118 = vsel %vm101, %v83, 0
  %v121 = vsel %vm101, %v84, 0
  %v124 = vsel %vm101, %v85, 0
  %vm126 = vcmask 1041408
  %v128 = vsel %vm126, %v98, 0
  %130 = vmatprep.subr.bf16.mxu0 0
  %131 = vmatpush1.bf16.msra.mxu0 0
  %132 = vmatprep.subr.bf16.mxu0 0
  %133 = vmatpush1.bf16.msra.mxu0 0
  %134 = vmatprep.subr.bf16.mxu0 0
  %135 = vmatpush1.bf16.msra.mxu0 0
  %136 = vmatprep.subr.bf16.mxu0 0
  %137 = vmatpush1.bf16.msra.mxu0 0
  %138 = vmatprep.subr.bf16.mxu0 0
  %139 = vmatpush1.bf16.msra.mxu0 0
  %140 = vmatprep.subr.bf16.mxu0 0
  %141 = vmatpush1.bf16.msra.mxu0 %v128
  %142 = vmatprep.subr.bf16.mxu0 0
  %143 = vmatpush1.bf16.msra.mxu0 %v97
  %144 = vmatprep.subr.bf16.mxu0 0
  %145 = vmatpush1.bf16.msra.mxu0 %v96
  %146 = vmatprep.subr.bf16.mxu0 0
  %147 = vmatpush2.bf16.msra.mxu0 0
  %148 = vmatprep.subr.bf16.mxu0 0
  %149 = vmatpush2.bf16.msra.mxu0 0
  %150 = vmatprep.subr.bf16.mxu0 0
  %151 = vmatpush2.bf16.msra.mxu0 0
  %152 = vmatprep.subr.bf16.mxu0 0
  %153 = vmatpush2.bf16.msra.mxu0 0
  %154 = vmatprep.subr.bf16.mxu0 0
  %155 = vmatpush2.bf16.msra.mxu0 0
  %156 = vmatprep.subr.bf16.mxu0 0
  %157 = vmatpush2.bf16.msra.mxu0 0
  %158 = vmatprep.subr.bf16.mxu0 0
  %159 = vmatpush2.bf16.msra.mxu0 0
  %160 = vmatprep.subr.bf16.mxu0 0
  %161 = vmatpush2.bf16.msra.mxu0 0
  %162 = vmatprep.mubr.bf16.mxu0 0
  %163 = vmatmul.mubr.bf16.gmra.mxu0 %v103
  %v164 = vpop.f32.mrf.mxu0
  %v165 = vadd.f32 %v44, %v164
  %v166 = vpop.f32.mrf.mxu0
  %v167 = vpop.f32.mrf.mxu0
  %v168 = vadd.f32 %v44, %v167
  %v169 = vpop.f32.mrf.mxu0
  %170 = vmatprep.mubr.bf16.mxu0 0
  %171 = vmatmul.mubr.bf16.gmra.mxu0 %v106
  %v172 = vpop.f32.mrf.mxu0
  %v173 = vadd.f32 %v44, %v172
  %v174 = vpop.f32.mrf.mxu0
  %v175 = vpop.f32.mrf.mxu0
  %v176 = vadd.f32 %v44, %v175
  %v177 = vpop.f32.mrf.mxu0
  %178 = vmatprep.mubr.bf16.mxu0 0
  %179 = vmatmul.mubr.bf16.gmra.mxu0 %v109
  %v180 = vpop.f32.mrf.mxu0
  %v181 = vadd.f32 %v44, %v180
  %v182 = vpop.f32.mrf.mxu0
  %v183 = vpop.f32.mrf.mxu0
  %v184 = vadd.f32 %v44, %v183
  %v185 = vpop.f32.mrf.mxu0
  %186 = vmatprep.mubr.bf16.mxu0 0
  %187 = vmatmul.mubr.bf16.gmra.mxu0 %v112
  %v188 = vpop.f32.mrf.mxu0
  %v189 = vadd.f32 %v44, %v188
  %v190 = vpop.f32.mrf.mxu0
  %v191 = vpop.f32.mrf.mxu0
  %v192 = vadd.f32 %v44, %v191
  %v193 = vpop.f32.mrf.mxu0
  %194 = vmatprep.mubr.bf16.mxu0 0
  %195 = vmatmul.mubr.bf16.gmra.mxu0 %v115
  %v196 = vpop.f32.mrf.mxu0
  %v197 = vadd.f32 %v44, %v196
  %v198 = vpop.f32.mrf.mxu0
  %v199 = vpop.f32.mrf.mxu0
  %v200 = vadd.f32 %v44, %v199
  %v201 = vpop.f32.mrf.mxu0
  %202 = vmatprep.mubr.bf16.mxu0 0
  %203 = vmatmul.mubr.bf16.gmra.mxu0 %v118
  %v204 = vpop.f32.mrf.mxu0
  %v205 = vadd.f32 %v44, %v204
  %v206 = vpop.f32.mrf.mxu0
  %v207 = vpop.f32.mrf.mxu0
  %v208 = vadd.f32 %v44, %v207
  %v209 = vpop.f32.mrf.mxu0
  %210 = vmatprep.mubr.bf16.mxu0 0
  %211 = vmatmul.mubr.bf16.gmra.mxu0 %v121
  %v212 = vpop.f32.mrf.mxu0
  %v213 = vadd.f32 %v44, %v212
  %v214 = vpop.f32.mrf.mxu0
  %v215 = vpop.f32.mrf.mxu0
  %v216 = vadd.f32 %v44, %v215
  %v217 = vpop.f32.mrf.mxu0
  %218 = vmatprep.mubr.bf16.mxu0 0
  %219 = vmatmul.mubr.bf16.gmra.mxu0 %v124
  %v220 = vpop.f32.mrf.mxu0
  %v221 = vadd.f32 %v44, %v220
  %v222 = vpop.f32.mrf.mxu0
  %v223 = vpop.f32.mrf.mxu0
  %v224 = vadd.f32 %v44, %v223
  %v225 = vpop.f32.mrf.mxu0
  %226 = vdwg.mxu0
  %vm227 = vcmp.ge.f32.partialorder %v165, 0.0
  %vm228 = vcmp.ge.f32.partialorder %v168, 0.0
  %vm229 = vcmp.ge.f32.partialorder %v173, 0.0
  %vm230 = vcmp.ge.f32.partialorder %v176, 0.0
  %vm231 = vcmp.ge.f32.partialorder %v181, 0.0
  %vm232 = vcmp.ge.f32.partialorder %v184, 0.0
  %vm233 = vcmp.ge.f32.partialorder %v189, 0.0
  %vm234 = vcmp.ge.f32.partialorder %v192, 0.0
  %vm235 = vcmp.ge.f32.partialorder %v197, 0.0
  %vm236 = vcmp.ge.f32.partialorder %v200, 0.0
  %vm237 = vcmp.ge.f32.partialorder %v205, 0.0
  %vm238 = vcmp.ge.f32.partialorder %v208, 0.0
  %vm239 = vcmp.ge.f32.partialorder %v213, 0.0
  %vm240 = vcmp.ge.f32.partialorder %v216, 0.0
  %vm241 = vcmp.ge.f32.partialorder %v221, 0.0
  %vm242 = vcmp.ge.f32.partialorder %v224, 0.0
  %v243 = vld [vmem:[%s3] sm:$0x1]
  %v245 = vlaneseq
  %v246 = vshrl.u32 %v245, 7
  %v247 = vsub.s32 0, %v246
  %v248 = vrot.slane %v243, %v247
  %v250 = vmul.f32 %v248, %v165
  %v251 = vmul.f32 %v248, %v168
  %v252 = vmul.f32 %v248, %v173
  %v253 = vmul.f32 %v248, %v176
  %v254 = vmul.f32 %v248, %v181
  %v255 = vmul.f32 %v248, %v184
  %v256 = vmul.f32 %v248, %v189
  %v257 = vmul.f32 %v248, %v192
  %v258 = vmul.f32 %v248, %v197
  %v259 = vmul.f32 %v248, %v200
  %v260 = vmul.f32 %v248, %v205
  %v261 = vmul.f32 %v248, %v208
  %v262 = vmul.f32 %v248, %v213
  %v263 = vmul.f32 %v248, %v216
  %v264 = vmul.f32 %v248, %v221
  %v265 = vmul.f32 %v248, %v224
  %v266 = vsel %vm227, %v165, %v250
  %v267 = vsel %vm228, %v168, %v251
  %v268 = vsel %vm229, %v173, %v252
  %v269 = vsel %vm230, %v176, %v253
  %v270 = vsel %vm231, %v181, %v254
  %v271 = vsel %vm232, %v184, %v255
  %v272 = vsel %vm233, %v189, %v256
  %v273 = vsel %vm234, %v192, %v257
  %v274 = vsel %vm235, %v197, %v258
  %v275 = vsel %vm236, %v200, %v259
  %v276 = vsel %vm237, %v205, %v260
  %v277 = vsel %vm238, %v208, %v261
  %v278 = vsel %vm239, %v213, %v262
  %v279 = vsel %vm240, %v216, %v263
  %v280 = vsel %vm241, %v221, %v264
  %v281 = vsel %vm242, %v224, %v265
  %v282 = vpack.c.bf16 %v267, %v266
  %v283 = vpack.c.bf16 %v269, %v268
  %v284 = vpack.c.bf16 %v271, %v270
  %v285 = vpack.c.bf16 %v273, %v272
  %v286 = vpack.c.bf16 %v275, %v274
  %v287 = vpack.c.bf16 %v277, %v276
  %v288 = vpack.c.bf16 %v279, %v278
  %v289 = vpack.c.bf16 %v281, %v280
  %v298 = vunpack.c.l.b16 %v282
  %v299 = vunpack.c.h.b16 %v282
  %v300 = vunpack.c.l.b16 %v283
  %v301 = vunpack.c.h.b16 %v283
  %v302 = vunpack.c.l.b16 %v284
  %v303 = vunpack.c.h.b16 %v284
  %v304 = vunpack.c.l.b16 %v285
  %v305 = vunpack.c.h.b16 %v285
  %v306 = vunpack.c.l.b16 %v286
  %v307 = vunpack.c.h.b16 %v286
  %v308 = vunpack.c.l.b16 %v287
  %v309 = vunpack.c.h.b16 %v287
  %v310 = vunpack.c.l.b16 %v288
  %v311 = vunpack.c.h.b16 %v288
  %v312 = vunpack.c.l.b16 %v289
  %v313 = vunpack.c.h.b16 %v289
  %v314 = vpack.c.b16 %v298, %v298
  %v315 = vpack.c.b16 %v299, %v299
  %v316 = vpack.c.b16 %v300, %v300
  %v317 = vpack.c.b16 %v301, %v301
  %v318 = vpack.c.b16 %v302, %v302
  %v319 = vpack.c.b16 %v303, %v303
  %v320 = vpack.c.b16 %v304, %v304
  %v321 = vpack.c.b16 %v305, %v305
  %v322 = vpack.c.b16 %v306, %v306
  %v323 = vpack.c.b16 %v307, %v307
  %v324 = vpack.c.b16 %v308, %v308
  %v325 = vpack.c.b16 %v309, %v309
  %v326 = vpack.c.b16 %v310, %v310
  %v327 = vpack.c.b16 %v311, %v311
  %v328 = vpack.c.b16 %v312, %v312
  %v329 = vpack.c.b16 %v313, %v313
  %vm346 = vcmask 27648
  %347 = vst.msk [vmem:[%s4] sm:$0xf] %vm346, %v314
  %348 = vst.msk [vmem:[%s4 + $0x4] sm:$0xf] %vm346, %v315
  %349 = vst.msk [vmem:[%s4 + $0x8] sm:$0xf] %vm346, %v316
  %350 = vst.msk [vmem:[%s4 + $0xc] sm:$0xf] %vm346, %v317
  %351 = vst.msk [vmem:[%s4 + $0x10] sm:$0xf] %vm346, %v318
  %352 = vst.msk [vmem:[%s4 + $0x14] sm:$0xf] %vm346, %v319
  %353 = vst.msk [vmem:[%s4 + $0x18] sm:$0xf] %vm346, %v320
  %354 = vst.msk [vmem:[%s4 + $0x1c] sm:$0xf] %vm346, %v321
  %355 = vst.msk [vmem:[%s4 + $0x20] sm:$0xf] %vm346, %v322
  %356 = vst.msk [vmem:[%s4 + $0x24] sm:$0xf] %vm346, %v323
  %357 = vst.msk [vmem:[%s4 + $0x28] sm:$0xf] %vm346, %v324
  %358 = vst.msk [vmem:[%s4 + $0x2c] sm:$0xf] %vm346, %v325
  %359 = vst.msk [vmem:[%s4 + $0x30] sm:$0xf] %vm346, %v326
  %360 = vst.msk [vmem:[%s4 + $0x34] sm:$0xf] %vm346, %v327
  %361 = vst.msk [vmem:[%s4 + $0x38] sm:$0xf] %vm346, %v328
  %362 = vst.msk [vmem:[%s4 + $0x3c] sm:$0xf] %vm346, %v329
  // Predicated region
  $region18: #{enet_forward.190} parent=0 // pred_check
    _
  $region19: #{enet_forward.190} parent=0 // pred_check_branch
    %364 = sbr.rel (0) target = $region21
  $region20: #{enet_forward.190} parent=0 // pred_region
    _
  $region21: #{enet_forward.190} parent=0 // pred_fallthru
    _
  // Predicated region
  $region22: #{enet_forward.190} parent=0 // pred_check
    _
  $region23: #{enet_forward.190} parent=0 // pred_check_branch
    %366 = sbr.rel (0) target = $region25
  $region24: #{enet_forward.190} parent=0 // pred_region
    _
  $region25: #{enet_forward.190} parent=0 // pred_fallthru
    _

// kernel: enet_forward.193
$region0: #{enet_forward.193}
  #allocation0 [shape = 'u32[]', space=smem, size = 0x4, offset = 0x4, fixed_abs, tag = 'smem constant byte address 0x4 - core index']
  #allocation1 [shape = 'u32[144,128]{1,0:T(1,128)}', space=vmem, size = 0x12000, scoped, tag = 'internal scratch']
  %s0 = inlined_call_operand.vmem [shape: bf16[128,32], index: 0, kind: input, shape index: {}]
  %s1 = inlined_call_operand.vmem [shape: bf16[32,4], index: 1, kind: input, shape index: {}]
  %s2 = inlined_call_operand.vmem [shape: f32[1,4], index: 2, kind: input, shape index: {}]
  %s3 = inlined_call_operand.vmem [shape: f32[1,4], index: 3, kind: input, shape index: {}]
  %s4 = inlined_call_operand.vmem [shape: f32[128,4], index: 4, kind: output, shape index: {}]
  %s5 = sld [smem:[#allocation0]]
  $region26: #{enet_forward.193} parent=0
    _
  %s7 = ssub.s32 1, %s5
  %s8 = scalar_select 0, %s7, %s5
  // Predicated region
  $region2: #{enet_forward.193} parent=0 // pred_check
    _
  $region3: #{enet_forward.193} parent=0 // pred_check_branch
    %10 = sbr.rel (0) target = $region5
  $region4: #{enet_forward.193} parent=0 // pred_region
    _
  $region5: #{enet_forward.193} parent=0 // pred_fallthru
    _
  // Predicated region
  $region6: #{enet_forward.193} parent=0 // pred_check
    _
  $region7: #{enet_forward.193} parent=0 // pred_check_branch
    %12 = sbr.rel (0) target = $region9
  $region8: #{enet_forward.193} parent=0 // pred_region
    _
  $region9: #{enet_forward.193} parent=0 // pred_fallthru
    _
  // Predicated region
  $region10: #{enet_forward.193} parent=0 // pred_check
    _
  $region11: #{enet_forward.193} parent=0 // pred_check_branch
    %14 = sbr.rel (0) target = $region13
  $region12: #{enet_forward.193} parent=0 // pred_region
    _
  $region13: #{enet_forward.193} parent=0 // pred_fallthru
    _
  // Predicated region
  $region14: #{enet_forward.193} parent=0 // pred_check
    _
  $region15: #{enet_forward.193} parent=0 // pred_check_branch
    %16 = sbr.rel (0) target = $region17
  $region16: #{enet_forward.193} parent=0 // pred_region
    _
  $region17: #{enet_forward.193} parent=0 // pred_fallthru
    _
  %v18 = vld [vmem:[%s0] sm:$0xf]
  %v19 = vld [vmem:[%s0 + $0x4] sm:$0xf]
  %v20 = vld [vmem:[%s0 + $0x8] sm:$0xf]
  %v21 = vld [vmem:[%s0 + $0xc] sm:$0xf]
  %v22 = vld [vmem:[%s0 + $0x10] sm:$0xf]
  %v23 = vld [vmem:[%s0 + $0x14] sm:$0xf]
  %v24 = vld [vmem:[%s0 + $0x18] sm:$0xf]
  %v25 = vld [vmem:[%s0 + $0x1c] sm:$0xf]
  %v26 = vld [vmem:[%s0 + $0x20] sm:$0xf]
  %v27 = vld [vmem:[%s0 + $0x24] sm:$0xf]
  %v28 = vld [vmem:[%s0 + $0x28] sm:$0xf]
  %v29 = vld [vmem:[%s0 + $0x2c] sm:$0xf]
  %v30 = vld [vmem:[%s0 + $0x30] sm:$0xf]
  %v31 = vld [vmem:[%s0 + $0x34] sm:$0xf]
  %v32 = vld [vmem:[%s0 + $0x38] sm:$0xf]
  %v33 = vld [vmem:[%s0 + $0x3c] sm:$0xf]
  %v34 = vld [vmem:[%s1] sm:$0xf]
  %v35 = vld [vmem:[%s1 + $0x4] sm:$0xf]
  %v36 = vld [vmem:[%s1 + $0x8] sm:$0xf]
  %v37 = vld [vmem:[%s1 + $0xc] sm:$0xf]
  %v38 = vld [vmem:[%s2] sm:$0x1]
  %v40 = vlaneseq
  %v41 = vshrl.u32 %v40, 7
  %v42 = vsub.s32 0, %v41
  %v43 = vrot.slane %v38, %v42
  %v61 = vunpack.c.l.b16 %v18
  %v62 = vunpack.c.l.b16 %v19
  %v63 = vunpack.c.l.b16 %v20
  %v64 = vunpack.c.l.b16 %v21
  %v65 = vunpack.c.l.b16 %v22
  %v66 = vunpack.c.l.b16 %v23
  %v67 = vunpack.c.l.b16 %v24
  %v68 = vunpack.c.l.b16 %v25
  %v69 = vunpack.c.l.b16 %v26
  %v70 = vunpack.c.l.b16 %v27
  %v71 = vunpack.c.l.b16 %v28
  %v72 = vunpack.c.l.b16 %v29
  %v73 = vunpack.c.l.b16 %v30
  %v74 = vunpack.c.l.b16 %v31
  %v75 = vunpack.c.l.b16 %v32
  %v76 = vunpack.c.l.b16 %v33
  %v77 = vpack.c.b16 %v62, %v61
  %v78 = vpack.c.b16 %v64, %v63
  %v79 = vpack.c.b16 %v66, %v65
  %v80 = vpack.c.b16 %v68, %v67
  %v81 = vpack.c.b16 %v70, %v69
  %v82 = vpack.c.b16 %v72, %v71
  %v83 = vpack.c.b16 %v74, %v73
  %v84 = vpack.c.b16 %v76, %v75
  %v89 = vunpack.c.l.b16 %v34
  %v90 = vunpack.c.l.b16 %v35
  %v91 = vunpack.c.l.b16 %v36
  %v92 = vunpack.c.l.b16 %v37
  %v93 = vpack.c.b16 %v90, %v89
  %v94 = vpack.c.b16 %v92, %v91
  %vm97 = vcmask 261120
  %v99 = vsel %vm97, %v77, 0
  %v102 = vsel %vm97, %v78, 0
  %v105 = vsel %vm97, %v79, 0
  %v108 = vsel %vm97, %v80, 0
  %v111 = vsel %vm97, %v81, 0
  %v114 = vsel %vm97, %v82, 0
  %v117 = vsel %vm97, %v83, 0
  %v120 = vsel %vm97, %v84, 0
  %122 = vmatprep.subr.bf16.mxu0 0
  %123 = vmatpush1.bf16.msra.mxu0 0
  %124 = vmatprep.subr.bf16.mxu0 0
  %125 = vmatpush1.bf16.msra.mxu0 0
  %126 = vmatprep.subr.bf16.mxu0 0
  %127 = vmatpush1.bf16.msra.mxu0 0
  %128 = vmatprep.subr.bf16.mxu0 0
  %129 = vmatpush1.bf16.msra.mxu0 0
  %130 = vmatprep.subr.bf16.mxu0 0
  %131 = vmatpush1.bf16.msra.mxu0 0
  %132 = vmatprep.subr.bf16.mxu0 0
  %133 = vmatpush1.bf16.msra.mxu0 0
  %134 = vmatprep.subr.bf16.mxu0 0
  %135 = vmatpush1.bf16.msra.mxu0 %v94
  %136 = vmatprep.subr.bf16.mxu0 0
  %137 = vmatpush1.bf16.msra.mxu0 %v93
  %138 = vmatprep.subr.bf16.mxu0 0
  %139 = vmatpush2.bf16.msra.mxu0 0
  %140 = vmatprep.subr.bf16.mxu0 0
  %141 = vmatpush2.bf16.msra.mxu0 0
  %142 = vmatprep.subr.bf16.mxu0 0
  %143 = vmatpush2.bf16.msra.mxu0 0
  %144 = vmatprep.subr.bf16.mxu0 0
  %145 = vmatpush2.bf16.msra.mxu0 0
  %146 = vmatprep.subr.bf16.mxu0 0
  %147 = vmatpush2.bf16.msra.mxu0 0
  %148 = vmatprep.subr.bf16.mxu0 0
  %149 = vmatpush2.bf16.msra.mxu0 0
  %150 = vmatprep.subr.bf16.mxu0 0
  %151 = vmatpush2.bf16.msra.mxu0 0
  %152 = vmatprep.subr.bf16.mxu0 0
  %153 = vmatpush2.bf16.msra.mxu0 0
  %154 = vmatprep.mubr.bf16.mxu0 0
  %155 = vmatmul.mubr.bf16.gmra.mxu0 %v99
  %v156 = vpop.f32.mrf.mxu0
  %v157 = vadd.f32 %v43, %v156
  %v158 = vpop.f32.mrf.mxu0
  %v159 = vpop.f32.mrf.mxu0
  %v160 = vadd.f32 %v43, %v159
  %v161 = vpop.f32.mrf.mxu0
  %162 = vmatprep.mubr.bf16.mxu0 0
  %163 = vmatmul.mubr.bf16.gmra.mxu0 %v102
  %v164 = vpop.f32.mrf.mxu0
  %v165 = vadd.f32 %v43, %v164
  %v166 = vpop.f32.mrf.mxu0
  %v167 = vpop.f32.mrf.mxu0
  %v168 = vadd.f32 %v43, %v167
  %v169 = vpop.f32.mrf.mxu0
  %170 = vmatprep.mubr.bf16.mxu0 0
  %171 = vmatmul.mubr.bf16.gmra.mxu0 %v105
  %v172 = vpop.f32.mrf.mxu0
  %v173 = vadd.f32 %v43, %v172
  %v174 = vpop.f32.mrf.mxu0
  %v175 = vpop.f32.mrf.mxu0
  %v176 = vadd.f32 %v43, %v175
  %v177 = vpop.f32.mrf.mxu0
  %178 = vmatprep.mubr.bf16.mxu0 0
  %179 = vmatmul.mubr.bf16.gmra.mxu0 %v108
  %v180 = vpop.f32.mrf.mxu0
  %v181 = vadd.f32 %v43, %v180
  %v182 = vpop.f32.mrf.mxu0
  %v183 = vpop.f32.mrf.mxu0
  %v184 = vadd.f32 %v43, %v183
  %v185 = vpop.f32.mrf.mxu0
  %186 = vmatprep.mubr.bf16.mxu0 0
  %187 = vmatmul.mubr.bf16.gmra.mxu0 %v111
  %v188 = vpop.f32.mrf.mxu0
  %v189 = vadd.f32 %v43, %v188
  %v190 = vpop.f32.mrf.mxu0
  %v191 = vpop.f32.mrf.mxu0
  %v192 = vadd.f32 %v43, %v191
  %v193 = vpop.f32.mrf.mxu0
  %194 = vmatprep.mubr.bf16.mxu0 0
  %195 = vmatmul.mubr.bf16.gmra.mxu0 %v114
  %v196 = vpop.f32.mrf.mxu0
  %v197 = vadd.f32 %v43, %v196
  %v198 = vpop.f32.mrf.mxu0
  %v199 = vpop.f32.mrf.mxu0
  %v200 = vadd.f32 %v43, %v199
  %v201 = vpop.f32.mrf.mxu0
  %202 = vmatprep.mubr.bf16.mxu0 0
  %203 = vmatmul.mubr.bf16.gmra.mxu0 %v117
  %v204 = vpop.f32.mrf.mxu0
  %v205 = vadd.f32 %v43, %v204
  %v206 = vpop.f32.mrf.mxu0
  %v207 = vpop.f32.mrf.mxu0
  %v208 = vadd.f32 %v43, %v207
  %v209 = vpop.f32.mrf.mxu0
  %210 = vmatprep.mubr.bf16.mxu0 0
  %211 = vmatmul.mubr.bf16.gmra.mxu0 %v120
  %v212 = vpop.f32.mrf.mxu0
  %v213 = vadd.f32 %v43, %v212
  %v214 = vpop.f32.mrf.mxu0
  %v215 = vpop.f32.mrf.mxu0
  %v216 = vadd.f32 %v43, %v215
  %v217 = vpop.f32.mrf.mxu0
  %218 = vdwg.mxu0
  %vm219 = vcmp.ge.f32.partialorder %v157, 0.0
  %vm220 = vcmp.ge.f32.partialorder %v160, 0.0
  %vm221 = vcmp.ge.f32.partialorder %v165, 0.0
  %vm222 = vcmp.ge.f32.partialorder %v168, 0.0
  %vm223 = vcmp.ge.f32.partialorder %v173, 0.0
  %vm224 = vcmp.ge.f32.partialorder %v176, 0.0
  %vm225 = vcmp.ge.f32.partialorder %v181, 0.0
  %vm226 = vcmp.ge.f32.partialorder %v184, 0.0
  %vm227 = vcmp.ge.f32.partialorder %v189, 0.0
  %vm228 = vcmp.ge.f32.partialorder %v192, 0.0
  %vm229 = vcmp.ge.f32.partialorder %v197, 0.0
  %vm230 = vcmp.ge.f32.partialorder %v200, 0.0
  %vm231 = vcmp.ge.f32.partialorder %v205, 0.0
  %vm232 = vcmp.ge.f32.partialorder %v208, 0.0
  %vm233 = vcmp.ge.f32.partialorder %v213, 0.0
  %vm234 = vcmp.ge.f32.partialorder %v216, 0.0
  %v235 = vld [vmem:[%s3] sm:$0x1]
  %v237 = vlaneseq
  %v238 = vshrl.u32 %v237, 7
  %v239 = vsub.s32 0, %v238
  %v240 = vrot.slane %v235, %v239
  %v242 = vmul.f32 %v240, %v157
  %v243 = vmul.f32 %v240, %v160
  %v244 = vmul.f32 %v240, %v165
  %v245 = vmul.f32 %v240, %v168
  %v246 = vmul.f32 %v240, %v173
  %v247 = vmul.f32 %v240, %v176
  %v248 = vmul.f32 %v240, %v181
  %v249 = vmul.f32 %v240, %v184
  %v250 = vmul.f32 %v240, %v189
  %v251 = vmul.f32 %v240, %v192
  %v252 = vmul.f32 %v240, %v197
  %v253 = vmul.f32 %v240, %v200
  %v254 = vmul.f32 %v240, %v205
  %v255 = vmul.f32 %v240, %v208
  %v256 = vmul.f32 %v240, %v213
  %v257 = vmul.f32 %v240, %v216
  %v258 = vsel %vm219, %v157, %v242
  %v259 = vsel %vm220, %v160, %v243
  %v260 = vsel %vm221, %v165, %v244
  %v261 = vsel %vm222, %v168, %v245
  %v262 = vsel %vm223, %v173, %v246
  %v263 = vsel %vm224, %v176, %v247
  %v264 = vsel %vm225, %v181, %v248
  %v265 = vsel %vm226, %v184, %v249
  %v266 = vsel %vm227, %v189, %v250
  %v267 = vsel %vm228, %v192, %v251
  %v268 = vsel %vm229, %v197, %v252
  %v269 = vsel %vm230, %v200, %v253
  %v270 = vsel %vm231, %v205, %v254
  %v271 = vsel %vm232, %v208, %v255
  %v272 = vsel %vm233, %v213, %v256
  %v273 = vsel %vm234, %v216, %v257
  %vm274 = vcmask 31744
  %275 = vst.msk [vmem:[%s4] sm:$0xff] %vm274, %v258
  %276 = vst.msk [vmem:[%s4 + $0x8] sm:$0xff] %vm274, %v259
  %277 = vst.msk [vmem:[%s4 + $0x10] sm:$0xff] %vm274, %v260
  %278 = vst.msk [vmem:[%s4 + $0x18] sm:$0xff] %vm274, %v261
  %279 = vst.msk [vmem:[%s4 + $0x20] sm:$0xff] %vm274, %v262
  %280 = vst.msk [vmem:[%s4 + $0x28] sm:$0xff] %vm274, %v263
  %281 = vst.msk [vmem:[%s4 + $0x30] sm:$0xff] %vm274, %v264
  %282 = vst.msk [vmem:[%s4 + $0x38] sm:$0xff] %vm274, %v265
  %283 = vst.msk [vmem:[%s4 + $0x40] sm:$0xff] %vm274, %v266
  %284 = vst.msk [vmem:[%s4 + $0x48] sm:$0xff] %vm274, %v267
  %285 = vst.msk [vmem:[%s4 + $0x50] sm:$0xff] %vm274, %v268
  %286 = vst.msk [vmem:[%s4 + $0x58] sm:$0xff] %vm274, %v269
  %287 = vst.msk [vmem:[%s4 + $0x60] sm:$0xff] %vm274, %v270
  %288 = vst.msk [vmem:[%s4 + $0x68] sm:$0xff] %vm274, %v271
  %289 = vst.msk [vmem:[%s4 + $0x70] sm:$0xff] %vm274, %v272
  %290 = vst.msk [vmem:[%s4 + $0x78] sm:$0xff] %vm274, %v273
  // Predicated region
  $region18: #{enet_forward.193} parent=0 // pred_check
    _
  $region19: #{enet_forward.193} parent=0 // pred_check_branch
    %292 = sbr.rel (0) target = $region21
  $region20: #{enet_forward.193} parent=0 // pred_region
    _
  $region21: #{enet_forward.193} parent=0 // pred_fallthru
    _
  // Predicated region
  $region22: #{enet_forward.193} parent=0 // pred_check
    _
  $region23: #{enet_forward.193} parent=0 // pred_check_branch
    %294 = sbr.rel (0) target = $region25
  $region24: #{enet_forward.193} parent=0 // pred_region
    _
  $region25: #{enet_forward.193} parent=0 // pred_fallthru
    _

// kernel: enet_forward.195
$region0: #{enet_forward.195}
  #allocation0 [shape = 'u32[]', space=smem, size = 0x4, offset = 0x4, fixed_abs, tag = 'smem constant byte address 0x4 - core index']
  #allocation1 [shape = 'u32[144,128]{1,0:T(1,128)}', space=vmem, size = 0x12000, scoped, tag = 'internal scratch']
  %s0 = inlined_call_operand.vmem [shape: bf16[128,64], index: 0, kind: input, shape index: {}]
  %s1 = inlined_call_operand.vmem [shape: bf16[64,4], index: 1, kind: input, shape index: {}]
  %s2 = inlined_call_operand.vmem [shape: f32[1,4], index: 2, kind: input, shape index: {}]
  %s3 = inlined_call_operand.vmem [shape: f32[1,4], index: 3, kind: input, shape index: {}]
  %s4 = inlined_call_operand.vmem [shape: f32[128,4], index: 4, kind: output, shape index: {}]
  %s5 = sld [smem:[#allocation0]]
  $region26: #{enet_forward.195} parent=0
    _
  %s7 = ssub.s32 1, %s5
  %s8 = scalar_select 0, %s7, %s5
  // Predicated region
  $region2: #{enet_forward.195} parent=0 // pred_check
    _
  $region3: #{enet_forward.195} parent=0 // pred_check_branch
    %10 = sbr.rel (0) target = $region5
  $region4: #{enet_forward.195} parent=0 // pred_region
    _
  $region5: #{enet_forward.195} parent=0 // pred_fallthru
    _
  // Predicated region
  $region6: #{enet_forward.195} parent=0 // pred_check
    _
  $region7: #{enet_forward.195} parent=0 // pred_check_branch
    %12 = sbr.rel (0) target = $region9
  $region8: #{enet_forward.195} parent=0 // pred_region
    _
  $region9: #{enet_forward.195} parent=0 // pred_fallthru
    _
  // Predicated region
  $region10: #{enet_forward.195} parent=0 // pred_check
    _
  $region11: #{enet_forward.195} parent=0 // pred_check_branch
    %14 = sbr.rel (0) target = $region13
  $region12: #{enet_forward.195} parent=0 // pred_region
    _
  $region13: #{enet_forward.195} parent=0 // pred_fallthru
    _
  // Predicated region
  $region14: #{enet_forward.195} parent=0 // pred_check
    _
  $region15: #{enet_forward.195} parent=0 // pred_check_branch
    %16 = sbr.rel (0) target = $region17
  $region16: #{enet_forward.195} parent=0 // pred_region
    _
  $region17: #{enet_forward.195} parent=0 // pred_fallthru
    _
  %v18 = vld [vmem:[%s0] sm:$0xf]
  %v19 = vld [vmem:[%s0 + $0x4] sm:$0xf]
  %v20 = vld [vmem:[%s0 + $0x8] sm:$0xf]
  %v21 = vld [vmem:[%s0 + $0xc] sm:$0xf]
  %v22 = vld [vmem:[%s0 + $0x10] sm:$0xf]
  %v23 = vld [vmem:[%s0 + $0x14] sm:$0xf]
  %v24 = vld [vmem:[%s0 + $0x18] sm:$0xf]
  %v25 = vld [vmem:[%s0 + $0x1c] sm:$0xf]
  %v26 = vld [vmem:[%s0 + $0x20] sm:$0xf]
  %v27 = vld [vmem:[%s0 + $0x24] sm:$0xf]
  %v28 = vld [vmem:[%s0 + $0x28] sm:$0xf]
  %v29 = vld [vmem:[%s0 + $0x2c] sm:$0xf]
  %v30 = vld [vmem:[%s0 + $0x30] sm:$0xf]
  %v31 = vld [vmem:[%s0 + $0x34] sm:$0xf]
  %v32 = vld [vmem:[%s0 + $0x38] sm:$0xf]
  %v33 = vld [vmem:[%s0 + $0x3c] sm:$0xf]
  %v34 = vld [vmem:[%s1] sm:$0xf]
  %v35 = vld [vmem:[%s1 + $0x4] sm:$0xf]
  %v36 = vld [vmem:[%s1 + $0x8] sm:$0xf]
  %v37 = vld [vmem:[%s1 + $0xc] sm:$0xf]
  %v38 = vld [vmem:[%s1 + $0x10] sm:$0xf]
  %v39 = vld [vmem:[%s1 + $0x14] sm:$0xf]
  %v40 = vld [vmem:[%s1 + $0x18] sm:$0xf]
  %v41 = vld [vmem:[%s1 + $0x1c] sm:$0xf]
  %v42 = vld [vmem:[%s2] sm:$0x1]
  %v44 = vlaneseq
  %v45 = vshrl.u32 %v44, 7
  %v46 = vsub.s32 0, %v45
  %v47 = vrot.slane %v42, %v46
  %v65 = vunpack.c.l.b16 %v18
  %v66 = vunpack.c.l.b16 %v19
  %v67 = vunpack.c.l.b16 %v20
  %v68 = vunpack.c.l.b16 %v21
  %v69 = vunpack.c.l.b16 %v22
  %v70 = vunpack.c.l.b16 %v23
  %v71 = vunpack.c.l.b16 %v24
  %v72 = vunpack.c.l.b16 %v25
  %v73 = vunpack.c.l.b16 %v26
  %v74 = vunpack.c.l.b16 %v27
  %v75 = vunpack.c.l.b16 %v28
  %v76 = vunpack.c.l.b16 %v29
  %v77 = vunpack.c.l.b16 %v30
  %v78 = vunpack.c.l.b16 %v31
  %v79 = vunpack.c.l.b16 %v32
  %v80 = vunpack.c.l.b16 %v33
  %v81 = vpack.c.b16 %v66, %v65
  %v82 = vpack.c.b16 %v68, %v67
  %v83 = vpack.c.b16 %v70, %v69
  %v84 = vpack.c.b16 %v72, %v71
  %v85 = vpack.c.b16 %v74, %v73
  %v86 = vpack.c.b16 %v76, %v75
  %v87 = vpack.c.b16 %v78, %v77
  %v88 = vpack.c.b16 %v80, %v79
  %v97 = vunpack.c.l.b16 %v34
  %v98 = vunpack.c.l.b16 %v35
  %v99 = vunpack.c.l.b16 %v36
  %v100 = vunpack.c.l.b16 %v37
  %v101 = vunpack.c.l.b16 %v38
  %v102 = vunpack.c.l.b16 %v39
  %v103 = vunpack.c.l.b16 %v40
  %v104 = vunpack.c.l.b16 %v41
  %v105 = vpack.c.b16 %v98, %v97
  %v106 = vpack.c.b16 %v100, %v99
  %v107 = vpack.c.b16 %v102, %v101
  %v108 = vpack.c.b16 %v104, %v103
  %vm113 = vcmask 523264
  %v115 = vsel %vm113, %v81, 0
  %v118 = vsel %vm113, %v82, 0
  %v121 = vsel %vm113, %v83, 0
  %v124 = vsel %vm113, %v84, 0
  %v127 = vsel %vm113, %v85, 0
  %v130 = vsel %vm113, %v86, 0
  %v133 = vsel %vm113, %v87, 0
  %v136 = vsel %vm113, %v88, 0
  %138 = vmatprep.subr.bf16.mxu0 0
  %139 = vmatpush1.bf16.msra.mxu0 0
  %140 = vmatprep.subr.bf16.mxu0 0
  %141 = vmatpush1.bf16.msra.mxu0 0
  %142 = vmatprep.subr.bf16.mxu0 0
  %143 = vmatpush1.bf16.msra.mxu0 0
  %144 = vmatprep.subr.bf16.mxu0 0
  %145 = vmatpush1.bf16.msra.mxu0 0
  %146 = vmatprep.subr.bf16.mxu0 0
  %147 = vmatpush1.bf16.msra.mxu0 %v108
  %148 = vmatprep.subr.bf16.mxu0 0
  %149 = vmatpush1.bf16.msra.mxu0 %v107
  %150 = vmatprep.subr.bf16.mxu0 0
  %151 = vmatpush1.bf16.msra.mxu0 %v106
  %152 = vmatprep.subr.bf16.mxu0 0
  %153 = vmatpush1.bf16.msra.mxu0 %v105
  %154 = vmatprep.subr.bf16.mxu0 0
  %155 = vmatpush2.bf16.msra.mxu0 0
  %156 = vmatprep.subr.bf16.mxu0 0
  %157 = vmatpush2.bf16.msra.mxu0 0
  %158 = vmatprep.subr.bf16.mxu0 0
  %159 = vmatpush2.bf16.msra.mxu0 0
  %160 = vmatprep.subr.bf16.mxu0 0
  %161 = vmatpush2.bf16.msra.mxu0 0
  %162 = vmatprep.subr.bf16.mxu0 0
  %163 = vmatpush2.bf16.msra.mxu0 0
  %164 = vmatprep.subr.bf16.mxu0 0
  %165 = vmatpush2.bf16.msra.mxu0 0
  %166 = vmatprep.subr.bf16.mxu0 0
  %167 = vmatpush2.bf16.msra.mxu0 0
  %168 = vmatprep.subr.bf16.mxu0 0
  %169 = vmatpush2.bf16.msra.mxu0 0
  %170 = vmatprep.mubr.bf16.mxu0 0
  %171 = vmatmul.mubr.bf16.gmra.mxu0 %v115
  %v172 = vpop.f32.mrf.mxu0
  %v173 = vadd.f32 %v47, %v172
  %v174 = vpop.f32.mrf.mxu0
  %v175 = vpop.f32.mrf.mxu0
  %v176 = vadd.f32 %v47, %v175
  %v177 = vpop.f32.mrf.mxu0
  %178 = vmatprep.mubr.bf16.mxu0 0
  %179 = vmatmul.mubr.bf16.gmra.mxu0 %v118
  %v180 = vpop.f32.mrf.mxu0
  %v181 = vadd.f32 %v47, %v180
  %v182 = vpop.f32.mrf.mxu0
  %v183 = vpop.f32.mrf.mxu0
  %v184 = vadd.f32 %v47, %v183
  %v185 = vpop.f32.mrf.mxu0
  %186 = vmatprep.mubr.bf16.mxu0 0
  %187 = vmatmul.mubr.bf16.gmra.mxu0 %v121
  %v188 = vpop.f32.mrf.mxu0
  %v189 = vadd.f32 %v47, %v188
  %v190 = vpop.f32.mrf.mxu0
  %v191 = vpop.f32.mrf.mxu0
  %v192 = vadd.f32 %v47, %v191
  %v193 = vpop.f32.mrf.mxu0
  %194 = vmatprep.mubr.bf16.mxu0 0
  %195 = vmatmul.mubr.bf16.gmra.mxu0 %v124
  %v196 = vpop.f32.mrf.mxu0
  %v197 = vadd.f32 %v47, %v196
  %v198 = vpop.f32.mrf.mxu0
  %v199 = vpop.f32.mrf.mxu0
  %v200 = vadd.f32 %v47, %v199
  %v201 = vpop.f32.mrf.mxu0
  %202 = vmatprep.mubr.bf16.mxu0 0
  %203 = vmatmul.mubr.bf16.gmra.mxu0 %v127
  %v204 = vpop.f32.mrf.mxu0
  %v205 = vadd.f32 %v47, %v204
  %v206 = vpop.f32.mrf.mxu0
  %v207 = vpop.f32.mrf.mxu0
  %v208 = vadd.f32 %v47, %v207
  %v209 = vpop.f32.mrf.mxu0
  %210 = vmatprep.mubr.bf16.mxu0 0
  %211 = vmatmul.mubr.bf16.gmra.mxu0 %v130
  %v212 = vpop.f32.mrf.mxu0
  %v213 = vadd.f32 %v47, %v212
  %v214 = vpop.f32.mrf.mxu0
  %v215 = vpop.f32.mrf.mxu0
  %v216 = vadd.f32 %v47, %v215
  %v217 = vpop.f32.mrf.mxu0
  %218 = vmatprep.mubr.bf16.mxu0 0
  %219 = vmatmul.mubr.bf16.gmra.mxu0 %v133
  %v220 = vpop.f32.mrf.mxu0
  %v221 = vadd.f32 %v47, %v220
  %v222 = vpop.f32.mrf.mxu0
  %v223 = vpop.f32.mrf.mxu0
  %v224 = vadd.f32 %v47, %v223
  %v225 = vpop.f32.mrf.mxu0
  %226 = vmatprep.mubr.bf16.mxu0 0
  %227 = vmatmul.mubr.bf16.gmra.mxu0 %v136
  %v228 = vpop.f32.mrf.mxu0
  %v229 = vadd.f32 %v47, %v228
  %v230 = vpop.f32.mrf.mxu0
  %v231 = vpop.f32.mrf.mxu0
  %v232 = vadd.f32 %v47, %v231
  %v233 = vpop.f32.mrf.mxu0
  %234 = vdwg.mxu0
  %vm235 = vcmp.ge.f32.partialorder %v173, 0.0
  %vm236 = vcmp.ge.f32.partialorder %v176, 0.0
  %vm237 = vcmp.ge.f32.partialorder %v181, 0.0
  %vm238 = vcmp.ge.f32.partialorder %v184, 0.0
  %vm239 = vcmp.ge.f32.partialorder %v189, 0.0
  %vm240 = vcmp.ge.f32.partialorder %v192, 0.0
  %vm241 = vcmp.ge.f32.partialorder %v197, 0.0
  %vm242 = vcmp.ge.f32.partialorder %v200, 0.0
  %vm243 = vcmp.ge.f32.partialorder %v205, 0.0
  %vm244 = vcmp.ge.f32.partialorder %v208, 0.0
  %vm245 = vcmp.ge.f32.partialorder %v213, 0.0
  %vm246 = vcmp.ge.f32.partialorder %v216, 0.0
  %vm247 = vcmp.ge.f32.partialorder %v221, 0.0
  %vm248 = vcmp.ge.f32.partialorder %v224, 0.0
  %vm249 = vcmp.ge.f32.partialorder %v229, 0.0
  %vm250 = vcmp.ge.f32.partialorder %v232, 0.0
  %v251 = vld [vmem:[%s3] sm:$0x1]
  %v253 = vlaneseq
  %v254 = vshrl.u32 %v253, 7
  %v255 = vsub.s32 0, %v254
  %v256 = vrot.slane %v251, %v255
  %v258 = vmul.f32 %v256, %v173
  %v259 = vmul.f32 %v256, %v176
  %v260 = vmul.f32 %v256, %v181
  %v261 = vmul.f32 %v256, %v184
  %v262 = vmul.f32 %v256, %v189
  %v263 = vmul.f32 %v256, %v192
  %v264 = vmul.f32 %v256, %v197
  %v265 = vmul.f32 %v256, %v200
  %v266 = vmul.f32 %v256, %v205
  %v267 = vmul.f32 %v256, %v208
  %v268 = vmul.f32 %v256, %v213
  %v269 = vmul.f32 %v256, %v216
  %v270 = vmul.f32 %v256, %v221
  %v271 = vmul.f32 %v256, %v224
  %v272 = vmul.f32 %v256, %v229
  %v273 = vmul.f32 %v256, %v232
  %v274 = vsel %vm235, %v173, %v258
  %v275 = vsel %vm236, %v176, %v259
  %v276 = vsel %vm237, %v181, %v260
  %v277 = vsel %vm238, %v184, %v261
  %v278 = vsel %vm239, %v189, %v262
  %v279 = vsel %vm240, %v192, %v263
  %v280 = vsel %vm241, %v197, %v264
  %v281 = vsel %vm242, %v200, %v265
  %v282 = vsel %vm243, %v205, %v266
  %v283 = vsel %vm244, %v208, %v267
  %v284 = vsel %vm245, %v213, %v268
  %v285 = vsel %vm246, %v216, %v269
  %v286 = vsel %vm247, %v221, %v270
  %v287 = vsel %vm248, %v224, %v271
  %v288 = vsel %vm249, %v229, %v272
  %v289 = vsel %vm250, %v232, %v273
  %vm290 = vcmask 31744
  %291 = vst.msk [vmem:[%s4] sm:$0xff] %vm290, %v274
  %292 = vst.msk [vmem:[%s4 + $0x8] sm:$0xff] %vm290, %v275
  %293 = vst.msk [vmem:[%s4 + $0x10] sm:$0xff] %vm290, %v276
  %294 = vst.msk [vmem:[%s4 + $0x18] sm:$0xff] %vm290, %v277
  %295 = vst.msk [vmem:[%s4 + $0x20] sm:$0xff] %vm290, %v278
  %296 = vst.msk [vmem:[%s4 + $0x28] sm:$0xff] %vm290, %v279
  %297 = vst.msk [vmem:[%s4 + $0x30] sm:$0xff] %vm290, %v280
  %298 = vst.msk [vmem:[%s4 + $0x38] sm:$0xff] %vm290, %v281
  %299 = vst.msk [vmem:[%s4 + $0x40] sm:$0xff] %vm290, %v282
  %300 = vst.msk [vmem:[%s4 + $0x48] sm:$0xff] %vm290, %v283
  %301 = vst.msk [vmem:[%s4 + $0x50] sm:$0xff] %vm290, %v284
  %302 = vst.msk [vmem:[%s4 + $0x58] sm:$0xff] %vm290, %v285
  %303 = vst.msk [vmem:[%s4 + $0x60] sm:$0xff] %vm290, %v286
  %304 = vst.msk [vmem:[%s4 + $0x68] sm:$0xff] %vm290, %v287
  %305 = vst.msk [vmem:[%s4 + $0x70] sm:$0xff] %vm290, %v288
  %306 = vst.msk [vmem:[%s4 + $0x78] sm:$0xff] %vm290, %v289
  // Predicated region
  $region18: #{enet_forward.195} parent=0 // pred_check
    _
  $region19: #{enet_forward.195} parent=0 // pred_check_branch
    %308 = sbr.rel (0) target = $region21
  $region20: #{enet_forward.195} parent=0 // pred_region
    _
  $region21: #{enet_forward.195} parent=0 // pred_fallthru
    _
  // Predicated region
  $region22: #{enet_forward.195} parent=0 // pred_check
    _
  $region23: #{enet_forward.195} parent=0 // pred_check_branch
    %310 = sbr.rel (0) target = $region25
  $region24: #{enet_forward.195} parent=0 // pred_region
    _
  $region25: #{enet_forward.195} parent=0 // pred_fallthru
    _

// kernel: enet_forward.192
$region0: #{enet_forward.192}
  #allocation0 [shape = 'u32[]', space=smem, size = 0x4, offset = 0x4, fixed_abs, tag = 'smem constant byte address 0x4 - core index']
  #allocation1 [shape = 'u32[144,128]{1,0:T(1,128)}', space=vmem, size = 0x12000, scoped, tag = 'internal scratch']
  %s0 = inlined_call_operand.vmem [shape: bf16[128,16], index: 0, kind: input, shape index: {}]
  %s1 = inlined_call_operand.vmem [shape: bf16[16,4], index: 1, kind: input, shape index: {}]
  %s2 = inlined_call_operand.vmem [shape: f32[1,4], index: 2, kind: input, shape index: {}]
  %s3 = inlined_call_operand.vmem [shape: f32[1,4], index: 3, kind: input, shape index: {}]
  %s4 = inlined_call_operand.vmem [shape: f32[128,4], index: 4, kind: output, shape index: {}]
  %s5 = sld [smem:[#allocation0]]
  $region26: #{enet_forward.192} parent=0
    _
  %s7 = ssub.s32 1, %s5
  %s8 = scalar_select 0, %s7, %s5
  // Predicated region
  $region2: #{enet_forward.192} parent=0 // pred_check
    _
  $region3: #{enet_forward.192} parent=0 // pred_check_branch
    %10 = sbr.rel (0) target = $region5
  $region4: #{enet_forward.192} parent=0 // pred_region
    _
  $region5: #{enet_forward.192} parent=0 // pred_fallthru
    _
  // Predicated region
  $region6: #{enet_forward.192} parent=0 // pred_check
    _
  $region7: #{enet_forward.192} parent=0 // pred_check_branch
    %12 = sbr.rel (0) target = $region9
  $region8: #{enet_forward.192} parent=0 // pred_region
    _
  $region9: #{enet_forward.192} parent=0 // pred_fallthru
    _
  // Predicated region
  $region10: #{enet_forward.192} parent=0 // pred_check
    _
  $region11: #{enet_forward.192} parent=0 // pred_check_branch
    %14 = sbr.rel (0) target = $region13
  $region12: #{enet_forward.192} parent=0 // pred_region
    _
  $region13: #{enet_forward.192} parent=0 // pred_fallthru
    _
  // Predicated region
  $region14: #{enet_forward.192} parent=0 // pred_check
    _
  $region15: #{enet_forward.192} parent=0 // pred_check_branch
    %16 = sbr.rel (0) target = $region17
  $region16: #{enet_forward.192} parent=0 // pred_region
    _
  $region17: #{enet_forward.192} parent=0 // pred_fallthru
    _
  %v18 = vld [vmem:[%s0] sm:$0xf]
  %v19 = vld [vmem:[%s0 + $0x4] sm:$0xf]
  %v20 = vld [vmem:[%s0 + $0x8] sm:$0xf]
  %v21 = vld [vmem:[%s0 + $0xc] sm:$0xf]
  %v22 = vld [vmem:[%s0 + $0x10] sm:$0xf]
  %v23 = vld [vmem:[%s0 + $0x14] sm:$0xf]
  %v24 = vld [vmem:[%s0 + $0x18] sm:$0xf]
  %v25 = vld [vmem:[%s0 + $0x1c] sm:$0xf]
  %v26 = vld [vmem:[%s0 + $0x20] sm:$0xf]
  %v27 = vld [vmem:[%s0 + $0x24] sm:$0xf]
  %v28 = vld [vmem:[%s0 + $0x28] sm:$0xf]
  %v29 = vld [vmem:[%s0 + $0x2c] sm:$0xf]
  %v30 = vld [vmem:[%s0 + $0x30] sm:$0xf]
  %v31 = vld [vmem:[%s0 + $0x34] sm:$0xf]
  %v32 = vld [vmem:[%s0 + $0x38] sm:$0xf]
  %v33 = vld [vmem:[%s0 + $0x3c] sm:$0xf]
  %v34 = vld [vmem:[%s1] sm:$0xf]
  %v35 = vld [vmem:[%s1 + $0x4] sm:$0xf]
  %v36 = vld [vmem:[%s2] sm:$0x1]
  %v38 = vlaneseq
  %v39 = vshrl.u32 %v38, 7
  %v40 = vsub.s32 0, %v39
  %v41 = vrot.slane %v36, %v40
  %v59 = vunpack.c.l.b16 %v18
  %v60 = vunpack.c.l.b16 %v19
  %v61 = vunpack.c.l.b16 %v20
  %v62 = vunpack.c.l.b16 %v21
  %v63 = vunpack.c.l.b16 %v22
  %v64 = vunpack.c.l.b16 %v23
  %v65 = vunpack.c.l.b16 %v24
  %v66 = vunpack.c.l.b16 %v25
  %v67 = vunpack.c.l.b16 %v26
  %v68 = vunpack.c.l.b16 %v27
  %v69 = vunpack.c.l.b16 %v28
  %v70 = vunpack.c.l.b16 %v29
  %v71 = vunpack.c.l.b16 %v30
  %v72 = vunpack.c.l.b16 %v31
  %v73 = vunpack.c.l.b16 %v32
  %v74 = vunpack.c.l.b16 %v33
  %v75 = vpack.c.b16 %v60, %v59
  %v76 = vpack.c.b16 %v62, %v61
  %v77 = vpack.c.b16 %v64, %v63
  %v78 = vpack.c.b16 %v66, %v65
  %v79 = vpack.c.b16 %v68, %v67
  %v80 = vpack.c.b16 %v70, %v69
  %v81 = vpack.c.b16 %v72, %v71
  %v82 = vpack.c.b16 %v74, %v73
  %v85 = vunpack.c.l.b16 %v34
  %v86 = vunpack.c.l.b16 %v35
  %v87 = vpack.c.b16 %v86, %v85
  %vm89 = vcmask 130048
  %v91 = vsel %vm89, %v75, 0
  %v94 = vsel %vm89, %v76, 0
  %v97 = vsel %vm89, %v77, 0
  %v100 = vsel %vm89, %v78, 0
  %v103 = vsel %vm89, %v79, 0
  %v106 = vsel %vm89, %v80, 0
  %v109 = vsel %vm89, %v81, 0
  %v112 = vsel %vm89, %v82, 0
  %114 = vmatprep.subr.bf16.mxu0 0
  %115 = vmatpush1.bf16.msra.mxu0 0
  %116 = vmatprep.subr.bf16.mxu0 0
  %117 = vmatpush1.bf16.msra.mxu0 0
  %118 = vmatprep.subr.bf16.mxu0 0
  %119 = vmatpush1.bf16.msra.mxu0 0
  %120 = vmatprep.subr.bf16.mxu0 0
  %121 = vmatpush1.bf16.msra.mxu0 0
  %122 = vmatprep.subr.bf16.mxu0 0
  %123 = vmatpush1.bf16.msra.mxu0 0
  %124 = vmatprep.subr.bf16.mxu0 0
  %125 = vmatpush1.bf16.msra.mxu0 0
  %126 = vmatprep.subr.bf16.mxu0 0
  %127 = vmatpush1.bf16.msra.mxu0 0
  %128 = vmatprep.subr.bf16.mxu0 0
  %129 = vmatpush1.bf16.msra.mxu0 %v87
  %130 = vmatprep.subr.bf16.mxu0 0
  %131 = vmatpush2.bf16.msra.mxu0 0
  %132 = vmatprep.subr.bf16.mxu0 0
  %133 = vmatpush2.bf16.msra.mxu0 0
  %134 = vmatprep.subr.bf16.mxu0 0
  %135 = vmatpush2.bf16.msra.mxu0 0
  %136 = vmatprep.subr.bf16.mxu0 0
  %137 = vmatpush2.bf16.msra.mxu0 0
  %138 = vmatprep.subr.bf16.mxu0 0
  %139 = vmatpush2.bf16.msra.mxu0 0
  %140 = vmatprep.subr.bf16.mxu0 0
  %141 = vmatpush2.bf16.msra.mxu0 0
  %142 = vmatprep.subr.bf16.mxu0 0
  %143 = vmatpush2.bf16.msra.mxu0 0
  %144 = vmatprep.subr.bf16.mxu0 0
  %145 = vmatpush2.bf16.msra.mxu0 0
  %146 = vmatprep.mubr.bf16.mxu0 0
  %147 = vmatmul.mubr.bf16.gmra.mxu0 %v91
  %v148 = vpop.f32.mrf.mxu0
  %v149 = vadd.f32 %v41, %v148
  %v150 = vpop.f32.mrf.mxu0
  %v151 = vpop.f32.mrf.mxu0
  %v152 = vadd.f32 %v41, %v151
  %v153 = vpop.f32.mrf.mxu0
  %154 = vmatprep.mubr.bf16.mxu0 0
  %155 = vmatmul.mubr.bf16.gmra.mxu0 %v94
  %v156 = vpop.f32.mrf.mxu0
  %v157 = vadd.f32 %v41, %v156
  %v158 = vpop.f32.mrf.mxu0
  %v159 = vpop.f32.mrf.mxu0
  %v160 = vadd.f32 %v41, %v159
  %v161 = vpop.f32.mrf.mxu0
  %162 = vmatprep.mubr.bf16.mxu0 0
  %163 = vmatmul.mubr.bf16.gmra.mxu0 %v97
  %v164 = vpop.f32.mrf.mxu0
  %v165 = vadd.f32 %v41, %v164
  %v166 = vpop.f32.mrf.mxu0
  %v167 = vpop.f32.mrf.mxu0
  %v168 = vadd.f32 %v41, %v167
  %v169 = vpop.f32.mrf.mxu0
  %170 = vmatprep.mubr.bf16.mxu0 0
  %171 = vmatmul.mubr.bf16.gmra.mxu0 %v100
  %v172 = vpop.f32.mrf.mxu0
  %v173 = vadd.f32 %v41, %v172
  %v174 = vpop.f32.mrf.mxu0
  %v175 = vpop.f32.mrf.mxu0
  %v176 = vadd.f32 %v41, %v175
  %v177 = vpop.f32.mrf.mxu0
  %178 = vmatprep.mubr.bf16.mxu0 0
  %179 = vmatmul.mubr.bf16.gmra.mxu0 %v103
  %v180 = vpop.f32.mrf.mxu0
  %v181 = vadd.f32 %v41, %v180
  %v182 = vpop.f32.mrf.mxu0
  %v183 = vpop.f32.mrf.mxu0
  %v184 = vadd.f32 %v41, %v183
  %v185 = vpop.f32.mrf.mxu0
  %186 = vmatprep.mubr.bf16.mxu0 0
  %187 = vmatmul.mubr.bf16.gmra.mxu0 %v106
  %v188 = vpop.f32.mrf.mxu0
  %v189 = vadd.f32 %v41, %v188
  %v190 = vpop.f32.mrf.mxu0
  %v191 = vpop.f32.mrf.mxu0
  %v192 = vadd.f32 %v41, %v191
  %v193 = vpop.f32.mrf.mxu0
  %194 = vmatprep.mubr.bf16.mxu0 0
  %195 = vmatmul.mubr.bf16.gmra.mxu0 %v109
  %v196 = vpop.f32.mrf.mxu0
  %v197 = vadd.f32 %v41, %v196
  %v198 = vpop.f32.mrf.mxu0
  %v199 = vpop.f32.mrf.mxu0
  %v200 = vadd.f32 %v41, %v199
  %v201 = vpop.f32.mrf.mxu0
  %202 = vmatprep.mubr.bf16.mxu0 0
  %203 = vmatmul.mubr.bf16.gmra.mxu0 %v112
  %v204 = vpop.f32.mrf.mxu0
  %v205 = vadd.f32 %v41, %v204
  %v206 = vpop.f32.mrf.mxu0
  %v207 = vpop.f32.mrf.mxu0
  %v208 = vadd.f32 %v41, %v207
  %v209 = vpop.f32.mrf.mxu0
  %210 = vdwg.mxu0
  %vm211 = vcmp.ge.f32.partialorder %v149, 0.0
  %vm212 = vcmp.ge.f32.partialorder %v152, 0.0
  %vm213 = vcmp.ge.f32.partialorder %v157, 0.0
  %vm214 = vcmp.ge.f32.partialorder %v160, 0.0
  %vm215 = vcmp.ge.f32.partialorder %v165, 0.0
  %vm216 = vcmp.ge.f32.partialorder %v168, 0.0
  %vm217 = vcmp.ge.f32.partialorder %v173, 0.0
  %vm218 = vcmp.ge.f32.partialorder %v176, 0.0
  %vm219 = vcmp.ge.f32.partialorder %v181, 0.0
  %vm220 = vcmp.ge.f32.partialorder %v184, 0.0
  %vm221 = vcmp.ge.f32.partialorder %v189, 0.0
  %vm222 = vcmp.ge.f32.partialorder %v192, 0.0
  %vm223 = vcmp.ge.f32.partialorder %v197, 0.0
  %vm224 = vcmp.ge.f32.partialorder %v200, 0.0
  %vm225 = vcmp.ge.f32.partialorder %v205, 0.0
  %vm226 = vcmp.ge.f32.partialorder %v208, 0.0
  %v227 = vld [vmem:[%s3] sm:$0x1]
  %v229 = vlaneseq
  %v230 = vshrl.u32 %v229, 7
  %v231 = vsub.s32 0, %v230
  %v232 = vrot.slane %v227, %v231
  %v234 = vmul.f32 %v232, %v149
  %v235 = vmul.f32 %v232, %v152
  %v236 = vmul.f32 %v232, %v157
  %v237 = vmul.f32 %v232, %v160
  %v238 = vmul.f32 %v232, %v165
  %v239 = vmul.f32 %v232, %v168
  %v240 = vmul.f32 %v232, %v173
  %v241 = vmul.f32 %v232, %v176
  %v242 = vmul.f32 %v232, %v181
  %v243 = vmul.f32 %v232, %v184
  %v244 = vmul.f32 %v232, %v189
  %v245 = vmul.f32 %v232, %v192
  %v246 = vmul.f32 %v232, %v197
  %v247 = vmul.f32 %v232, %v200
  %v248 = vmul.f32 %v232, %v205
  %v249 = vmul.f32 %v232, %v208
  %v250 = vsel %vm211, %v149, %v234
  %v251 = vsel %vm212, %v152, %v235
  %v252 = vsel %vm213, %v157, %v236
  %v253 = vsel %vm214, %v160, %v237
  %v254 = vsel %vm215, %v165, %v238
  %v255 = vsel %vm216, %v168, %v239
  %v256 = vsel %vm217, %v173, %v240
  %v257 = vsel %vm218, %v176, %v241
  %v258 = vsel %vm219, %v181, %v242
  %v259 = vsel %vm220, %v184, %v243
  %v260 = vsel %vm221, %v189, %v244
  %v261 = vsel %vm222, %v192, %v245
  %v262 = vsel %vm223, %v197, %v246
  %v263 = vsel %vm224, %v200, %v247
  %v264 = vsel %vm225, %v205, %v248
  %v265 = vsel %vm226, %v208, %v249
  %vm266 = vcmask 31744
  %267 = vst.msk [vmem:[%s4] sm:$0xff] %vm266, %v250
  %268 = vst.msk [vmem:[%s4 + $0x8] sm:$0xff] %vm266, %v251
  %269 = vst.msk [vmem:[%s4 + $0x10] sm:$0xff] %vm266, %v252
  %270 = vst.msk [vmem:[%s4 + $0x18] sm:$0xff] %vm266, %v253
  %271 = vst.msk [vmem:[%s4 + $0x20] sm:$0xff] %vm266, %v254
  %272 = vst.msk [vmem:[%s4 + $0x28] sm:$0xff] %vm266, %v255
  %273 = vst.msk [vmem:[%s4 + $0x30] sm:$0xff] %vm266, %v256
  %274 = vst.msk [vmem:[%s4 + $0x38] sm:$0xff] %vm266, %v257
  %275 = vst.msk [vmem:[%s4 + $0x40] sm:$0xff] %vm266, %v258
  %276 = vst.msk [vmem:[%s4 + $0x48] sm:$0xff] %vm266, %v259
  %277 = vst.msk [vmem:[%s4 + $0x50] sm:$0xff] %vm266, %v260
  %278 = vst.msk [vmem:[%s4 + $0x58] sm:$0xff] %vm266, %v261
  %279 = vst.msk [vmem:[%s4 + $0x60] sm:$0xff] %vm266, %v262
  %280 = vst.msk [vmem:[%s4 + $0x68] sm:$0xff] %vm266, %v263
  %281 = vst.msk [vmem:[%s4 + $0x70] sm:$0xff] %vm266, %v264
  %282 = vst.msk [vmem:[%s4 + $0x78] sm:$0xff] %vm266, %v265
  // Predicated region
  $region18: #{enet_forward.192} parent=0 // pred_check
    _
  $region19: #{enet_forward.192} parent=0 // pred_check_branch
    %284 = sbr.rel (0) target = $region21
  $region20: #{enet_forward.192} parent=0 // pred_region
    _
  $region21: #{enet_forward.192} parent=0 // pred_fallthru
    _
  // Predicated region
  $region22: #{enet_forward.192} parent=0 // pred_check
    _
  $region23: #{enet_forward.192} parent=0 // pred_check_branch
    %286 = sbr.rel (0) target = $region25
  $region24: #{enet_forward.192} parent=0 // pred_region
    _
  $region25: #{enet_forward.192} parent=0 // pred_fallthru
    _

</llo_original>
